<compile_context>
chip_gen: v5e
topology: v5e:2x2
jax: 0.10.0
libtpu: 0.0.40
codegen_flags: <defaults>
</compile_context>

<pallas_src>
import numpy as np
import jax
import jax.numpy as jnp
from jax import lax
from jax.experimental import pallas as pl
from jax.experimental.pallas import tpu as pltpu

# ---------------- architecture constants (from the PyTorch module) -----------
H_EEG   = 63    # EEG channel axis ("H" of NCHW); fixed by Conv2d(40,40,(63,1))
C1      = 40    # conv1 output channels
K1      = 25    # conv1 temporal kernel (1, 25)
POOL_K  = 51    # AvgPool2d (1, 51)
POOL_S  = 5     # AvgPool2d stride (1, 5)
EMB     = 40    # projection emb_size
BN_EPS  = 1e-5

KC = K1 + POOL_K - 1          # 75 taps of the fused conv1(+)avg-pool linear map

MAX_LANES = 512               # cap on the per-step matmul N (VMEM-safe everywhere)


# --------------------------------- kernel ------------------------------------
def _make_kernel(NP):
    def kernel(cols_ref, wc_ref, b1_ref, w2_ref, b2_ref, wp_ref, bp_ref, out_ref):
        cols = cols_ref[0]                                   # (KC, 63*NP) bf16

        # --- fused Conv2d(1,40,(1,25)) + AvgPool2d((1,51),(1,5)) + BN1 -------
        y1 = jnp.dot(wc_ref[...], cols,
                     preferred_element_type=jnp.float32) + b1_ref[...]  # (40, 63*NP)
        # ELU (max form: exp rides the EUP slot, single VALU max)
        a = jnp.maximum(y1, jnp.exp(jnp.minimum(y1, 0.0)) - 1.0)

        # --- Conv2d(40,40,(63,1)) + BN2 as one (40,2520)x(2520,NP) matmul ----
        a = a.reshape(C1 * H_EEG, NP).astype(jnp.bfloat16)   # tile-aligned retile
        y2 = jnp.dot(w2_ref[...], a,
                     preferred_element_type=jnp.float32) + b2_ref[...]  # (40, NP)
        y2 = jnp.maximum(y2, jnp.exp(jnp.minimum(y2, 0.0)) - 1.0)
        # Dropout(0.5): identity in eval mode

        # --- projection Conv2d(40, EMB, (1,1)) -------------------------------
        y3 = jnp.dot(wp_ref[...], y2.astype(jnp.bfloat16),
                     preferred_element_type=jnp.float32) + bp_ref[...]  # (EMB, NP)

        # single lane-dense, unmasked store
        out_ref[0] = y3.astype(out_ref.dtype)

    return kernel


# --------------------------------- wrapper -----------------------------------
def _choose_block_b(B, WP):
    """Pick samples-per-step BB minimizing total padded lanes (128-aligned N)."""
    if B <= 1:
        return 1
    max_bb = max(1, min(B, MAX_LANES // max(WP, 1)))
    best_bb, best_cost = 1, None
    for bb in range(1, max_bb + 1):
        n = bb * WP
        np_lanes = -(-n // 128) * 128
        g = -(-B // bb)
        cost = g * np_lanes                    # total lanes processed (compute proxy)
        if best_cost is None or cost < best_cost or \
           (cost == best_cost and bb > best_bb):
            best_cost, best_bb = cost, bb
    return best_bb


def patch_embedding_pallas(x, kparams, block_b=None):
    """x: (B, 63, T) float32 -> (B, WP, EMB) float32."""
    B, H, T = x.shape
    assert H == H_EEG and T >= KC
    W1 = T - K1 + 1
    WP = (W1 - POOL_K) // POOL_S + 1

    BB = _choose_block_b(B, WP) if block_b is None else block_b
    G = -(-B // BB)                     # grid steps
    Bp = G * BB
    N = BB * WP                         # real matmul N per step
    NP = -(-N // 128) * 128             # lane-padded N (multiple of 128)

    wc, b1, w2, b2, wpj, bp = kparams

    # -- wrapper-side layout plumbing (XLA): pad batch + im2col + lane pad ----
    xb = x
    if Bp > B:
        xb = jnp.pad(xb, ((0, Bp - B), (0, 0), (0, 0)))

    # cols[g, m, h*NP + (bb*WP + j)] = x[g*BB+bb, h, 5*j + m]
    idx = POOL_S * jnp.arange(WP)[:, None] + jnp.arange(KC)[None, :]   # (WP, KC)
    xw = jnp.take(xb, idx, axis=2)                    # (Bp, 63, WP, KC)
    xw = xw.reshape(G, BB, H_EEG, WP, KC)
    xw = jnp.transpose(xw, (0, 4, 2, 1, 3))           # (G, KC, 63, BB, WP)
    xw = xw.reshape(G, KC, H_EEG, N)
    if NP > N:
        xw = jnp.pad(xw, ((0, 0), (0, 0), (0, 0), (0, NP - N)))
    cols = xw.reshape(G, KC, H_EEG * NP).astype(jnp.bfloat16)

    kernel = _make_kernel(NP)
    HNP = H_EEG * NP
    full2 = lambda g: (0, 0)
    in_specs = [
        pl.BlockSpec((1, KC, HNP), lambda g: (g, 0, 0)),   # im2col slab (bf16)
        pl.BlockSpec((C1, KC), full2),                     # fused conv+pool+BN1 weight
        pl.BlockSpec((C1, 1), full2),                      # fused bias (BN1 folded)
        pl.BlockSpec((C1, C1 * H_EEG), full2),             # conv2 weight (BN2 folded)
        pl.BlockSpec((C1, 1), full2),                      # conv2 bias (BN2 folded)
        pl.BlockSpec((EMB, C1), full2),                    # projection weight
        pl.BlockSpec((EMB, 1), full2),                     # projection bias
    ]
    out_spec = pl.BlockSpec((1, EMB, NP), lambda g: (g, 0, 0))

    flops = 2 * G * NP * (C1 * KC * H_EEG + C1 * C1 * H_EEG + EMB * C1)
    transc = G * NP * (C1 * H_EEG + C1)
    bytes_acc = int(cols.size * 2 + G * EMB * NP * 4
                    + G * (wc.size + w2.size + wpj.size) * 2)

    out = pl.pallas_call(
        kernel,
        out_shape=jax.ShapeDtypeStruct((G, EMB, NP), jnp.float32),
        grid_spec=pltpu.PrefetchScalarGridSpec(
            num_scalar_prefetch=0,
            grid=(G,),
            in_specs=in_specs,
            out_specs=out_spec,
        ),
        compiler_params=pltpu.CompilerParams(
            dimension_semantics=("parallel",),
            vmem_limit_bytes=32 * 1024 * 1024),
        cost_estimate=pl.CostEstimate(
            flops=flops, transcendentals=transc, bytes_accessed=bytes_acc),
    )(cols, wc, b1, w2, b2, wpj, bp)

    # unpad / split / transpose in XLA (layout plumbing)
    out = out[:, :, :N].reshape(G, EMB, BB, WP)
    out = jnp.transpose(out, (0, 2, 3, 1)).reshape(Bp, WP, EMB)
    return out[:B]


# ---------------------- deterministic parameter construction -----------------
def init_params(key):
    ks = jax.random.split(key, 12)
    u = lambda k, shape, bound: jax.random.uniform(k, shape, jnp.float32, -bound, bound)

    w1_4d = u(ks[0], (C1, 1, 1, K1), 1.0 / np.sqrt(K1))
    b1 = u(ks[1], (C1,), 1.0 / np.sqrt(K1))
    w2_4d = u(ks[2], (C1, C1, H_EEG, 1), 1.0 / np.sqrt(C1 * H_EEG))
    b2 = u(ks[3], (C1,), 1.0 / np.sqrt(C1 * H_EEG))
    wp_4d = u(ks[4], (EMB, C1, 1, 1), 1.0 / np.sqrt(C1))
    bp = u(ks[5], (EMB,), 1.0 / np.sqrt(C1))

    def bn(k1, k2, k3):
        gamma = 1.0 + 0.5 * jax.random.uniform(k1, (C1,), jnp.float32, -1.0, 1.0)
        beta = 0.1 * jax.random.uniform(k2, (C1,), jnp.float32, -1.0, 1.0)
        rmean = 0.1 * jax.random.uniform(k3, (C1,), jnp.float32, -1.0, 1.0)
        rvar = 1.0 + 0.5 * jax.random.uniform(k3, (C1,), jnp.float32, 0.0, 1.0)
        scale = gamma / jnp.sqrt(rvar + BN_EPS)
        shift = beta - rmean * scale
        return scale, shift

    s1c, t1c = bn(ks[6], ks[7], ks[8])
    s2c, t2c = bn(ks[9], ks[10], ks[11])

    return dict(w1_4d=w1_4d, b1=b1, w2_4d=w2_4d, b2=b2, wp_4d=wp_4d, bp=bp,
                s1c=s1c, t1c=t1c, s2c=s2c, t2c=t2c)


def pack_params_for_kernel(p):
    """Fold conv1+avg-pool into a (40,75) weight, fold BN1/BN2 (in f32), cast bf16."""
    w1 = p["w1_4d"].reshape(C1, K1)
    # w_comb[o, m] = (1/51) * sum_{k=max(0, m-50)}^{min(24, m)} w1[o, k]
    csum = jnp.concatenate([jnp.zeros((C1, 1), jnp.float32),
                            jnp.cumsum(w1, axis=1)], axis=1)           # (40, 26)
    m = jnp.arange(KC)
    lo = jnp.maximum(0, m - (POOL_K - 1))
    hi = jnp.minimum(K1 - 1, m)
    w_comb = (csum[:, hi + 1] - csum[:, lo]) / POOL_K                  # (40, 75)

    s1, t1 = p["s1c"], p["t1c"]
    s2, t2 = p["s2c"], p["t2c"]

    wc = (s1[:, None] * w_comb).astype(jnp.bfloat16)                   # BN1 folded
    b1 = (s1 * p["b1"] + t1).reshape(C1, 1)

    w2m = p["w2_4d"].reshape(C1, C1 * H_EEG)                           # cols (o, h)
    w2 = (s2[:, None] * w2m).astype(jnp.bfloat16)                      # BN2 folded
    b2 = (s2 * p["b2"] + t2).reshape(C1, 1)

    wpj = p["wp_4d"].reshape(EMB, C1).astype(jnp.bfloat16)
    bp = p["bp"].reshape(EMB, 1)
    return (wc, b1, w2, b2, wpj, bp)


# ---------------------- pure-JAX reference (for validation) ------------------
def reference(x, p):
    xb = x[:, None, :, :]                                              # (B,1,63,T)
    dn = ("NCHW", "OIHW", "NCHW")
    y = lax.conv_general_dilated(xb, p["w1_4d"], (1, 1), "VALID",
                                 dimension_numbers=dn)
    y = y + p["b1"].reshape(1, C1, 1, 1)
    y = lax.reduce_window(y, 0.0, lax.add, (1, 1, 1, POOL_K),
                          (1, 1, 1, POOL_S), "VALID") / POOL_K
    y = y * p["s1c"].reshape(1, C1, 1, 1) + p["t1c"].reshape(1, C1, 1, 1)
    y = jnp.where(y > 0, y, jnp.exp(jnp.minimum(y, 0.0)) - 1.0)
    y = lax.conv_general_dilated(y, p["w2_4d"], (1, 1), "VALID",
                                 dimension_numbers=dn)
    y = y + p["b2"].reshape(1, C1, 1, 1)
    y = y * p["s2c"].reshape(1, C1, 1, 1) + p["t2c"].reshape(1, C1, 1, 1)
    y = jnp.where(y > 0, y, jnp.exp(jnp.minimum(y, 0.0)) - 1.0)
    y = lax.conv_general_dilated(y, p["wp_4d"], (1, 1), "VALID",
                                 dimension_numbers=dn)
    y = y + p["bp"].reshape(1, EMB, 1, 1)
    return jnp.transpose(y[:, :, 0, :], (0, 2, 1))                     # (B, WP, EMB)


if __name__ == "__main__":
    B, T = 2, 100                        # small but architecture-consistent (T >= 75)
    key = jax.random.PRNGKey(0)
    kx, kp = jax.random.split(key)
    x = jax.random.normal(kx, (B, H_EEG, T), jnp.float32)

    p = init_params(kp)
    kparams = pack_params_for_kernel(p)

    fn = jax.jit(lambda xx: patch_embedding_pallas(xx, kparams))
    out = jax.block_until_ready(fn(x))

    W1 = T - K1 + 1
    WP = (W1 - POOL_K) // POOL_S + 1
    assert out.shape == (B, WP, EMB), out.shape
    assert bool(jnp.all(jnp.isfinite(out)))

    ref = jax.block_until_ready(reference(x, p))
    np.testing.assert_allclose(np.asarray(out), np.asarray(ref), rtol=2e-2, atol=2e-2)

    print("KERNEL_OK")
</pallas_src>

<mosaic_0001>
module attributes {stable_mosaic.version = 11 : i64} {
  func.func @kernel(%arg0: i32, %arg1: memref<1x75x8064xbf16, #tpu.memory_space<vmem>>, %arg2: memref<40x75xbf16, #tpu.memory_space<vmem>>, %arg3: memref<40x1xf32, #tpu.memory_space<vmem>>, %arg4: memref<40x2520xbf16, #tpu.memory_space<vmem>>, %arg5: memref<40x1xf32, #tpu.memory_space<vmem>>, %arg6: memref<40x40xbf16, #tpu.memory_space<vmem>>, %arg7: memref<40x1xf32, #tpu.memory_space<vmem>>, %arg8: memref<1x40x128xf32, #tpu.memory_space<vmem>>) attributes {dimension_semantics = [#tpu.dimension_semantics<parallel>], iteration_bounds = array<i64: 1>, scalar_prefetch = 0 : i64, scratch_operands = 0 : i64, tpu.core_type = #tpu.core_type<tc>, window_params = [{transform_indices = @transform_0, window_bounds = array<i64: 1, 75, 8064>}, {pipeline_mode = #tpu.pipeline_mode<synchronous>, transform_indices = @transform_1, window_bounds = array<i64: 40, 75>}, {pipeline_mode = #tpu.pipeline_mode<synchronous>, transform_indices = @transform_2, window_bounds = array<i64: 40, 1>}, {pipeline_mode = #tpu.pipeline_mode<synchronous>, transform_indices = @transform_3, window_bounds = array<i64: 40, 2520>}, {pipeline_mode = #tpu.pipeline_mode<synchronous>, transform_indices = @transform_4, window_bounds = array<i64: 40, 1>}, {pipeline_mode = #tpu.pipeline_mode<synchronous>, transform_indices = @transform_5, window_bounds = array<i64: 40, 40>}, {pipeline_mode = #tpu.pipeline_mode<synchronous>, transform_indices = @transform_6, window_bounds = array<i64: 40, 1>}, {transform_indices = @transform_7, window_bounds = array<i64: 1, 40, 128>}]} {
    %c0 = arith.constant 0 : index
    %c0_0 = arith.constant 0 : index
    %c0_1 = arith.constant 0 : index
    %0 = vector.load %arg1[%c0, %c0_0, %c0_1] : memref<1x75x8064xbf16, #tpu.memory_space<vmem>>, vector<1x75x8064xbf16>
    %1 = vector.shape_cast %0 : vector<1x75x8064xbf16> to vector<75x8064xbf16>
    %c0_2 = arith.constant 0 : index
    %c0_3 = arith.constant 0 : index
    %2 = vector.load %arg2[%c0_2, %c0_3] : memref<40x75xbf16, #tpu.memory_space<vmem>>, vector<40x75xbf16>
    %cst = arith.constant dense<0.000000e+00> : vector<40x8064xf32>
    %3 = tpu.matmul %2, %1, %cst {dimension_numbers = #tpu.dot_dimension_numbers<[1], [0], [0], [1], [0, 0, 1, 1], [], []>} : vector<40x75xbf16>, vector<75x8064xbf16>, vector<40x8064xf32> -> vector<40x8064xf32>
    %c0_4 = arith.constant 0 : index
    %c0_5 = arith.constant 0 : index
    %4 = vector.load %arg3[%c0_4, %c0_5] : memref<40x1xf32, #tpu.memory_space<vmem>>, vector<40x1xf32>
    %5 = vector.broadcast %4 : vector<40x1xf32> to vector<40x8064xf32>
    %6 = arith.addf %3, %5 : vector<40x8064xf32>
    %cst_6 = arith.constant 0.000000e+00 : f32
    %7 = vector.broadcast %cst_6 : f32 to vector<40x8064xf32>
    %8 = arith.minimumf %6, %7 : vector<40x8064xf32>
    %9 = math.exp %8 : vector<40x8064xf32>
    %cst_7 = arith.constant 1.000000e+00 : f32
    %10 = vector.broadcast %cst_7 : f32 to vector<40x8064xf32>
    %11 = arith.subf %9, %10 : vector<40x8064xf32>
    %12 = arith.maximumf %6, %11 : vector<40x8064xf32>
    %13 = vector.shape_cast %12 : vector<40x8064xf32> to vector<2520x128xf32>
    %14 = arith.truncf %13 : vector<2520x128xf32> to vector<2520x128xbf16>
    %c0_8 = arith.constant 0 : index
    %c0_9 = arith.constant 0 : index
    %15 = vector.load %arg4[%c0_8, %c0_9] : memref<40x2520xbf16, #tpu.memory_space<vmem>>, vector<40x2520xbf16>
    %cst_10 = arith.constant dense<0.000000e+00> : vector<40x128xf32>
    %16 = tpu.matmul %15, %14, %cst_10 {dimension_numbers = #tpu.dot_dimension_numbers<[1], [0], [0], [1], [0, 0, 1, 1], [], []>} : vector<40x2520xbf16>, vector<2520x128xbf16>, vector<40x128xf32> -> vector<40x128xf32>
    %c0_11 = arith.constant 0 : index
    %c0_12 = arith.constant 0 : index
    %17 = vector.load %arg5[%c0_11, %c0_12] : memref<40x1xf32, #tpu.memory_space<vmem>>, vector<40x1xf32>
    %18 = vector.broadcast %17 : vector<40x1xf32> to vector<40x128xf32>
    %19 = arith.addf %16, %18 : vector<40x128xf32>
    %cst_13 = arith.constant 0.000000e+00 : f32
    %20 = vector.broadcast %cst_13 : f32 to vector<40x128xf32>
    %21 = arith.minimumf %19, %20 : vector<40x128xf32>
    %22 = math.exp %21 : vector<40x128xf32>
    %cst_14 = arith.constant 1.000000e+00 : f32
    %23 = vector.broadcast %cst_14 : f32 to vector<40x128xf32>
    %24 = arith.subf %22, %23 : vector<40x128xf32>
    %25 = arith.maximumf %19, %24 : vector<40x128xf32>
    %c0_15 = arith.constant 0 : index
    %c0_16 = arith.constant 0 : index
    %26 = vector.load %arg6[%c0_15, %c0_16] : memref<40x40xbf16, #tpu.memory_space<vmem>>, vector<40x40xbf16>
    %27 = arith.truncf %25 : vector<40x128xf32> to vector<40x128xbf16>
    %cst_17 = arith.constant dense<0.000000e+00> : vector<40x128xf32>
    %28 = tpu.matmul %26, %27, %cst_17 {dimension_numbers = #tpu.dot_dimension_numbers<[1], [0], [0], [1], [0, 0, 1, 1], [], []>} : vector<40x40xbf16>, vector<40x128xbf16>, vector<40x128xf32> -> vector<40x128xf32>
    %c0_18 = arith.constant 0 : index
    %c0_19 = arith.constant 0 : index
    %29 = vector.load %arg7[%c0_18, %c0_19] : memref<40x1xf32, #tpu.memory_space<vmem>>, vector<40x1xf32>
    %30 = vector.broadcast %29 : vector<40x1xf32> to vector<40x128xf32>
    %31 = arith.addf %28, %30 : vector<40x128xf32>
    %c0_20 = arith.constant 0 : index
    %c0_21 = arith.constant 0 : index
    %c0_22 = arith.constant 0 : index
    %32 = vector.load %arg8[%c0_20, %c0_21, %c0_22] : memref<1x40x128xf32, #tpu.memory_space<vmem>>, vector<1x40x128xf32>
    %33 = vector.shape_cast %32 : vector<1x40x128xf32> to vector<40x128xf32>
    %34 = vector.shape_cast %31 : vector<40x128xf32> to vector<1x40x128xf32>
    tpu.vector_store %arg8[%c0_20, %c0_21, %c0_22], %34 {strides = array<i32>} : memref<1x40x128xf32, #tpu.memory_space<vmem>>, vector<1x40x128xf32>,
    return
  }
  func.func @transform_0(%arg0: i32) -> (i32, i32, i32) {
    %c0_i32 = arith.constant 0 : i32
    %c0_i32_0 = arith.constant 0 : i32
    %c0_i32_1 = arith.constant 0 : i32
    return %arg0, %c0_i32, %c0_i32_0 : i32, i32, i32
  }
  func.func @transform_1(%arg0: i32) -> (i32, i32) {
    %c0_i32 = arith.constant 0 : i32
    %c0_i32_0 = arith.constant 0 : i32
    %c0_i32_1 = arith.constant 0 : i32
    return %c0_i32, %c0_i32_0 : i32, i32
  }
  func.func @transform_2(%arg0: i32) -> (i32, i32) {
    %c0_i32 = arith.constant 0 : i32
    %c0_i32_0 = arith.constant 0 : i32
    %c0_i32_1 = arith.constant 0 : i32
    return %c0_i32, %c0_i32_0 : i32, i32
  }
  func.func @transform_3(%arg0: i32) -> (i32, i32) {
    %c0_i32 = arith.constant 0 : i32
    %c0_i32_0 = arith.constant 0 : i32
    %c0_i32_1 = arith.constant 0 : i32
    return %c0_i32, %c0_i32_0 : i32, i32
  }
  func.func @transform_4(%arg0: i32) -> (i32, i32) {
    %c0_i32 = arith.constant 0 : i32
    %c0_i32_0 = arith.constant 0 : i32
    %c0_i32_1 = arith.constant 0 : i32
    return %c0_i32, %c0_i32_0 : i32, i32
  }
  func.func @transform_5(%arg0: i32) -> (i32, i32) {
    %c0_i32 = arith.constant 0 : i32
    %c0_i32_0 = arith.constant 0 : i32
    %c0_i32_1 = arith.constant 0 : i32
    return %c0_i32, %c0_i32_0 : i32, i32
  }
  func.func @transform_6(%arg0: i32) -> (i32, i32) {
    %c0_i32 = arith.constant 0 : i32
    %c0_i32_0 = arith.constant 0 : i32
    %c0_i32_1 = arith.constant 0 : i32
    return %c0_i32, %c0_i32_0 : i32, i32
  }
  func.func @transform_7(%arg0: i32) -> (i32, i32, i32) {
    %c0_i32 = arith.constant 0 : i32
    %c0_i32_0 = arith.constant 0 : i32
    %c0_i32_1 = arith.constant 0 : i32
    return %arg0, %c0_i32, %c0_i32_0 : i32, i32, i32
  }
}

</mosaic_0001>

<llo_original>
// kernel: _lambda_.1
$region0: #{_lambda_.1}
  #allocation0 [shape = 'u32[]', space=smem, size = 0x4, offset = 0x4, fixed_abs, tag = 'smem constant byte address 0x4 - core index']
  #allocation1 [shape = 'u32[72,128]{1,0:T(1,128)}', space=vmem, size = 0x9000, scoped, tag = 'internal scratch']
  %s0 = inlined_call_operand.vmem [shape: bf16[1,75,8064], index: 0, kind: input, shape index: {}]
  %s1 = inlined_call_operand.vmem [shape: bf16[40,75], index: 1, kind: input, shape index: {}]
  %s2 = inlined_call_operand.vmem [shape: f32[40,1], index: 2, kind: input, shape index: {}]
  %s3 = inlined_call_operand.vmem [shape: bf16[40,2520], index: 3, kind: input, shape index: {}]
  %s4 = inlined_call_operand.vmem [shape: f32[40,1], index: 4, kind: input, shape index: {}]
  %s5 = inlined_call_operand.vmem [shape: bf16[40,40], index: 5, kind: input, shape index: {}]
  %s6 = inlined_call_operand.vmem [shape: f32[40,1], index: 6, kind: input, shape index: {}]
  %s7 = inlined_call_operand.vmem [shape: f32[1,40,128], index: 7, kind: output, shape index: {}]
  %s8 = sld [smem:[#allocation0]]
  $region38: #{_lambda_.1} parent=0
    _
  %s10 = ssub.s32 1, %s8
  %s11 = scalar_select 0, %s10, %s8
  // Predicated region
  $region2: #{_lambda_.1} parent=0 // pred_check
    _
  $region3: #{_lambda_.1} parent=0 // pred_check_branch
    %13 = sbr.rel (0) target = $region5
  $region4: #{_lambda_.1} parent=0 // pred_region
    _
  $region5: #{_lambda_.1} parent=0 // pred_fallthru
    _
  // Predicated region
  $region6: #{_lambda_.1} parent=0 // pred_check
    _
  $region7: #{_lambda_.1} parent=0 // pred_check_branch
    %15 = sbr.rel (0) target = $region9
  $region8: #{_lambda_.1} parent=0 // pred_region
    _
  $region9: #{_lambda_.1} parent=0 // pred_fallthru
    _
  // Predicated region
  $region10: #{_lambda_.1} parent=0 // pred_check
    _
  $region11: #{_lambda_.1} parent=0 // pred_check_branch
    %17 = sbr.rel (0) target = $region13
  $region12: #{_lambda_.1} parent=0 // pred_region
    _
  $region13: #{_lambda_.1} parent=0 // pred_fallthru
    _
  // Predicated region
  $region14: #{_lambda_.1} parent=0 // pred_check
    _
  $region15: #{_lambda_.1} parent=0 // pred_check_branch
    %19 = sbr.rel (0) target = $region17
  $region16: #{_lambda_.1} parent=0 // pred_region
    _
  $region17: #{_lambda_.1} parent=0 // pred_fallthru
    _
  // Predicated region
  $region18: #{_lambda_.1} parent=0 // pred_check
    _
  $region19: #{_lambda_.1} parent=0 // pred_check_branch
    %21 = sbr.rel (0) target = $region21
  $region20: #{_lambda_.1} parent=0 // pred_region
    _
  $region21: #{_lambda_.1} parent=0 // pred_fallthru
    _
  // Predicated region
  $region22: #{_lambda_.1} parent=0 // pred_check
    _
  $region23: #{_lambda_.1} parent=0 // pred_check_branch
    %23 = sbr.rel (0) target = $region25
  $region24: #{_lambda_.1} parent=0 // pred_region
    _
  $region25: #{_lambda_.1} parent=0 // pred_fallthru
    _
  // Predicated region
  $region26: #{_lambda_.1} parent=0 // pred_check
    _
  $region27: #{_lambda_.1} parent=0 // pred_check_branch
    %25 = sbr.rel (0) target = $region29
  $region28: #{_lambda_.1} parent=0 // pred_region
    _
  $region29: #{_lambda_.1} parent=0 // pred_fallthru
    _
  %v27 = vld [vmem:[%s0] sm:$0xff]
  %v28 = vld [vmem:[%s0 + $0x8] sm:$0xff]
  %v29 = vld [vmem:[%s0 + $0x10] sm:$0xff]
  %v30 = vld [vmem:[%s0 + $0x18] sm:$0xff]
  %v31 = vld [vmem:[%s0 + $0x20] sm:$0xff]
  %v32 = vld [vmem:[%s0 + $0x28] sm:$0xff]
  %v33 = vld [vmem:[%s0 + $0x30] sm:$0xff]
  %v34 = vld [vmem:[%s0 + $0x38] sm:$0xff]
  %v35 = vld [vmem:[%s0 + $0x40] sm:$0xff]
  %v36 = vld [vmem:[%s0 + $0x48] sm:$0xff]
  %v37 = vld [vmem:[%s0 + $0x50] sm:$0xff]
  %v38 = vld [vmem:[%s0 + $0x58] sm:$0xff]
  %v39 = vld [vmem:[%s0 + $0x60] sm:$0xff]
  %v40 = vld [vmem:[%s0 + $0x68] sm:$0xff]
  %v41 = vld [vmem:[%s0 + $0x70] sm:$0xff]
  %v42 = vld [vmem:[%s0 + $0x78] sm:$0xff]
  %v43 = vld [vmem:[%s0 + $0x80] sm:$0xff]
  %v44 = vld [vmem:[%s0 + $0x88] sm:$0xff]
  %v45 = vld [vmem:[%s0 + $0x90] sm:$0xff]
  %v46 = vld [vmem:[%s0 + $0x98] sm:$0xff]
  %v47 = vld [vmem:[%s0 + $0xa0] sm:$0xff]
  %v48 = vld [vmem:[%s0 + $0xa8] sm:$0xff]
  %v49 = vld [vmem:[%s0 + $0xb0] sm:$0xff]
  %v50 = vld [vmem:[%s0 + $0xb8] sm:$0xff]
  %v51 = vld [vmem:[%s0 + $0xc0] sm:$0xff]
  %v52 = vld [vmem:[%s0 + $0xc8] sm:$0xff]
  %v53 = vld [vmem:[%s0 + $0xd0] sm:$0xff]
  %v54 = vld [vmem:[%s0 + $0xd8] sm:$0xff]
  %v55 = vld [vmem:[%s0 + $0xe0] sm:$0xff]
  %v56 = vld [vmem:[%s0 + $0xe8] sm:$0xff]
  %v57 = vld [vmem:[%s0 + $0xf0] sm:$0xff]
  %v58 = vld [vmem:[%s0 + $0xf8] sm:$0xf]
  %v59 = vld [vmem:[%s0 + $0xfc] sm:$0xff]
  %v60 = vld [vmem:[%s0 + $0x104] sm:$0xff]
  %v61 = vld [vmem:[%s0 + $0x10c] sm:$0xff]
  %v62 = vld [vmem:[%s0 + $0x114] sm:$0xff]
  %v63 = vld [vmem:[%s0 + $0x11c] sm:$0xff]
  %v64 = vld [vmem:[%s0 + $0x124] sm:$0xff]
  %v65 = vld [vmem:[%s0 + $0x12c] sm:$0xff]
  %v66 = vld [vmem:[%s0 + $0x134] sm:$0xff]
  %v67 = vld [vmem:[%s0 + $0x13c] sm:$0xff]
  %v68 = vld [vmem:[%s0 + $0x144] sm:$0xff]
  %v69 = vld [vmem:[%s0 + $0x14c] sm:$0xff]
  %v70 = vld [vmem:[%s0 + $0x154] sm:$0xff]
  %v71 = vld [vmem:[%s0 + $0x15c] sm:$0xff]
  %v72 = vld [vmem:[%s0 + $0x164] sm:$0xff]
  %v73 = vld [vmem:[%s0 + $0x16c] sm:$0xff]
  %v74 = vld [vmem:[%s0 + $0x174] sm:$0xff]
  %v75 = vld [vmem:[%s0 + $0x17c] sm:$0xff]
  %v76 = vld [vmem:[%s0 + $0x184] sm:$0xff]
  %v77 = vld [vmem:[%s0 + $0x18c] sm:$0xff]
  %v78 = vld [vmem:[%s0 + $0x194] sm:$0xff]
  %v79 = vld [vmem:[%s0 + $0x19c] sm:$0xff]
  %v80 = vld [vmem:[%s0 + $0x1a4] sm:$0xff]
  %v81 = vld [vmem:[%s0 + $0x1ac] sm:$0xff]
  %v82 = vld [vmem:[%s0 + $0x1b4] sm:$0xff]
  %v83 = vld [vmem:[%s0 + $0x1bc] sm:$0xff]
  %v84 = vld [vmem:[%s0 + $0x1c4] sm:$0xff]
  %v85 = vld [vmem:[%s0 + $0x1cc] sm:$0xff]
  %v86 = vld [vmem:[%s0 + $0x1d4] sm:$0xff]
  %v87 = vld [vmem:[%s0 + $0x1dc] sm:$0xff]
  %v88 = vld [vmem:[%s0 + $0x1e4] sm:$0xff]
  %v89 = vld [vmem:[%s0 + $0x1ec] sm:$0xff]
  %v90 = vld [vmem:[%s0 + $0x1f4] sm:$0xf]
  %v91 = vld [vmem:[%s0 + $0x1f8] sm:$0xff]
  %v92 = vld [vmem:[%s0 + $0x200] sm:$0xff]
  %v93 = vld [vmem:[%s0 + $0x208] sm:$0xff]
  %v94 = vld [vmem:[%s0 + $0x210] sm:$0xff]
  %v95 = vld [vmem:[%s0 + $0x218] sm:$0xff]
  %v96 = vld [vmem:[%s0 + $0x220] sm:$0xff]
  %v97 = vld [vmem:[%s0 + $0x228] sm:$0xff]
  %v98 = vld [vmem:[%s0 + $0x230] sm:$0xff]
  %v99 = vld [vmem:[%s0 + $0x238] sm:$0xff]
  %v100 = vld [vmem:[%s0 + $0x240] sm:$0xff]
  %v101 = vld [vmem:[%s0 + $0x248] sm:$0xff]
  %v102 = vld [vmem:[%s0 + $0x250] sm:$0xff]
  %v103 = vld [vmem:[%s0 + $0x258] sm:$0xff]
  %v104 = vld [vmem:[%s0 + $0x260] sm:$0xff]
  %v105 = vld [vmem:[%s0 + $0x268] sm:$0xff]
  %v106 = vld [vmem:[%s0 + $0x270] sm:$0xff]
  %v107 = vld [vmem:[%s0 + $0x278] sm:$0xff]
  %v108 = vld [vmem:[%s0 + $0x280] sm:$0xff]
  %v109 = vld [vmem:[%s0 + $0x288] sm:$0xff]
  %v110 = vld [vmem:[%s0 + $0x290] sm:$0xff]
  %v111 = vld [vmem:[%s0 + $0x298] sm:$0xff]
  %v112 = vld [vmem:[%s0 + $0x2a0] sm:$0xff]
  %v113 = vld [vmem:[%s0 + $0x2a8] sm:$0xff]
  %v114 = vld [vmem:[%s0 + $0x2b0] sm:$0xff]
  %v115 = vld [vmem:[%s0 + $0x2b8] sm:$0xff]
  %v116 = vld [vmem:[%s0 + $0x2c0] sm:$0xff]
  %v117 = vld [vmem:[%s0 + $0x2c8] sm:$0xff]
  %v118 = vld [vmem:[%s0 + $0x2d0] sm:$0xff]
  %v119 = vld [vmem:[%s0 + $0x2d8] sm:$0xff]
  %v120 = vld [vmem:[%s0 + $0x2e0] sm:$0xff]
  %v121 = vld [vmem:[%s0 + $0x2e8] sm:$0xff]
  %v122 = vld [vmem:[%s0 + $0x2f0] sm:$0xf]
  %v123 = vld [vmem:[%s0 + $0x2f4] sm:$0xff]
  %v124 = vld [vmem:[%s0 + $0x2fc] sm:$0xff]
  %v125 = vld [vmem:[%s0 + $0x304] sm:$0xff]
  %v126 = vld [vmem:[%s0 + $0x30c] sm:$0xff]
  %v127 = vld [vmem:[%s0 + $0x314] sm:$0xff]
  %v128 = vld [vmem:[%s0 + $0x31c] sm:$0xff]
  %v129 = vld [vmem:[%s0 + $0x324] sm:$0xff]
  %v130 = vld [vmem:[%s0 + $0x32c] sm:$0xff]
  %v131 = vld [vmem:[%s0 + $0x334] sm:$0xff]
  %v132 = vld [vmem:[%s0 + $0x33c] sm:$0xff]
  %v133 = vld [vmem:[%s0 + $0x344] sm:$0xff]
  %v134 = vld [vmem:[%s0 + $0x34c] sm:$0xff]
  %v135 = vld [vmem:[%s0 + $0x354] sm:$0xff]
  %v136 = vld [vmem:[%s0 + $0x35c] sm:$0xff]
  %v137 = vld [vmem:[%s0 + $0x364] sm:$0xff]
  %v138 = vld [vmem:[%s0 + $0x36c] sm:$0xff]
  %v139 = vld [vmem:[%s0 + $0x374] sm:$0xff]
  %v140 = vld [vmem:[%s0 + $0x37c] sm:$0xff]
  %v141 = vld [vmem:[%s0 + $0x384] sm:$0xff]
  %v142 = vld [vmem:[%s0 + $0x38c] sm:$0xff]
  %v143 = vld [vmem:[%s0 + $0x394] sm:$0xff]
  %v144 = vld [vmem:[%s0 + $0x39c] sm:$0xff]
  %v145 = vld [vmem:[%s0 + $0x3a4] sm:$0xff]
  %v146 = vld [vmem:[%s0 + $0x3ac] sm:$0xff]
  %v147 = vld [vmem:[%s0 + $0x3b4] sm:$0xff]
  %v148 = vld [vmem:[%s0 + $0x3bc] sm:$0xff]
  %v149 = vld [vmem:[%s0 + $0x3c4] sm:$0xff]
  %v150 = vld [vmem:[%s0 + $0x3cc] sm:$0xff]
  %v151 = vld [vmem:[%s0 + $0x3d4] sm:$0xff]
  %v152 = vld [vmem:[%s0 + $0x3dc] sm:$0xff]
  %v153 = vld [vmem:[%s0 + $0x3e4] sm:$0xff]
  %v154 = vld [vmem:[%s0 + $0x3ec] sm:$0xf]
  %v155 = vld [vmem:[%s0 + $0x3f0] sm:$0xff]
  %v156 = vld [vmem:[%s0 + $0x3f8] sm:$0xff]
  %v157 = vld [vmem:[%s0 + $0x400] sm:$0xff]
  %v158 = vld [vmem:[%s0 + $0x408] sm:$0xff]
  %v159 = vld [vmem:[%s0 + $0x410] sm:$0xff]
  %v160 = vld [vmem:[%s0 + $0x418] sm:$0xff]
  %v161 = vld [vmem:[%s0 + $0x420] sm:$0xff]
  %v162 = vld [vmem:[%s0 + $0x428] sm:$0xff]
  %v163 = vld [vmem:[%s0 + $0x430] sm:$0xff]
  %v164 = vld [vmem:[%s0 + $0x438] sm:$0xff]
  %v165 = vld [vmem:[%s0 + $0x440] sm:$0xff]
  %v166 = vld [vmem:[%s0 + $0x448] sm:$0xff]
  %v167 = vld [vmem:[%s0 + $0x450] sm:$0xff]
  %v168 = vld [vmem:[%s0 + $0x458] sm:$0xff]
  %v169 = vld [vmem:[%s0 + $0x460] sm:$0xff]
  %v170 = vld [vmem:[%s0 + $0x468] sm:$0xff]
  %v171 = vld [vmem:[%s0 + $0x470] sm:$0xff]
  %v172 = vld [vmem:[%s0 + $0x478] sm:$0xff]
  %v173 = vld [vmem:[%s0 + $0x480] sm:$0xff]
  %v174 = vld [vmem:[%s0 + $0x488] sm:$0xff]
  %v175 = vld [vmem:[%s0 + $0x490] sm:$0xff]
  %v176 = vld [vmem:[%s0 + $0x498] sm:$0xff]
  %v177 = vld [vmem:[%s0 + $0x4a0] sm:$0xff]
  %v178 = vld [vmem:[%s0 + $0x4a8] sm:$0xff]
  %v179 = vld [vmem:[%s0 + $0x4b0] sm:$0xff]
  %v180 = vld [vmem:[%s0 + $0x4b8] sm:$0xff]
  %v181 = vld [vmem:[%s0 + $0x4c0] sm:$0xff]
  %v182 = vld [vmem:[%s0 + $0x4c8] sm:$0xff]
  %v183 = vld [vmem:[%s0 + $0x4d0] sm:$0xff]
  %v184 = vld [vmem:[%s0 + $0x4d8] sm:$0xff]
  %v185 = vld [vmem:[%s0 + $0x4e0] sm:$0xff]
  %v186 = vld [vmem:[%s0 + $0x4e8] sm:$0xf]
  %v187 = vld [vmem:[%s0 + $0x4ec] sm:$0xff]
  %v188 = vld [vmem:[%s0 + $0x4f4] sm:$0xff]
  %v189 = vld [vmem:[%s0 + $0x4fc] sm:$0xff]
  %v190 = vld [vmem:[%s0 + $0x504] sm:$0xff]
  %v191 = vld [vmem:[%s0 + $0x50c] sm:$0xff]
  %v192 = vld [vmem:[%s0 + $0x514] sm:$0xff]
  %v193 = vld [vmem:[%s0 + $0x51c] sm:$0xff]
  %v194 = vld [vmem:[%s0 + $0x524] sm:$0xff]
  %v195 = vld [vmem:[%s0 + $0x52c] sm:$0xff]
  %v196 = vld [vmem:[%s0 + $0x534] sm:$0xff]
  %v197 = vld [vmem:[%s0 + $0x53c] sm:$0xff]
  %v198 = vld [vmem:[%s0 + $0x544] sm:$0xff]
  %v199 = vld [vmem:[%s0 + $0x54c] sm:$0xff]
  %v200 = vld [vmem:[%s0 + $0x554] sm:$0xff]
  %v201 = vld [vmem:[%s0 + $0x55c] sm:$0xff]
  %v202 = vld [vmem:[%s0 + $0x564] sm:$0xff]
  %v203 = vld [vmem:[%s0 + $0x56c] sm:$0xff]
  %v204 = vld [vmem:[%s0 + $0x574] sm:$0xff]
  %v205 = vld [vmem:[%s0 + $0x57c] sm:$0xff]
  %v206 = vld [vmem:[%s0 + $0x584] sm:$0xff]
  %v207 = vld [vmem:[%s0 + $0x58c] sm:$0xff]
  %v208 = vld [vmem:[%s0 + $0x594] sm:$0xff]
  %v209 = vld [vmem:[%s0 + $0x59c] sm:$0xff]
  %v210 = vld [vmem:[%s0 + $0x5a4] sm:$0xff]
  %v211 = vld [vmem:[%s0 + $0x5ac] sm:$0xff]
  %v212 = vld [vmem:[%s0 + $0x5b4] sm:$0xff]
  %v213 = vld [vmem:[%s0 + $0x5bc] sm:$0xff]
  %v214 = vld [vmem:[%s0 + $0x5c4] sm:$0xff]
  %v215 = vld [vmem:[%s0 + $0x5cc] sm:$0xff]
  %v216 = vld [vmem:[%s0 + $0x5d4] sm:$0xff]
  %v217 = vld [vmem:[%s0 + $0x5dc] sm:$0xff]
  %v218 = vld [vmem:[%s0 + $0x5e4] sm:$0xf]
  %v219 = vld [vmem:[%s0 + $0x5e8] sm:$0xff]
  %v220 = vld [vmem:[%s0 + $0x5f0] sm:$0xff]
  %v221 = vld [vmem:[%s0 + $0x5f8] sm:$0xff]
  %v222 = vld [vmem:[%s0 + $0x600] sm:$0xff]
  %v223 = vld [vmem:[%s0 + $0x608] sm:$0xff]
  %v224 = vld [vmem:[%s0 + $0x610] sm:$0xff]
  %v225 = vld [vmem:[%s0 + $0x618] sm:$0xff]
  %v226 = vld [vmem:[%s0 + $0x620] sm:$0xff]
  %v227 = vld [vmem:[%s0 + $0x628] sm:$0xff]
  %v228 = vld [vmem:[%s0 + $0x630] sm:$0xff]
  %v229 = vld [vmem:[%s0 + $0x638] sm:$0xff]
  %v230 = vld [vmem:[%s0 + $0x640] sm:$0xff]
  %v231 = vld [vmem:[%s0 + $0x648] sm:$0xff]
  %v232 = vld [vmem:[%s0 + $0x650] sm:$0xff]
  %v233 = vld [vmem:[%s0 + $0x658] sm:$0xff]
  %v234 = vld [vmem:[%s0 + $0x660] sm:$0xff]
  %v235 = vld [vmem:[%s0 + $0x668] sm:$0xff]
  %v236 = vld [vmem:[%s0 + $0x670] sm:$0xff]
  %v237 = vld [vmem:[%s0 + $0x678] sm:$0xff]
  %v238 = vld [vmem:[%s0 + $0x680] sm:$0xff]
  %v239 = vld [vmem:[%s0 + $0x688] sm:$0xff]
  %v240 = vld [vmem:[%s0 + $0x690] sm:$0xff]
  %v241 = vld [vmem:[%s0 + $0x698] sm:$0xff]
  %v242 = vld [vmem:[%s0 + $0x6a0] sm:$0xff]
  %v243 = vld [vmem:[%s0 + $0x6a8] sm:$0xff]
  %v244 = vld [vmem:[%s0 + $0x6b0] sm:$0xff]
  %v245 = vld [vmem:[%s0 + $0x6b8] sm:$0xff]
  %v246 = vld [vmem:[%s0 + $0x6c0] sm:$0xff]
  %v247 = vld [vmem:[%s0 + $0x6c8] sm:$0xff]
  %v248 = vld [vmem:[%s0 + $0x6d0] sm:$0xff]
  %v249 = vld [vmem:[%s0 + $0x6d8] sm:$0xff]
  %v250 = vld [vmem:[%s0 + $0x6e0] sm:$0xf]
  %v251 = vld [vmem:[%s0 + $0x6e4] sm:$0xff]
  %v252 = vld [vmem:[%s0 + $0x6ec] sm:$0xff]
  %v253 = vld [vmem:[%s0 + $0x6f4] sm:$0xff]
  %v254 = vld [vmem:[%s0 + $0x6fc] sm:$0xff]
  %v255 = vld [vmem:[%s0 + $0x704] sm:$0xff]
  %v256 = vld [vmem:[%s0 + $0x70c] sm:$0xff]
  %v257 = vld [vmem:[%s0 + $0x714] sm:$0xff]
  %v258 = vld [vmem:[%s0 + $0x71c] sm:$0xff]
  %v259 = vld [vmem:[%s0 + $0x724] sm:$0xff]
  %v260 = vld [vmem:[%s0 + $0x72c] sm:$0xff]
  %v261 = vld [vmem:[%s0 + $0x734] sm:$0xff]
  %v262 = vld [vmem:[%s0 + $0x73c] sm:$0xff]
  %v263 = vld [vmem:[%s0 + $0x744] sm:$0xff]
  %v264 = vld [vmem:[%s0 + $0x74c] sm:$0xff]
  %v265 = vld [vmem:[%s0 + $0x754] sm:$0xff]
  %v266 = vld [vmem:[%s0 + $0x75c] sm:$0xff]
  %v267 = vld [vmem:[%s0 + $0x764] sm:$0xff]
  %v268 = vld [vmem:[%s0 + $0x76c] sm:$0xff]
  %v269 = vld [vmem:[%s0 + $0x774] sm:$0xff]
  %v270 = vld [vmem:[%s0 + $0x77c] sm:$0xff]
  %v271 = vld [vmem:[%s0 + $0x784] sm:$0xff]
  %v272 = vld [vmem:[%s0 + $0x78c] sm:$0xff]
  %v273 = vld [vmem:[%s0 + $0x794] sm:$0xff]
  %v274 = vld [vmem:[%s0 + $0x79c] sm:$0xff]
  %v275 = vld [vmem:[%s0 + $0x7a4] sm:$0xff]
  %v276 = vld [vmem:[%s0 + $0x7ac] sm:$0xff]
  %v277 = vld [vmem:[%s0 + $0x7b4] sm:$0xff]
  %v278 = vld [vmem:[%s0 + $0x7bc] sm:$0xff]
  %v279 = vld [vmem:[%s0 + $0x7c4] sm:$0xff]
  %v280 = vld [vmem:[%s0 + $0x7cc] sm:$0xff]
  %v281 = vld [vmem:[%s0 + $0x7d4] sm:$0xff]
  %v282 = vld [vmem:[%s0 + $0x7dc] sm:$0xf]
  %v283 = vld [vmem:[%s0 + $0x7e0] sm:$0xff]
  %v284 = vld [vmem:[%s0 + $0x7e8] sm:$0xff]
  %v285 = vld [vmem:[%s0 + $0x7f0] sm:$0xff]
  %v286 = vld [vmem:[%s0 + $0x7f8] sm:$0xff]
  %v287 = vld [vmem:[%s0 + $0x800] sm:$0xff]
  %v288 = vld [vmem:[%s0 + $0x808] sm:$0xff]
  %v289 = vld [vmem:[%s0 + $0x810] sm:$0xff]
  %v290 = vld [vmem:[%s0 + $0x818] sm:$0xff]
  %v291 = vld [vmem:[%s0 + $0x820] sm:$0xff]
  %v292 = vld [vmem:[%s0 + $0x828] sm:$0xff]
  %v293 = vld [vmem:[%s0 + $0x830] sm:$0xff]
  %v294 = vld [vmem:[%s0 + $0x838] sm:$0xff]
  %v295 = vld [vmem:[%s0 + $0x840] sm:$0xff]
  %v296 = vld [vmem:[%s0 + $0x848] sm:$0xff]
  %v297 = vld [vmem:[%s0 + $0x850] sm:$0xff]
  %v298 = vld [vmem:[%s0 + $0x858] sm:$0xff]
  %v299 = vld [vmem:[%s0 + $0x860] sm:$0xff]
  %v300 = vld [vmem:[%s0 + $0x868] sm:$0xff]
  %v301 = vld [vmem:[%s0 + $0x870] sm:$0xff]
  %v302 = vld [vmem:[%s0 + $0x878] sm:$0xff]
  %v303 = vld [vmem:[%s0 + $0x880] sm:$0xff]
  %v304 = vld [vmem:[%s0 + $0x888] sm:$0xff]
  %v305 = vld [vmem:[%s0 + $0x890] sm:$0xff]
  %v306 = vld [vmem:[%s0 + $0x898] sm:$0xff]
  %v307 = vld [vmem:[%s0 + $0x8a0] sm:$0xff]
  %v308 = vld [vmem:[%s0 + $0x8a8] sm:$0xff]
  %v309 = vld [vmem:[%s0 + $0x8b0] sm:$0xff]
  %v310 = vld [vmem:[%s0 + $0x8b8] sm:$0xff]
  %v311 = vld [vmem:[%s0 + $0x8c0] sm:$0xff]
  %v312 = vld [vmem:[%s0 + $0x8c8] sm:$0xff]
  %v313 = vld [vmem:[%s0 + $0x8d0] sm:$0xff]
  %v314 = vld [vmem:[%s0 + $0x8d8] sm:$0xf]
  %v315 = vld [vmem:[%s0 + $0x8dc] sm:$0x33]
  %v316 = vld [vmem:[%s0 + $0x8e4] sm:$0x33]
  %v317 = vld [vmem:[%s0 + $0x8ec] sm:$0x33]
  %v318 = vld [vmem:[%s0 + $0x8f4] sm:$0x33]
  %v319 = vld [vmem:[%s0 + $0x8fc] sm:$0x33]
  %v320 = vld [vmem:[%s0 + $0x904] sm:$0x33]
  %v321 = vld [vmem:[%s0 + $0x90c] sm:$0x33]
  %v322 = vld [vmem:[%s0 + $0x914] sm:$0x33]
  %v323 = vld [vmem:[%s0 + $0x91c] sm:$0x33]
  %v324 = vld [vmem:[%s0 + $0x924] sm:$0x33]
  %v325 = vld [vmem:[%s0 + $0x92c] sm:$0x33]
  %v326 = vld [vmem:[%s0 + $0x934] sm:$0x33]
  %v327 = vld [vmem:[%s0 + $0x93c] sm:$0x33]
  %v328 = vld [vmem:[%s0 + $0x944] sm:$0x33]
  %v329 = vld [vmem:[%s0 + $0x94c] sm:$0x33]
  %v330 = vld [vmem:[%s0 + $0x954] sm:$0x33]
  %v331 = vld [vmem:[%s0 + $0x95c] sm:$0x33]
  %v332 = vld [vmem:[%s0 + $0x964] sm:$0x33]
  %v333 = vld [vmem:[%s0 + $0x96c] sm:$0x33]
  %v334 = vld [vmem:[%s0 + $0x974] sm:$0x33]
  %v335 = vld [vmem:[%s0 + $0x97c] sm:$0x33]
  %v336 = vld [vmem:[%s0 + $0x984] sm:$0x33]
  %v337 = vld [vmem:[%s0 + $0x98c] sm:$0x33]
  %v338 = vld [vmem:[%s0 + $0x994] sm:$0x33]
  %v339 = vld [vmem:[%s0 + $0x99c] sm:$0x33]
  %v340 = vld [vmem:[%s0 + $0x9a4] sm:$0x33]
  %v341 = vld [vmem:[%s0 + $0x9ac] sm:$0x33]
  %v342 = vld [vmem:[%s0 + $0x9b4] sm:$0x33]
  %v343 = vld [vmem:[%s0 + $0x9bc] sm:$0x33]
  %v344 = vld [vmem:[%s0 + $0x9c4] sm:$0x33]
  %v345 = vld [vmem:[%s0 + $0x9cc] sm:$0x33]
  %v346 = vld [vmem:[%s0 + $0x9d4] sm:$0x3]
  %v347 = vld [vmem:[%s1] sm:$0xf]
  %v348 = vld [vmem:[%s1 + $0x4] sm:$0xf]
  %v349 = vld [vmem:[%s1 + $0x8] sm:$0xf]
  %v350 = vld [vmem:[%s1 + $0xc] sm:$0xf]
  %v351 = vld [vmem:[%s1 + $0x10] sm:$0xf]
  %v352 = vld [vmem:[%s2] sm:$0xff]
  %v353 = vld [vmem:[%s2 + $0x8] sm:$0xff]
  %v354 = vld [vmem:[%s2 + $0x10] sm:$0xff]
  %v355 = vld [vmem:[%s2 + $0x18] sm:$0xff]
  %v356 = vld [vmem:[%s2 + $0x20] sm:$0xff]
  %358 = vset.pattern.permute.xlu0 0
  %359 = vperm.xlu0 %358, %v352
  %v360 = vpop.permute.xlu0 %359
  %363 = vset.pattern.permute.xlu0 0
  %364 = vperm.xlu0 %363, %v353
  %v365 = vpop.permute.xlu0 %364
  %368 = vset.pattern.permute.xlu0 0
  %369 = vperm.xlu0 %368, %v354
  %v370 = vpop.permute.xlu0 %369
  %373 = vset.pattern.permute.xlu0 0
  %374 = vperm.xlu0 %373, %v355
  %v375 = vpop.permute.xlu0 %374
  %378 = vset.pattern.permute.xlu0 0
  %379 = vperm.xlu0 %378, %v356
  %v380 = vpop.permute.xlu0 %379
  %v387 = vunpack.c.l.b16 %v347
  %v388 = vunpack.c.l.b16 %v348
  %v389 = vunpack.c.l.b16 %v349
  %v390 = vunpack.c.l.b16 %v350
  %v391 = vunpack.c.l.b16 %v351
  %v392 = vpack.c.b16 %v388, %v387
  %v393 = vpack.c.b16 %v390, %v389
  %v394 = vpack.c.b16 %v391, %v391
  %v715 = vunpack.c.l.b16 %v27
  %v716 = vunpack.c.h.b16 %v27
  %v717 = vunpack.c.l.b16 %v28
  %v718 = vunpack.c.h.b16 %v28
  %v719 = vunpack.c.l.b16 %v29
  %v720 = vunpack.c.h.b16 %v29
  %v721 = vunpack.c.l.b16 %v30
  %v722 = vunpack.c.h.b16 %v30
  %v723 = vunpack.c.l.b16 %v31
  %v724 = vunpack.c.h.b16 %v31
  %v725 = vunpack.c.l.b16 %v32
  %v726 = vunpack.c.h.b16 %v32
  %v727 = vunpack.c.l.b16 %v33
  %v728 = vunpack.c.h.b16 %v33
  %v729 = vunpack.c.l.b16 %v34
  %v730 = vunpack.c.h.b16 %v34
  %v731 = vunpack.c.l.b16 %v35
  %v732 = vunpack.c.h.b16 %v35
  %v733 = vunpack.c.l.b16 %v36
  %v734 = vunpack.c.h.b16 %v36
  %v735 = vunpack.c.l.b16 %v37
  %v736 = vunpack.c.h.b16 %v37
  %v737 = vunpack.c.l.b16 %v38
  %v738 = vunpack.c.h.b16 %v38
  %v739 = vunpack.c.l.b16 %v39
  %v740 = vunpack.c.h.b16 %v39
  %v741 = vunpack.c.l.b16 %v40
  %v742 = vunpack.c.h.b16 %v40
  %v743 = vunpack.c.l.b16 %v41
  %v744 = vunpack.c.h.b16 %v41
  %v745 = vunpack.c.l.b16 %v42
  %v746 = vunpack.c.h.b16 %v42
  %v747 = vunpack.c.l.b16 %v43
  %v748 = vunpack.c.h.b16 %v43
  %v749 = vunpack.c.l.b16 %v44
  %v750 = vunpack.c.h.b16 %v44
  %v751 = vunpack.c.l.b16 %v45
  %v752 = vunpack.c.h.b16 %v45
  %v753 = vunpack.c.l.b16 %v46
  %v754 = vunpack.c.h.b16 %v46
  %v755 = vunpack.c.l.b16 %v47
  %v756 = vunpack.c.h.b16 %v47
  %v757 = vunpack.c.l.b16 %v48
  %v758 = vunpack.c.h.b16 %v48
  %v759 = vunpack.c.l.b16 %v49
  %v760 = vunpack.c.h.b16 %v49
  %v761 = vunpack.c.l.b16 %v50
  %v762 = vunpack.c.h.b16 %v50
  %v763 = vunpack.c.l.b16 %v51
  %v764 = vunpack.c.h.b16 %v51
  %v765 = vunpack.c.l.b16 %v52
  %v766 = vunpack.c.h.b16 %v52
  %v767 = vunpack.c.l.b16 %v53
  %v768 = vunpack.c.h.b16 %v53
  %v769 = vunpack.c.l.b16 %v54
  %v770 = vunpack.c.h.b16 %v54
  %v771 = vunpack.c.l.b16 %v55
  %v772 = vunpack.c.h.b16 %v55
  %v773 = vunpack.c.l.b16 %v56
  %v774 = vunpack.c.h.b16 %v56
  %v775 = vunpack.c.l.b16 %v57
  %v776 = vunpack.c.h.b16 %v57
  %v777 = vunpack.c.l.b16 %v58
  %v778 = vunpack.c.l.b16 %v59
  %v779 = vunpack.c.h.b16 %v59
  %v780 = vunpack.c.l.b16 %v60
  %v781 = vunpack.c.h.b16 %v60
  %v782 = vunpack.c.l.b16 %v61
  %v783 = vunpack.c.h.b16 %v61
  %v784 = vunpack.c.l.b16 %v62
  %v785 = vunpack.c.h.b16 %v62
  %v786 = vunpack.c.l.b16 %v63
  %v787 = vunpack.c.h.b16 %v63
  %v788 = vunpack.c.l.b16 %v64
  %v789 = vunpack.c.h.b16 %v64
  %v790 = vunpack.c.l.b16 %v65
  %v791 = vunpack.c.h.b16 %v65
  %v792 = vunpack.c.l.b16 %v66
  %v793 = vunpack.c.h.b16 %v66
  %v794 = vunpack.c.l.b16 %v67
  %v795 = vunpack.c.h.b16 %v67
  %v796 = vunpack.c.l.b16 %v68
  %v797 = vunpack.c.h.b16 %v68
  %v798 = vunpack.c.l.b16 %v69
  %v799 = vunpack.c.h.b16 %v69
  %v800 = vunpack.c.l.b16 %v70
  %v801 = vunpack.c.h.b16 %v70
  %v802 = vunpack.c.l.b16 %v71
  %v803 = vunpack.c.h.b16 %v71
  %v804 = vunpack.c.l.b16 %v72
  %v805 = vunpack.c.h.b16 %v72
  %v806 = vunpack.c.l.b16 %v73
  %v807 = vunpack.c.h.b16 %v73
  %v808 = vunpack.c.l.b16 %v74
  %v809 = vunpack.c.h.b16 %v74
  %v810 = vunpack.c.l.b16 %v75
  %v811 = vunpack.c.h.b16 %v75
  %v812 = vunpack.c.l.b16 %v76
  %v813 = vunpack.c.h.b16 %v76
  %v814 = vunpack.c.l.b16 %v77
  %v815 = vunpack.c.h.b16 %v77
  %v816 = vunpack.c.l.b16 %v78
  %v817 = vunpack.c.h.b16 %v78
  %v818 = vunpack.c.l.b16 %v79
  %v819 = vunpack.c.h.b16 %v79
  %v820 = vunpack.c.l.b16 %v80
  %v821 = vunpack.c.h.b16 %v80
  %v822 = vunpack.c.l.b16 %v81
  %v823 = vunpack.c.h.b16 %v81
  %v824 = vunpack.c.l.b16 %v82
  %v825 = vunpack.c.h.b16 %v82
  %v826 = vunpack.c.l.b16 %v83
  %v827 = vunpack.c.h.b16 %v83
  %v828 = vunpack.c.l.b16 %v84
  %v829 = vunpack.c.h.b16 %v84
  %v830 = vunpack.c.l.b16 %v85
  %v831 = vunpack.c.h.b16 %v85
  %v832 = vunpack.c.l.b16 %v86
  %v833 = vunpack.c.h.b16 %v86
  %v834 = vunpack.c.l.b16 %v87
  %v835 = vunpack.c.h.b16 %v87
  %v836 = vunpack.c.l.b16 %v88
  %v837 = vunpack.c.h.b16 %v88
  %v838 = vunpack.c.l.b16 %v89
  %v839 = vunpack.c.h.b16 %v89
  %v840 = vunpack.c.l.b16 %v90
  %v841 = vunpack.c.l.b16 %v91
  %v842 = vunpack.c.h.b16 %v91
  %v843 = vunpack.c.l.b16 %v92
  %v844 = vunpack.c.h.b16 %v92
  %v845 = vunpack.c.l.b16 %v93
  %v846 = vunpack.c.h.b16 %v93
  %v847 = vunpack.c.l.b16 %v94
  %v848 = vunpack.c.h.b16 %v94
  %v849 = vunpack.c.l.b16 %v95
  %v850 = vunpack.c.h.b16 %v95
  %v851 = vunpack.c.l.b16 %v96
  %v852 = vunpack.c.h.b16 %v96
  %v853 = vunpack.c.l.b16 %v97
  %v854 = vunpack.c.h.b16 %v97
  %v855 = vunpack.c.l.b16 %v98
  %v856 = vunpack.c.h.b16 %v98
  %v857 = vunpack.c.l.b16 %v99
  %v858 = vunpack.c.h.b16 %v99
  %v859 = vunpack.c.l.b16 %v100
  %v860 = vunpack.c.h.b16 %v100
  %v861 = vunpack.c.l.b16 %v101
  %v862 = vunpack.c.h.b16 %v101
  %v863 = vunpack.c.l.b16 %v102
  %v864 = vunpack.c.h.b16 %v102
  %v865 = vunpack.c.l.b16 %v103
  %v866 = vunpack.c.h.b16 %v103
  %v867 = vunpack.c.l.b16 %v104
  %v868 = vunpack.c.h.b16 %v104
  %v869 = vunpack.c.l.b16 %v105
  %v870 = vunpack.c.h.b16 %v105
  %v871 = vunpack.c.l.b16 %v106
  %v872 = vunpack.c.h.b16 %v106
  %v873 = vunpack.c.l.b16 %v107
  %v874 = vunpack.c.h.b16 %v107
  %v875 = vunpack.c.l.b16 %v108
  %v876 = vunpack.c.h.b16 %v108
  %v877 = vunpack.c.l.b16 %v109
  %v878 = vunpack.c.h.b16 %v109
  %v879 = vunpack.c.l.b16 %v110
  %v880 = vunpack.c.h.b16 %v110
  %v881 = vunpack.c.l.b16 %v111
  %v882 = vunpack.c.h.b16 %v111
  %v883 = vunpack.c.l.b16 %v112
  %v884 = vunpack.c.h.b16 %v112
  %v885 = vunpack.c.l.b16 %v113
  %v886 = vunpack.c.h.b16 %v113
  %v887 = vunpack.c.l.b16 %v114
  %v888 = vunpack.c.h.b16 %v114
  %v889 = vunpack.c.l.b16 %v115
  %v890 = vunpack.c.h.b16 %v115
  %v891 = vunpack.c.l.b16 %v116
  %v892 = vunpack.c.h.b16 %v116
  %v893 = vunpack.c.l.b16 %v117
  %v894 = vunpack.c.h.b16 %v117
  %v895 = vunpack.c.l.b16 %v118
  %v896 = vunpack.c.h.b16 %v118
  %v897 = vunpack.c.l.b16 %v119
  %v898 = vunpack.c.h.b16 %v119
  %v899 = vunpack.c.l.b16 %v120
  %v900 = vunpack.c.h.b16 %v120
  %v901 = vunpack.c.l.b16 %v121
  %v902 = vunpack.c.h.b16 %v121
  %v903 = vunpack.c.l.b16 %v122
  %v904 = vunpack.c.l.b16 %v123
  %v905 = vunpack.c.h.b16 %v123
  %v906 = vunpack.c.l.b16 %v124
  %v907 = vunpack.c.h.b16 %v124
  %v908 = vunpack.c.l.b16 %v125
  %v909 = vunpack.c.h.b16 %v125
  %v910 = vunpack.c.l.b16 %v126
  %v911 = vunpack.c.h.b16 %v126
  %v912 = vunpack.c.l.b16 %v127
  %v913 = vunpack.c.h.b16 %v127
  %v914 = vunpack.c.l.b16 %v128
  %v915 = vunpack.c.h.b16 %v128
  %v916 = vunpack.c.l.b16 %v129
  %v917 = vunpack.c.h.b16 %v129
  %v918 = vunpack.c.l.b16 %v130
  %v919 = vunpack.c.h.b16 %v130
  %v920 = vunpack.c.l.b16 %v131
  %v921 = vunpack.c.h.b16 %v131
  %v922 = vunpack.c.l.b16 %v132
  %v923 = vunpack.c.h.b16 %v132
  %v924 = vunpack.c.l.b16 %v133
  %v925 = vunpack.c.h.b16 %v133
  %v926 = vunpack.c.l.b16 %v134
  %v927 = vunpack.c.h.b16 %v134
  %v928 = vunpack.c.l.b16 %v135
  %v929 = vunpack.c.h.b16 %v135
  %v930 = vunpack.c.l.b16 %v136
  %v931 = vunpack.c.h.b16 %v136
  %v932 = vunpack.c.l.b16 %v137
  %v933 = vunpack.c.h.b16 %v137
  %v934 = vunpack.c.l.b16 %v138
  %v935 = vunpack.c.h.b16 %v138
  %v936 = vunpack.c.l.b16 %v139
  %v937 = vunpack.c.h.b16 %v139
  %v938 = vunpack.c.l.b16 %v140
  %v939 = vunpack.c.h.b16 %v140
  %v940 = vunpack.c.l.b16 %v141
  %v941 = vunpack.c.h.b16 %v141
  %v942 = vunpack.c.l.b16 %v142
  %v943 = vunpack.c.h.b16 %v142
  %v944 = vunpack.c.l.b16 %v143
  %v945 = vunpack.c.h.b16 %v143
  %v946 = vunpack.c.l.b16 %v144
  %v947 = vunpack.c.h.b16 %v144
  %v948 = vunpack.c.l.b16 %v145
  %v949 = vunpack.c.h.b16 %v145
  %v950 = vunpack.c.l.b16 %v146
  %v951 = vunpack.c.h.b16 %v146
  %v952 = vunpack.c.l.b16 %v147
  %v953 = vunpack.c.h.b16 %v147
  %v954 = vunpack.c.l.b16 %v148
  %v955 = vunpack.c.h.b16 %v148
  %v956 = vunpack.c.l.b16 %v149
  %v957 = vunpack.c.h.b16 %v149
  %v958 = vunpack.c.l.b16 %v150
  %v959 = vunpack.c.h.b16 %v150
  %v960 = vunpack.c.l.b16 %v151
  %v961 = vunpack.c.h.b16 %v151
  %v962 = vunpack.c.l.b16 %v152
  %v963 = vunpack.c.h.b16 %v152
  %v964 = vunpack.c.l.b16 %v153
  %v965 = vunpack.c.h.b16 %v153
  %v966 = vunpack.c.l.b16 %v154
  %v967 = vunpack.c.l.b16 %v155
  %v968 = vunpack.c.h.b16 %v155
  %v969 = vunpack.c.l.b16 %v156
  %v970 = vunpack.c.h.b16 %v156
  %v971 = vunpack.c.l.b16 %v157
  %v972 = vunpack.c.h.b16 %v157
  %v973 = vunpack.c.l.b16 %v158
  %v974 = vunpack.c.h.b16 %v158
  %v975 = vunpack.c.l.b16 %v159
  %v976 = vunpack.c.h.b16 %v159
  %v977 = vunpack.c.l.b16 %v160
  %v978 = vunpack.c.h.b16 %v160
  %v979 = vunpack.c.l.b16 %v161
  %v980 = vunpack.c.h.b16 %v161
  %v981 = vunpack.c.l.b16 %v162
  %v982 = vunpack.c.h.b16 %v162
  %v983 = vunpack.c.l.b16 %v163
  %v984 = vunpack.c.h.b16 %v163
  %v985 = vunpack.c.l.b16 %v164
  %v986 = vunpack.c.h.b16 %v164
  %v987 = vunpack.c.l.b16 %v165
  %v988 = vunpack.c.h.b16 %v165
  %v989 = vunpack.c.l.b16 %v166
  %v990 = vunpack.c.h.b16 %v166
  %v991 = vunpack.c.l.b16 %v167
  %v992 = vunpack.c.h.b16 %v167
  %v993 = vunpack.c.l.b16 %v168
  %v994 = vunpack.c.h.b16 %v168
  %v995 = vunpack.c.l.b16 %v169
  %v996 = vunpack.c.h.b16 %v169
  %v997 = vunpack.c.l.b16 %v170
  %v998 = vunpack.c.h.b16 %v170
  %v999 = vunpack.c.l.b16 %v171
  %v1000 = vunpack.c.h.b16 %v171
  %v1001 = vunpack.c.l.b16 %v172
  %v1002 = vunpack.c.h.b16 %v172
  %v1003 = vunpack.c.l.b16 %v173
  %v1004 = vunpack.c.h.b16 %v173
  %v1005 = vunpack.c.l.b16 %v174
  %v1006 = vunpack.c.h.b16 %v174
  %v1007 = vunpack.c.l.b16 %v175
  %v1008 = vunpack.c.h.b16 %v175
  %v1009 = vunpack.c.l.b16 %v176
  %v1010 = vunpack.c.h.b16 %v176
  %v1011 = vunpack.c.l.b16 %v177
  %v1012 = vunpack.c.h.b16 %v177
  %v1013 = vunpack.c.l.b16 %v178
  %v1014 = vunpack.c.h.b16 %v178
  %v1015 = vunpack.c.l.b16 %v179
  %v1016 = vunpack.c.h.b16 %v179
  %v1017 = vunpack.c.l.b16 %v180
  %v1018 = vunpack.c.h.b16 %v180
  %v1019 = vunpack.c.l.b16 %v181
  %v1020 = vunpack.c.h.b16 %v181
  %v1021 = vunpack.c.l.b16 %v182
  %v1022 = vunpack.c.h.b16 %v182
  %v1023 = vunpack.c.l.b16 %v183
  %v1024 = vunpack.c.h.b16 %v183
  %v1025 = vunpack.c.l.b16 %v184
  %v1026 = vunpack.c.h.b16 %v184
  %v1027 = vunpack.c.l.b16 %v185
  %v1028 = vunpack.c.h.b16 %v185
  %v1029 = vunpack.c.l.b16 %v186
  %v1030 = vunpack.c.l.b16 %v187
  %v1031 = vunpack.c.h.b16 %v187
  %v1032 = vunpack.c.l.b16 %v188
  %v1033 = vunpack.c.h.b16 %v188
  %v1034 = vunpack.c.l.b16 %v189
  %v1035 = vunpack.c.h.b16 %v189
  %v1036 = vunpack.c.l.b16 %v190
  %v1037 = vunpack.c.h.b16 %v190
  %v1038 = vunpack.c.l.b16 %v191
  %v1039 = vunpack.c.h.b16 %v191
  %v1040 = vunpack.c.l.b16 %v192
  %v1041 = vunpack.c.h.b16 %v192
  %v1042 = vunpack.c.l.b16 %v193
  %v1043 = vunpack.c.h.b16 %v193
  %v1044 = vunpack.c.l.b16 %v194
  %v1045 = vunpack.c.h.b16 %v194
  %v1046 = vunpack.c.l.b16 %v195
  %v1047 = vunpack.c.h.b16 %v195
  %v1048 = vunpack.c.l.b16 %v196
  %v1049 = vunpack.c.h.b16 %v196
  %v1050 = vunpack.c.l.b16 %v197
  %v1051 = vunpack.c.h.b16 %v197
  %v1052 = vunpack.c.l.b16 %v198
  %v1053 = vunpack.c.h.b16 %v198
  %v1054 = vunpack.c.l.b16 %v199
  %v1055 = vunpack.c.h.b16 %v199
  %v1056 = vunpack.c.l.b16 %v200
  %v1057 = vunpack.c.h.b16 %v200
  %v1058 = vunpack.c.l.b16 %v201
  %v1059 = vunpack.c.h.b16 %v201
  %v1060 = vunpack.c.l.b16 %v202
  %v1061 = vunpack.c.h.b16 %v202
  %v1062 = vunpack.c.l.b16 %v203
  %v1063 = vunpack.c.h.b16 %v203
  %v1064 = vunpack.c.l.b16 %v204
  %v1065 = vunpack.c.h.b16 %v204
  %v1066 = vunpack.c.l.b16 %v205
  %v1067 = vunpack.c.h.b16 %v205
  %v1068 = vunpack.c.l.b16 %v206
  %v1069 = vunpack.c.h.b16 %v206
  %v1070 = vunpack.c.l.b16 %v207
  %v1071 = vunpack.c.h.b16 %v207
  %v1072 = vunpack.c.l.b16 %v208
  %v1073 = vunpack.c.h.b16 %v208
  %v1074 = vunpack.c.l.b16 %v209
  %v1075 = vunpack.c.h.b16 %v209
  %v1076 = vunpack.c.l.b16 %v210
  %v1077 = vunpack.c.h.b16 %v210
  %v1078 = vunpack.c.l.b16 %v211
  %v1079 = vunpack.c.h.b16 %v211
  %v1080 = vunpack.c.l.b16 %v212
  %v1081 = vunpack.c.h.b16 %v212
  %v1082 = vunpack.c.l.b16 %v213
  %v1083 = vunpack.c.h.b16 %v213
  %v1084 = vunpack.c.l.b16 %v214
  %v1085 = vunpack.c.h.b16 %v214
  %v1086 = vunpack.c.l.b16 %v215
  %v1087 = vunpack.c.h.b16 %v215
  %v1088 = vunpack.c.l.b16 %v216
  %v1089 = vunpack.c.h.b16 %v216
  %v1090 = vunpack.c.l.b16 %v217
  %v1091 = vunpack.c.h.b16 %v217
  %v1092 = vunpack.c.l.b16 %v218
  %v1093 = vunpack.c.l.b16 %v219
  %v1094 = vunpack.c.h.b16 %v219
  %v1095 = vunpack.c.l.b16 %v220
  %v1096 = vunpack.c.h.b16 %v220
  %v1097 = vunpack.c.l.b16 %v221
  %v1098 = vunpack.c.h.b16 %v221
  %v1099 = vunpack.c.l.b16 %v222
  %v1100 = vunpack.c.h.b16 %v222
  %v1101 = vunpack.c.l.b16 %v223
  %v1102 = vunpack.c.h.b16 %v223
  %v1103 = vunpack.c.l.b16 %v224
  %v1104 = vunpack.c.h.b16 %v224
  %v1105 = vunpack.c.l.b16 %v225
  %v1106 = vunpack.c.h.b16 %v225
  %v1107 = vunpack.c.l.b16 %v226
  %v1108 = vunpack.c.h.b16 %v226
  %v1109 = vunpack.c.l.b16 %v227
  %v1110 = vunpack.c.h.b16 %v227
  %v1111 = vunpack.c.l.b16 %v228
  %v1112 = vunpack.c.h.b16 %v228
  %v1113 = vunpack.c.l.b16 %v229
  %v1114 = vunpack.c.h.b16 %v229
  %v1115 = vunpack.c.l.b16 %v230
  %v1116 = vunpack.c.h.b16 %v230
  %v1117 = vunpack.c.l.b16 %v231
  %v1118 = vunpack.c.h.b16 %v231
  %v1119 = vunpack.c.l.b16 %v232
  %v1120 = vunpack.c.h.b16 %v232
  %v1121 = vunpack.c.l.b16 %v233
  %v1122 = vunpack.c.h.b16 %v233
  %v1123 = vunpack.c.l.b16 %v234
  %v1124 = vunpack.c.h.b16 %v234
  %v1125 = vunpack.c.l.b16 %v235
  %v1126 = vunpack.c.h.b16 %v235
  %v1127 = vunpack.c.l.b16 %v236
  %v1128 = vunpack.c.h.b16 %v236
  %v1129 = vunpack.c.l.b16 %v237
  %v1130 = vunpack.c.h.b16 %v237
  %v1131 = vunpack.c.l.b16 %v238
  %v1132 = vunpack.c.h.b16 %v238
  %v1133 = vunpack.c.l.b16 %v239
  %v1134 = vunpack.c.h.b16 %v239
  %v1135 = vunpack.c.l.b16 %v240
  %v1136 = vunpack.c.h.b16 %v240
  %v1137 = vunpack.c.l.b16 %v241
  %v1138 = vunpack.c.h.b16 %v241
  %v1139 = vunpack.c.l.b16 %v242
  %v1140 = vunpack.c.h.b16 %v242
  %v1141 = vunpack.c.l.b16 %v243
  %v1142 = vunpack.c.h.b16 %v243
  %v1143 = vunpack.c.l.b16 %v244
  %v1144 = vunpack.c.h.b16 %v244
  %v1145 = vunpack.c.l.b16 %v245
  %v1146 = vunpack.c.h.b16 %v245
  %v1147 = vunpack.c.l.b16 %v246
  %v1148 = vunpack.c.h.b16 %v246
  %v1149 = vunpack.c.l.b16 %v247
  %v1150 = vunpack.c.h.b16 %v247
  %v1151 = vunpack.c.l.b16 %v248
  %v1152 = vunpack.c.h.b16 %v248
  %v1153 = vunpack.c.l.b16 %v249
  %v1154 = vunpack.c.h.b16 %v249
  %v1155 = vunpack.c.l.b16 %v250
  %v1156 = vunpack.c.l.b16 %v251
  %v1157 = vunpack.c.h.b16 %v251
  %v1158 = vunpack.c.l.b16 %v252
  %v1159 = vunpack.c.h.b16 %v252
  %v1160 = vunpack.c.l.b16 %v253
  %v1161 = vunpack.c.h.b16 %v253
  %v1162 = vunpack.c.l.b16 %v254
  %v1163 = vunpack.c.h.b16 %v254
  %v1164 = vunpack.c.l.b16 %v255
  %v1165 = vunpack.c.h.b16 %v255
  %v1166 = vunpack.c.l.b16 %v256
  %v1167 = vunpack.c.h.b16 %v256
  %v1168 = vunpack.c.l.b16 %v257
  %v1169 = vunpack.c.h.b16 %v257
  %v1170 = vunpack.c.l.b16 %v258
  %v1171 = vunpack.c.h.b16 %v258
  %v1172 = vunpack.c.l.b16 %v259
  %v1173 = vunpack.c.h.b16 %v259
  %v1174 = vunpack.c.l.b16 %v260
  %v1175 = vunpack.c.h.b16 %v260
  %v1176 = vunpack.c.l.b16 %v261
  %v1177 = vunpack.c.h.b16 %v261
  %v1178 = vunpack.c.l.b16 %v262
  %v1179 = vunpack.c.h.b16 %v262
  %v1180 = vunpack.c.l.b16 %v263
  %v1181 = vunpack.c.h.b16 %v263
  %v1182 = vunpack.c.l.b16 %v264
  %v1183 = vunpack.c.h.b16 %v264
  %v1184 = vunpack.c.l.b16 %v265
  %v1185 = vunpack.c.h.b16 %v265
  %v1186 = vunpack.c.l.b16 %v266
  %v1187 = vunpack.c.h.b16 %v266
  %v1188 = vunpack.c.l.b16 %v267
  %v1189 = vunpack.c.h.b16 %v267
  %v1190 = vunpack.c.l.b16 %v268
  %v1191 = vunpack.c.h.b16 %v268
  %v1192 = vunpack.c.l.b16 %v269
  %v1193 = vunpack.c.h.b16 %v269
  %v1194 = vunpack.c.l.b16 %v270
  %v1195 = vunpack.c.h.b16 %v270
  %v1196 = vunpack.c.l.b16 %v271
  %v1197 = vunpack.c.h.b16 %v271
  %v1198 = vunpack.c.l.b16 %v272
  %v1199 = vunpack.c.h.b16 %v272
  %v1200 = vunpack.c.l.b16 %v273
  %v1201 = vunpack.c.h.b16 %v273
  %v1202 = vunpack.c.l.b16 %v274
  %v1203 = vunpack.c.h.b16 %v274
  %v1204 = vunpack.c.l.b16 %v275
  %v1205 = vunpack.c.h.b16 %v275
  %v1206 = vunpack.c.l.b16 %v276
  %v1207 = vunpack.c.h.b16 %v276
  %v1208 = vunpack.c.l.b16 %v277
  %v1209 = vunpack.c.h.b16 %v277
  %v1210 = vunpack.c.l.b16 %v278
  %v1211 = vunpack.c.h.b16 %v278
  %v1212 = vunpack.c.l.b16 %v279
  %v1213 = vunpack.c.h.b16 %v279
  %v1214 = vunpack.c.l.b16 %v280
  %v1215 = vunpack.c.h.b16 %v280
  %v1216 = vunpack.c.l.b16 %v281
  %v1217 = vunpack.c.h.b16 %v281
  %v1218 = vunpack.c.l.b16 %v282
  %v1219 = vunpack.c.l.b16 %v283
  %v1220 = vunpack.c.h.b16 %v283
  %v1221 = vunpack.c.l.b16 %v284
  %v1222 = vunpack.c.h.b16 %v284
  %v1223 = vunpack.c.l.b16 %v285
  %v1224 = vunpack.c.h.b16 %v285
  %v1225 = vunpack.c.l.b16 %v286
  %v1226 = vunpack.c.h.b16 %v286
  %v1227 = vunpack.c.l.b16 %v287
  %v1228 = vunpack.c.h.b16 %v287
  %v1229 = vunpack.c.l.b16 %v288
  %v1230 = vunpack.c.h.b16 %v288
  %v1231 = vunpack.c.l.b16 %v289
  %v1232 = vunpack.c.h.b16 %v289
  %v1233 = vunpack.c.l.b16 %v290
  %v1234 = vunpack.c.h.b16 %v290
  %v1235 = vunpack.c.l.b16 %v291
  %v1236 = vunpack.c.h.b16 %v291
  %v1237 = vunpack.c.l.b16 %v292
  %v1238 = vunpack.c.h.b16 %v292
  %v1239 = vunpack.c.l.b16 %v293
  %v1240 = vunpack.c.h.b16 %v293
  %v1241 = vunpack.c.l.b16 %v294
  %v1242 = vunpack.c.h.b16 %v294
  %v1243 = vunpack.c.l.b16 %v295
  %v1244 = vunpack.c.h.b16 %v295
  %v1245 = vunpack.c.l.b16 %v296
  %v1246 = vunpack.c.h.b16 %v296
  %v1247 = vunpack.c.l.b16 %v297
  %v1248 = vunpack.c.h.b16 %v297
  %v1249 = vunpack.c.l.b16 %v298
  %v1250 = vunpack.c.h.b16 %v298
  %v1251 = vunpack.c.l.b16 %v299
  %v1252 = vunpack.c.h.b16 %v299
  %v1253 = vunpack.c.l.b16 %v300
  %v1254 = vunpack.c.h.b16 %v300
  %v1255 = vunpack.c.l.b16 %v301
  %v1256 = vunpack.c.h.b16 %v301
  %v1257 = vunpack.c.l.b16 %v302
  %v1258 = vunpack.c.h.b16 %v302
  %v1259 = vunpack.c.l.b16 %v303
  %v1260 = vunpack.c.h.b16 %v303
  %v1261 = vunpack.c.l.b16 %v304
  %v1262 = vunpack.c.h.b16 %v304
  %v1263 = vunpack.c.l.b16 %v305
  %v1264 = vunpack.c.h.b16 %v305
  %v1265 = vunpack.c.l.b16 %v306
  %v1266 = vunpack.c.h.b16 %v306
  %v1267 = vunpack.c.l.b16 %v307
  %v1268 = vunpack.c.h.b16 %v307
  %v1269 = vunpack.c.l.b16 %v308
  %v1270 = vunpack.c.h.b16 %v308
  %v1271 = vunpack.c.l.b16 %v309
  %v1272 = vunpack.c.h.b16 %v309
  %v1273 = vunpack.c.l.b16 %v310
  %v1274 = vunpack.c.h.b16 %v310
  %v1275 = vunpack.c.l.b16 %v311
  %v1276 = vunpack.c.h.b16 %v311
  %v1277 = vunpack.c.l.b16 %v312
  %v1278 = vunpack.c.h.b16 %v312
  %v1279 = vunpack.c.l.b16 %v313
  %v1280 = vunpack.c.h.b16 %v313
  %v1281 = vunpack.c.l.b16 %v314
  %v1282 = vunpack.c.l.b16 %v315
  %v1283 = vunpack.c.h.b16 %v315
  %v1284 = vunpack.c.l.b16 %v316
  %v1285 = vunpack.c.h.b16 %v316
  %v1286 = vunpack.c.l.b16 %v317
  %v1287 = vunpack.c.h.b16 %v317
  %v1288 = vunpack.c.l.b16 %v318
  %v1289 = vunpack.c.h.b16 %v318
  %v1290 = vunpack.c.l.b16 %v319
  %v1291 = vunpack.c.h.b16 %v319
  %v1292 = vunpack.c.l.b16 %v320
  %v1293 = vunpack.c.h.b16 %v320
  %v1294 = vunpack.c.l.b16 %v321
  %v1295 = vunpack.c.h.b16 %v321
  %v1296 = vunpack.c.l.b16 %v322
  %v1297 = vunpack.c.h.b16 %v322
  %v1298 = vunpack.c.l.b16 %v323
  %v1299 = vunpack.c.h.b16 %v323
  %v1300 = vunpack.c.l.b16 %v324
  %v1301 = vunpack.c.h.b16 %v324
  %v1302 = vunpack.c.l.b16 %v325
  %v1303 = vunpack.c.h.b16 %v325
  %v1304 = vunpack.c.l.b16 %v326
  %v1305 = vunpack.c.h.b16 %v326
  %v1306 = vunpack.c.l.b16 %v327
  %v1307 = vunpack.c.h.b16 %v327
  %v1308 = vunpack.c.l.b16 %v328
  %v1309 = vunpack.c.h.b16 %v328
  %v1310 = vunpack.c.l.b16 %v329
  %v1311 = vunpack.c.h.b16 %v329
  %v1312 = vunpack.c.l.b16 %v330
  %v1313 = vunpack.c.h.b16 %v330
  %v1314 = vunpack.c.l.b16 %v331
  %v1315 = vunpack.c.h.b16 %v331
  %v1316 = vunpack.c.l.b16 %v332
  %v1317 = vunpack.c.h.b16 %v332
  %v1318 = vunpack.c.l.b16 %v333
  %v1319 = vunpack.c.h.b16 %v333
  %v1320 = vunpack.c.l.b16 %v334
  %v1321 = vunpack.c.h.b16 %v334
  %v1322 = vunpack.c.l.b16 %v335
  %v1323 = vunpack.c.h.b16 %v335
  %v1324 = vunpack.c.l.b16 %v336
  %v1325 = vunpack.c.h.b16 %v336
  %v1326 = vunpack.c.l.b16 %v337
  %v1327 = vunpack.c.h.b16 %v337
  %v1328 = vunpack.c.l.b16 %v338
  %v1329 = vunpack.c.h.b16 %v338
  %v1330 = vunpack.c.l.b16 %v339
  %v1331 = vunpack.c.h.b16 %v339
  %v1332 = vunpack.c.l.b16 %v340
  %v1333 = vunpack.c.h.b16 %v340
  %v1334 = vunpack.c.l.b16 %v341
  %v1335 = vunpack.c.h.b16 %v341
  %v1336 = vunpack.c.l.b16 %v342
  %v1337 = vunpack.c.h.b16 %v342
  %v1338 = vunpack.c.l.b16 %v343
  %v1339 = vunpack.c.h.b16 %v343
  %v1340 = vunpack.c.l.b16 %v344
  %v1341 = vunpack.c.h.b16 %v344
  %v1342 = vunpack.c.l.b16 %v345
  %v1343 = vunpack.c.h.b16 %v345
  %v1344 = vunpack.c.l.b16 %v346
  %v1345 = vpack.c.b16 %v778, %v715
  %v1346 = vpack.c.b16 %v779, %v716
  %v1347 = vpack.c.b16 %v780, %v717
  %v1348 = vpack.c.b16 %v781, %v718
  %v1349 = vpack.c.b16 %v782, %v719
  %v1350 = vpack.c.b16 %v783, %v720
  %v1351 = vpack.c.b16 %v784, %v721
  %v1352 = vpack.c.b16 %v785, %v722
  %v1353 = vpack.c.b16 %v786, %v723
  %v1354 = vpack.c.b16 %v787, %v724
  %v1355 = vpack.c.b16 %v788, %v725
  %v1356 = vpack.c.b16 %v789, %v726
  %v1357 = vpack.c.b16 %v790, %v727
  %v1358 = vpack.c.b16 %v791, %v728
  %v1359 = vpack.c.b16 %v792, %v729
  %v1360 = vpack.c.b16 %v793, %v730
  %v1361 = vpack.c.b16 %v794, %v731
  %v1362 = vpack.c.b16 %v795, %v732
  %v1363 = vpack.c.b16 %v796, %v733
  %v1364 = vpack.c.b16 %v797, %v734
  %v1365 = vpack.c.b16 %v798, %v735
  %v1366 = vpack.c.b16 %v799, %v736
  %v1367 = vpack.c.b16 %v800, %v737
  %v1368 = vpack.c.b16 %v801, %v738
  %v1369 = vpack.c.b16 %v802, %v739
  %v1370 = vpack.c.b16 %v803, %v740
  %v1371 = vpack.c.b16 %v804, %v741
  %v1372 = vpack.c.b16 %v805, %v742
  %v1373 = vpack.c.b16 %v806, %v743
  %v1374 = vpack.c.b16 %v807, %v744
  %v1375 = vpack.c.b16 %v808, %v745
  %v1376 = vpack.c.b16 %v809, %v746
  %v1377 = vpack.c.b16 %v810, %v747
  %v1378 = vpack.c.b16 %v811, %v748
  %v1379 = vpack.c.b16 %v812, %v749
  %v1380 = vpack.c.b16 %v813, %v750
  %v1381 = vpack.c.b16 %v814, %v751
  %v1382 = vpack.c.b16 %v815, %v752
  %v1383 = vpack.c.b16 %v816, %v753
  %v1384 = vpack.c.b16 %v817, %v754
  %v1385 = vpack.c.b16 %v818, %v755
  %v1386 = vpack.c.b16 %v819, %v756
  %v1387 = vpack.c.b16 %v820, %v757
  %v1388 = vpack.c.b16 %v821, %v758
  %v1389 = vpack.c.b16 %v822, %v759
  %v1390 = vpack.c.b16 %v823, %v760
  %v1391 = vpack.c.b16 %v824, %v761
  %v1392 = vpack.c.b16 %v825, %v762
  %v1393 = vpack.c.b16 %v826, %v763
  %v1394 = vpack.c.b16 %v827, %v764
  %v1395 = vpack.c.b16 %v828, %v765
  %v1396 = vpack.c.b16 %v829, %v766
  %v1397 = vpack.c.b16 %v830, %v767
  %v1398 = vpack.c.b16 %v831, %v768
  %v1399 = vpack.c.b16 %v832, %v769
  %v1400 = vpack.c.b16 %v833, %v770
  %v1401 = vpack.c.b16 %v834, %v771
  %v1402 = vpack.c.b16 %v835, %v772
  %v1403 = vpack.c.b16 %v836, %v773
  %v1404 = vpack.c.b16 %v837, %v774
  %v1405 = vpack.c.b16 %v838, %v775
  %v1406 = vpack.c.b16 %v839, %v776
  %v1407 = vpack.c.b16 %v840, %v777
  %v1408 = vpack.c.b16 %v904, %v841
  %v1409 = vpack.c.b16 %v905, %v842
  %v1410 = vpack.c.b16 %v906, %v843
  %v1411 = vpack.c.b16 %v907, %v844
  %v1412 = vpack.c.b16 %v908, %v845
  %v1413 = vpack.c.b16 %v909, %v846
  %v1414 = vpack.c.b16 %v910, %v847
  %v1415 = vpack.c.b16 %v911, %v848
  %v1416 = vpack.c.b16 %v912, %v849
  %v1417 = vpack.c.b16 %v913, %v850
  %v1418 = vpack.c.b16 %v914, %v851
  %v1419 = vpack.c.b16 %v915, %v852
  %v1420 = vpack.c.b16 %v916, %v853
  %v1421 = vpack.c.b16 %v917, %v854
  %v1422 = vpack.c.b16 %v918, %v855
  %v1423 = vpack.c.b16 %v919, %v856
  %v1424 = vpack.c.b16 %v920, %v857
  %v1425 = vpack.c.b16 %v921, %v858
  %v1426 = vpack.c.b16 %v922, %v859
  %v1427 = vpack.c.b16 %v923, %v860
  %v1428 = vpack.c.b16 %v924, %v861
  %v1429 = vpack.c.b16 %v925, %v862
  %v1430 = vpack.c.b16 %v926, %v863
  %v1431 = vpack.c.b16 %v927, %v864
  %v1432 = vpack.c.b16 %v928, %v865
  %v1433 = vpack.c.b16 %v929, %v866
  %v1434 = vpack.c.b16 %v930, %v867
  %v1435 = vpack.c.b16 %v931, %v868
  %v1436 = vpack.c.b16 %v932, %v869
  %v1437 = vpack.c.b16 %v933, %v870
  %v1438 = vpack.c.b16 %v934, %v871
  %v1439 = vpack.c.b16 %v935, %v872
  %v1440 = vpack.c.b16 %v936, %v873
  %v1441 = vpack.c.b16 %v937, %v874
  %v1442 = vpack.c.b16 %v938, %v875
  %v1443 = vpack.c.b16 %v939, %v876
  %v1444 = vpack.c.b16 %v940, %v877
  %v1445 = vpack.c.b16 %v941, %v878
  %v1446 = vpack.c.b16 %v942, %v879
  %v1447 = vpack.c.b16 %v943, %v880
  %v1448 = vpack.c.b16 %v944, %v881
  %v1449 = vpack.c.b16 %v945, %v882
  %v1450 = vpack.c.b16 %v946, %v883
  %v1451 = vpack.c.b16 %v947, %v884
  %v1452 = vpack.c.b16 %v948, %v885
  %v1453 = vpack.c.b16 %v949, %v886
  %v1454 = vpack.c.b16 %v950, %v887
  %v1455 = vpack.c.b16 %v951, %v888
  %v1456 = vpack.c.b16 %v952, %v889
  %v1457 = vpack.c.b16 %v953, %v890
  %v1458 = vpack.c.b16 %v954, %v891
  %v1459 = vpack.c.b16 %v955, %v892
  %v1460 = vpack.c.b16 %v956, %v893
  %v1461 = vpack.c.b16 %v957, %v894
  %v1462 = vpack.c.b16 %v958, %v895
  %v1463 = vpack.c.b16 %v959, %v896
  %v1464 = vpack.c.b16 %v960, %v897
  %v1465 = vpack.c.b16 %v961, %v898
  %v1466 = vpack.c.b16 %v962, %v899
  %v1467 = vpack.c.b16 %v963, %v900
  %v1468 = vpack.c.b16 %v964, %v901
  %v1469 = vpack.c.b16 %v965, %v902
  %v1470 = vpack.c.b16 %v966, %v903
  %v1471 = vpack.c.b16 %v1030, %v967
  %v1472 = vpack.c.b16 %v1031, %v968
  %v1473 = vpack.c.b16 %v1032, %v969
  %v1474 = vpack.c.b16 %v1033, %v970
  %v1475 = vpack.c.b16 %v1034, %v971
  %v1476 = vpack.c.b16 %v1035, %v972
  %v1477 = vpack.c.b16 %v1036, %v973
  %v1478 = vpack.c.b16 %v1037, %v974
  %v1479 = vpack.c.b16 %v1038, %v975
  %v1480 = vpack.c.b16 %v1039, %v976
  %v1481 = vpack.c.b16 %v1040, %v977
  %v1482 = vpack.c.b16 %v1041, %v978
  %v1483 = vpack.c.b16 %v1042, %v979
  %v1484 = vpack.c.b16 %v1043, %v980
  %v1485 = vpack.c.b16 %v1044, %v981
  %v1486 = vpack.c.b16 %v1045, %v982
  %v1487 = vpack.c.b16 %v1046, %v983
  %v1488 = vpack.c.b16 %v1047, %v984
  %v1489 = vpack.c.b16 %v1048, %v985
  %v1490 = vpack.c.b16 %v1049, %v986
  %v1491 = vpack.c.b16 %v1050, %v987
  %v1492 = vpack.c.b16 %v1051, %v988
  %v1493 = vpack.c.b16 %v1052, %v989
  %v1494 = vpack.c.b16 %v1053, %v990
  %v1495 = vpack.c.b16 %v1054, %v991
  %v1496 = vpack.c.b16 %v1055, %v992
  %v1497 = vpack.c.b16 %v1056, %v993
  %v1498 = vpack.c.b16 %v1057, %v994
  %v1499 = vpack.c.b16 %v1058, %v995
  %v1500 = vpack.c.b16 %v1059, %v996
  %v1501 = vpack.c.b16 %v1060, %v997
  %v1502 = vpack.c.b16 %v1061, %v998
  %v1503 = vpack.c.b16 %v1062, %v999
  %v1504 = vpack.c.b16 %v1063, %v1000
  %v1505 = vpack.c.b16 %v1064, %v1001
  %v1506 = vpack.c.b16 %v1065, %v1002
  %v1507 = vpack.c.b16 %v1066, %v1003
  %v1508 = vpack.c.b16 %v1067, %v1004
  %v1509 = vpack.c.b16 %v1068, %v1005
  %v1510 = vpack.c.b16 %v1069, %v1006
  %v1511 = vpack.c.b16 %v1070, %v1007
  %v1512 = vpack.c.b16 %v1071, %v1008
  %v1513 = vpack.c.b16 %v1072, %v1009
  %v1514 = vpack.c.b16 %v1073, %v1010
  %v1515 = vpack.c.b16 %v1074, %v1011
  %v1516 = vpack.c.b16 %v1075, %v1012
  %v1517 = vpack.c.b16 %v1076, %v1013
  %v1518 = vpack.c.b16 %v1077, %v1014
  %v1519 = vpack.c.b16 %v1078, %v1015
  %v1520 = vpack.c.b16 %v1079, %v1016
  %v1521 = vpack.c.b16 %v1080, %v1017
  %v1522 = vpack.c.b16 %v1081, %v1018
  %v1523 = vpack.c.b16 %v1082, %v1019
  %v1524 = vpack.c.b16 %v1083, %v1020
  %v1525 = vpack.c.b16 %v1084, %v1021
  %v1526 = vpack.c.b16 %v1085, %v1022
  %v1527 = vpack.c.b16 %v1086, %v1023
  %v1528 = vpack.c.b16 %v1087, %v1024
  %v1529 = vpack.c.b16 %v1088, %v1025
  %v1530 = vpack.c.b16 %v1089, %v1026
  %v1531 = vpack.c.b16 %v1090, %v1027
  %v1532 = vpack.c.b16 %v1091, %v1028
  %v1533 = vpack.c.b16 %v1092, %v1029
  %v1534 = vpack.c.b16 %v1156, %v1093
  %v1535 = vpack.c.b16 %v1157, %v1094
  %v1536 = vpack.c.b16 %v1158, %v1095
  %v1537 = vpack.c.b16 %v1159, %v1096
  %v1538 = vpack.c.b16 %v1160, %v1097
  %v1539 = vpack.c.b16 %v1161, %v1098
  %v1540 = vpack.c.b16 %v1162, %v1099
  %v1541 = vpack.c.b16 %v1163, %v1100
  %v1542 = vpack.c.b16 %v1164, %v1101
  %v1543 = vpack.c.b16 %v1165, %v1102
  %v1544 = vpack.c.b16 %v1166, %v1103
  %v1545 = vpack.c.b16 %v1167, %v1104
  %v1546 = vpack.c.b16 %v1168, %v1105
  %v1547 = vpack.c.b16 %v1169, %v1106
  %v1548 = vpack.c.b16 %v1170, %v1107
  %v1549 = vpack.c.b16 %v1171, %v1108
  %v1550 = vpack.c.b16 %v1172, %v1109
  %v1551 = vpack.c.b16 %v1173, %v1110
  %v1552 = vpack.c.b16 %v1174, %v1111
  %v1553 = vpack.c.b16 %v1175, %v1112
  %v1554 = vpack.c.b16 %v1176, %v1113
  %v1555 = vpack.c.b16 %v1177, %v1114
  %v1556 = vpack.c.b16 %v1178, %v1115
  %v1557 = vpack.c.b16 %v1179, %v1116
  %v1558 = vpack.c.b16 %v1180, %v1117
  %v1559 = vpack.c.b16 %v1181, %v1118
  %v1560 = vpack.c.b16 %v1182, %v1119
  %v1561 = vpack.c.b16 %v1183, %v1120
  %v1562 = vpack.c.b16 %v1184, %v1121
  %v1563 = vpack.c.b16 %v1185, %v1122
  %v1564 = vpack.c.b16 %v1186, %v1123
  %v1565 = vpack.c.b16 %v1187, %v1124
  %v1566 = vpack.c.b16 %v1188, %v1125
  %v1567 = vpack.c.b16 %v1189, %v1126
  %v1568 = vpack.c.b16 %v1190, %v1127
  %v1569 = vpack.c.b16 %v1191, %v1128
  %v1570 = vpack.c.b16 %v1192, %v1129
  %v1571 = vpack.c.b16 %v1193, %v1130
  %v1572 = vpack.c.b16 %v1194, %v1131
  %v1573 = vpack.c.b16 %v1195, %v1132
  %v1574 = vpack.c.b16 %v1196, %v1133
  %v1575 = vpack.c.b16 %v1197, %v1134
  %v1576 = vpack.c.b16 %v1198, %v1135
  %v1577 = vpack.c.b16 %v1199, %v1136
  %v1578 = vpack.c.b16 %v1200, %v1137
  %v1579 = vpack.c.b16 %v1201, %v1138
  %v1580 = vpack.c.b16 %v1202, %v1139
  %v1581 = vpack.c.b16 %v1203, %v1140
  %v1582 = vpack.c.b16 %v1204, %v1141
  %v1583 = vpack.c.b16 %v1205, %v1142
  %v1584 = vpack.c.b16 %v1206, %v1143
  %v1585 = vpack.c.b16 %v1207, %v1144
  %v1586 = vpack.c.b16 %v1208, %v1145
  %v1587 = vpack.c.b16 %v1209, %v1146
  %v1588 = vpack.c.b16 %v1210, %v1147
  %v1589 = vpack.c.b16 %v1211, %v1148
  %v1590 = vpack.c.b16 %v1212, %v1149
  %v1591 = vpack.c.b16 %v1213, %v1150
  %v1592 = vpack.c.b16 %v1214, %v1151
  %v1593 = vpack.c.b16 %v1215, %v1152
  %v1594 = vpack.c.b16 %v1216, %v1153
  %v1595 = vpack.c.b16 %v1217, %v1154
  %v1596 = vpack.c.b16 %v1218, %v1155
  %v1597 = vpack.c.b16 %v1282, %v1219
  %v1598 = vpack.c.b16 %v1283, %v1220
  %v1599 = vpack.c.b16 %v1284, %v1221
  %v1600 = vpack.c.b16 %v1285, %v1222
  %v1601 = vpack.c.b16 %v1286, %v1223
  %v1602 = vpack.c.b16 %v1287, %v1224
  %v1603 = vpack.c.b16 %v1288, %v1225
  %v1604 = vpack.c.b16 %v1289, %v1226
  %v1605 = vpack.c.b16 %v1290, %v1227
  %v1606 = vpack.c.b16 %v1291, %v1228
  %v1607 = vpack.c.b16 %v1292, %v1229
  %v1608 = vpack.c.b16 %v1293, %v1230
  %v1609 = vpack.c.b16 %v1294, %v1231
  %v1610 = vpack.c.b16 %v1295, %v1232
  %v1611 = vpack.c.b16 %v1296, %v1233
  %v1612 = vpack.c.b16 %v1297, %v1234
  %v1613 = vpack.c.b16 %v1298, %v1235
  %v1614 = vpack.c.b16 %v1299, %v1236
  %v1615 = vpack.c.b16 %v1300, %v1237
  %v1616 = vpack.c.b16 %v1301, %v1238
  %v1617 = vpack.c.b16 %v1302, %v1239
  %v1618 = vpack.c.b16 %v1303, %v1240
  %v1619 = vpack.c.b16 %v1304, %v1241
  %v1620 = vpack.c.b16 %v1305, %v1242
  %v1621 = vpack.c.b16 %v1306, %v1243
  %v1622 = vpack.c.b16 %v1307, %v1244
  %v1623 = vpack.c.b16 %v1308, %v1245
  %v1624 = vpack.c.b16 %v1309, %v1246
  %v1625 = vpack.c.b16 %v1310, %v1247
  %v1626 = vpack.c.b16 %v1311, %v1248
  %v1627 = vpack.c.b16 %v1312, %v1249
  %v1628 = vpack.c.b16 %v1313, %v1250
  %v1629 = vpack.c.b16 %v1314, %v1251
  %v1630 = vpack.c.b16 %v1315, %v1252
  %v1631 = vpack.c.b16 %v1316, %v1253
  %v1632 = vpack.c.b16 %v1317, %v1254
  %v1633 = vpack.c.b16 %v1318, %v1255
  %v1634 = vpack.c.b16 %v1319, %v1256
  %v1635 = vpack.c.b16 %v1320, %v1257
  %v1636 = vpack.c.b16 %v1321, %v1258
  %v1637 = vpack.c.b16 %v1322, %v1259
  %v1638 = vpack.c.b16 %v1323, %v1260
  %v1639 = vpack.c.b16 %v1324, %v1261
  %v1640 = vpack.c.b16 %v1325, %v1262
  %v1641 = vpack.c.b16 %v1326, %v1263
  %v1642 = vpack.c.b16 %v1327, %v1264
  %v1643 = vpack.c.b16 %v1328, %v1265
  %v1644 = vpack.c.b16 %v1329, %v1266
  %v1645 = vpack.c.b16 %v1330, %v1267
  %v1646 = vpack.c.b16 %v1331, %v1268
  %v1647 = vpack.c.b16 %v1332, %v1269
  %v1648 = vpack.c.b16 %v1333, %v1270
  %v1649 = vpack.c.b16 %v1334, %v1271
  %v1650 = vpack.c.b16 %v1335, %v1272
  %v1651 = vpack.c.b16 %v1336, %v1273
  %v1652 = vpack.c.b16 %v1337, %v1274
  %v1653 = vpack.c.b16 %v1338, %v1275
  %v1654 = vpack.c.b16 %v1339, %v1276
  %v1655 = vpack.c.b16 %v1340, %v1277
  %v1656 = vpack.c.b16 %v1341, %v1278
  %v1657 = vpack.c.b16 %v1342, %v1279
  %v1658 = vpack.c.b16 %v1343, %v1280
  %v1659 = vpack.c.b16 %v1344, %v1281
  %vm1912 = vcmask 613376
  %v1914 = vsel %vm1912, %v392, 0
  %v1917 = vsel %vm1912, %v393, 0
  %v1920 = vsel %vm1912, %v394, 0
  %vm1922 = vcmask 1044480
  %vm1923 = vcmask 1045504
  %v1924 = vsel %vm1922, 4294967295, 65535
  %v1925 = vsel %vm1923, %v1924, 0
  %v1927 = vand.u32 %v1597, %v1925
  %v1930 = vand.u32 %v1598, %v1925
  %v1933 = vand.u32 %v1599, %v1925
  %v1936 = vand.u32 %v1600, %v1925
  %v1939 = vand.u32 %v1601, %v1925
  %v1942 = vand.u32 %v1602, %v1925
  %v1945 = vand.u32 %v1603, %v1925
  %v1948 = vand.u32 %v1604, %v1925
  %v1951 = vand.u32 %v1605, %v1925
  %v1954 = vand.u32 %v1606, %v1925
  %v1957 = vand.u32 %v1607, %v1925
  %v1960 = vand.u32 %v1608, %v1925
  %v1963 = vand.u32 %v1609, %v1925
  %v1966 = vand.u32 %v1610, %v1925
  %v1969 = vand.u32 %v1611, %v1925
  %v1972 = vand.u32 %v1612, %v1925
  %v1975 = vand.u32 %v1613, %v1925
  %v1978 = vand.u32 %v1614, %v1925
  %v1981 = vand.u32 %v1615, %v1925
  %v1984 = vand.u32 %v1616, %v1925
  %v1987 = vand.u32 %v1617, %v1925
  %v1990 = vand.u32 %v1618, %v1925
  %v1993 = vand.u32 %v1619, %v1925
  %v1996 = vand.u32 %v1620, %v1925
  %v1999 = vand.u32 %v1621, %v1925
  %v2002 = vand.u32 %v1622, %v1925
  %v2005 = vand.u32 %v1623, %v1925
  %v2008 = vand.u32 %v1624, %v1925
  %v2011 = vand.u32 %v1625, %v1925
  %v2014 = vand.u32 %v1626, %v1925
  %v2017 = vand.u32 %v1627, %v1925
  %v2020 = vand.u32 %v1628, %v1925
  %v2023 = vand.u32 %v1629, %v1925
  %v2026 = vand.u32 %v1630, %v1925
  %v2029 = vand.u32 %v1631, %v1925
  %v2032 = vand.u32 %v1632, %v1925
  %v2035 = vand.u32 %v1633, %v1925
  %v2038 = vand.u32 %v1634, %v1925
  %v2041 = vand.u32 %v1635, %v1925
  %v2044 = vand.u32 %v1636, %v1925
  %v2047 = vand.u32 %v1637, %v1925
  %v2050 = vand.u32 %v1638, %v1925
  %v2053 = vand.u32 %v1639, %v1925
  %v2056 = vand.u32 %v1640, %v1925
  %v2059 = vand.u32 %v1641, %v1925
  %v2062 = vand.u32 %v1642, %v1925
  %v2065 = vand.u32 %v1643, %v1925
  %v2068 = vand.u32 %v1644, %v1925
  %v2071 = vand.u32 %v1645, %v1925
  %v2074 = vand.u32 %v1646, %v1925
  %v2077 = vand.u32 %v1647, %v1925
  %v2080 = vand.u32 %v1648, %v1925
  %v2083 = vand.u32 %v1649, %v1925
  %v2086 = vand.u32 %v1650, %v1925
  %v2089 = vand.u32 %v1651, %v1925
  %v2092 = vand.u32 %v1652, %v1925
  %v2095 = vand.u32 %v1653, %v1925
  %v2098 = vand.u32 %v1654, %v1925
  %v2101 = vand.u32 %v1655, %v1925
  %v2104 = vand.u32 %v1656, %v1925
  %v2107 = vand.u32 %v1657, %v1925
  %v2110 = vand.u32 %v1658, %v1925
  %v2113 = vand.u32 %v1659, %v1925
  %2115 = vmatpush.bf16.msra.mxu0 0
  %2116 = vmatpush.bf16.msra.mxu0 0
  %2117 = vmatpush.bf16.msra.mxu0 0
  %2118 = vmatpush.bf16.msra.mxu0 %v1927
  %2119 = vmatpush.bf16.msra.mxu0 %v1534
  %2120 = vmatpush.bf16.msra.mxu0 %v1471
  %2121 = vmatpush.bf16.msra.mxu0 %v1408
  %2122 = vmatpush.bf16.msra.mxu0 %v1345
  %2123 = vmatmul.bf16.gmra.mxu0 %v1914
  %v2124 = vpop.f32.mrf.mxu0
  %v2125 = vadd.f32 %v360, %v2124
  %v2126 = vpop.f32.mrf.mxu0
  %v2127 = vadd.f32 %v365, %v2126
  %2128 = vmatmul.bf16.gmra.mxu0 %v1917
  %v2129 = vpop.f32.mrf.mxu0
  %v2130 = vadd.f32 %v370, %v2129
  %v2131 = vpop.f32.mrf.mxu0
  %v2132 = vadd.f32 %v375, %v2131
  %2133 = vmatmul.bf16.gmra.mxu0 %v1920
  %v2134 = vpop.f32.mrf.mxu0
  %v2135 = vadd.f32 %v380, %v2134
  %v2136 = vpop.f32.mrf.mxu0
  %2137 = vdwg.mxu0
  %2138 = vmatpush.bf16.msra.mxu0 0
  %2139 = vmatpush.bf16.msra.mxu0 0
  %2140 = vmatpush.bf16.msra.mxu0 0
  %2141 = vmatpush.bf16.msra.mxu0 %v1930
  %2142 = vmatpush.bf16.msra.mxu0 %v1535
  %2143 = vmatpush.bf16.msra.mxu0 %v1472
  %2144 = vmatpush.bf16.msra.mxu0 %v1409
  %2145 = vmatpush.bf16.msra.mxu0 %v1346
  %2146 = vmatmul.bf16.gmra.mxu0 %v1914
  %v2147 = vpop.f32.mrf.mxu0
  %v2148 = vadd.f32 %v360, %v2147
  %v2149 = vpop.f32.mrf.mxu0
  %v2150 = vadd.f32 %v365, %v2149
  %2151 = vmatmul.bf16.gmra.mxu0 %v1917
  %v2152 = vpop.f32.mrf.mxu0
  %v2153 = vadd.f32 %v370, %v2152
  %v2154 = vpop.f32.mrf.mxu0
  %v2155 = vadd.f32 %v375, %v2154
  %2156 = vmatmul.bf16.gmra.mxu0 %v1920
  %v2157 = vpop.f32.mrf.mxu0
  %v2158 = vadd.f32 %v380, %v2157
  %v2159 = vpop.f32.mrf.mxu0
  %2160 = vdwg.mxu0
  %2161 = vmatpush.bf16.msra.mxu0 0
  %2162 = vmatpush.bf16.msra.mxu0 0
  %2163 = vmatpush.bf16.msra.mxu0 0
  %2164 = vmatpush.bf16.msra.mxu0 %v1933
  %2165 = vmatpush.bf16.msra.mxu0 %v1536
  %2166 = vmatpush.bf16.msra.mxu0 %v1473
  %2167 = vmatpush.bf16.msra.mxu0 %v1410
  %2168 = vmatpush.bf16.msra.mxu0 %v1347
  %2169 = vmatmul.bf16.gmra.mxu0 %v1914
  %v2170 = vpop.f32.mrf.mxu0
  %v2171 = vadd.f32 %v360, %v2170
  %v2172 = vpop.f32.mrf.mxu0
  %v2173 = vadd.f32 %v365, %v2172
  %2174 = vmatmul.bf16.gmra.mxu0 %v1917
  %v2175 = vpop.f32.mrf.mxu0
  %v2176 = vadd.f32 %v370, %v2175
  %v2177 = vpop.f32.mrf.mxu0
  %v2178 = vadd.f32 %v375, %v2177
  %2179 = vmatmul.bf16.gmra.mxu0 %v1920
  %v2180 = vpop.f32.mrf.mxu0
  %v2181 = vadd.f32 %v380, %v2180
  %v2182 = vpop.f32.mrf.mxu0
  %2183 = vdwg.mxu0
  %2184 = vmatpush.bf16.msra.mxu0 0
  %2185 = vmatpush.bf16.msra.mxu0 0
  %2186 = vmatpush.bf16.msra.mxu0 0
  %2187 = vmatpush.bf16.msra.mxu0 %v1936
  %2188 = vmatpush.bf16.msra.mxu0 %v1537
  %2189 = vmatpush.bf16.msra.mxu0 %v1474
  %2190 = vmatpush.bf16.msra.mxu0 %v1411
  %2191 = vmatpush.bf16.msra.mxu0 %v1348
  %2192 = vmatmul.bf16.gmra.mxu0 %v1914
  %v2193 = vpop.f32.mrf.mxu0
  %v2194 = vadd.f32 %v360, %v2193
  %v2195 = vpop.f32.mrf.mxu0
  %v2196 = vadd.f32 %v365, %v2195
  %2197 = vmatmul.bf16.gmra.mxu0 %v1917
  %v2198 = vpop.f32.mrf.mxu0
  %v2199 = vadd.f32 %v370, %v2198
  %v2200 = vpop.f32.mrf.mxu0
  %v2201 = vadd.f32 %v375, %v2200
  %2202 = vmatmul.bf16.gmra.mxu0 %v1920
  %v2203 = vpop.f32.mrf.mxu0
  %v2204 = vadd.f32 %v380, %v2203
  %v2205 = vpop.f32.mrf.mxu0
  %2206 = vdwg.mxu0
  %2207 = vmatpush.bf16.msra.mxu0 0
  %2208 = vmatpush.bf16.msra.mxu0 0
  %2209 = vmatpush.bf16.msra.mxu0 0
  %2210 = vmatpush.bf16.msra.mxu0 %v1939
  %2211 = vmatpush.bf16.msra.mxu0 %v1538
  %2212 = vmatpush.bf16.msra.mxu0 %v1475
  %2213 = vmatpush.bf16.msra.mxu0 %v1412
  %2214 = vmatpush.bf16.msra.mxu0 %v1349
  %2215 = vmatmul.bf16.gmra.mxu0 %v1914
  %v2216 = vpop.f32.mrf.mxu0
  %v2217 = vadd.f32 %v360, %v2216
  %v2218 = vpop.f32.mrf.mxu0
  %v2219 = vadd.f32 %v365, %v2218
  %2220 = vmatmul.bf16.gmra.mxu0 %v1917
  %v2221 = vpop.f32.mrf.mxu0
  %v2222 = vadd.f32 %v370, %v2221
  %v2223 = vpop.f32.mrf.mxu0
  %v2224 = vadd.f32 %v375, %v2223
  %2225 = vmatmul.bf16.gmra.mxu0 %v1920
  %v2226 = vpop.f32.mrf.mxu0
  %v2227 = vadd.f32 %v380, %v2226
  %v2228 = vpop.f32.mrf.mxu0
  %2229 = vdwg.mxu0
  %2230 = vmatpush.bf16.msra.mxu0 0
  %2231 = vmatpush.bf16.msra.mxu0 0
  %2232 = vmatpush.bf16.msra.mxu0 0
  %2233 = vmatpush.bf16.msra.mxu0 %v1942
  %2234 = vmatpush.bf16.msra.mxu0 %v1539
  %2235 = vmatpush.bf16.msra.mxu0 %v1476
  %2236 = vmatpush.bf16.msra.mxu0 %v1413
  %2237 = vmatpush.bf16.msra.mxu0 %v1350
  %2238 = vmatmul.bf16.gmra.mxu0 %v1914
  %v2239 = vpop.f32.mrf.mxu0
  %v2240 = vadd.f32 %v360, %v2239
  %v2241 = vpop.f32.mrf.mxu0
  %v2242 = vadd.f32 %v365, %v2241
  %2243 = vmatmul.bf16.gmra.mxu0 %v1917
  %v2244 = vpop.f32.mrf.mxu0
  %v2245 = vadd.f32 %v370, %v2244
  %v2246 = vpop.f32.mrf.mxu0
  %v2247 = vadd.f32 %v375, %v2246
  %2248 = vmatmul.bf16.gmra.mxu0 %v1920
  %v2249 = vpop.f32.mrf.mxu0
  %v2250 = vadd.f32 %v380, %v2249
  %v2251 = vpop.f32.mrf.mxu0
  %2252 = vdwg.mxu0
  %2253 = vmatpush.bf16.msra.mxu0 0
  %2254 = vmatpush.bf16.msra.mxu0 0
  %2255 = vmatpush.bf16.msra.mxu0 0
  %2256 = vmatpush.bf16.msra.mxu0 %v1945
  %2257 = vmatpush.bf16.msra.mxu0 %v1540
  %2258 = vmatpush.bf16.msra.mxu0 %v1477
  %2259 = vmatpush.bf16.msra.mxu0 %v1414
  %2260 = vmatpush.bf16.msra.mxu0 %v1351
  %2261 = vmatmul.bf16.gmra.mxu0 %v1914
  %v2262 = vpop.f32.mrf.mxu0
  %v2263 = vadd.f32 %v360, %v2262
  %v2264 = vpop.f32.mrf.mxu0
  %v2265 = vadd.f32 %v365, %v2264
  %2266 = vmatmul.bf16.gmra.mxu0 %v1917
  %v2267 = vpop.f32.mrf.mxu0
  %v2268 = vadd.f32 %v370, %v2267
  %v2269 = vpop.f32.mrf.mxu0
  %v2270 = vadd.f32 %v375, %v2269
  %2271 = vmatmul.bf16.gmra.mxu0 %v1920
  %v2272 = vpop.f32.mrf.mxu0
  %v2273 = vadd.f32 %v380, %v2272
  %v2274 = vpop.f32.mrf.mxu0
  %2275 = vdwg.mxu0
  %2276 = vmatpush.bf16.msra.mxu0 0
  %2277 = vmatpush.bf16.msra.mxu0 0
  %2278 = vmatpush.bf16.msra.mxu0 0
  %2279 = vmatpush.bf16.msra.mxu0 %v1948
  %2280 = vmatpush.bf16.msra.mxu0 %v1541
  %2281 = vmatpush.bf16.msra.mxu0 %v1478
  %2282 = vmatpush.bf16.msra.mxu0 %v1415
  %2283 = vmatpush.bf16.msra.mxu0 %v1352
  %2284 = vmatmul.bf16.gmra.mxu0 %v1914
  %v2285 = vpop.f32.mrf.mxu0
  %v2286 = vadd.f32 %v360, %v2285
  %v2287 = vpop.f32.mrf.mxu0
  %v2288 = vadd.f32 %v365, %v2287
  %2289 = vmatmul.bf16.gmra.mxu0 %v1917
  %v2290 = vpop.f32.mrf.mxu0
  %v2291 = vadd.f32 %v370, %v2290
  %v2292 = vpop.f32.mrf.mxu0
  %v2293 = vadd.f32 %v375, %v2292
  %2294 = vmatmul.bf16.gmra.mxu0 %v1920
  %v2295 = vpop.f32.mrf.mxu0
  %v2296 = vadd.f32 %v380, %v2295
  %v2297 = vpop.f32.mrf.mxu0
  %2298 = vdwg.mxu0
  %2299 = vmatpush.bf16.msra.mxu0 0
  %2300 = vmatpush.bf16.msra.mxu0 0
  %2301 = vmatpush.bf16.msra.mxu0 0
  %2302 = vmatpush.bf16.msra.mxu0 %v1951
  %2303 = vmatpush.bf16.msra.mxu0 %v1542
  %2304 = vmatpush.bf16.msra.mxu0 %v1479
  %2305 = vmatpush.bf16.msra.mxu0 %v1416
  %2306 = vmatpush.bf16.msra.mxu0 %v1353
  %2307 = vmatmul.bf16.gmra.mxu0 %v1914
  %v2308 = vpop.f32.mrf.mxu0
  %v2309 = vadd.f32 %v360, %v2308
  %v2310 = vpop.f32.mrf.mxu0
  %v2311 = vadd.f32 %v365, %v2310
  %2312 = vmatmul.bf16.gmra.mxu0 %v1917
  %v2313 = vpop.f32.mrf.mxu0
  %v2314 = vadd.f32 %v370, %v2313
  %v2315 = vpop.f32.mrf.mxu0
  %v2316 = vadd.f32 %v375, %v2315
  %2317 = vmatmul.bf16.gmra.mxu0 %v1920
  %v2318 = vpop.f32.mrf.mxu0
  %v2319 = vadd.f32 %v380, %v2318
  %v2320 = vpop.f32.mrf.mxu0
  %2321 = vdwg.mxu0
  %2322 = vmatpush.bf16.msra.mxu0 0
  %2323 = vmatpush.bf16.msra.mxu0 0
  %2324 = vmatpush.bf16.msra.mxu0 0
  %2325 = vmatpush.bf16.msra.mxu0 %v1954
  %2326 = vmatpush.bf16.msra.mxu0 %v1543
  %2327 = vmatpush.bf16.msra.mxu0 %v1480
  %2328 = vmatpush.bf16.msra.mxu0 %v1417
  %2329 = vmatpush.bf16.msra.mxu0 %v1354
  %2330 = vmatmul.bf16.gmra.mxu0 %v1914
  %v2331 = vpop.f32.mrf.mxu0
  %v2332 = vadd.f32 %v360, %v2331
  %v2333 = vpop.f32.mrf.mxu0
  %v2334 = vadd.f32 %v365, %v2333
  %2335 = vmatmul.bf16.gmra.mxu0 %v1917
  %v2336 = vpop.f32.mrf.mxu0
  %v2337 = vadd.f32 %v370, %v2336
  %v2338 = vpop.f32.mrf.mxu0
  %v2339 = vadd.f32 %v375, %v2338
  %2340 = vmatmul.bf16.gmra.mxu0 %v1920
  %v2341 = vpop.f32.mrf.mxu0
  %v2342 = vadd.f32 %v380, %v2341
  %v2343 = vpop.f32.mrf.mxu0
  %2344 = vdwg.mxu0
  %2345 = vmatpush.bf16.msra.mxu0 0
  %2346 = vmatpush.bf16.msra.mxu0 0
  %2347 = vmatpush.bf16.msra.mxu0 0
  %2348 = vmatpush.bf16.msra.mxu0 %v1957
  %2349 = vmatpush.bf16.msra.mxu0 %v1544
  %2350 = vmatpush.bf16.msra.mxu0 %v1481
  %2351 = vmatpush.bf16.msra.mxu0 %v1418
  %2352 = vmatpush.bf16.msra.mxu0 %v1355
  %2353 = vmatmul.bf16.gmra.mxu0 %v1914
  %v2354 = vpop.f32.mrf.mxu0
  %v2355 = vadd.f32 %v360, %v2354
  %v2356 = vpop.f32.mrf.mxu0
  %v2357 = vadd.f32 %v365, %v2356
  %2358 = vmatmul.bf16.gmra.mxu0 %v1917
  %v2359 = vpop.f32.mrf.mxu0
  %v2360 = vadd.f32 %v370, %v2359
  %v2361 = vpop.f32.mrf.mxu0
  %v2362 = vadd.f32 %v375, %v2361
  %2363 = vmatmul.bf16.gmra.mxu0 %v1920
  %v2364 = vpop.f32.mrf.mxu0
  %v2365 = vadd.f32 %v380, %v2364
  %v2366 = vpop.f32.mrf.mxu0
  %2367 = vdwg.mxu0
  %2368 = vmatpush.bf16.msra.mxu0 0
  %2369 = vmatpush.bf16.msra.mxu0 0
  %2370 = vmatpush.bf16.msra.mxu0 0
  %2371 = vmatpush.bf16.msra.mxu0 %v1960
  %2372 = vmatpush.bf16.msra.mxu0 %v1545
  %2373 = vmatpush.bf16.msra.mxu0 %v1482
  %2374 = vmatpush.bf16.msra.mxu0 %v1419
  %2375 = vmatpush.bf16.msra.mxu0 %v1356
  %2376 = vmatmul.bf16.gmra.mxu0 %v1914
  %v2377 = vpop.f32.mrf.mxu0
  %v2378 = vadd.f32 %v360, %v2377
  %v2379 = vpop.f32.mrf.mxu0
  %v2380 = vadd.f32 %v365, %v2379
  %2381 = vmatmul.bf16.gmra.mxu0 %v1917
  %v2382 = vpop.f32.mrf.mxu0
  %v2383 = vadd.f32 %v370, %v2382
  %v2384 = vpop.f32.mrf.mxu0
  %v2385 = vadd.f32 %v375, %v2384
  %2386 = vmatmul.bf16.gmra.mxu0 %v1920
  %v2387 = vpop.f32.mrf.mxu0
  %v2388 = vadd.f32 %v380, %v2387
  %v2389 = vpop.f32.mrf.mxu0
  %2390 = vdwg.mxu0
  %2391 = vmatpush.bf16.msra.mxu0 0
  %2392 = vmatpush.bf16.msra.mxu0 0
  %2393 = vmatpush.bf16.msra.mxu0 0
  %2394 = vmatpush.bf16.msra.mxu0 %v1963
  %2395 = vmatpush.bf16.msra.mxu0 %v1546
  %2396 = vmatpush.bf16.msra.mxu0 %v1483
  %2397 = vmatpush.bf16.msra.mxu0 %v1420
  %2398 = vmatpush.bf16.msra.mxu0 %v1357
  %2399 = vmatmul.bf16.gmra.mxu0 %v1914
  %v2400 = vpop.f32.mrf.mxu0
  %v2401 = vadd.f32 %v360, %v2400
  %v2402 = vpop.f32.mrf.mxu0
  %v2403 = vadd.f32 %v365, %v2402
  %2404 = vmatmul.bf16.gmra.mxu0 %v1917
  %v2405 = vpop.f32.mrf.mxu0
  %v2406 = vadd.f32 %v370, %v2405
  %v2407 = vpop.f32.mrf.mxu0
  %v2408 = vadd.f32 %v375, %v2407
  %2409 = vmatmul.bf16.gmra.mxu0 %v1920
  %v2410 = vpop.f32.mrf.mxu0
  %v2411 = vadd.f32 %v380, %v2410
  %v2412 = vpop.f32.mrf.mxu0
  %2413 = vdwg.mxu0
  %2414 = vmatpush.bf16.msra.mxu0 0
  %2415 = vmatpush.bf16.msra.mxu0 0
  %2416 = vmatpush.bf16.msra.mxu0 0
  %2417 = vmatpush.bf16.msra.mxu0 %v1966
  %2418 = vmatpush.bf16.msra.mxu0 %v1547
  %2419 = vmatpush.bf16.msra.mxu0 %v1484
  %2420 = vmatpush.bf16.msra.mxu0 %v1421
  %2421 = vmatpush.bf16.msra.mxu0 %v1358
  %2422 = vmatmul.bf16.gmra.mxu0 %v1914
  %v2423 = vpop.f32.mrf.mxu0
  %v2424 = vadd.f32 %v360, %v2423
  %v2425 = vpop.f32.mrf.mxu0
  %v2426 = vadd.f32 %v365, %v2425
  %2427 = vmatmul.bf16.gmra.mxu0 %v1917
  %v2428 = vpop.f32.mrf.mxu0
  %v2429 = vadd.f32 %v370, %v2428
  %v2430 = vpop.f32.mrf.mxu0
  %v2431 = vadd.f32 %v375, %v2430
  %2432 = vmatmul.bf16.gmra.mxu0 %v1920
  %v2433 = vpop.f32.mrf.mxu0
  %v2434 = vadd.f32 %v380, %v2433
  %v2435 = vpop.f32.mrf.mxu0
  %2436 = vdwg.mxu0
  %2437 = vmatpush.bf16.msra.mxu0 0
  %2438 = vmatpush.bf16.msra.mxu0 0
  %2439 = vmatpush.bf16.msra.mxu0 0
  %2440 = vmatpush.bf16.msra.mxu0 %v1969
  %2441 = vmatpush.bf16.msra.mxu0 %v1548
  %2442 = vmatpush.bf16.msra.mxu0 %v1485
  %2443 = vmatpush.bf16.msra.mxu0 %v1422
  %2444 = vmatpush.bf16.msra.mxu0 %v1359
  %2445 = vmatmul.bf16.gmra.mxu0 %v1914
  %v2446 = vpop.f32.mrf.mxu0
  %v2447 = vadd.f32 %v360, %v2446
  %v2448 = vpop.f32.mrf.mxu0
  %v2449 = vadd.f32 %v365, %v2448
  %2450 = vmatmul.bf16.gmra.mxu0 %v1917
  %v2451 = vpop.f32.mrf.mxu0
  %v2452 = vadd.f32 %v370, %v2451
  %v2453 = vpop.f32.mrf.mxu0
  %v2454 = vadd.f32 %v375, %v2453
  %2455 = vmatmul.bf16.gmra.mxu0 %v1920
  %v2456 = vpop.f32.mrf.mxu0
  %v2457 = vadd.f32 %v380, %v2456
  %v2458 = vpop.f32.mrf.mxu0
  %2459 = vdwg.mxu0
  %2460 = vmatpush.bf16.msra.mxu0 0
  %2461 = vmatpush.bf16.msra.mxu0 0
  %2462 = vmatpush.bf16.msra.mxu0 0
  %2463 = vmatpush.bf16.msra.mxu0 %v1972
  %2464 = vmatpush.bf16.msra.mxu0 %v1549
  %2465 = vmatpush.bf16.msra.mxu0 %v1486
  %2466 = vmatpush.bf16.msra.mxu0 %v1423
  %2467 = vmatpush.bf16.msra.mxu0 %v1360
  %2468 = vmatmul.bf16.gmra.mxu0 %v1914
  %v2469 = vpop.f32.mrf.mxu0
  %v2470 = vadd.f32 %v360, %v2469
  %v2471 = vpop.f32.mrf.mxu0
  %v2472 = vadd.f32 %v365, %v2471
  %2473 = vmatmul.bf16.gmra.mxu0 %v1917
  %v2474 = vpop.f32.mrf.mxu0
  %v2475 = vadd.f32 %v370, %v2474
  %v2476 = vpop.f32.mrf.mxu0
  %v2477 = vadd.f32 %v375, %v2476
  %2478 = vmatmul.bf16.gmra.mxu0 %v1920
  %v2479 = vpop.f32.mrf.mxu0
  %v2480 = vadd.f32 %v380, %v2479
  %v2481 = vpop.f32.mrf.mxu0
  %2482 = vdwg.mxu0
  %2483 = vmatpush.bf16.msra.mxu0 0
  %2484 = vmatpush.bf16.msra.mxu0 0
  %2485 = vmatpush.bf16.msra.mxu0 0
  %2486 = vmatpush.bf16.msra.mxu0 %v1975
  %2487 = vmatpush.bf16.msra.mxu0 %v1550
  %2488 = vmatpush.bf16.msra.mxu0 %v1487
  %2489 = vmatpush.bf16.msra.mxu0 %v1424
  %2490 = vmatpush.bf16.msra.mxu0 %v1361
  %2491 = vmatmul.bf16.gmra.mxu0 %v1914
  %v2492 = vpop.f32.mrf.mxu0
  %v2493 = vadd.f32 %v360, %v2492
  %v2494 = vpop.f32.mrf.mxu0
  %v2495 = vadd.f32 %v365, %v2494
  %2496 = vmatmul.bf16.gmra.mxu0 %v1917
  %v2497 = vpop.f32.mrf.mxu0
  %v2498 = vadd.f32 %v370, %v2497
  %v2499 = vpop.f32.mrf.mxu0
  %v2500 = vadd.f32 %v375, %v2499
  %2501 = vmatmul.bf16.gmra.mxu0 %v1920
  %v2502 = vpop.f32.mrf.mxu0
  %v2503 = vadd.f32 %v380, %v2502
  %v2504 = vpop.f32.mrf.mxu0
  %2505 = vdwg.mxu0
  %2506 = vmatpush.bf16.msra.mxu0 0
  %2507 = vmatpush.bf16.msra.mxu0 0
  %2508 = vmatpush.bf16.msra.mxu0 0
  %2509 = vmatpush.bf16.msra.mxu0 %v1978
  %2510 = vmatpush.bf16.msra.mxu0 %v1551
  %2511 = vmatpush.bf16.msra.mxu0 %v1488
  %2512 = vmatpush.bf16.msra.mxu0 %v1425
  %2513 = vmatpush.bf16.msra.mxu0 %v1362
  %2514 = vmatmul.bf16.gmra.mxu0 %v1914
  %v2515 = vpop.f32.mrf.mxu0
  %v2516 = vadd.f32 %v360, %v2515
  %v2517 = vpop.f32.mrf.mxu0
  %v2518 = vadd.f32 %v365, %v2517
  %2519 = vmatmul.bf16.gmra.mxu0 %v1917
  %v2520 = vpop.f32.mrf.mxu0
  %v2521 = vadd.f32 %v370, %v2520
  %v2522 = vpop.f32.mrf.mxu0
  %v2523 = vadd.f32 %v375, %v2522
  %2524 = vmatmul.bf16.gmra.mxu0 %v1920
  %v2525 = vpop.f32.mrf.mxu0
  %v2526 = vadd.f32 %v380, %v2525
  %v2527 = vpop.f32.mrf.mxu0
  %2528 = vdwg.mxu0
  %2529 = vmatpush.bf16.msra.mxu0 0
  %2530 = vmatpush.bf16.msra.mxu0 0
  %2531 = vmatpush.bf16.msra.mxu0 0
  %2532 = vmatpush.bf16.msra.mxu0 %v1981
  %2533 = vmatpush.bf16.msra.mxu0 %v1552
  %2534 = vmatpush.bf16.msra.mxu0 %v1489
  %2535 = vmatpush.bf16.msra.mxu0 %v1426
  %2536 = vmatpush.bf16.msra.mxu0 %v1363
  %2537 = vmatmul.bf16.gmra.mxu0 %v1914
  %v2538 = vpop.f32.mrf.mxu0
  %v2539 = vadd.f32 %v360, %v2538
  %v2540 = vpop.f32.mrf.mxu0
  %v2541 = vadd.f32 %v365, %v2540
  %2542 = vmatmul.bf16.gmra.mxu0 %v1917
  %v2543 = vpop.f32.mrf.mxu0
  %v2544 = vadd.f32 %v370, %v2543
  %v2545 = vpop.f32.mrf.mxu0
  %v2546 = vadd.f32 %v375, %v2545
  %2547 = vmatmul.bf16.gmra.mxu0 %v1920
  %v2548 = vpop.f32.mrf.mxu0
  %v2549 = vadd.f32 %v380, %v2548
  %v2550 = vpop.f32.mrf.mxu0
  %2551 = vdwg.mxu0
  %2552 = vmatpush.bf16.msra.mxu0 0
  %2553 = vmatpush.bf16.msra.mxu0 0
  %2554 = vmatpush.bf16.msra.mxu0 0
  %2555 = vmatpush.bf16.msra.mxu0 %v1984
  %2556 = vmatpush.bf16.msra.mxu0 %v1553
  %2557 = vmatpush.bf16.msra.mxu0 %v1490
  %2558 = vmatpush.bf16.msra.mxu0 %v1427
  %2559 = vmatpush.bf16.msra.mxu0 %v1364
  %2560 = vmatmul.bf16.gmra.mxu0 %v1914
  %v2561 = vpop.f32.mrf.mxu0
  %v2562 = vadd.f32 %v360, %v2561
  %v2563 = vpop.f32.mrf.mxu0
  %v2564 = vadd.f32 %v365, %v2563
  %2565 = vmatmul.bf16.gmra.mxu0 %v1917
  %v2566 = vpop.f32.mrf.mxu0
  %v2567 = vadd.f32 %v370, %v2566
  %v2568 = vpop.f32.mrf.mxu0
  %v2569 = vadd.f32 %v375, %v2568
  %2570 = vmatmul.bf16.gmra.mxu0 %v1920
  %v2571 = vpop.f32.mrf.mxu0
  %v2572 = vadd.f32 %v380, %v2571
  %v2573 = vpop.f32.mrf.mxu0
  %2574 = vdwg.mxu0
  %2575 = vmatpush.bf16.msra.mxu0 0
  %2576 = vmatpush.bf16.msra.mxu0 0
  %2577 = vmatpush.bf16.msra.mxu0 0
  %2578 = vmatpush.bf16.msra.mxu0 %v1987
  %2579 = vmatpush.bf16.msra.mxu0 %v1554
  %2580 = vmatpush.bf16.msra.mxu0 %v1491
  %2581 = vmatpush.bf16.msra.mxu0 %v1428
  %2582 = vmatpush.bf16.msra.mxu0 %v1365
  %2583 = vmatmul.bf16.gmra.mxu0 %v1914
  %v2584 = vpop.f32.mrf.mxu0
  %v2585 = vadd.f32 %v360, %v2584
  %v2586 = vpop.f32.mrf.mxu0
  %v2587 = vadd.f32 %v365, %v2586
  %2588 = vmatmul.bf16.gmra.mxu0 %v1917
  %v2589 = vpop.f32.mrf.mxu0
  %v2590 = vadd.f32 %v370, %v2589
  %v2591 = vpop.f32.mrf.mxu0
  %v2592 = vadd.f32 %v375, %v2591
  %2593 = vmatmul.bf16.gmra.mxu0 %v1920
  %v2594 = vpop.f32.mrf.mxu0
  %v2595 = vadd.f32 %v380, %v2594
  %v2596 = vpop.f32.mrf.mxu0
  %2597 = vdwg.mxu0
  %2598 = vmatpush.bf16.msra.mxu0 0
  %2599 = vmatpush.bf16.msra.mxu0 0
  %2600 = vmatpush.bf16.msra.mxu0 0
  %2601 = vmatpush.bf16.msra.mxu0 %v1990
  %2602 = vmatpush.bf16.msra.mxu0 %v1555
  %2603 = vmatpush.bf16.msra.mxu0 %v1492
  %2604 = vmatpush.bf16.msra.mxu0 %v1429
  %2605 = vmatpush.bf16.msra.mxu0 %v1366
  %2606 = vmatmul.bf16.gmra.mxu0 %v1914
  %v2607 = vpop.f32.mrf.mxu0
  %v2608 = vadd.f32 %v360, %v2607
  %v2609 = vpop.f32.mrf.mxu0
  %v2610 = vadd.f32 %v365, %v2609
  %2611 = vmatmul.bf16.gmra.mxu0 %v1917
  %v2612 = vpop.f32.mrf.mxu0
  %v2613 = vadd.f32 %v370, %v2612
  %v2614 = vpop.f32.mrf.mxu0
  %v2615 = vadd.f32 %v375, %v2614
  %2616 = vmatmul.bf16.gmra.mxu0 %v1920
  %v2617 = vpop.f32.mrf.mxu0
  %v2618 = vadd.f32 %v380, %v2617
  %v2619 = vpop.f32.mrf.mxu0
  %2620 = vdwg.mxu0
  %2621 = vmatpush.bf16.msra.mxu0 0
  %2622 = vmatpush.bf16.msra.mxu0 0
  %2623 = vmatpush.bf16.msra.mxu0 0
  %2624 = vmatpush.bf16.msra.mxu0 %v1993
  %2625 = vmatpush.bf16.msra.mxu0 %v1556
  %2626 = vmatpush.bf16.msra.mxu0 %v1493
  %2627 = vmatpush.bf16.msra.mxu0 %v1430
  %2628 = vmatpush.bf16.msra.mxu0 %v1367
  %2629 = vmatmul.bf16.gmra.mxu0 %v1914
  %v2630 = vpop.f32.mrf.mxu0
  %v2631 = vadd.f32 %v360, %v2630
  %v2632 = vpop.f32.mrf.mxu0
  %v2633 = vadd.f32 %v365, %v2632
  %2634 = vmatmul.bf16.gmra.mxu0 %v1917
  %v2635 = vpop.f32.mrf.mxu0
  %v2636 = vadd.f32 %v370, %v2635
  %v2637 = vpop.f32.mrf.mxu0
  %v2638 = vadd.f32 %v375, %v2637
  %2639 = vmatmul.bf16.gmra.mxu0 %v1920
  %v2640 = vpop.f32.mrf.mxu0
  %v2641 = vadd.f32 %v380, %v2640
  %v2642 = vpop.f32.mrf.mxu0
  %2643 = vdwg.mxu0
  %2644 = vmatpush.bf16.msra.mxu0 0
  %2645 = vmatpush.bf16.msra.mxu0 0
  %2646 = vmatpush.bf16.msra.mxu0 0
  %2647 = vmatpush.bf16.msra.mxu0 %v1996
  %2648 = vmatpush.bf16.msra.mxu0 %v1557
  %2649 = vmatpush.bf16.msra.mxu0 %v1494
  %2650 = vmatpush.bf16.msra.mxu0 %v1431
  %2651 = vmatpush.bf16.msra.mxu0 %v1368
  %2652 = vmatmul.bf16.gmra.mxu0 %v1914
  %v2653 = vpop.f32.mrf.mxu0
  %v2654 = vadd.f32 %v360, %v2653
  %v2655 = vpop.f32.mrf.mxu0
  %v2656 = vadd.f32 %v365, %v2655
  %2657 = vmatmul.bf16.gmra.mxu0 %v1917
  %v2658 = vpop.f32.mrf.mxu0
  %v2659 = vadd.f32 %v370, %v2658
  %v2660 = vpop.f32.mrf.mxu0
  %v2661 = vadd.f32 %v375, %v2660
  %2662 = vmatmul.bf16.gmra.mxu0 %v1920
  %v2663 = vpop.f32.mrf.mxu0
  %v2664 = vadd.f32 %v380, %v2663
  %v2665 = vpop.f32.mrf.mxu0
  %2666 = vdwg.mxu0
  %2667 = vmatpush.bf16.msra.mxu0 0
  %2668 = vmatpush.bf16.msra.mxu0 0
  %2669 = vmatpush.bf16.msra.mxu0 0
  %2670 = vmatpush.bf16.msra.mxu0 %v1999
  %2671 = vmatpush.bf16.msra.mxu0 %v1558
  %2672 = vmatpush.bf16.msra.mxu0 %v1495
  %2673 = vmatpush.bf16.msra.mxu0 %v1432
  %2674 = vmatpush.bf16.msra.mxu0 %v1369
  %2675 = vmatmul.bf16.gmra.mxu0 %v1914
  %v2676 = vpop.f32.mrf.mxu0
  %v2677 = vadd.f32 %v360, %v2676
  %v2678 = vpop.f32.mrf.mxu0
  %v2679 = vadd.f32 %v365, %v2678
  %2680 = vmatmul.bf16.gmra.mxu0 %v1917
  %v2681 = vpop.f32.mrf.mxu0
  %v2682 = vadd.f32 %v370, %v2681
  %v2683 = vpop.f32.mrf.mxu0
  %v2684 = vadd.f32 %v375, %v2683
  %2685 = vmatmul.bf16.gmra.mxu0 %v1920
  %v2686 = vpop.f32.mrf.mxu0
  %v2687 = vadd.f32 %v380, %v2686
  %v2688 = vpop.f32.mrf.mxu0
  %2689 = vdwg.mxu0
  %2690 = vmatpush.bf16.msra.mxu0 0
  %2691 = vmatpush.bf16.msra.mxu0 0
  %2692 = vmatpush.bf16.msra.mxu0 0
  %2693 = vmatpush.bf16.msra.mxu0 %v2002
  %2694 = vmatpush.bf16.msra.mxu0 %v1559
  %2695 = vmatpush.bf16.msra.mxu0 %v1496
  %2696 = vmatpush.bf16.msra.mxu0 %v1433
  %2697 = vmatpush.bf16.msra.mxu0 %v1370
  %2698 = vmatmul.bf16.gmra.mxu0 %v1914
  %v2699 = vpop.f32.mrf.mxu0
  %v2700 = vadd.f32 %v360, %v2699
  %v2701 = vpop.f32.mrf.mxu0
  %v2702 = vadd.f32 %v365, %v2701
  %2703 = vmatmul.bf16.gmra.mxu0 %v1917
  %v2704 = vpop.f32.mrf.mxu0
  %v2705 = vadd.f32 %v370, %v2704
  %v2706 = vpop.f32.mrf.mxu0
  %v2707 = vadd.f32 %v375, %v2706
  %2708 = vmatmul.bf16.gmra.mxu0 %v1920
  %v2709 = vpop.f32.mrf.mxu0
  %v2710 = vadd.f32 %v380, %v2709
  %v2711 = vpop.f32.mrf.mxu0
  %2712 = vdwg.mxu0
  %2713 = vmatpush.bf16.msra.mxu0 0
  %2714 = vmatpush.bf16.msra.mxu0 0
  %2715 = vmatpush.bf16.msra.mxu0 0
  %2716 = vmatpush.bf16.msra.mxu0 %v2005
  %2717 = vmatpush.bf16.msra.mxu0 %v1560
  %2718 = vmatpush.bf16.msra.mxu0 %v1497
  %2719 = vmatpush.bf16.msra.mxu0 %v1434
  %2720 = vmatpush.bf16.msra.mxu0 %v1371
  %2721 = vmatmul.bf16.gmra.mxu0 %v1914
  %v2722 = vpop.f32.mrf.mxu0
  %v2723 = vadd.f32 %v360, %v2722
  %v2724 = vpop.f32.mrf.mxu0
  %v2725 = vadd.f32 %v365, %v2724
  %2726 = vmatmul.bf16.gmra.mxu0 %v1917
  %v2727 = vpop.f32.mrf.mxu0
  %v2728 = vadd.f32 %v370, %v2727
  %v2729 = vpop.f32.mrf.mxu0
  %v2730 = vadd.f32 %v375, %v2729
  %2731 = vmatmul.bf16.gmra.mxu0 %v1920
  %v2732 = vpop.f32.mrf.mxu0
  %v2733 = vadd.f32 %v380, %v2732
  %v2734 = vpop.f32.mrf.mxu0
  %2735 = vdwg.mxu0
  %2736 = vmatpush.bf16.msra.mxu0 0
  %2737 = vmatpush.bf16.msra.mxu0 0
  %2738 = vmatpush.bf16.msra.mxu0 0
  %2739 = vmatpush.bf16.msra.mxu0 %v2008
  %2740 = vmatpush.bf16.msra.mxu0 %v1561
  %2741 = vmatpush.bf16.msra.mxu0 %v1498
  %2742 = vmatpush.bf16.msra.mxu0 %v1435
  %2743 = vmatpush.bf16.msra.mxu0 %v1372
  %2744 = vmatmul.bf16.gmra.mxu0 %v1914
  %v2745 = vpop.f32.mrf.mxu0
  %v2746 = vadd.f32 %v360, %v2745
  %v2747 = vpop.f32.mrf.mxu0
  %v2748 = vadd.f32 %v365, %v2747
  %2749 = vmatmul.bf16.gmra.mxu0 %v1917
  %v2750 = vpop.f32.mrf.mxu0
  %v2751 = vadd.f32 %v370, %v2750
  %v2752 = vpop.f32.mrf.mxu0
  %v2753 = vadd.f32 %v375, %v2752
  %2754 = vmatmul.bf16.gmra.mxu0 %v1920
  %v2755 = vpop.f32.mrf.mxu0
  %v2756 = vadd.f32 %v380, %v2755
  %v2757 = vpop.f32.mrf.mxu0
  %2758 = vdwg.mxu0
  %2759 = vmatpush.bf16.msra.mxu0 0
  %2760 = vmatpush.bf16.msra.mxu0 0
  %2761 = vmatpush.bf16.msra.mxu0 0
  %2762 = vmatpush.bf16.msra.mxu0 %v2011
  %2763 = vmatpush.bf16.msra.mxu0 %v1562
  %2764 = vmatpush.bf16.msra.mxu0 %v1499
  %2765 = vmatpush.bf16.msra.mxu0 %v1436
  %2766 = vmatpush.bf16.msra.mxu0 %v1373
  %2767 = vmatmul.bf16.gmra.mxu0 %v1914
  %v2768 = vpop.f32.mrf.mxu0
  %v2769 = vadd.f32 %v360, %v2768
  %v2770 = vpop.f32.mrf.mxu0
  %v2771 = vadd.f32 %v365, %v2770
  %2772 = vmatmul.bf16.gmra.mxu0 %v1917
  %v2773 = vpop.f32.mrf.mxu0
  %v2774 = vadd.f32 %v370, %v2773
  %v2775 = vpop.f32.mrf.mxu0
  %v2776 = vadd.f32 %v375, %v2775
  %2777 = vmatmul.bf16.gmra.mxu0 %v1920
  %v2778 = vpop.f32.mrf.mxu0
  %v2779 = vadd.f32 %v380, %v2778
  %v2780 = vpop.f32.mrf.mxu0
  %2781 = vdwg.mxu0
  %2782 = vmatpush.bf16.msra.mxu0 0
  %2783 = vmatpush.bf16.msra.mxu0 0
  %2784 = vmatpush.bf16.msra.mxu0 0
  %2785 = vmatpush.bf16.msra.mxu0 %v2014
  %2786 = vmatpush.bf16.msra.mxu0 %v1563
  %2787 = vmatpush.bf16.msra.mxu0 %v1500
  %2788 = vmatpush.bf16.msra.mxu0 %v1437
  %2789 = vmatpush.bf16.msra.mxu0 %v1374
  %2790 = vmatmul.bf16.gmra.mxu0 %v1914
  %v2791 = vpop.f32.mrf.mxu0
  %v2792 = vadd.f32 %v360, %v2791
  %v2793 = vpop.f32.mrf.mxu0
  %v2794 = vadd.f32 %v365, %v2793
  %2795 = vmatmul.bf16.gmra.mxu0 %v1917
  %v2796 = vpop.f32.mrf.mxu0
  %v2797 = vadd.f32 %v370, %v2796
  %v2798 = vpop.f32.mrf.mxu0
  %v2799 = vadd.f32 %v375, %v2798
  %2800 = vmatmul.bf16.gmra.mxu0 %v1920
  %v2801 = vpop.f32.mrf.mxu0
  %v2802 = vadd.f32 %v380, %v2801
  %v2803 = vpop.f32.mrf.mxu0
  %2804 = vdwg.mxu0
  %2805 = vmatpush.bf16.msra.mxu0 0
  %2806 = vmatpush.bf16.msra.mxu0 0
  %2807 = vmatpush.bf16.msra.mxu0 0
  %2808 = vmatpush.bf16.msra.mxu0 %v2017
  %2809 = vmatpush.bf16.msra.mxu0 %v1564
  %2810 = vmatpush.bf16.msra.mxu0 %v1501
  %2811 = vmatpush.bf16.msra.mxu0 %v1438
  %2812 = vmatpush.bf16.msra.mxu0 %v1375
  %2813 = vmatmul.bf16.gmra.mxu0 %v1914
  %v2814 = vpop.f32.mrf.mxu0
  %v2815 = vadd.f32 %v360, %v2814
  %v2816 = vpop.f32.mrf.mxu0
  %v2817 = vadd.f32 %v365, %v2816
  %2818 = vmatmul.bf16.gmra.mxu0 %v1917
  %v2819 = vpop.f32.mrf.mxu0
  %v2820 = vadd.f32 %v370, %v2819
  %v2821 = vpop.f32.mrf.mxu0
  %v2822 = vadd.f32 %v375, %v2821
  %2823 = vmatmul.bf16.gmra.mxu0 %v1920
  %v2824 = vpop.f32.mrf.mxu0
  %v2825 = vadd.f32 %v380, %v2824
  %v2826 = vpop.f32.mrf.mxu0
  %2827 = vdwg.mxu0
  %2828 = vmatpush.bf16.msra.mxu0 0
  %2829 = vmatpush.bf16.msra.mxu0 0
  %2830 = vmatpush.bf16.msra.mxu0 0
  %2831 = vmatpush.bf16.msra.mxu0 %v2020
  %2832 = vmatpush.bf16.msra.mxu0 %v1565
  %2833 = vmatpush.bf16.msra.mxu0 %v1502
  %2834 = vmatpush.bf16.msra.mxu0 %v1439
  %2835 = vmatpush.bf16.msra.mxu0 %v1376
  %2836 = vmatmul.bf16.gmra.mxu0 %v1914
  %v2837 = vpop.f32.mrf.mxu0
  %v2838 = vadd.f32 %v360, %v2837
  %v2839 = vpop.f32.mrf.mxu0
  %v2840 = vadd.f32 %v365, %v2839
  %2841 = vmatmul.bf16.gmra.mxu0 %v1917
  %v2842 = vpop.f32.mrf.mxu0
  %v2843 = vadd.f32 %v370, %v2842
  %v2844 = vpop.f32.mrf.mxu0
  %v2845 = vadd.f32 %v375, %v2844
  %2846 = vmatmul.bf16.gmra.mxu0 %v1920
  %v2847 = vpop.f32.mrf.mxu0
  %v2848 = vadd.f32 %v380, %v2847
  %v2849 = vpop.f32.mrf.mxu0
  %2850 = vdwg.mxu0
  %2851 = vmatpush.bf16.msra.mxu0 0
  %2852 = vmatpush.bf16.msra.mxu0 0
  %2853 = vmatpush.bf16.msra.mxu0 0
  %2854 = vmatpush.bf16.msra.mxu0 %v2023
  %2855 = vmatpush.bf16.msra.mxu0 %v1566
  %2856 = vmatpush.bf16.msra.mxu0 %v1503
  %2857 = vmatpush.bf16.msra.mxu0 %v1440
  %2858 = vmatpush.bf16.msra.mxu0 %v1377
  %2859 = vmatmul.bf16.gmra.mxu0 %v1914
  %v2860 = vpop.f32.mrf.mxu0
  %v2861 = vadd.f32 %v360, %v2860
  %v2862 = vpop.f32.mrf.mxu0
  %v2863 = vadd.f32 %v365, %v2862
  %2864 = vmatmul.bf16.gmra.mxu0 %v1917
  %v2865 = vpop.f32.mrf.mxu0
  %v2866 = vadd.f32 %v370, %v2865
  %v2867 = vpop.f32.mrf.mxu0
  %v2868 = vadd.f32 %v375, %v2867
  %2869 = vmatmul.bf16.gmra.mxu0 %v1920
  %v2870 = vpop.f32.mrf.mxu0
  %v2871 = vadd.f32 %v380, %v2870
  %v2872 = vpop.f32.mrf.mxu0
  %2873 = vdwg.mxu0
  %2874 = vmatpush.bf16.msra.mxu0 0
  %2875 = vmatpush.bf16.msra.mxu0 0
  %2876 = vmatpush.bf16.msra.mxu0 0
  %2877 = vmatpush.bf16.msra.mxu0 %v2026
  %2878 = vmatpush.bf16.msra.mxu0 %v1567
  %2879 = vmatpush.bf16.msra.mxu0 %v1504
  %2880 = vmatpush.bf16.msra.mxu0 %v1441
  %2881 = vmatpush.bf16.msra.mxu0 %v1378
  %2882 = vmatmul.bf16.gmra.mxu0 %v1914
  %v2883 = vpop.f32.mrf.mxu0
  %v2884 = vadd.f32 %v360, %v2883
  %v2885 = vpop.f32.mrf.mxu0
  %v2886 = vadd.f32 %v365, %v2885
  %2887 = vmatmul.bf16.gmra.mxu0 %v1917
  %v2888 = vpop.f32.mrf.mxu0
  %v2889 = vadd.f32 %v370, %v2888
  %v2890 = vpop.f32.mrf.mxu0
  %v2891 = vadd.f32 %v375, %v2890
  %2892 = vmatmul.bf16.gmra.mxu0 %v1920
  %v2893 = vpop.f32.mrf.mxu0
  %v2894 = vadd.f32 %v380, %v2893
  %v2895 = vpop.f32.mrf.mxu0
  %2896 = vdwg.mxu0
  %2897 = vmatpush.bf16.msra.mxu0 0
  %2898 = vmatpush.bf16.msra.mxu0 0
  %2899 = vmatpush.bf16.msra.mxu0 0
  %2900 = vmatpush.bf16.msra.mxu0 %v2029
  %2901 = vmatpush.bf16.msra.mxu0 %v1568
  %2902 = vmatpush.bf16.msra.mxu0 %v1505
  %2903 = vmatpush.bf16.msra.mxu0 %v1442
  %2904 = vmatpush.bf16.msra.mxu0 %v1379
  %2905 = vmatmul.bf16.gmra.mxu0 %v1914
  %v2906 = vpop.f32.mrf.mxu0
  %v2907 = vadd.f32 %v360, %v2906
  %v2908 = vpop.f32.mrf.mxu0
  %v2909 = vadd.f32 %v365, %v2908
  %2910 = vmatmul.bf16.gmra.mxu0 %v1917
  %v2911 = vpop.f32.mrf.mxu0
  %v2912 = vadd.f32 %v370, %v2911
  %v2913 = vpop.f32.mrf.mxu0
  %v2914 = vadd.f32 %v375, %v2913
  %2915 = vmatmul.bf16.gmra.mxu0 %v1920
  %v2916 = vpop.f32.mrf.mxu0
  %v2917 = vadd.f32 %v380, %v2916
  %v2918 = vpop.f32.mrf.mxu0
  %2919 = vdwg.mxu0
  %2920 = vmatpush.bf16.msra.mxu0 0
  %2921 = vmatpush.bf16.msra.mxu0 0
  %2922 = vmatpush.bf16.msra.mxu0 0
  %2923 = vmatpush.bf16.msra.mxu0 %v2032
  %2924 = vmatpush.bf16.msra.mxu0 %v1569
  %2925 = vmatpush.bf16.msra.mxu0 %v1506
  %2926 = vmatpush.bf16.msra.mxu0 %v1443
  %2927 = vmatpush.bf16.msra.mxu0 %v1380
  %2928 = vmatmul.bf16.gmra.mxu0 %v1914
  %v2929 = vpop.f32.mrf.mxu0
  %v2930 = vadd.f32 %v360, %v2929
  %v2931 = vpop.f32.mrf.mxu0
  %v2932 = vadd.f32 %v365, %v2931
  %2933 = vmatmul.bf16.gmra.mxu0 %v1917
  %v2934 = vpop.f32.mrf.mxu0
  %v2935 = vadd.f32 %v370, %v2934
  %v2936 = vpop.f32.mrf.mxu0
  %v2937 = vadd.f32 %v375, %v2936
  %2938 = vmatmul.bf16.gmra.mxu0 %v1920
  %v2939 = vpop.f32.mrf.mxu0
  %v2940 = vadd.f32 %v380, %v2939
  %v2941 = vpop.f32.mrf.mxu0
  %2942 = vdwg.mxu0
  %2943 = vmatpush.bf16.msra.mxu0 0
  %2944 = vmatpush.bf16.msra.mxu0 0
  %2945 = vmatpush.bf16.msra.mxu0 0
  %2946 = vmatpush.bf16.msra.mxu0 %v2035
  %2947 = vmatpush.bf16.msra.mxu0 %v1570
  %2948 = vmatpush.bf16.msra.mxu0 %v1507
  %2949 = vmatpush.bf16.msra.mxu0 %v1444
  %2950 = vmatpush.bf16.msra.mxu0 %v1381
  %2951 = vmatmul.bf16.gmra.mxu0 %v1914
  %v2952 = vpop.f32.mrf.mxu0
  %v2953 = vadd.f32 %v360, %v2952
  %v2954 = vpop.f32.mrf.mxu0
  %v2955 = vadd.f32 %v365, %v2954
  %2956 = vmatmul.bf16.gmra.mxu0 %v1917
  %v2957 = vpop.f32.mrf.mxu0
  %v2958 = vadd.f32 %v370, %v2957
  %v2959 = vpop.f32.mrf.mxu0
  %v2960 = vadd.f32 %v375, %v2959
  %2961 = vmatmul.bf16.gmra.mxu0 %v1920
  %v2962 = vpop.f32.mrf.mxu0
  %v2963 = vadd.f32 %v380, %v2962
  %v2964 = vpop.f32.mrf.mxu0
  %2965 = vdwg.mxu0
  %2966 = vmatpush.bf16.msra.mxu0 0
  %2967 = vmatpush.bf16.msra.mxu0 0
  %2968 = vmatpush.bf16.msra.mxu0 0
  %2969 = vmatpush.bf16.msra.mxu0 %v2038
  %2970 = vmatpush.bf16.msra.mxu0 %v1571
  %2971 = vmatpush.bf16.msra.mxu0 %v1508
  %2972 = vmatpush.bf16.msra.mxu0 %v1445
  %2973 = vmatpush.bf16.msra.mxu0 %v1382
  %2974 = vmatmul.bf16.gmra.mxu0 %v1914
  %v2975 = vpop.f32.mrf.mxu0
  %v2976 = vadd.f32 %v360, %v2975
  %v2977 = vpop.f32.mrf.mxu0
  %v2978 = vadd.f32 %v365, %v2977
  %2979 = vmatmul.bf16.gmra.mxu0 %v1917
  %v2980 = vpop.f32.mrf.mxu0
  %v2981 = vadd.f32 %v370, %v2980
  %v2982 = vpop.f32.mrf.mxu0
  %v2983 = vadd.f32 %v375, %v2982
  %2984 = vmatmul.bf16.gmra.mxu0 %v1920
  %v2985 = vpop.f32.mrf.mxu0
  %v2986 = vadd.f32 %v380, %v2985
  %v2987 = vpop.f32.mrf.mxu0
  %2988 = vdwg.mxu0
  %2989 = vmatpush.bf16.msra.mxu0 0
  %2990 = vmatpush.bf16.msra.mxu0 0
  %2991 = vmatpush.bf16.msra.mxu0 0
  %2992 = vmatpush.bf16.msra.mxu0 %v2041
  %2993 = vmatpush.bf16.msra.mxu0 %v1572
  %2994 = vmatpush.bf16.msra.mxu0 %v1509
  %2995 = vmatpush.bf16.msra.mxu0 %v1446
  %2996 = vmatpush.bf16.msra.mxu0 %v1383
  %2997 = vmatmul.bf16.gmra.mxu0 %v1914
  %v2998 = vpop.f32.mrf.mxu0
  %v2999 = vadd.f32 %v360, %v2998
  %v3000 = vpop.f32.mrf.mxu0
  %v3001 = vadd.f32 %v365, %v3000
  %3002 = vmatmul.bf16.gmra.mxu0 %v1917
  %v3003 = vpop.f32.mrf.mxu0
  %v3004 = vadd.f32 %v370, %v3003
  %v3005 = vpop.f32.mrf.mxu0
  %v3006 = vadd.f32 %v375, %v3005
  %3007 = vmatmul.bf16.gmra.mxu0 %v1920
  %v3008 = vpop.f32.mrf.mxu0
  %v3009 = vadd.f32 %v380, %v3008
  %v3010 = vpop.f32.mrf.mxu0
  %3011 = vdwg.mxu0
  %3012 = vmatpush.bf16.msra.mxu0 0
  %3013 = vmatpush.bf16.msra.mxu0 0
  %3014 = vmatpush.bf16.msra.mxu0 0
  %3015 = vmatpush.bf16.msra.mxu0 %v2044
  %3016 = vmatpush.bf16.msra.mxu0 %v1573
  %3017 = vmatpush.bf16.msra.mxu0 %v1510
  %3018 = vmatpush.bf16.msra.mxu0 %v1447
  %3019 = vmatpush.bf16.msra.mxu0 %v1384
  %3020 = vmatmul.bf16.gmra.mxu0 %v1914
  %v3021 = vpop.f32.mrf.mxu0
  %v3022 = vadd.f32 %v360, %v3021
  %v3023 = vpop.f32.mrf.mxu0
  %v3024 = vadd.f32 %v365, %v3023
  %3025 = vmatmul.bf16.gmra.mxu0 %v1917
  %v3026 = vpop.f32.mrf.mxu0
  %v3027 = vadd.f32 %v370, %v3026
  %v3028 = vpop.f32.mrf.mxu0
  %v3029 = vadd.f32 %v375, %v3028
  %3030 = vmatmul.bf16.gmra.mxu0 %v1920
  %v3031 = vpop.f32.mrf.mxu0
  %v3032 = vadd.f32 %v380, %v3031
  %v3033 = vpop.f32.mrf.mxu0
  %3034 = vdwg.mxu0
  %3035 = vmatpush.bf16.msra.mxu0 0
  %3036 = vmatpush.bf16.msra.mxu0 0
  %3037 = vmatpush.bf16.msra.mxu0 0
  %3038 = vmatpush.bf16.msra.mxu0 %v2047
  %3039 = vmatpush.bf16.msra.mxu0 %v1574
  %3040 = vmatpush.bf16.msra.mxu0 %v1511
  %3041 = vmatpush.bf16.msra.mxu0 %v1448
  %3042 = vmatpush.bf16.msra.mxu0 %v1385
  %3043 = vmatmul.bf16.gmra.mxu0 %v1914
  %v3044 = vpop.f32.mrf.mxu0
  %v3045 = vadd.f32 %v360, %v3044
  %v3046 = vpop.f32.mrf.mxu0
  %v3047 = vadd.f32 %v365, %v3046
  %3048 = vmatmul.bf16.gmra.mxu0 %v1917
  %v3049 = vpop.f32.mrf.mxu0
  %v3050 = vadd.f32 %v370, %v3049
  %v3051 = vpop.f32.mrf.mxu0
  %v3052 = vadd.f32 %v375, %v3051
  %3053 = vmatmul.bf16.gmra.mxu0 %v1920
  %v3054 = vpop.f32.mrf.mxu0
  %v3055 = vadd.f32 %v380, %v3054
  %v3056 = vpop.f32.mrf.mxu0
  %3057 = vdwg.mxu0
  %3058 = vmatpush.bf16.msra.mxu0 0
  %3059 = vmatpush.bf16.msra.mxu0 0
  %3060 = vmatpush.bf16.msra.mxu0 0
  %3061 = vmatpush.bf16.msra.mxu0 %v2050
  %3062 = vmatpush.bf16.msra.mxu0 %v1575
  %3063 = vmatpush.bf16.msra.mxu0 %v1512
  %3064 = vmatpush.bf16.msra.mxu0 %v1449
  %3065 = vmatpush.bf16.msra.mxu0 %v1386
  %3066 = vmatmul.bf16.gmra.mxu0 %v1914
  %v3067 = vpop.f32.mrf.mxu0
  %v3068 = vadd.f32 %v360, %v3067
  %v3069 = vpop.f32.mrf.mxu0
  %v3070 = vadd.f32 %v365, %v3069
  %3071 = vmatmul.bf16.gmra.mxu0 %v1917
  %v3072 = vpop.f32.mrf.mxu0
  %v3073 = vadd.f32 %v370, %v3072
  %v3074 = vpop.f32.mrf.mxu0
  %v3075 = vadd.f32 %v375, %v3074
  %3076 = vmatmul.bf16.gmra.mxu0 %v1920
  %v3077 = vpop.f32.mrf.mxu0
  %v3078 = vadd.f32 %v380, %v3077
  %v3079 = vpop.f32.mrf.mxu0
  %3080 = vdwg.mxu0
  %3081 = vmatpush.bf16.msra.mxu0 0
  %3082 = vmatpush.bf16.msra.mxu0 0
  %3083 = vmatpush.bf16.msra.mxu0 0
  %3084 = vmatpush.bf16.msra.mxu0 %v2053
  %3085 = vmatpush.bf16.msra.mxu0 %v1576
  %3086 = vmatpush.bf16.msra.mxu0 %v1513
  %3087 = vmatpush.bf16.msra.mxu0 %v1450
  %3088 = vmatpush.bf16.msra.mxu0 %v1387
  %3089 = vmatmul.bf16.gmra.mxu0 %v1914
  %v3090 = vpop.f32.mrf.mxu0
  %v3091 = vadd.f32 %v360, %v3090
  %v3092 = vpop.f32.mrf.mxu0
  %v3093 = vadd.f32 %v365, %v3092
  %3094 = vmatmul.bf16.gmra.mxu0 %v1917
  %v3095 = vpop.f32.mrf.mxu0
  %v3096 = vadd.f32 %v370, %v3095
  %v3097 = vpop.f32.mrf.mxu0
  %v3098 = vadd.f32 %v375, %v3097
  %3099 = vmatmul.bf16.gmra.mxu0 %v1920
  %v3100 = vpop.f32.mrf.mxu0
  %v3101 = vadd.f32 %v380, %v3100
  %v3102 = vpop.f32.mrf.mxu0
  %3103 = vdwg.mxu0
  %3104 = vmatpush.bf16.msra.mxu0 0
  %3105 = vmatpush.bf16.msra.mxu0 0
  %3106 = vmatpush.bf16.msra.mxu0 0
  %3107 = vmatpush.bf16.msra.mxu0 %v2056
  %3108 = vmatpush.bf16.msra.mxu0 %v1577
  %3109 = vmatpush.bf16.msra.mxu0 %v1514
  %3110 = vmatpush.bf16.msra.mxu0 %v1451
  %3111 = vmatpush.bf16.msra.mxu0 %v1388
  %3112 = vmatmul.bf16.gmra.mxu0 %v1914
  %v3113 = vpop.f32.mrf.mxu0
  %v3114 = vadd.f32 %v360, %v3113
  %v3115 = vpop.f32.mrf.mxu0
  %v3116 = vadd.f32 %v365, %v3115
  %3117 = vmatmul.bf16.gmra.mxu0 %v1917
  %v3118 = vpop.f32.mrf.mxu0
  %v3119 = vadd.f32 %v370, %v3118
  %v3120 = vpop.f32.mrf.mxu0
  %v3121 = vadd.f32 %v375, %v3120
  %3122 = vmatmul.bf16.gmra.mxu0 %v1920
  %v3123 = vpop.f32.mrf.mxu0
  %v3124 = vadd.f32 %v380, %v3123
  %v3125 = vpop.f32.mrf.mxu0
  %3126 = vdwg.mxu0
  %3127 = vmatpush.bf16.msra.mxu0 0
  %3128 = vmatpush.bf16.msra.mxu0 0
  %3129 = vmatpush.bf16.msra.mxu0 0
  %3130 = vmatpush.bf16.msra.mxu0 %v2059
  %3131 = vmatpush.bf16.msra.mxu0 %v1578
  %3132 = vmatpush.bf16.msra.mxu0 %v1515
  %3133 = vmatpush.bf16.msra.mxu0 %v1452
  %3134 = vmatpush.bf16.msra.mxu0 %v1389
  %3135 = vmatmul.bf16.gmra.mxu0 %v1914
  %v3136 = vpop.f32.mrf.mxu0
  %v3137 = vadd.f32 %v360, %v3136
  %v3138 = vpop.f32.mrf.mxu0
  %v3139 = vadd.f32 %v365, %v3138
  %3140 = vmatmul.bf16.gmra.mxu0 %v1917
  %v3141 = vpop.f32.mrf.mxu0
  %v3142 = vadd.f32 %v370, %v3141
  %v3143 = vpop.f32.mrf.mxu0
  %v3144 = vadd.f32 %v375, %v3143
  %3145 = vmatmul.bf16.gmra.mxu0 %v1920
  %v3146 = vpop.f32.mrf.mxu0
  %v3147 = vadd.f32 %v380, %v3146
  %v3148 = vpop.f32.mrf.mxu0
  %3149 = vdwg.mxu0
  %3150 = vmatpush.bf16.msra.mxu0 0
  %3151 = vmatpush.bf16.msra.mxu0 0
  %3152 = vmatpush.bf16.msra.mxu0 0
  %3153 = vmatpush.bf16.msra.mxu0 %v2062
  %3154 = vmatpush.bf16.msra.mxu0 %v1579
  %3155 = vmatpush.bf16.msra.mxu0 %v1516
  %3156 = vmatpush.bf16.msra.mxu0 %v1453
  %3157 = vmatpush.bf16.msra.mxu0 %v1390
  %3158 = vmatmul.bf16.gmra.mxu0 %v1914
  %v3159 = vpop.f32.mrf.mxu0
  %v3160 = vadd.f32 %v360, %v3159
  %v3161 = vpop.f32.mrf.mxu0
  %v3162 = vadd.f32 %v365, %v3161
  %3163 = vmatmul.bf16.gmra.mxu0 %v1917
  %v3164 = vpop.f32.mrf.mxu0
  %v3165 = vadd.f32 %v370, %v3164
  %v3166 = vpop.f32.mrf.mxu0
  %v3167 = vadd.f32 %v375, %v3166
  %3168 = vmatmul.bf16.gmra.mxu0 %v1920
  %v3169 = vpop.f32.mrf.mxu0
  %v3170 = vadd.f32 %v380, %v3169
  %v3171 = vpop.f32.mrf.mxu0
  %3172 = vdwg.mxu0
  %3173 = vmatpush.bf16.msra.mxu0 0
  %3174 = vmatpush.bf16.msra.mxu0 0
  %3175 = vmatpush.bf16.msra.mxu0 0
  %3176 = vmatpush.bf16.msra.mxu0 %v2065
  %3177 = vmatpush.bf16.msra.mxu0 %v1580
  %3178 = vmatpush.bf16.msra.mxu0 %v1517
  %3179 = vmatpush.bf16.msra.mxu0 %v1454
  %3180 = vmatpush.bf16.msra.mxu0 %v1391
  %3181 = vmatmul.bf16.gmra.mxu0 %v1914
  %v3182 = vpop.f32.mrf.mxu0
  %v3183 = vadd.f32 %v360, %v3182
  %v3184 = vpop.f32.mrf.mxu0
  %v3185 = vadd.f32 %v365, %v3184
  %3186 = vmatmul.bf16.gmra.mxu0 %v1917
  %v3187 = vpop.f32.mrf.mxu0
  %v3188 = vadd.f32 %v370, %v3187
  %v3189 = vpop.f32.mrf.mxu0
  %v3190 = vadd.f32 %v375, %v3189
  %3191 = vmatmul.bf16.gmra.mxu0 %v1920
  %v3192 = vpop.f32.mrf.mxu0
  %v3193 = vadd.f32 %v380, %v3192
  %v3194 = vpop.f32.mrf.mxu0
  %3195 = vdwg.mxu0
  %3196 = vmatpush.bf16.msra.mxu0 0
  %3197 = vmatpush.bf16.msra.mxu0 0
  %3198 = vmatpush.bf16.msra.mxu0 0
  %3199 = vmatpush.bf16.msra.mxu0 %v2068
  %3200 = vmatpush.bf16.msra.mxu0 %v1581
  %3201 = vmatpush.bf16.msra.mxu0 %v1518
  %3202 = vmatpush.bf16.msra.mxu0 %v1455
  %3203 = vmatpush.bf16.msra.mxu0 %v1392
  %3204 = vmatmul.bf16.gmra.mxu0 %v1914
  %v3205 = vpop.f32.mrf.mxu0
  %v3206 = vadd.f32 %v360, %v3205
  %v3207 = vpop.f32.mrf.mxu0
  %v3208 = vadd.f32 %v365, %v3207
  %3209 = vmatmul.bf16.gmra.mxu0 %v1917
  %v3210 = vpop.f32.mrf.mxu0
  %v3211 = vadd.f32 %v370, %v3210
  %v3212 = vpop.f32.mrf.mxu0
  %v3213 = vadd.f32 %v375, %v3212
  %3214 = vmatmul.bf16.gmra.mxu0 %v1920
  %v3215 = vpop.f32.mrf.mxu0
  %v3216 = vadd.f32 %v380, %v3215
  %v3217 = vpop.f32.mrf.mxu0
  %3218 = vdwg.mxu0
  %3219 = vmatpush.bf16.msra.mxu0 0
  %3220 = vmatpush.bf16.msra.mxu0 0
  %3221 = vmatpush.bf16.msra.mxu0 0
  %3222 = vmatpush.bf16.msra.mxu0 %v2071
  %3223 = vmatpush.bf16.msra.mxu0 %v1582
  %3224 = vmatpush.bf16.msra.mxu0 %v1519
  %3225 = vmatpush.bf16.msra.mxu0 %v1456
  %3226 = vmatpush.bf16.msra.mxu0 %v1393
  %3227 = vmatmul.bf16.gmra.mxu0 %v1914
  %v3228 = vpop.f32.mrf.mxu0
  %v3229 = vadd.f32 %v360, %v3228
  %v3230 = vpop.f32.mrf.mxu0
  %v3231 = vadd.f32 %v365, %v3230
  %3232 = vmatmul.bf16.gmra.mxu0 %v1917
  %v3233 = vpop.f32.mrf.mxu0
  %v3234 = vadd.f32 %v370, %v3233
  %v3235 = vpop.f32.mrf.mxu0
  %v3236 = vadd.f32 %v375, %v3235
  %3237 = vmatmul.bf16.gmra.mxu0 %v1920
  %v3238 = vpop.f32.mrf.mxu0
  %v3239 = vadd.f32 %v380, %v3238
  %v3240 = vpop.f32.mrf.mxu0
  %3241 = vdwg.mxu0
  %3242 = vmatpush.bf16.msra.mxu0 0
  %3243 = vmatpush.bf16.msra.mxu0 0
  %3244 = vmatpush.bf16.msra.mxu0 0
  %3245 = vmatpush.bf16.msra.mxu0 %v2074
  %3246 = vmatpush.bf16.msra.mxu0 %v1583
  %3247 = vmatpush.bf16.msra.mxu0 %v1520
  %3248 = vmatpush.bf16.msra.mxu0 %v1457
  %3249 = vmatpush.bf16.msra.mxu0 %v1394
  %3250 = vmatmul.bf16.gmra.mxu0 %v1914
  %v3251 = vpop.f32.mrf.mxu0
  %v3252 = vadd.f32 %v360, %v3251
  %v3253 = vpop.f32.mrf.mxu0
  %v3254 = vadd.f32 %v365, %v3253
  %3255 = vmatmul.bf16.gmra.mxu0 %v1917
  %v3256 = vpop.f32.mrf.mxu0
  %v3257 = vadd.f32 %v370, %v3256
  %v3258 = vpop.f32.mrf.mxu0
  %v3259 = vadd.f32 %v375, %v3258
  %3260 = vmatmul.bf16.gmra.mxu0 %v1920
  %v3261 = vpop.f32.mrf.mxu0
  %v3262 = vadd.f32 %v380, %v3261
  %v3263 = vpop.f32.mrf.mxu0
  %3264 = vdwg.mxu0
  %3265 = vmatpush.bf16.msra.mxu0 0
  %3266 = vmatpush.bf16.msra.mxu0 0
  %3267 = vmatpush.bf16.msra.mxu0 0
  %3268 = vmatpush.bf16.msra.mxu0 %v2077
  %3269 = vmatpush.bf16.msra.mxu0 %v1584
  %3270 = vmatpush.bf16.msra.mxu0 %v1521
  %3271 = vmatpush.bf16.msra.mxu0 %v1458
  %3272 = vmatpush.bf16.msra.mxu0 %v1395
  %3273 = vmatmul.bf16.gmra.mxu0 %v1914
  %v3274 = vpop.f32.mrf.mxu0
  %v3275 = vadd.f32 %v360, %v3274
  %v3276 = vpop.f32.mrf.mxu0
  %v3277 = vadd.f32 %v365, %v3276
  %3278 = vmatmul.bf16.gmra.mxu0 %v1917
  %v3279 = vpop.f32.mrf.mxu0
  %v3280 = vadd.f32 %v370, %v3279
  %v3281 = vpop.f32.mrf.mxu0
  %v3282 = vadd.f32 %v375, %v3281
  %3283 = vmatmul.bf16.gmra.mxu0 %v1920
  %v3284 = vpop.f32.mrf.mxu0
  %v3285 = vadd.f32 %v380, %v3284
  %v3286 = vpop.f32.mrf.mxu0
  %3287 = vdwg.mxu0
  %3288 = vmatpush.bf16.msra.mxu0 0
  %3289 = vmatpush.bf16.msra.mxu0 0
  %3290 = vmatpush.bf16.msra.mxu0 0
  %3291 = vmatpush.bf16.msra.mxu0 %v2080
  %3292 = vmatpush.bf16.msra.mxu0 %v1585
  %3293 = vmatpush.bf16.msra.mxu0 %v1522
  %3294 = vmatpush.bf16.msra.mxu0 %v1459
  %3295 = vmatpush.bf16.msra.mxu0 %v1396
  %3296 = vmatmul.bf16.gmra.mxu0 %v1914
  %v3297 = vpop.f32.mrf.mxu0
  %v3298 = vadd.f32 %v360, %v3297
  %v3299 = vpop.f32.mrf.mxu0
  %v3300 = vadd.f32 %v365, %v3299
  %3301 = vmatmul.bf16.gmra.mxu0 %v1917
  %v3302 = vpop.f32.mrf.mxu0
  %v3303 = vadd.f32 %v370, %v3302
  %v3304 = vpop.f32.mrf.mxu0
  %v3305 = vadd.f32 %v375, %v3304
  %3306 = vmatmul.bf16.gmra.mxu0 %v1920
  %v3307 = vpop.f32.mrf.mxu0
  %v3308 = vadd.f32 %v380, %v3307
  %v3309 = vpop.f32.mrf.mxu0
  %3310 = vdwg.mxu0
  %3311 = vmatpush.bf16.msra.mxu0 0
  %3312 = vmatpush.bf16.msra.mxu0 0
  %3313 = vmatpush.bf16.msra.mxu0 0
  %3314 = vmatpush.bf16.msra.mxu0 %v2083
  %3315 = vmatpush.bf16.msra.mxu0 %v1586
  %3316 = vmatpush.bf16.msra.mxu0 %v1523
  %3317 = vmatpush.bf16.msra.mxu0 %v1460
  %3318 = vmatpush.bf16.msra.mxu0 %v1397
  %3319 = vmatmul.bf16.gmra.mxu0 %v1914
  %v3320 = vpop.f32.mrf.mxu0
  %v3321 = vadd.f32 %v360, %v3320
  %v3322 = vpop.f32.mrf.mxu0
  %v3323 = vadd.f32 %v365, %v3322
  %3324 = vmatmul.bf16.gmra.mxu0 %v1917
  %v3325 = vpop.f32.mrf.mxu0
  %v3326 = vadd.f32 %v370, %v3325
  %v3327 = vpop.f32.mrf.mxu0
  %v3328 = vadd.f32 %v375, %v3327
  %3329 = vmatmul.bf16.gmra.mxu0 %v1920
  %v3330 = vpop.f32.mrf.mxu0
  %v3331 = vadd.f32 %v380, %v3330
  %v3332 = vpop.f32.mrf.mxu0
  %3333 = vdwg.mxu0
  %3334 = vmatpush.bf16.msra.mxu0 0
  %3335 = vmatpush.bf16.msra.mxu0 0
  %3336 = vmatpush.bf16.msra.mxu0 0
  %3337 = vmatpush.bf16.msra.mxu0 %v2086
  %3338 = vmatpush.bf16.msra.mxu0 %v1587
  %3339 = vmatpush.bf16.msra.mxu0 %v1524
  %3340 = vmatpush.bf16.msra.mxu0 %v1461
  %3341 = vmatpush.bf16.msra.mxu0 %v1398
  %3342 = vmatmul.bf16.gmra.mxu0 %v1914
  %v3343 = vpop.f32.mrf.mxu0
  %v3344 = vadd.f32 %v360, %v3343
  %v3345 = vpop.f32.mrf.mxu0
  %v3346 = vadd.f32 %v365, %v3345
  %3347 = vmatmul.bf16.gmra.mxu0 %v1917
  %v3348 = vpop.f32.mrf.mxu0
  %v3349 = vadd.f32 %v370, %v3348
  %v3350 = vpop.f32.mrf.mxu0
  %v3351 = vadd.f32 %v375, %v3350
  %3352 = vmatmul.bf16.gmra.mxu0 %v1920
  %v3353 = vpop.f32.mrf.mxu0
  %v3354 = vadd.f32 %v380, %v3353
  %v3355 = vpop.f32.mrf.mxu0
  %3356 = vdwg.mxu0
  %3357 = vmatpush.bf16.msra.mxu0 0
  %3358 = vmatpush.bf16.msra.mxu0 0
  %3359 = vmatpush.bf16.msra.mxu0 0
  %3360 = vmatpush.bf16.msra.mxu0 %v2089
  %3361 = vmatpush.bf16.msra.mxu0 %v1588
  %3362 = vmatpush.bf16.msra.mxu0 %v1525
  %3363 = vmatpush.bf16.msra.mxu0 %v1462
  %3364 = vmatpush.bf16.msra.mxu0 %v1399
  %3365 = vmatmul.bf16.gmra.mxu0 %v1914
  %v3366 = vpop.f32.mrf.mxu0
  %v3367 = vadd.f32 %v360, %v3366
  %v3368 = vpop.f32.mrf.mxu0
  %v3369 = vadd.f32 %v365, %v3368
  %3370 = vmatmul.bf16.gmra.mxu0 %v1917
  %v3371 = vpop.f32.mrf.mxu0
  %v3372 = vadd.f32 %v370, %v3371
  %v3373 = vpop.f32.mrf.mxu0
  %v3374 = vadd.f32 %v375, %v3373
  %3375 = vmatmul.bf16.gmra.mxu0 %v1920
  %v3376 = vpop.f32.mrf.mxu0
  %v3377 = vadd.f32 %v380, %v3376
  %v3378 = vpop.f32.mrf.mxu0
  %3379 = vdwg.mxu0
  %3380 = vmatpush.bf16.msra.mxu0 0
  %3381 = vmatpush.bf16.msra.mxu0 0
  %3382 = vmatpush.bf16.msra.mxu0 0
  %3383 = vmatpush.bf16.msra.mxu0 %v2092
  %3384 = vmatpush.bf16.msra.mxu0 %v1589
  %3385 = vmatpush.bf16.msra.mxu0 %v1526
  %3386 = vmatpush.bf16.msra.mxu0 %v1463
  %3387 = vmatpush.bf16.msra.mxu0 %v1400
  %3388 = vmatmul.bf16.gmra.mxu0 %v1914
  %v3389 = vpop.f32.mrf.mxu0
  %v3390 = vadd.f32 %v360, %v3389
  %v3391 = vpop.f32.mrf.mxu0
  %v3392 = vadd.f32 %v365, %v3391
  %3393 = vmatmul.bf16.gmra.mxu0 %v1917
  %v3394 = vpop.f32.mrf.mxu0
  %v3395 = vadd.f32 %v370, %v3394
  %v3396 = vpop.f32.mrf.mxu0
  %v3397 = vadd.f32 %v375, %v3396
  %3398 = vmatmul.bf16.gmra.mxu0 %v1920
  %v3399 = vpop.f32.mrf.mxu0
  %v3400 = vadd.f32 %v380, %v3399
  %v3401 = vpop.f32.mrf.mxu0
  %3402 = vdwg.mxu0
  %3403 = vmatpush.bf16.msra.mxu0 0
  %3404 = vmatpush.bf16.msra.mxu0 0
  %3405 = vmatpush.bf16.msra.mxu0 0
  %3406 = vmatpush.bf16.msra.mxu0 %v2095
  %3407 = vmatpush.bf16.msra.mxu0 %v1590
  %3408 = vmatpush.bf16.msra.mxu0 %v1527
  %3409 = vmatpush.bf16.msra.mxu0 %v1464
  %3410 = vmatpush.bf16.msra.mxu0 %v1401
  %3411 = vmatmul.bf16.gmra.mxu0 %v1914
  %v3412 = vpop.f32.mrf.mxu0
  %v3413 = vadd.f32 %v360, %v3412
  %v3414 = vpop.f32.mrf.mxu0
  %v3415 = vadd.f32 %v365, %v3414
  %3416 = vmatmul.bf16.gmra.mxu0 %v1917
  %v3417 = vpop.f32.mrf.mxu0
  %v3418 = vadd.f32 %v370, %v3417
  %v3419 = vpop.f32.mrf.mxu0
  %v3420 = vadd.f32 %v375, %v3419
  %3421 = vmatmul.bf16.gmra.mxu0 %v1920
  %v3422 = vpop.f32.mrf.mxu0
  %v3423 = vadd.f32 %v380, %v3422
  %v3424 = vpop.f32.mrf.mxu0
  %3425 = vdwg.mxu0
  %3426 = vmatpush.bf16.msra.mxu0 0
  %3427 = vmatpush.bf16.msra.mxu0 0
  %3428 = vmatpush.bf16.msra.mxu0 0
  %3429 = vmatpush.bf16.msra.mxu0 %v2098
  %3430 = vmatpush.bf16.msra.mxu0 %v1591
  %3431 = vmatpush.bf16.msra.mxu0 %v1528
  %3432 = vmatpush.bf16.msra.mxu0 %v1465
  %3433 = vmatpush.bf16.msra.mxu0 %v1402
  %3434 = vmatmul.bf16.gmra.mxu0 %v1914
  %v3435 = vpop.f32.mrf.mxu0
  %v3436 = vadd.f32 %v360, %v3435
  %v3437 = vpop.f32.mrf.mxu0
  %v3438 = vadd.f32 %v365, %v3437
  %3439 = vmatmul.bf16.gmra.mxu0 %v1917
  %v3440 = vpop.f32.mrf.mxu0
  %v3441 = vadd.f32 %v370, %v3440
  %v3442 = vpop.f32.mrf.mxu0
  %v3443 = vadd.f32 %v375, %v3442
  %3444 = vmatmul.bf16.gmra.mxu0 %v1920
  %v3445 = vpop.f32.mrf.mxu0
  %v3446 = vadd.f32 %v380, %v3445
  %v3447 = vpop.f32.mrf.mxu0
  %3448 = vdwg.mxu0
  %3449 = vmatpush.bf16.msra.mxu0 0
  %3450 = vmatpush.bf16.msra.mxu0 0
  %3451 = vmatpush.bf16.msra.mxu0 0
  %3452 = vmatpush.bf16.msra.mxu0 %v2101
  %3453 = vmatpush.bf16.msra.mxu0 %v1592
  %3454 = vmatpush.bf16.msra.mxu0 %v1529
  %3455 = vmatpush.bf16.msra.mxu0 %v1466
  %3456 = vmatpush.bf16.msra.mxu0 %v1403
  %3457 = vmatmul.bf16.gmra.mxu0 %v1914
  %v3458 = vpop.f32.mrf.mxu0
  %v3459 = vadd.f32 %v360, %v3458
  %v3460 = vpop.f32.mrf.mxu0
  %v3461 = vadd.f32 %v365, %v3460
  %3462 = vmatmul.bf16.gmra.mxu0 %v1917
  %v3463 = vpop.f32.mrf.mxu0
  %v3464 = vadd.f32 %v370, %v3463
  %v3465 = vpop.f32.mrf.mxu0
  %v3466 = vadd.f32 %v375, %v3465
  %3467 = vmatmul.bf16.gmra.mxu0 %v1920
  %v3468 = vpop.f32.mrf.mxu0
  %v3469 = vadd.f32 %v380, %v3468
  %v3470 = vpop.f32.mrf.mxu0
  %3471 = vdwg.mxu0
  %3472 = vmatpush.bf16.msra.mxu0 0
  %3473 = vmatpush.bf16.msra.mxu0 0
  %3474 = vmatpush.bf16.msra.mxu0 0
  %3475 = vmatpush.bf16.msra.mxu0 %v2104
  %3476 = vmatpush.bf16.msra.mxu0 %v1593
  %3477 = vmatpush.bf16.msra.mxu0 %v1530
  %3478 = vmatpush.bf16.msra.mxu0 %v1467
  %3479 = vmatpush.bf16.msra.mxu0 %v1404
  %3480 = vmatmul.bf16.gmra.mxu0 %v1914
  %v3481 = vpop.f32.mrf.mxu0
  %v3482 = vadd.f32 %v360, %v3481
  %v3483 = vpop.f32.mrf.mxu0
  %v3484 = vadd.f32 %v365, %v3483
  %3485 = vmatmul.bf16.gmra.mxu0 %v1917
  %v3486 = vpop.f32.mrf.mxu0
  %v3487 = vadd.f32 %v370, %v3486
  %v3488 = vpop.f32.mrf.mxu0
  %v3489 = vadd.f32 %v375, %v3488
  %3490 = vmatmul.bf16.gmra.mxu0 %v1920
  %v3491 = vpop.f32.mrf.mxu0
  %v3492 = vadd.f32 %v380, %v3491
  %v3493 = vpop.f32.mrf.mxu0
  %3494 = vdwg.mxu0
  %3495 = vmatpush.bf16.msra.mxu0 0
  %3496 = vmatpush.bf16.msra.mxu0 0
  %3497 = vmatpush.bf16.msra.mxu0 0
  %3498 = vmatpush.bf16.msra.mxu0 %v2107
  %3499 = vmatpush.bf16.msra.mxu0 %v1594
  %3500 = vmatpush.bf16.msra.mxu0 %v1531
  %3501 = vmatpush.bf16.msra.mxu0 %v1468
  %3502 = vmatpush.bf16.msra.mxu0 %v1405
  %3503 = vmatmul.bf16.gmra.mxu0 %v1914
  %v3504 = vpop.f32.mrf.mxu0
  %v3505 = vadd.f32 %v360, %v3504
  %v3506 = vpop.f32.mrf.mxu0
  %v3507 = vadd.f32 %v365, %v3506
  %3508 = vmatmul.bf16.gmra.mxu0 %v1917
  %v3509 = vpop.f32.mrf.mxu0
  %v3510 = vadd.f32 %v370, %v3509
  %v3511 = vpop.f32.mrf.mxu0
  %v3512 = vadd.f32 %v375, %v3511
  %3513 = vmatmul.bf16.gmra.mxu0 %v1920
  %v3514 = vpop.f32.mrf.mxu0
  %v3515 = vadd.f32 %v380, %v3514
  %v3516 = vpop.f32.mrf.mxu0
  %3517 = vdwg.mxu0
  %3518 = vmatpush.bf16.msra.mxu0 0
  %3519 = vmatpush.bf16.msra.mxu0 0
  %3520 = vmatpush.bf16.msra.mxu0 0
  %3521 = vmatpush.bf16.msra.mxu0 %v2110
  %3522 = vmatpush.bf16.msra.mxu0 %v1595
  %3523 = vmatpush.bf16.msra.mxu0 %v1532
  %3524 = vmatpush.bf16.msra.mxu0 %v1469
  %3525 = vmatpush.bf16.msra.mxu0 %v1406
  %3526 = vmatmul.bf16.gmra.mxu0 %v1914
  %v3527 = vpop.f32.mrf.mxu0
  %v3528 = vadd.f32 %v360, %v3527
  %v3529 = vpop.f32.mrf.mxu0
  %v3530 = vadd.f32 %v365, %v3529
  %3531 = vmatmul.bf16.gmra.mxu0 %v1917
  %v3532 = vpop.f32.mrf.mxu0
  %v3533 = vadd.f32 %v370, %v3532
  %v3534 = vpop.f32.mrf.mxu0
  %v3535 = vadd.f32 %v375, %v3534
  %3536 = vmatmul.bf16.gmra.mxu0 %v1920
  %v3537 = vpop.f32.mrf.mxu0
  %v3538 = vadd.f32 %v380, %v3537
  %v3539 = vpop.f32.mrf.mxu0
  %3540 = vdwg.mxu0
  %3541 = vmatpush.bf16.msra.mxu0 0
  %3542 = vmatpush.bf16.msra.mxu0 0
  %3543 = vmatpush.bf16.msra.mxu0 0
  %3544 = vmatpush.bf16.msra.mxu0 %v2113
  %3545 = vmatpush.bf16.msra.mxu0 %v1596
  %3546 = vmatpush.bf16.msra.mxu0 %v1533
  %3547 = vmatpush.bf16.msra.mxu0 %v1470
  %3548 = vmatpush.bf16.msra.mxu0 %v1407
  %3549 = vmatmul.bf16.gmra.mxu0 %v1914
  %v3550 = vpop.f32.mrf.mxu0
  %v3551 = vadd.f32 %v360, %v3550
  %v3552 = vpop.f32.mrf.mxu0
  %v3553 = vadd.f32 %v365, %v3552
  %3554 = vmatmul.bf16.gmra.mxu0 %v1917
  %v3555 = vpop.f32.mrf.mxu0
  %v3556 = vadd.f32 %v370, %v3555
  %v3557 = vpop.f32.mrf.mxu0
  %v3558 = vadd.f32 %v375, %v3557
  %3559 = vmatmul.bf16.gmra.mxu0 %v1920
  %v3560 = vpop.f32.mrf.mxu0
  %v3561 = vadd.f32 %v380, %v3560
  %v3562 = vpop.f32.mrf.mxu0
  %3563 = vdwg.mxu0
  %v3564 = vmin.f32 %v2125, 0.0
  %v3565 = vmin.f32 %v2148, 0.0
  %v3566 = vmin.f32 %v2171, 0.0
  %v3567 = vmin.f32 %v2194, 0.0
  %v3568 = vmin.f32 %v2217, 0.0
  %v3569 = vmin.f32 %v2240, 0.0
  %v3570 = vmin.f32 %v2263, 0.0
  %v3571 = vmin.f32 %v2286, 0.0
  %v3572 = vmin.f32 %v2309, 0.0
  %v3573 = vmin.f32 %v2332, 0.0
  %v3574 = vmin.f32 %v2355, 0.0
  %v3575 = vmin.f32 %v2378, 0.0
  %v3576 = vmin.f32 %v2401, 0.0
  %v3577 = vmin.f32 %v2424, 0.0
  %v3578 = vmin.f32 %v2447, 0.0
  %v3579 = vmin.f32 %v2470, 0.0
  %v3580 = vmin.f32 %v2493, 0.0
  %v3581 = vmin.f32 %v2516, 0.0
  %v3582 = vmin.f32 %v2539, 0.0
  %v3583 = vmin.f32 %v2562, 0.0
  %v3584 = vmin.f32 %v2585, 0.0
  %v3585 = vmin.f32 %v2608, 0.0
  %v3586 = vmin.f32 %v2631, 0.0
  %v3587 = vmin.f32 %v2654, 0.0
  %v3588 = vmin.f32 %v2677, 0.0
  %v3589 = vmin.f32 %v2700, 0.0
  %v3590 = vmin.f32 %v2723, 0.0
  %v3591 = vmin.f32 %v2746, 0.0
  %v3592 = vmin.f32 %v2769, 0.0
  %v3593 = vmin.f32 %v2792, 0.0
  %v3594 = vmin.f32 %v2815, 0.0
  %v3595 = vmin.f32 %v2838, 0.0
  %v3596 = vmin.f32 %v2861, 0.0
  %v3597 = vmin.f32 %v2884, 0.0
  %v3598 = vmin.f32 %v2907, 0.0
  %v3599 = vmin.f32 %v2930, 0.0
  %v3600 = vmin.f32 %v2953, 0.0
  %v3601 = vmin.f32 %v2976, 0.0
  %v3602 = vmin.f32 %v2999, 0.0
  %v3603 = vmin.f32 %v3022, 0.0
  %v3604 = vmin.f32 %v3045, 0.0
  %v3605 = vmin.f32 %v3068, 0.0
  %v3606 = vmin.f32 %v3091, 0.0
  %v3607 = vmin.f32 %v3114, 0.0
  %v3608 = vmin.f32 %v3137, 0.0
  %v3609 = vmin.f32 %v3160, 0.0
  %v3610 = vmin.f32 %v3183, 0.0
  %v3611 = vmin.f32 %v3206, 0.0
  %v3612 = vmin.f32 %v3229, 0.0
  %v3613 = vmin.f32 %v3252, 0.0
  %v3614 = vmin.f32 %v3275, 0.0
  %v3615 = vmin.f32 %v3298, 0.0
  %v3616 = vmin.f32 %v3321, 0.0
  %v3617 = vmin.f32 %v3344, 0.0
  %v3618 = vmin.f32 %v3367, 0.0
  %v3619 = vmin.f32 %v3390, 0.0
  %v3620 = vmin.f32 %v3413, 0.0
  %v3621 = vmin.f32 %v3436, 0.0
  %v3622 = vmin.f32 %v3459, 0.0
  %v3623 = vmin.f32 %v3482, 0.0
  %v3624 = vmin.f32 %v3505, 0.0
  %v3625 = vmin.f32 %v3528, 0.0
  %v3626 = vmin.f32 %v3551, 0.0
  %v3627 = vmin.f32 %v2127, 0.0
  %v3628 = vmin.f32 %v2150, 0.0
  %v3629 = vmin.f32 %v2173, 0.0
  %v3630 = vmin.f32 %v2196, 0.0
  %v3631 = vmin.f32 %v2219, 0.0
  %v3632 = vmin.f32 %v2242, 0.0
  %v3633 = vmin.f32 %v2265, 0.0
  %v3634 = vmin.f32 %v2288, 0.0
  %v3635 = vmin.f32 %v2311, 0.0
  %v3636 = vmin.f32 %v2334, 0.0
  %v3637 = vmin.f32 %v2357, 0.0
  %v3638 = vmin.f32 %v2380, 0.0
  %v3639 = vmin.f32 %v2403, 0.0
  %v3640 = vmin.f32 %v2426, 0.0
  %v3641 = vmin.f32 %v2449, 0.0
  %v3642 = vmin.f32 %v2472, 0.0
  %v3643 = vmin.f32 %v2495, 0.0
  %v3644 = vmin.f32 %v2518, 0.0
  %v3645 = vmin.f32 %v2541, 0.0
  %v3646 = vmin.f32 %v2564, 0.0
  %v3647 = vmin.f32 %v2587, 0.0
  %v3648 = vmin.f32 %v2610, 0.0
  %v3649 = vmin.f32 %v2633, 0.0
  %v3650 = vmin.f32 %v2656, 0.0
  %v3651 = vmin.f32 %v2679, 0.0
  %v3652 = vmin.f32 %v2702, 0.0
  %v3653 = vmin.f32 %v2725, 0.0
  %v3654 = vmin.f32 %v2748, 0.0
  %v3655 = vmin.f32 %v2771, 0.0
  %v3656 = vmin.f32 %v2794, 0.0
  %v3657 = vmin.f32 %v2817, 0.0
  %v3658 = vmin.f32 %v2840, 0.0
  %v3659 = vmin.f32 %v2863, 0.0
  %v3660 = vmin.f32 %v2886, 0.0
  %v3661 = vmin.f32 %v2909, 0.0
  %v3662 = vmin.f32 %v2932, 0.0
  %v3663 = vmin.f32 %v2955, 0.0
  %v3664 = vmin.f32 %v2978, 0.0
  %v3665 = vmin.f32 %v3001, 0.0
  %v3666 = vmin.f32 %v3024, 0.0
  %v3667 = vmin.f32 %v3047, 0.0
  %v3668 = vmin.f32 %v3070, 0.0
  %v3669 = vmin.f32 %v3093, 0.0
  %v3670 = vmin.f32 %v3116, 0.0
  %v3671 = vmin.f32 %v3139, 0.0
  %v3672 = vmin.f32 %v3162, 0.0
  %v3673 = vmin.f32 %v3185, 0.0
  %v3674 = vmin.f32 %v3208, 0.0
  %v3675 = vmin.f32 %v3231, 0.0
  %v3676 = vmin.f32 %v3254, 0.0
  %v3677 = vmin.f32 %v3277, 0.0
  %v3678 = vmin.f32 %v3300, 0.0
  %v3679 = vmin.f32 %v3323, 0.0
  %v3680 = vmin.f32 %v3346, 0.0
  %v3681 = vmin.f32 %v3369, 0.0
  %v3682 = vmin.f32 %v3392, 0.0
  %v3683 = vmin.f32 %v3415, 0.0
  %v3684 = vmin.f32 %v3438, 0.0
  %v3685 = vmin.f32 %v3461, 0.0
  %v3686 = vmin.f32 %v3484, 0.0
  %v3687 = vmin.f32 %v3507, 0.0
  %v3688 = vmin.f32 %v3530, 0.0
  %v3689 = vmin.f32 %v3553, 0.0
  %v3690 = vmin.f32 %v2130, 0.0
  %v3691 = vmin.f32 %v2153, 0.0
  %v3692 = vmin.f32 %v2176, 0.0
  %v3693 = vmin.f32 %v2199, 0.0
  %v3694 = vmin.f32 %v2222, 0.0
  %v3695 = vmin.f32 %v2245, 0.0
  %v3696 = vmin.f32 %v2268, 0.0
  %v3697 = vmin.f32 %v2291, 0.0
  %v3698 = vmin.f32 %v2314, 0.0
  %v3699 = vmin.f32 %v2337, 0.0
  %v3700 = vmin.f32 %v2360, 0.0
  %v3701 = vmin.f32 %v2383, 0.0
  %v3702 = vmin.f32 %v2406, 0.0
  %v3703 = vmin.f32 %v2429, 0.0
  %v3704 = vmin.f32 %v2452, 0.0
  %v3705 = vmin.f32 %v2475, 0.0
  %v3706 = vmin.f32 %v2498, 0.0
  %v3707 = vmin.f32 %v2521, 0.0
  %v3708 = vmin.f32 %v2544, 0.0
  %v3709 = vmin.f32 %v2567, 0.0
  %v3710 = vmin.f32 %v2590, 0.0
  %v3711 = vmin.f32 %v2613, 0.0
  %v3712 = vmin.f32 %v2636, 0.0
  %v3713 = vmin.f32 %v2659, 0.0
  %v3714 = vmin.f32 %v2682, 0.0
  %v3715 = vmin.f32 %v2705, 0.0
  %v3716 = vmin.f32 %v2728, 0.0
  %v3717 = vmin.f32 %v2751, 0.0
  %v3718 = vmin.f32 %v2774, 0.0
  %v3719 = vmin.f32 %v2797, 0.0
  %v3720 = vmin.f32 %v2820, 0.0
  %v3721 = vmin.f32 %v2843, 0.0
  %v3722 = vmin.f32 %v2866, 0.0
  %v3723 = vmin.f32 %v2889, 0.0
  %v3724 = vmin.f32 %v2912, 0.0
  %v3725 = vmin.f32 %v2935, 0.0
  %v3726 = vmin.f32 %v2958, 0.0
  %v3727 = vmin.f32 %v2981, 0.0
  %v3728 = vmin.f32 %v3004, 0.0
  %v3729 = vmin.f32 %v3027, 0.0
  %v3730 = vmin.f32 %v3050, 0.0
  %v3731 = vmin.f32 %v3073, 0.0
  %v3732 = vmin.f32 %v3096, 0.0
  %v3733 = vmin.f32 %v3119, 0.0
  %v3734 = vmin.f32 %v3142, 0.0
  %v3735 = vmin.f32 %v3165, 0.0
  %v3736 = vmin.f32 %v3188, 0.0
  %v3737 = vmin.f32 %v3211, 0.0
  %v3738 = vmin.f32 %v3234, 0.0
  %v3739 = vmin.f32 %v3257, 0.0
  %v3740 = vmin.f32 %v3280, 0.0
  %v3741 = vmin.f32 %v3303, 0.0
  %v3742 = vmin.f32 %v3326, 0.0
  %v3743 = vmin.f32 %v3349, 0.0
  %v3744 = vmin.f32 %v3372, 0.0
  %v3745 = vmin.f32 %v3395, 0.0
  %v3746 = vmin.f32 %v3418, 0.0
  %v3747 = vmin.f32 %v3441, 0.0
  %v3748 = vmin.f32 %v3464, 0.0
  %v3749 = vmin.f32 %v3487, 0.0
  %v3750 = vmin.f32 %v3510, 0.0
  %v3751 = vmin.f32 %v3533, 0.0
  %v3752 = vmin.f32 %v3556, 0.0
  %v3753 = vmin.f32 %v2132, 0.0
  %v3754 = vmin.f32 %v2155, 0.0
  %v3755 = vmin.f32 %v2178, 0.0
  %v3756 = vmin.f32 %v2201, 0.0
  %v3757 = vmin.f32 %v2224, 0.0
  %v3758 = vmin.f32 %v2247, 0.0
  %v3759 = vmin.f32 %v2270, 0.0
  %v3760 = vmin.f32 %v2293, 0.0
  %v3761 = vmin.f32 %v2316, 0.0
  %v3762 = vmin.f32 %v2339, 0.0
  %v3763 = vmin.f32 %v2362, 0.0
  %v3764 = vmin.f32 %v2385, 0.0
  %v3765 = vmin.f32 %v2408, 0.0
  %v3766 = vmin.f32 %v2431, 0.0
  %v3767 = vmin.f32 %v2454, 0.0
  %v3768 = vmin.f32 %v2477, 0.0
  %v3769 = vmin.f32 %v2500, 0.0
  %v3770 = vmin.f32 %v2523, 0.0
  %v3771 = vmin.f32 %v2546, 0.0
  %v3772 = vmin.f32 %v2569, 0.0
  %v3773 = vmin.f32 %v2592, 0.0
  %v3774 = vmin.f32 %v2615, 0.0
  %v3775 = vmin.f32 %v2638, 0.0
  %v3776 = vmin.f32 %v2661, 0.0
  %v3777 = vmin.f32 %v2684, 0.0
  %v3778 = vmin.f32 %v2707, 0.0
  %v3779 = vmin.f32 %v2730, 0.0
  %v3780 = vmin.f32 %v2753, 0.0
  %v3781 = vmin.f32 %v2776, 0.0
  %v3782 = vmin.f32 %v2799, 0.0
  %v3783 = vmin.f32 %v2822, 0.0
  %v3784 = vmin.f32 %v2845, 0.0
  %v3785 = vmin.f32 %v2868, 0.0
  %v3786 = vmin.f32 %v2891, 0.0
  %v3787 = vmin.f32 %v2914, 0.0
  %v3788 = vmin.f32 %v2937, 0.0
  %v3789 = vmin.f32 %v2960, 0.0
  %v3790 = vmin.f32 %v2983, 0.0
  %v3791 = vmin.f32 %v3006, 0.0
  %v3792 = vmin.f32 %v3029, 0.0
  %v3793 = vmin.f32 %v3052, 0.0
  %v3794 = vmin.f32 %v3075, 0.0
  %v3795 = vmin.f32 %v3098, 0.0
  %v3796 = vmin.f32 %v3121, 0.0
  %v3797 = vmin.f32 %v3144, 0.0
  %v3798 = vmin.f32 %v3167, 0.0
  %v3799 = vmin.f32 %v3190, 0.0
  %v3800 = vmin.f32 %v3213, 0.0
  %v3801 = vmin.f32 %v3236, 0.0
  %v3802 = vmin.f32 %v3259, 0.0
  %v3803 = vmin.f32 %v3282, 0.0
  %v3804 = vmin.f32 %v3305, 0.0
  %v3805 = vmin.f32 %v3328, 0.0
  %v3806 = vmin.f32 %v3351, 0.0
  %v3807 = vmin.f32 %v3374, 0.0
  %v3808 = vmin.f32 %v3397, 0.0
  %v3809 = vmin.f32 %v3420, 0.0
  %v3810 = vmin.f32 %v3443, 0.0
  %v3811 = vmin.f32 %v3466, 0.0
  %v3812 = vmin.f32 %v3489, 0.0
  %v3813 = vmin.f32 %v3512, 0.0
  %v3814 = vmin.f32 %v3535, 0.0
  %v3815 = vmin.f32 %v3558, 0.0
  %v3816 = vmin.f32 %v2135, 0.0
  %v3817 = vmin.f32 %v2158, 0.0
  %v3818 = vmin.f32 %v2181, 0.0
  %v3819 = vmin.f32 %v2204, 0.0
  %v3820 = vmin.f32 %v2227, 0.0
  %v3821 = vmin.f32 %v2250, 0.0
  %v3822 = vmin.f32 %v2273, 0.0
  %v3823 = vmin.f32 %v2296, 0.0
  %v3824 = vmin.f32 %v2319, 0.0
  %v3825 = vmin.f32 %v2342, 0.0
  %v3826 = vmin.f32 %v2365, 0.0
  %v3827 = vmin.f32 %v2388, 0.0
  %v3828 = vmin.f32 %v2411, 0.0
  %v3829 = vmin.f32 %v2434, 0.0
  %v3830 = vmin.f32 %v2457, 0.0
  %v3831 = vmin.f32 %v2480, 0.0
  %v3832 = vmin.f32 %v2503, 0.0
  %v3833 = vmin.f32 %v2526, 0.0
  %v3834 = vmin.f32 %v2549, 0.0
  %v3835 = vmin.f32 %v2572, 0.0
  %v3836 = vmin.f32 %v2595, 0.0
  %v3837 = vmin.f32 %v2618, 0.0
  %v3838 = vmin.f32 %v2641, 0.0
  %v3839 = vmin.f32 %v2664, 0.0
  %v3840 = vmin.f32 %v2687, 0.0
  %v3841 = vmin.f32 %v2710, 0.0
  %v3842 = vmin.f32 %v2733, 0.0
  %v3843 = vmin.f32 %v2756, 0.0
  %v3844 = vmin.f32 %v2779, 0.0
  %v3845 = vmin.f32 %v2802, 0.0
  %v3846 = vmin.f32 %v2825, 0.0
  %v3847 = vmin.f32 %v2848, 0.0
  %v3848 = vmin.f32 %v2871, 0.0
  %v3849 = vmin.f32 %v2894, 0.0
  %v3850 = vmin.f32 %v2917, 0.0
  %v3851 = vmin.f32 %v2940, 0.0
  %v3852 = vmin.f32 %v2963, 0.0
  %v3853 = vmin.f32 %v2986, 0.0
  %v3854 = vmin.f32 %v3009, 0.0
  %v3855 = vmin.f32 %v3032, 0.0
  %v3856 = vmin.f32 %v3055, 0.0
  %v3857 = vmin.f32 %v3078, 0.0
  %v3858 = vmin.f32 %v3101, 0.0
  %v3859 = vmin.f32 %v3124, 0.0
  %v3860 = vmin.f32 %v3147, 0.0
  %v3861 = vmin.f32 %v3170, 0.0
  %v3862 = vmin.f32 %v3193, 0.0
  %v3863 = vmin.f32 %v3216, 0.0
  %v3864 = vmin.f32 %v3239, 0.0
  %v3865 = vmin.f32 %v3262, 0.0
  %v3866 = vmin.f32 %v3285, 0.0
  %v3867 = vmin.f32 %v3308, 0.0
  %v3868 = vmin.f32 %v3331, 0.0
  %v3869 = vmin.f32 %v3354, 0.0
  %v3870 = vmin.f32 %v3377, 0.0
  %v3871 = vmin.f32 %v3400, 0.0
  %v3872 = vmin.f32 %v3423, 0.0
  %v3873 = vmin.f32 %v3446, 0.0
  %v3874 = vmin.f32 %v3469, 0.0
  %v3875 = vmin.f32 %v3492, 0.0
  %v3876 = vmin.f32 %v3515, 0.0
  %v3877 = vmin.f32 %v3538, 0.0
  %v3878 = vmin.f32 %v3561, 0.0
  %v3879 = vmul.f32 %v3564, 1.442695
  %v3880 = vpow.pop %v3879
  %v3881 = vmul.f32 %v3565, 1.442695
  %v3882 = vpow.pop %v3881
  %v3883 = vmul.f32 %v3566, 1.442695
  %v3884 = vpow.pop %v3883
  %v3885 = vmul.f32 %v3567, 1.442695
  %v3886 = vpow.pop %v3885
  %v3887 = vmul.f32 %v3568, 1.442695
  %v3888 = vpow.pop %v3887
  %v3889 = vmul.f32 %v3569, 1.442695
  %v3890 = vpow.pop %v3889
  %v3891 = vmul.f32 %v3570, 1.442695
  %v3892 = vpow.pop %v3891
  %v3893 = vmul.f32 %v3571, 1.442695
  %v3894 = vpow.pop %v3893
  %v3895 = vmul.f32 %v3572, 1.442695
  %v3896 = vpow.pop %v3895
  %v3897 = vmul.f32 %v3573, 1.442695
  %v3898 = vpow.pop %v3897
  %v3899 = vmul.f32 %v3574, 1.442695
  %v3900 = vpow.pop %v3899
  %v3901 = vmul.f32 %v3575, 1.442695
  %v3902 = vpow.pop %v3901
  %v3903 = vmul.f32 %v3576, 1.442695
  %v3904 = vpow.pop %v3903
  %v3905 = vmul.f32 %v3577, 1.442695
  %v3906 = vpow.pop %v3905
  %v3907 = vmul.f32 %v3578, 1.442695
  %v3908 = vpow.pop %v3907
  %v3909 = vmul.f32 %v3579, 1.442695
  %v3910 = vpow.pop %v3909
  %v3911 = vmul.f32 %v3580, 1.442695
  %v3912 = vpow.pop %v3911
  %v3913 = vmul.f32 %v3581, 1.442695
  %v3914 = vpow.pop %v3913
  %v3915 = vmul.f32 %v3582, 1.442695
  %v3916 = vpow.pop %v3915
  %v3917 = vmul.f32 %v3583, 1.442695
  %v3918 = vpow.pop %v3917
  %v3919 = vmul.f32 %v3584, 1.442695
  %v3920 = vpow.pop %v3919
  %v3921 = vmul.f32 %v3585, 1.442695
  %v3922 = vpow.pop %v3921
  %v3923 = vmul.f32 %v3586, 1.442695
  %v3924 = vpow.pop %v3923
  %v3925 = vmul.f32 %v3587, 1.442695
  %v3926 = vpow.pop %v3925
  %v3927 = vmul.f32 %v3588, 1.442695
  %v3928 = vpow.pop %v3927
  %v3929 = vmul.f32 %v3589, 1.442695
  %v3930 = vpow.pop %v3929
  %v3931 = vmul.f32 %v3590, 1.442695
  %v3932 = vpow.pop %v3931
  %v3933 = vmul.f32 %v3591, 1.442695
  %v3934 = vpow.pop %v3933
  %v3935 = vmul.f32 %v3592, 1.442695
  %v3936 = vpow.pop %v3935
  %v3937 = vmul.f32 %v3593, 1.442695
  %v3938 = vpow.pop %v3937
  %v3939 = vmul.f32 %v3594, 1.442695
  %v3940 = vpow.pop %v3939
  %v3941 = vmul.f32 %v3595, 1.442695
  %v3942 = vpow.pop %v3941
  %v3943 = vmul.f32 %v3596, 1.442695
  %v3944 = vpow.pop %v3943
  %v3945 = vmul.f32 %v3597, 1.442695
  %v3946 = vpow.pop %v3945
  %v3947 = vmul.f32 %v3598, 1.442695
  %v3948 = vpow.pop %v3947
  %v3949 = vmul.f32 %v3599, 1.442695
  %v3950 = vpow.pop %v3949
  %v3951 = vmul.f32 %v3600, 1.442695
  %v3952 = vpow.pop %v3951
  %v3953 = vmul.f32 %v3601, 1.442695
  %v3954 = vpow.pop %v3953
  %v3955 = vmul.f32 %v3602, 1.442695
  %v3956 = vpow.pop %v3955
  %v3957 = vmul.f32 %v3603, 1.442695
  %v3958 = vpow.pop %v3957
  %v3959 = vmul.f32 %v3604, 1.442695
  %v3960 = vpow.pop %v3959
  %v3961 = vmul.f32 %v3605, 1.442695
  %v3962 = vpow.pop %v3961
  %v3963 = vmul.f32 %v3606, 1.442695
  %v3964 = vpow.pop %v3963
  %v3965 = vmul.f32 %v3607, 1.442695
  %v3966 = vpow.pop %v3965
  %v3967 = vmul.f32 %v3608, 1.442695
  %v3968 = vpow.pop %v3967
  %v3969 = vmul.f32 %v3609, 1.442695
  %v3970 = vpow.pop %v3969
  %v3971 = vmul.f32 %v3610, 1.442695
  %v3972 = vpow.pop %v3971
  %v3973 = vmul.f32 %v3611, 1.442695
  %v3974 = vpow.pop %v3973
  %v3975 = vmul.f32 %v3612, 1.442695
  %v3976 = vpow.pop %v3975
  %v3977 = vmul.f32 %v3613, 1.442695
  %v3978 = vpow.pop %v3977
  %v3979 = vmul.f32 %v3614, 1.442695
  %v3980 = vpow.pop %v3979
  %v3981 = vmul.f32 %v3615, 1.442695
  %v3982 = vpow.pop %v3981
  %v3983 = vmul.f32 %v3616, 1.442695
  %v3984 = vpow.pop %v3983
  %v3985 = vmul.f32 %v3617, 1.442695
  %v3986 = vpow.pop %v3985
  %v3987 = vmul.f32 %v3618, 1.442695
  %v3988 = vpow.pop %v3987
  %v3989 = vmul.f32 %v3619, 1.442695
  %v3990 = vpow.pop %v3989
  %v3991 = vmul.f32 %v3620, 1.442695
  %v3992 = vpow.pop %v3991
  %v3993 = vmul.f32 %v3621, 1.442695
  %v3994 = vpow.pop %v3993
  %v3995 = vmul.f32 %v3622, 1.442695
  %v3996 = vpow.pop %v3995
  %v3997 = vmul.f32 %v3623, 1.442695
  %v3998 = vpow.pop %v3997
  %v3999 = vmul.f32 %v3624, 1.442695
  %v4000 = vpow.pop %v3999
  %v4001 = vmul.f32 %v3625, 1.442695
  %v4002 = vpow.pop %v4001
  %v4003 = vmul.f32 %v3626, 1.442695
  %v4004 = vpow.pop %v4003
  %v4005 = vmul.f32 %v3627, 1.442695
  %v4006 = vpow.pop %v4005
  %v4007 = vmul.f32 %v3628, 1.442695
  %v4008 = vpow.pop %v4007
  %v4009 = vmul.f32 %v3629, 1.442695
  %v4010 = vpow.pop %v4009
  %v4011 = vmul.f32 %v3630, 1.442695
  %v4012 = vpow.pop %v4011
  %v4013 = vmul.f32 %v3631, 1.442695
  %v4014 = vpow.pop %v4013
  %v4015 = vmul.f32 %v3632, 1.442695
  %v4016 = vpow.pop %v4015
  %v4017 = vmul.f32 %v3633, 1.442695
  %v4018 = vpow.pop %v4017
  %v4019 = vmul.f32 %v3634, 1.442695
  %v4020 = vpow.pop %v4019
  %v4021 = vmul.f32 %v3635, 1.442695
  %v4022 = vpow.pop %v4021
  %v4023 = vmul.f32 %v3636, 1.442695
  %v4024 = vpow.pop %v4023
  %v4025 = vmul.f32 %v3637, 1.442695
  %v4026 = vpow.pop %v4025
  %v4027 = vmul.f32 %v3638, 1.442695
  %v4028 = vpow.pop %v4027
  %v4029 = vmul.f32 %v3639, 1.442695
  %v4030 = vpow.pop %v4029
  %v4031 = vmul.f32 %v3640, 1.442695
  %v4032 = vpow.pop %v4031
  %v4033 = vmul.f32 %v3641, 1.442695
  %v4034 = vpow.pop %v4033
  %v4035 = vmul.f32 %v3642, 1.442695
  %v4036 = vpow.pop %v4035
  %v4037 = vmul.f32 %v3643, 1.442695
  %v4038 = vpow.pop %v4037
  %v4039 = vmul.f32 %v3644, 1.442695
  %v4040 = vpow.pop %v4039
  %v4041 = vmul.f32 %v3645, 1.442695
  %v4042 = vpow.pop %v4041
  %v4043 = vmul.f32 %v3646, 1.442695
  %v4044 = vpow.pop %v4043
  %v4045 = vmul.f32 %v3647, 1.442695
  %v4046 = vpow.pop %v4045
  %v4047 = vmul.f32 %v3648, 1.442695
  %v4048 = vpow.pop %v4047
  %v4049 = vmul.f32 %v3649, 1.442695
  %v4050 = vpow.pop %v4049
  %v4051 = vmul.f32 %v3650, 1.442695
  %v4052 = vpow.pop %v4051
  %v4053 = vmul.f32 %v3651, 1.442695
  %v4054 = vpow.pop %v4053
  %v4055 = vmul.f32 %v3652, 1.442695
  %v4056 = vpow.pop %v4055
  %v4057 = vmul.f32 %v3653, 1.442695
  %v4058 = vpow.pop %v4057
  %v4059 = vmul.f32 %v3654, 1.442695
  %v4060 = vpow.pop %v4059
  %v4061 = vmul.f32 %v3655, 1.442695
  %v4062 = vpow.pop %v4061
  %v4063 = vmul.f32 %v3656, 1.442695
  %v4064 = vpow.pop %v4063
  %v4065 = vmul.f32 %v3657, 1.442695
  %v4066 = vpow.pop %v4065
  %v4067 = vmul.f32 %v3658, 1.442695
  %v4068 = vpow.pop %v4067
  %v4069 = vmul.f32 %v3659, 1.442695
  %v4070 = vpow.pop %v4069
  %v4071 = vmul.f32 %v3660, 1.442695
  %v4072 = vpow.pop %v4071
  %v4073 = vmul.f32 %v3661, 1.442695
  %v4074 = vpow.pop %v4073
  %v4075 = vmul.f32 %v3662, 1.442695
  %v4076 = vpow.pop %v4075
  %v4077 = vmul.f32 %v3663, 1.442695
  %v4078 = vpow.pop %v4077
  %v4079 = vmul.f32 %v3664, 1.442695
  %v4080 = vpow.pop %v4079
  %v4081 = vmul.f32 %v3665, 1.442695
  %v4082 = vpow.pop %v4081
  %v4083 = vmul.f32 %v3666, 1.442695
  %v4084 = vpow.pop %v4083
  %v4085 = vmul.f32 %v3667, 1.442695
  %v4086 = vpow.pop %v4085
  %v4087 = vmul.f32 %v3668, 1.442695
  %v4088 = vpow.pop %v4087
  %v4089 = vmul.f32 %v3669, 1.442695
  %v4090 = vpow.pop %v4089
  %v4091 = vmul.f32 %v3670, 1.442695
  %v4092 = vpow.pop %v4091
  %v4093 = vmul.f32 %v3671, 1.442695
  %v4094 = vpow.pop %v4093
  %v4095 = vmul.f32 %v3672, 1.442695
  %v4096 = vpow.pop %v4095
  %v4097 = vmul.f32 %v3673, 1.442695
  %v4098 = vpow.pop %v4097
  %v4099 = vmul.f32 %v3674, 1.442695
  %v4100 = vpow.pop %v4099
  %v4101 = vmul.f32 %v3675, 1.442695
  %v4102 = vpow.pop %v4101
  %v4103 = vmul.f32 %v3676, 1.442695
  %v4104 = vpow.pop %v4103
  %v4105 = vmul.f32 %v3677, 1.442695
  %v4106 = vpow.pop %v4105
  %v4107 = vmul.f32 %v3678, 1.442695
  %v4108 = vpow.pop %v4107
  %v4109 = vmul.f32 %v3679, 1.442695
  %v4110 = vpow.pop %v4109
  %v4111 = vmul.f32 %v3680, 1.442695
  %v4112 = vpow.pop %v4111
  %v4113 = vmul.f32 %v3681, 1.442695
  %v4114 = vpow.pop %v4113
  %v4115 = vmul.f32 %v3682, 1.442695
  %v4116 = vpow.pop %v4115
  %v4117 = vmul.f32 %v3683, 1.442695
  %v4118 = vpow.pop %v4117
  %v4119 = vmul.f32 %v3684, 1.442695
  %v4120 = vpow.pop %v4119
  %v4121 = vmul.f32 %v3685, 1.442695
  %v4122 = vpow.pop %v4121
  %v4123 = vmul.f32 %v3686, 1.442695
  %v4124 = vpow.pop %v4123
  %v4125 = vmul.f32 %v3687, 1.442695
  %v4126 = vpow.pop %v4125
  %v4127 = vmul.f32 %v3688, 1.442695
  %v4128 = vpow.pop %v4127
  %v4129 = vmul.f32 %v3689, 1.442695
  %v4130 = vpow.pop %v4129
  %v4131 = vmul.f32 %v3690, 1.442695
  %v4132 = vpow.pop %v4131
  %v4133 = vmul.f32 %v3691, 1.442695
  %v4134 = vpow.pop %v4133
  %v4135 = vmul.f32 %v3692, 1.442695
  %v4136 = vpow.pop %v4135
  %v4137 = vmul.f32 %v3693, 1.442695
  %v4138 = vpow.pop %v4137
  %v4139 = vmul.f32 %v3694, 1.442695
  %v4140 = vpow.pop %v4139
  %v4141 = vmul.f32 %v3695, 1.442695
  %v4142 = vpow.pop %v4141
  %v4143 = vmul.f32 %v3696, 1.442695
  %v4144 = vpow.pop %v4143
  %v4145 = vmul.f32 %v3697, 1.442695
  %v4146 = vpow.pop %v4145
  %v4147 = vmul.f32 %v3698, 1.442695
  %v4148 = vpow.pop %v4147
  %v4149 = vmul.f32 %v3699, 1.442695
  %v4150 = vpow.pop %v4149
  %v4151 = vmul.f32 %v3700, 1.442695
  %v4152 = vpow.pop %v4151
  %v4153 = vmul.f32 %v3701, 1.442695
  %v4154 = vpow.pop %v4153
  %v4155 = vmul.f32 %v3702, 1.442695
  %v4156 = vpow.pop %v4155
  %v4157 = vmul.f32 %v3703, 1.442695
  %v4158 = vpow.pop %v4157
  %v4159 = vmul.f32 %v3704, 1.442695
  %v4160 = vpow.pop %v4159
  %v4161 = vmul.f32 %v3705, 1.442695
  %v4162 = vpow.pop %v4161
  %v4163 = vmul.f32 %v3706, 1.442695
  %v4164 = vpow.pop %v4163
  %v4165 = vmul.f32 %v3707, 1.442695
  %v4166 = vpow.pop %v4165
  %v4167 = vmul.f32 %v3708, 1.442695
  %v4168 = vpow.pop %v4167
  %v4169 = vmul.f32 %v3709, 1.442695
  %v4170 = vpow.pop %v4169
  %v4171 = vmul.f32 %v3710, 1.442695
  %v4172 = vpow.pop %v4171
  %v4173 = vmul.f32 %v3711, 1.442695
  %v4174 = vpow.pop %v4173
  %v4175 = vmul.f32 %v3712, 1.442695
  %v4176 = vpow.pop %v4175
  %v4177 = vmul.f32 %v3713, 1.442695
  %v4178 = vpow.pop %v4177
  %v4179 = vmul.f32 %v3714, 1.442695
  %v4180 = vpow.pop %v4179
  %v4181 = vmul.f32 %v3715, 1.442695
  %v4182 = vpow.pop %v4181
  %v4183 = vmul.f32 %v3716, 1.442695
  %v4184 = vpow.pop %v4183
  %v4185 = vmul.f32 %v3717, 1.442695
  %v4186 = vpow.pop %v4185
  %v4187 = vmul.f32 %v3718, 1.442695
  %v4188 = vpow.pop %v4187
  %v4189 = vmul.f32 %v3719, 1.442695
  %v4190 = vpow.pop %v4189
  %v4191 = vmul.f32 %v3720, 1.442695
  %v4192 = vpow.pop %v4191
  %v4193 = vmul.f32 %v3721, 1.442695
  %v4194 = vpow.pop %v4193
  %v4195 = vmul.f32 %v3722, 1.442695
  %v4196 = vpow.pop %v4195
  %v4197 = vmul.f32 %v3723, 1.442695
  %v4198 = vpow.pop %v4197
  %v4199 = vmul.f32 %v3724, 1.442695
  %v4200 = vpow.pop %v4199
  %v4201 = vmul.f32 %v3725, 1.442695
  %v4202 = vpow.pop %v4201
  %v4203 = vmul.f32 %v3726, 1.442695
  %v4204 = vpow.pop %v4203
  %v4205 = vmul.f32 %v3727, 1.442695
  %v4206 = vpow.pop %v4205
  %v4207 = vmul.f32 %v3728, 1.442695
  %v4208 = vpow.pop %v4207
  %v4209 = vmul.f32 %v3729, 1.442695
  %v4210 = vpow.pop %v4209
  %v4211 = vmul.f32 %v3730, 1.442695
  %v4212 = vpow.pop %v4211
  %v4213 = vmul.f32 %v3731, 1.442695
  %v4214 = vpow.pop %v4213
  %v4215 = vmul.f32 %v3732, 1.442695
  %v4216 = vpow.pop %v4215
  %v4217 = vmul.f32 %v3733, 1.442695
  %v4218 = vpow.pop %v4217
  %v4219 = vmul.f32 %v3734, 1.442695
  %v4220 = vpow.pop %v4219
  %v4221 = vmul.f32 %v3735, 1.442695
  %v4222 = vpow.pop %v4221
  %v4223 = vmul.f32 %v3736, 1.442695
  %v4224 = vpow.pop %v4223
  %v4225 = vmul.f32 %v3737, 1.442695
  %v4226 = vpow.pop %v4225
  %v4227 = vmul.f32 %v3738, 1.442695
  %v4228 = vpow.pop %v4227
  %v4229 = vmul.f32 %v3739, 1.442695
  %v4230 = vpow.pop %v4229
  %v4231 = vmul.f32 %v3740, 1.442695
  %v4232 = vpow.pop %v4231
  %v4233 = vmul.f32 %v3741, 1.442695
  %v4234 = vpow.pop %v4233
  %v4235 = vmul.f32 %v3742, 1.442695
  %v4236 = vpow.pop %v4235
  %v4237 = vmul.f32 %v3743, 1.442695
  %v4238 = vpow.pop %v4237
  %v4239 = vmul.f32 %v3744, 1.442695
  %v4240 = vpow.pop %v4239
  %v4241 = vmul.f32 %v3745, 1.442695
  %v4242 = vpow.pop %v4241
  %v4243 = vmul.f32 %v3746, 1.442695
  %v4244 = vpow.pop %v4243
  %v4245 = vmul.f32 %v3747, 1.442695
  %v4246 = vpow.pop %v4245
  %v4247 = vmul.f32 %v3748, 1.442695
  %v4248 = vpow.pop %v4247
  %v4249 = vmul.f32 %v3749, 1.442695
  %v4250 = vpow.pop %v4249
  %v4251 = vmul.f32 %v3750, 1.442695
  %v4252 = vpow.pop %v4251
  %v4253 = vmul.f32 %v3751, 1.442695
  %v4254 = vpow.pop %v4253
  %v4255 = vmul.f32 %v3752, 1.442695
  %v4256 = vpow.pop %v4255
  %v4257 = vmul.f32 %v3753, 1.442695
  %v4258 = vpow.pop %v4257
  %v4259 = vmul.f32 %v3754, 1.442695
  %v4260 = vpow.pop %v4259
  %v4261 = vmul.f32 %v3755, 1.442695
  %v4262 = vpow.pop %v4261
  %v4263 = vmul.f32 %v3756, 1.442695
  %v4264 = vpow.pop %v4263
  %v4265 = vmul.f32 %v3757, 1.442695
  %v4266 = vpow.pop %v4265
  %v4267 = vmul.f32 %v3758, 1.442695
  %v4268 = vpow.pop %v4267
  %v4269 = vmul.f32 %v3759, 1.442695
  %v4270 = vpow.pop %v4269
  %v4271 = vmul.f32 %v3760, 1.442695
  %v4272 = vpow.pop %v4271
  %v4273 = vmul.f32 %v3761, 1.442695
  %v4274 = vpow.pop %v4273
  %v4275 = vmul.f32 %v3762, 1.442695
  %v4276 = vpow.pop %v4275
  %v4277 = vmul.f32 %v3763, 1.442695
  %v4278 = vpow.pop %v4277
  %v4279 = vmul.f32 %v3764, 1.442695
  %v4280 = vpow.pop %v4279
  %v4281 = vmul.f32 %v3765, 1.442695
  %v4282 = vpow.pop %v4281
  %v4283 = vmul.f32 %v3766, 1.442695
  %v4284 = vpow.pop %v4283
  %v4285 = vmul.f32 %v3767, 1.442695
  %v4286 = vpow.pop %v4285
  %v4287 = vmul.f32 %v3768, 1.442695
  %v4288 = vpow.pop %v4287
  %v4289 = vmul.f32 %v3769, 1.442695
  %v4290 = vpow.pop %v4289
  %v4291 = vmul.f32 %v3770, 1.442695
  %v4292 = vpow.pop %v4291
  %v4293 = vmul.f32 %v3771, 1.442695
  %v4294 = vpow.pop %v4293
  %v4295 = vmul.f32 %v3772, 1.442695
  %v4296 = vpow.pop %v4295
  %v4297 = vmul.f32 %v3773, 1.442695
  %v4298 = vpow.pop %v4297
  %v4299 = vmul.f32 %v3774, 1.442695
  %v4300 = vpow.pop %v4299
  %v4301 = vmul.f32 %v3775, 1.442695
  %v4302 = vpow.pop %v4301
  %v4303 = vmul.f32 %v3776, 1.442695
  %v4304 = vpow.pop %v4303
  %v4305 = vmul.f32 %v3777, 1.442695
  %v4306 = vpow.pop %v4305
  %v4307 = vmul.f32 %v3778, 1.442695
  %v4308 = vpow.pop %v4307
  %v4309 = vmul.f32 %v3779, 1.442695
  %v4310 = vpow.pop %v4309
  %v4311 = vmul.f32 %v3780, 1.442695
  %v4312 = vpow.pop %v4311
  %v4313 = vmul.f32 %v3781, 1.442695
  %v4314 = vpow.pop %v4313
  %v4315 = vmul.f32 %v3782, 1.442695
  %v4316 = vpow.pop %v4315
  %v4317 = vmul.f32 %v3783, 1.442695
  %v4318 = vpow.pop %v4317
  %v4319 = vmul.f32 %v3784, 1.442695
  %v4320 = vpow.pop %v4319
  %v4321 = vmul.f32 %v3785, 1.442695
  %v4322 = vpow.pop %v4321
  %v4323 = vmul.f32 %v3786, 1.442695
  %v4324 = vpow.pop %v4323
  %v4325 = vmul.f32 %v3787, 1.442695
  %v4326 = vpow.pop %v4325
  %v4327 = vmul.f32 %v3788, 1.442695
  %v4328 = vpow.pop %v4327
  %v4329 = vmul.f32 %v3789, 1.442695
  %v4330 = vpow.pop %v4329
  %v4331 = vmul.f32 %v3790, 1.442695
  %v4332 = vpow.pop %v4331
  %v4333 = vmul.f32 %v3791, 1.442695
  %v4334 = vpow.pop %v4333
  %v4335 = vmul.f32 %v3792, 1.442695
  %v4336 = vpow.pop %v4335
  %v4337 = vmul.f32 %v3793, 1.442695
  %v4338 = vpow.pop %v4337
  %v4339 = vmul.f32 %v3794, 1.442695
  %v4340 = vpow.pop %v4339
  %v4341 = vmul.f32 %v3795, 1.442695
  %v4342 = vpow.pop %v4341
  %v4343 = vmul.f32 %v3796, 1.442695
  %v4344 = vpow.pop %v4343
  %v4345 = vmul.f32 %v3797, 1.442695
  %v4346 = vpow.pop %v4345
  %v4347 = vmul.f32 %v3798, 1.442695
  %v4348 = vpow.pop %v4347
  %v4349 = vmul.f32 %v3799, 1.442695
  %v4350 = vpow.pop %v4349
  %v4351 = vmul.f32 %v3800, 1.442695
  %v4352 = vpow.pop %v4351
  %v4353 = vmul.f32 %v3801, 1.442695
  %v4354 = vpow.pop %v4353
  %v4355 = vmul.f32 %v3802, 1.442695
  %v4356 = vpow.pop %v4355
  %v4357 = vmul.f32 %v3803, 1.442695
  %v4358 = vpow.pop %v4357
  %v4359 = vmul.f32 %v3804, 1.442695
  %v4360 = vpow.pop %v4359
  %v4361 = vmul.f32 %v3805, 1.442695
  %v4362 = vpow.pop %v4361
  %v4363 = vmul.f32 %v3806, 1.442695
  %v4364 = vpow.pop %v4363
  %v4365 = vmul.f32 %v3807, 1.442695
  %v4366 = vpow.pop %v4365
  %v4367 = vmul.f32 %v3808, 1.442695
  %v4368 = vpow.pop %v4367
  %v4369 = vmul.f32 %v3809, 1.442695
  %v4370 = vpow.pop %v4369
  %v4371 = vmul.f32 %v3810, 1.442695
  %v4372 = vpow.pop %v4371
  %v4373 = vmul.f32 %v3811, 1.442695
  %v4374 = vpow.pop %v4373
  %v4375 = vmul.f32 %v3812, 1.442695
  %v4376 = vpow.pop %v4375
  %v4377 = vmul.f32 %v3813, 1.442695
  %v4378 = vpow.pop %v4377
  %v4379 = vmul.f32 %v3814, 1.442695
  %v4380 = vpow.pop %v4379
  %v4381 = vmul.f32 %v3815, 1.442695
  %v4382 = vpow.pop %v4381
  %v4383 = vmul.f32 %v3816, 1.442695
  %v4384 = vpow.pop %v4383
  %v4385 = vmul.f32 %v3817, 1.442695
  %v4386 = vpow.pop %v4385
  %v4387 = vmul.f32 %v3818, 1.442695
  %v4388 = vpow.pop %v4387
  %v4389 = vmul.f32 %v3819, 1.442695
  %v4390 = vpow.pop %v4389
  %v4391 = vmul.f32 %v3820, 1.442695
  %v4392 = vpow.pop %v4391
  %v4393 = vmul.f32 %v3821, 1.442695
  %v4394 = vpow.pop %v4393
  %v4395 = vmul.f32 %v3822, 1.442695
  %v4396 = vpow.pop %v4395
  %v4397 = vmul.f32 %v3823, 1.442695
  %v4398 = vpow.pop %v4397
  %v4399 = vmul.f32 %v3824, 1.442695
  %v4400 = vpow.pop %v4399
  %v4401 = vmul.f32 %v3825, 1.442695
  %v4402 = vpow.pop %v4401
  %v4403 = vmul.f32 %v3826, 1.442695
  %v4404 = vpow.pop %v4403
  %v4405 = vmul.f32 %v3827, 1.442695
  %v4406 = vpow.pop %v4405
  %v4407 = vmul.f32 %v3828, 1.442695
  %v4408 = vpow.pop %v4407
  %v4409 = vmul.f32 %v3829, 1.442695
  %v4410 = vpow.pop %v4409
  %v4411 = vmul.f32 %v3830, 1.442695
  %v4412 = vpow.pop %v4411
  %v4413 = vmul.f32 %v3831, 1.442695
  %v4414 = vpow.pop %v4413
  %v4415 = vmul.f32 %v3832, 1.442695
  %v4416 = vpow.pop %v4415
  %v4417 = vmul.f32 %v3833, 1.442695
  %v4418 = vpow.pop %v4417
  %v4419 = vmul.f32 %v3834, 1.442695
  %v4420 = vpow.pop %v4419
  %v4421 = vmul.f32 %v3835, 1.442695
  %v4422 = vpow.pop %v4421
  %v4423 = vmul.f32 %v3836, 1.442695
  %v4424 = vpow.pop %v4423
  %v4425 = vmul.f32 %v3837, 1.442695
  %v4426 = vpow.pop %v4425
  %v4427 = vmul.f32 %v3838, 1.442695
  %v4428 = vpow.pop %v4427
  %v4429 = vmul.f32 %v3839, 1.442695
  %v4430 = vpow.pop %v4429
  %v4431 = vmul.f32 %v3840, 1.442695
  %v4432 = vpow.pop %v4431
  %v4433 = vmul.f32 %v3841, 1.442695
  %v4434 = vpow.pop %v4433
  %v4435 = vmul.f32 %v3842, 1.442695
  %v4436 = vpow.pop %v4435
  %v4437 = vmul.f32 %v3843, 1.442695
  %v4438 = vpow.pop %v4437
  %v4439 = vmul.f32 %v3844, 1.442695
  %v4440 = vpow.pop %v4439
  %v4441 = vmul.f32 %v3845, 1.442695
  %v4442 = vpow.pop %v4441
  %v4443 = vmul.f32 %v3846, 1.442695
  %v4444 = vpow.pop %v4443
  %v4445 = vmul.f32 %v3847, 1.442695
  %v4446 = vpow.pop %v4445
  %v4447 = vmul.f32 %v3848, 1.442695
  %v4448 = vpow.pop %v4447
  %v4449 = vmul.f32 %v3849, 1.442695
  %v4450 = vpow.pop %v4449
  %v4451 = vmul.f32 %v3850, 1.442695
  %v4452 = vpow.pop %v4451
  %v4453 = vmul.f32 %v3851, 1.442695
  %v4454 = vpow.pop %v4453
  %v4455 = vmul.f32 %v3852, 1.442695
  %v4456 = vpow.pop %v4455
  %v4457 = vmul.f32 %v3853, 1.442695
  %v4458 = vpow.pop %v4457
  %v4459 = vmul.f32 %v3854, 1.442695
  %v4460 = vpow.pop %v4459
  %v4461 = vmul.f32 %v3855, 1.442695
  %v4462 = vpow.pop %v4461
  %v4463 = vmul.f32 %v3856, 1.442695
  %v4464 = vpow.pop %v4463
  %v4465 = vmul.f32 %v3857, 1.442695
  %v4466 = vpow.pop %v4465
  %v4467 = vmul.f32 %v3858, 1.442695
  %v4468 = vpow.pop %v4467
  %v4469 = vmul.f32 %v3859, 1.442695
  %v4470 = vpow.pop %v4469
  %v4471 = vmul.f32 %v3860, 1.442695
  %v4472 = vpow.pop %v4471
  %v4473 = vmul.f32 %v3861, 1.442695
  %v4474 = vpow.pop %v4473
  %v4475 = vmul.f32 %v3862, 1.442695
  %v4476 = vpow.pop %v4475
  %v4477 = vmul.f32 %v3863, 1.442695
  %v4478 = vpow.pop %v4477
  %v4479 = vmul.f32 %v3864, 1.442695
  %v4480 = vpow.pop %v4479
  %v4481 = vmul.f32 %v3865, 1.442695
  %v4482 = vpow.pop %v4481
  %v4483 = vmul.f32 %v3866, 1.442695
  %v4484 = vpow.pop %v4483
  %v4485 = vmul.f32 %v3867, 1.442695
  %v4486 = vpow.pop %v4485
  %v4487 = vmul.f32 %v3868, 1.442695
  %v4488 = vpow.pop %v4487
  %v4489 = vmul.f32 %v3869, 1.442695
  %v4490 = vpow.pop %v4489
  %v4491 = vmul.f32 %v3870, 1.442695
  %v4492 = vpow.pop %v4491
  %v4493 = vmul.f32 %v3871, 1.442695
  %v4494 = vpow.pop %v4493
  %v4495 = vmul.f32 %v3872, 1.442695
  %v4496 = vpow.pop %v4495
  %v4497 = vmul.f32 %v3873, 1.442695
  %v4498 = vpow.pop %v4497
  %v4499 = vmul.f32 %v3874, 1.442695
  %v4500 = vpow.pop %v4499
  %v4501 = vmul.f32 %v3875, 1.442695
  %v4502 = vpow.pop %v4501
  %v4503 = vmul.f32 %v3876, 1.442695
  %v4504 = vpow.pop %v4503
  %v4505 = vmul.f32 %v3877, 1.442695
  %v4506 = vpow.pop %v4505
  %v4507 = vmul.f32 %v3878, 1.442695
  %v4508 = vpow.pop %v4507
  %v4509 = vsub.f32 %v3880, 1.0
  %v4510 = vsub.f32 %v3882, 1.0
  %v4511 = vsub.f32 %v3884, 1.0
  %v4512 = vsub.f32 %v3886, 1.0
  %v4513 = vsub.f32 %v3888, 1.0
  %v4514 = vsub.f32 %v3890, 1.0
  %v4515 = vsub.f32 %v3892, 1.0
  %v4516 = vsub.f32 %v3894, 1.0
  %v4517 = vsub.f32 %v3896, 1.0
  %v4518 = vsub.f32 %v3898, 1.0
  %v4519 = vsub.f32 %v3900, 1.0
  %v4520 = vsub.f32 %v3902, 1.0
  %v4521 = vsub.f32 %v3904, 1.0
  %v4522 = vsub.f32 %v3906, 1.0
  %v4523 = vsub.f32 %v3908, 1.0
  %v4524 = vsub.f32 %v3910, 1.0
  %v4525 = vsub.f32 %v3912, 1.0
  %v4526 = vsub.f32 %v3914, 1.0
  %v4527 = vsub.f32 %v3916, 1.0
  %v4528 = vsub.f32 %v3918, 1.0
  %v4529 = vsub.f32 %v3920, 1.0
  %v4530 = vsub.f32 %v3922, 1.0
  %v4531 = vsub.f32 %v3924, 1.0
  %v4532 = vsub.f32 %v3926, 1.0
  %v4533 = vsub.f32 %v3928, 1.0
  %v4534 = vsub.f32 %v3930, 1.0
  %v4535 = vsub.f32 %v3932, 1.0
  %v4536 = vsub.f32 %v3934, 1.0
  %v4537 = vsub.f32 %v3936, 1.0
  %v4538 = vsub.f32 %v3938, 1.0
  %v4539 = vsub.f32 %v3940, 1.0
  %v4540 = vsub.f32 %v3942, 1.0
  %v4541 = vsub.f32 %v3944, 1.0
  %v4542 = vsub.f32 %v3946, 1.0
  %v4543 = vsub.f32 %v3948, 1.0
  %v4544 = vsub.f32 %v3950, 1.0
  %v4545 = vsub.f32 %v3952, 1.0
  %v4546 = vsub.f32 %v3954, 1.0
  %v4547 = vsub.f32 %v3956, 1.0
  %v4548 = vsub.f32 %v3958, 1.0
  %v4549 = vsub.f32 %v3960, 1.0
  %v4550 = vsub.f32 %v3962, 1.0
  %v4551 = vsub.f32 %v3964, 1.0
  %v4552 = vsub.f32 %v3966, 1.0
  %v4553 = vsub.f32 %v3968, 1.0
  %v4554 = vsub.f32 %v3970, 1.0
  %v4555 = vsub.f32 %v3972, 1.0
  %v4556 = vsub.f32 %v3974, 1.0
  %v4557 = vsub.f32 %v3976, 1.0
  %v4558 = vsub.f32 %v3978, 1.0
  %v4559 = vsub.f32 %v3980, 1.0
  %v4560 = vsub.f32 %v3982, 1.0
  %v4561 = vsub.f32 %v3984, 1.0
  %v4562 = vsub.f32 %v3986, 1.0
  %v4563 = vsub.f32 %v3988, 1.0
  %v4564 = vsub.f32 %v3990, 1.0
  %v4565 = vsub.f32 %v3992, 1.0
  %v4566 = vsub.f32 %v3994, 1.0
  %v4567 = vsub.f32 %v3996, 1.0
  %v4568 = vsub.f32 %v3998, 1.0
  %v4569 = vsub.f32 %v4000, 1.0
  %v4570 = vsub.f32 %v4002, 1.0
  %v4571 = vsub.f32 %v4004, 1.0
  %v4572 = vsub.f32 %v4006, 1.0
  %v4573 = vsub.f32 %v4008, 1.0
  %v4574 = vsub.f32 %v4010, 1.0
  %v4575 = vsub.f32 %v4012, 1.0
  %v4576 = vsub.f32 %v4014, 1.0
  %v4577 = vsub.f32 %v4016, 1.0
  %v4578 = vsub.f32 %v4018, 1.0
  %v4579 = vsub.f32 %v4020, 1.0
  %v4580 = vsub.f32 %v4022, 1.0
  %v4581 = vsub.f32 %v4024, 1.0
  %v4582 = vsub.f32 %v4026, 1.0
  %v4583 = vsub.f32 %v4028, 1.0
  %v4584 = vsub.f32 %v4030, 1.0
  %v4585 = vsub.f32 %v4032, 1.0
  %v4586 = vsub.f32 %v4034, 1.0
  %v4587 = vsub.f32 %v4036, 1.0
  %v4588 = vsub.f32 %v4038, 1.0
  %v4589 = vsub.f32 %v4040, 1.0
  %v4590 = vsub.f32 %v4042, 1.0
  %v4591 = vsub.f32 %v4044, 1.0
  %v4592 = vsub.f32 %v4046, 1.0
  %v4593 = vsub.f32 %v4048, 1.0
  %v4594 = vsub.f32 %v4050, 1.0
  %v4595 = vsub.f32 %v4052, 1.0
  %v4596 = vsub.f32 %v4054, 1.0
  %v4597 = vsub.f32 %v4056, 1.0
  %v4598 = vsub.f32 %v4058, 1.0
  %v4599 = vsub.f32 %v4060, 1.0
  %v4600 = vsub.f32 %v4062, 1.0
  %v4601 = vsub.f32 %v4064, 1.0
  %v4602 = vsub.f32 %v4066, 1.0
  %v4603 = vsub.f32 %v4068, 1.0
  %v4604 = vsub.f32 %v4070, 1.0
  %v4605 = vsub.f32 %v4072, 1.0
  %v4606 = vsub.f32 %v4074, 1.0
  %v4607 = vsub.f32 %v4076, 1.0
  %v4608 = vsub.f32 %v4078, 1.0
  %v4609 = vsub.f32 %v4080, 1.0
  %v4610 = vsub.f32 %v4082, 1.0
  %v4611 = vsub.f32 %v4084, 1.0
  %v4612 = vsub.f32 %v4086, 1.0
  %v4613 = vsub.f32 %v4088, 1.0
  %v4614 = vsub.f32 %v4090, 1.0
  %v4615 = vsub.f32 %v4092, 1.0
  %v4616 = vsub.f32 %v4094, 1.0
  %v4617 = vsub.f32 %v4096, 1.0
  %v4618 = vsub.f32 %v4098, 1.0
  %v4619 = vsub.f32 %v4100, 1.0
  %v4620 = vsub.f32 %v4102, 1.0
  %v4621 = vsub.f32 %v4104, 1.0
  %v4622 = vsub.f32 %v4106, 1.0
  %v4623 = vsub.f32 %v4108, 1.0
  %v4624 = vsub.f32 %v4110, 1.0
  %v4625 = vsub.f32 %v4112, 1.0
  %v4626 = vsub.f32 %v4114, 1.0
  %v4627 = vsub.f32 %v4116, 1.0
  %v4628 = vsub.f32 %v4118, 1.0
  %v4629 = vsub.f32 %v4120, 1.0
  %v4630 = vsub.f32 %v4122, 1.0
  %v4631 = vsub.f32 %v4124, 1.0
  %v4632 = vsub.f32 %v4126, 1.0
  %v4633 = vsub.f32 %v4128, 1.0
  %v4634 = vsub.f32 %v4130, 1.0
  %v4635 = vsub.f32 %v4132, 1.0
  %v4636 = vsub.f32 %v4134, 1.0
  %v4637 = vsub.f32 %v4136, 1.0
  %v4638 = vsub.f32 %v4138, 1.0
  %v4639 = vsub.f32 %v4140, 1.0
  %v4640 = vsub.f32 %v4142, 1.0
  %v4641 = vsub.f32 %v4144, 1.0
  %v4642 = vsub.f32 %v4146, 1.0
  %v4643 = vsub.f32 %v4148, 1.0
  %v4644 = vsub.f32 %v4150, 1.0
  %v4645 = vsub.f32 %v4152, 1.0
  %v4646 = vsub.f32 %v4154, 1.0
  %v4647 = vsub.f32 %v4156, 1.0
  %v4648 = vsub.f32 %v4158, 1.0
  %v4649 = vsub.f32 %v4160, 1.0
  %v4650 = vsub.f32 %v4162, 1.0
  %v4651 = vsub.f32 %v4164, 1.0
  %v4652 = vsub.f32 %v4166, 1.0
  %v4653 = vsub.f32 %v4168, 1.0
  %v4654 = vsub.f32 %v4170, 1.0
  %v4655 = vsub.f32 %v4172, 1.0
  %v4656 = vsub.f32 %v4174, 1.0
  %v4657 = vsub.f32 %v4176, 1.0
  %v4658 = vsub.f32 %v4178, 1.0
  %v4659 = vsub.f32 %v4180, 1.0
  %v4660 = vsub.f32 %v4182, 1.0
  %v4661 = vsub.f32 %v4184, 1.0
  %v4662 = vsub.f32 %v4186, 1.0
  %v4663 = vsub.f32 %v4188, 1.0
  %v4664 = vsub.f32 %v4190, 1.0
  %v4665 = vsub.f32 %v4192, 1.0
  %v4666 = vsub.f32 %v4194, 1.0
  %v4667 = vsub.f32 %v4196, 1.0
  %v4668 = vsub.f32 %v4198, 1.0
  %v4669 = vsub.f32 %v4200, 1.0
  %v4670 = vsub.f32 %v4202, 1.0
  %v4671 = vsub.f32 %v4204, 1.0
  %v4672 = vsub.f32 %v4206, 1.0
  %v4673 = vsub.f32 %v4208, 1.0
  %v4674 = vsub.f32 %v4210, 1.0
  %v4675 = vsub.f32 %v4212, 1.0
  %v4676 = vsub.f32 %v4214, 1.0
  %v4677 = vsub.f32 %v4216, 1.0
  %v4678 = vsub.f32 %v4218, 1.0
  %v4679 = vsub.f32 %v4220, 1.0
  %v4680 = vsub.f32 %v4222, 1.0
  %v4681 = vsub.f32 %v4224, 1.0
  %v4682 = vsub.f32 %v4226, 1.0
  %v4683 = vsub.f32 %v4228, 1.0
  %v4684 = vsub.f32 %v4230, 1.0
  %v4685 = vsub.f32 %v4232, 1.0
  %v4686 = vsub.f32 %v4234, 1.0
  %v4687 = vsub.f32 %v4236, 1.0
  %v4688 = vsub.f32 %v4238, 1.0
  %v4689 = vsub.f32 %v4240, 1.0
  %v4690 = vsub.f32 %v4242, 1.0
  %v4691 = vsub.f32 %v4244, 1.0
  %v4692 = vsub.f32 %v4246, 1.0
  %v4693 = vsub.f32 %v4248, 1.0
  %v4694 = vsub.f32 %v4250, 1.0
  %v4695 = vsub.f32 %v4252, 1.0
  %v4696 = vsub.f32 %v4254, 1.0
  %v4697 = vsub.f32 %v4256, 1.0
  %v4698 = vsub.f32 %v4258, 1.0
  %v4699 = vsub.f32 %v4260, 1.0
  %v4700 = vsub.f32 %v4262, 1.0
  %v4701 = vsub.f32 %v4264, 1.0
  %v4702 = vsub.f32 %v4266, 1.0
  %v4703 = vsub.f32 %v4268, 1.0
  %v4704 = vsub.f32 %v4270, 1.0
  %v4705 = vsub.f32 %v4272, 1.0
  %v4706 = vsub.f32 %v4274, 1.0
  %v4707 = vsub.f32 %v4276, 1.0
  %v4708 = vsub.f32 %v4278, 1.0
  %v4709 = vsub.f32 %v4280, 1.0
  %v4710 = vsub.f32 %v4282, 1.0
  %v4711 = vsub.f32 %v4284, 1.0
  %v4712 = vsub.f32 %v4286, 1.0
  %v4713 = vsub.f32 %v4288, 1.0
  %v4714 = vsub.f32 %v4290, 1.0
  %v4715 = vsub.f32 %v4292, 1.0
  %v4716 = vsub.f32 %v4294, 1.0
  %v4717 = vsub.f32 %v4296, 1.0
  %v4718 = vsub.f32 %v4298, 1.0
  %v4719 = vsub.f32 %v4300, 1.0
  %v4720 = vsub.f32 %v4302, 1.0
  %v4721 = vsub.f32 %v4304, 1.0
  %v4722 = vsub.f32 %v4306, 1.0
  %v4723 = vsub.f32 %v4308, 1.0
  %v4724 = vsub.f32 %v4310, 1.0
  %v4725 = vsub.f32 %v4312, 1.0
  %v4726 = vsub.f32 %v4314, 1.0
  %v4727 = vsub.f32 %v4316, 1.0
  %v4728 = vsub.f32 %v4318, 1.0
  %v4729 = vsub.f32 %v4320, 1.0
  %v4730 = vsub.f32 %v4322, 1.0
  %v4731 = vsub.f32 %v4324, 1.0
  %v4732 = vsub.f32 %v4326, 1.0
  %v4733 = vsub.f32 %v4328, 1.0
  %v4734 = vsub.f32 %v4330, 1.0
  %v4735 = vsub.f32 %v4332, 1.0
  %v4736 = vsub.f32 %v4334, 1.0
  %v4737 = vsub.f32 %v4336, 1.0
  %v4738 = vsub.f32 %v4338, 1.0
  %v4739 = vsub.f32 %v4340, 1.0
  %v4740 = vsub.f32 %v4342, 1.0
  %v4741 = vsub.f32 %v4344, 1.0
  %v4742 = vsub.f32 %v4346, 1.0
  %v4743 = vsub.f32 %v4348, 1.0
  %v4744 = vsub.f32 %v4350, 1.0
  %v4745 = vsub.f32 %v4352, 1.0
  %v4746 = vsub.f32 %v4354, 1.0
  %v4747 = vsub.f32 %v4356, 1.0
  %v4748 = vsub.f32 %v4358, 1.0
  %v4749 = vsub.f32 %v4360, 1.0
  %v4750 = vsub.f32 %v4362, 1.0
  %v4751 = vsub.f32 %v4364, 1.0
  %v4752 = vsub.f32 %v4366, 1.0
  %v4753 = vsub.f32 %v4368, 1.0
  %v4754 = vsub.f32 %v4370, 1.0
  %v4755 = vsub.f32 %v4372, 1.0
  %v4756 = vsub.f32 %v4374, 1.0
  %v4757 = vsub.f32 %v4376, 1.0
  %v4758 = vsub.f32 %v4378, 1.0
  %v4759 = vsub.f32 %v4380, 1.0
  %v4760 = vsub.f32 %v4382, 1.0
  %v4761 = vsub.f32 %v4384, 1.0
  %v4762 = vsub.f32 %v4386, 1.0
  %v4763 = vsub.f32 %v4388, 1.0
  %v4764 = vsub.f32 %v4390, 1.0
  %v4765 = vsub.f32 %v4392, 1.0
  %v4766 = vsub.f32 %v4394, 1.0
  %v4767 = vsub.f32 %v4396, 1.0
  %v4768 = vsub.f32 %v4398, 1.0
  %v4769 = vsub.f32 %v4400, 1.0
  %v4770 = vsub.f32 %v4402, 1.0
  %v4771 = vsub.f32 %v4404, 1.0
  %v4772 = vsub.f32 %v4406, 1.0
  %v4773 = vsub.f32 %v4408, 1.0
  %v4774 = vsub.f32 %v4410, 1.0
  %v4775 = vsub.f32 %v4412, 1.0
  %v4776 = vsub.f32 %v4414, 1.0
  %v4777 = vsub.f32 %v4416, 1.0
  %v4778 = vsub.f32 %v4418, 1.0
  %v4779 = vsub.f32 %v4420, 1.0
  %v4780 = vsub.f32 %v4422, 1.0
  %v4781 = vsub.f32 %v4424, 1.0
  %v4782 = vsub.f32 %v4426, 1.0
  %v4783 = vsub.f32 %v4428, 1.0
  %v4784 = vsub.f32 %v4430, 1.0
  %v4785 = vsub.f32 %v4432, 1.0
  %v4786 = vsub.f32 %v4434, 1.0
  %v4787 = vsub.f32 %v4436, 1.0
  %v4788 = vsub.f32 %v4438, 1.0
  %v4789 = vsub.f32 %v4440, 1.0
  %v4790 = vsub.f32 %v4442, 1.0
  %v4791 = vsub.f32 %v4444, 1.0
  %v4792 = vsub.f32 %v4446, 1.0
  %v4793 = vsub.f32 %v4448, 1.0
  %v4794 = vsub.f32 %v4450, 1.0
  %v4795 = vsub.f32 %v4452, 1.0
  %v4796 = vsub.f32 %v4454, 1.0
  %v4797 = vsub.f32 %v4456, 1.0
  %v4798 = vsub.f32 %v4458, 1.0
  %v4799 = vsub.f32 %v4460, 1.0
  %v4800 = vsub.f32 %v4462, 1.0
  %v4801 = vsub.f32 %v4464, 1.0
  %v4802 = vsub.f32 %v4466, 1.0
  %v4803 = vsub.f32 %v4468, 1.0
  %v4804 = vsub.f32 %v4470, 1.0
  %v4805 = vsub.f32 %v4472, 1.0
  %v4806 = vsub.f32 %v4474, 1.0
  %v4807 = vsub.f32 %v4476, 1.0
  %v4808 = vsub.f32 %v4478, 1.0
  %v4809 = vsub.f32 %v4480, 1.0
  %v4810 = vsub.f32 %v4482, 1.0
  %v4811 = vsub.f32 %v4484, 1.0
  %v4812 = vsub.f32 %v4486, 1.0
  %v4813 = vsub.f32 %v4488, 1.0
  %v4814 = vsub.f32 %v4490, 1.0
  %v4815 = vsub.f32 %v4492, 1.0
  %v4816 = vsub.f32 %v4494, 1.0
  %v4817 = vsub.f32 %v4496, 1.0
  %v4818 = vsub.f32 %v4498, 1.0
  %v4819 = vsub.f32 %v4500, 1.0
  %v4820 = vsub.f32 %v4502, 1.0
  %v4821 = vsub.f32 %v4504, 1.0
  %v4822 = vsub.f32 %v4506, 1.0
  %v4823 = vsub.f32 %v4508, 1.0
  %v4824 = vmax.f32 %v2125, %v4509
  %v4825 = vmax.f32 %v2148, %v4510
  %v4826 = vmax.f32 %v2171, %v4511
  %v4827 = vmax.f32 %v2194, %v4512
  %v4828 = vmax.f32 %v2217, %v4513
  %v4829 = vmax.f32 %v2240, %v4514
  %v4830 = vmax.f32 %v2263, %v4515
  %v4831 = vmax.f32 %v2286, %v4516
  %v4832 = vmax.f32 %v2309, %v4517
  %v4833 = vmax.f32 %v2332, %v4518
  %v4834 = vmax.f32 %v2355, %v4519
  %v4835 = vmax.f32 %v2378, %v4520
  %v4836 = vmax.f32 %v2401, %v4521
  %v4837 = vmax.f32 %v2424, %v4522
  %v4838 = vmax.f32 %v2447, %v4523
  %v4839 = vmax.f32 %v2470, %v4524
  %v4840 = vmax.f32 %v2493, %v4525
  %v4841 = vmax.f32 %v2516, %v4526
  %v4842 = vmax.f32 %v2539, %v4527
  %v4843 = vmax.f32 %v2562, %v4528
  %v4844 = vmax.f32 %v2585, %v4529
  %v4845 = vmax.f32 %v2608, %v4530
  %v4846 = vmax.f32 %v2631, %v4531
  %v4847 = vmax.f32 %v2654, %v4532
  %v4848 = vmax.f32 %v2677, %v4533
  %v4849 = vmax.f32 %v2700, %v4534
  %v4850 = vmax.f32 %v2723, %v4535
  %v4851 = vmax.f32 %v2746, %v4536
  %v4852 = vmax.f32 %v2769, %v4537
  %v4853 = vmax.f32 %v2792, %v4538
  %v4854 = vmax.f32 %v2815, %v4539
  %v4855 = vmax.f32 %v2838, %v4540
  %v4856 = vmax.f32 %v2861, %v4541
  %v4857 = vmax.f32 %v2884, %v4542
  %v4858 = vmax.f32 %v2907, %v4543
  %v4859 = vmax.f32 %v2930, %v4544
  %v4860 = vmax.f32 %v2953, %v4545
  %v4861 = vmax.f32 %v2976, %v4546
  %v4862 = vmax.f32 %v2999, %v4547
  %v4863 = vmax.f32 %v3022, %v4548
  %v4864 = vmax.f32 %v3045, %v4549
  %v4865 = vmax.f32 %v3068, %v4550
  %v4866 = vmax.f32 %v3091, %v4551
  %v4867 = vmax.f32 %v3114, %v4552
  %v4868 = vmax.f32 %v3137, %v4553
  %v4869 = vmax.f32 %v3160, %v4554
  %v4870 = vmax.f32 %v3183, %v4555
  %v4871 = vmax.f32 %v3206, %v4556
  %v4872 = vmax.f32 %v3229, %v4557
  %v4873 = vmax.f32 %v3252, %v4558
  %v4874 = vmax.f32 %v3275, %v4559
  %v4875 = vmax.f32 %v3298, %v4560
  %v4876 = vmax.f32 %v3321, %v4561
  %v4877 = vmax.f32 %v3344, %v4562
  %v4878 = vmax.f32 %v3367, %v4563
  %v4879 = vmax.f32 %v3390, %v4564
  %v4880 = vmax.f32 %v3413, %v4565
  %v4881 = vmax.f32 %v3436, %v4566
  %v4882 = vmax.f32 %v3459, %v4567
  %v4883 = vmax.f32 %v3482, %v4568
  %v4884 = vmax.f32 %v3505, %v4569
  %v4885 = vmax.f32 %v3528, %v4570
  %v4886 = vmax.f32 %v3551, %v4571
  %v4887 = vmax.f32 %v2127, %v4572
  %v4888 = vmax.f32 %v2150, %v4573
  %v4889 = vmax.f32 %v2173, %v4574
  %v4890 = vmax.f32 %v2196, %v4575
  %v4891 = vmax.f32 %v2219, %v4576
  %v4892 = vmax.f32 %v2242, %v4577
  %v4893 = vmax.f32 %v2265, %v4578
  %v4894 = vmax.f32 %v2288, %v4579
  %v4895 = vmax.f32 %v2311, %v4580
  %v4896 = vmax.f32 %v2334, %v4581
  %v4897 = vmax.f32 %v2357, %v4582
  %v4898 = vmax.f32 %v2380, %v4583
  %v4899 = vmax.f32 %v2403, %v4584
  %v4900 = vmax.f32 %v2426, %v4585
  %v4901 = vmax.f32 %v2449, %v4586
  %v4902 = vmax.f32 %v2472, %v4587
  %v4903 = vmax.f32 %v2495, %v4588
  %v4904 = vmax.f32 %v2518, %v4589
  %v4905 = vmax.f32 %v2541, %v4590
  %v4906 = vmax.f32 %v2564, %v4591
  %v4907 = vmax.f32 %v2587, %v4592
  %v4908 = vmax.f32 %v2610, %v4593
  %v4909 = vmax.f32 %v2633, %v4594
  %v4910 = vmax.f32 %v2656, %v4595
  %v4911 = vmax.f32 %v2679, %v4596
  %v4912 = vmax.f32 %v2702, %v4597
  %v4913 = vmax.f32 %v2725, %v4598
  %v4914 = vmax.f32 %v2748, %v4599
  %v4915 = vmax.f32 %v2771, %v4600
  %v4916 = vmax.f32 %v2794, %v4601
  %v4917 = vmax.f32 %v2817, %v4602
  %v4918 = vmax.f32 %v2840, %v4603
  %v4919 = vmax.f32 %v2863, %v4604
  %v4920 = vmax.f32 %v2886, %v4605
  %v4921 = vmax.f32 %v2909, %v4606
  %v4922 = vmax.f32 %v2932, %v4607
  %v4923 = vmax.f32 %v2955, %v4608
  %v4924 = vmax.f32 %v2978, %v4609
  %v4925 = vmax.f32 %v3001, %v4610
  %v4926 = vmax.f32 %v3024, %v4611
  %v4927 = vmax.f32 %v3047, %v4612
  %v4928 = vmax.f32 %v3070, %v4613
  %v4929 = vmax.f32 %v3093, %v4614
  %v4930 = vmax.f32 %v3116, %v4615
  %v4931 = vmax.f32 %v3139, %v4616
  %v4932 = vmax.f32 %v3162, %v4617
  %v4933 = vmax.f32 %v3185, %v4618
  %v4934 = vmax.f32 %v3208, %v4619
  %v4935 = vmax.f32 %v3231, %v4620
  %v4936 = vmax.f32 %v3254, %v4621
  %v4937 = vmax.f32 %v3277, %v4622
  %v4938 = vmax.f32 %v3300, %v4623
  %v4939 = vmax.f32 %v3323, %v4624
  %v4940 = vmax.f32 %v3346, %v4625
  %v4941 = vmax.f32 %v3369, %v4626
  %v4942 = vmax.f32 %v3392, %v4627
  %v4943 = vmax.f32 %v3415, %v4628
  %v4944 = vmax.f32 %v3438, %v4629
  %v4945 = vmax.f32 %v3461, %v4630
  %v4946 = vmax.f32 %v3484, %v4631
  %v4947 = vmax.f32 %v3507, %v4632
  %v4948 = vmax.f32 %v3530, %v4633
  %v4949 = vmax.f32 %v3553, %v4634
  %v4950 = vmax.f32 %v2130, %v4635
  %v4951 = vmax.f32 %v2153, %v4636
  %v4952 = vmax.f32 %v2176, %v4637
  %v4953 = vmax.f32 %v2199, %v4638
  %v4954 = vmax.f32 %v2222, %v4639
  %v4955 = vmax.f32 %v2245, %v4640
  %v4956 = vmax.f32 %v2268, %v4641
  %v4957 = vmax.f32 %v2291, %v4642
  %v4958 = vmax.f32 %v2314, %v4643
  %v4959 = vmax.f32 %v2337, %v4644
  %v4960 = vmax.f32 %v2360, %v4645
  %v4961 = vmax.f32 %v2383, %v4646
  %v4962 = vmax.f32 %v2406, %v4647
  %v4963 = vmax.f32 %v2429, %v4648
  %v4964 = vmax.f32 %v2452, %v4649
  %v4965 = vmax.f32 %v2475, %v4650
  %v4966 = vmax.f32 %v2498, %v4651
  %v4967 = vmax.f32 %v2521, %v4652
  %v4968 = vmax.f32 %v2544, %v4653
  %v4969 = vmax.f32 %v2567, %v4654
  %v4970 = vmax.f32 %v2590, %v4655
  %v4971 = vmax.f32 %v2613, %v4656
  %v4972 = vmax.f32 %v2636, %v4657
  %v4973 = vmax.f32 %v2659, %v4658
  %v4974 = vmax.f32 %v2682, %v4659
  %v4975 = vmax.f32 %v2705, %v4660
  %v4976 = vmax.f32 %v2728, %v4661
  %v4977 = vmax.f32 %v2751, %v4662
  %v4978 = vmax.f32 %v2774, %v4663
  %v4979 = vmax.f32 %v2797, %v4664
  %v4980 = vmax.f32 %v2820, %v4665
  %v4981 = vmax.f32 %v2843, %v4666
  %v4982 = vmax.f32 %v2866, %v4667
  %v4983 = vmax.f32 %v2889, %v4668
  %v4984 = vmax.f32 %v2912, %v4669
  %v4985 = vmax.f32 %v2935, %v4670
  %v4986 = vmax.f32 %v2958, %v4671
  %v4987 = vmax.f32 %v2981, %v4672
  %v4988 = vmax.f32 %v3004, %v4673
  %v4989 = vmax.f32 %v3027, %v4674
  %v4990 = vmax.f32 %v3050, %v4675
  %v4991 = vmax.f32 %v3073, %v4676
  %v4992 = vmax.f32 %v3096, %v4677
  %v4993 = vmax.f32 %v3119, %v4678
  %v4994 = vmax.f32 %v3142, %v4679
  %v4995 = vmax.f32 %v3165, %v4680
  %v4996 = vmax.f32 %v3188, %v4681
  %v4997 = vmax.f32 %v3211, %v4682
  %v4998 = vmax.f32 %v3234, %v4683
  %v4999 = vmax.f32 %v3257, %v4684
  %v5000 = vmax.f32 %v3280, %v4685
  %v5001 = vmax.f32 %v3303, %v4686
  %v5002 = vmax.f32 %v3326, %v4687
  %v5003 = vmax.f32 %v3349, %v4688
  %v5004 = vmax.f32 %v3372, %v4689
  %v5005 = vmax.f32 %v3395, %v4690
  %v5006 = vmax.f32 %v3418, %v4691
  %v5007 = vmax.f32 %v3441, %v4692
  %v5008 = vmax.f32 %v3464, %v4693
  %v5009 = vmax.f32 %v3487, %v4694
  %v5010 = vmax.f32 %v3510, %v4695
  %v5011 = vmax.f32 %v3533, %v4696
  %v5012 = vmax.f32 %v3556, %v4697
  %v5013 = vmax.f32 %v2132, %v4698
  %v5014 = vmax.f32 %v2155, %v4699
  %v5015 = vmax.f32 %v2178, %v4700
  %v5016 = vmax.f32 %v2201, %v4701
  %v5017 = vmax.f32 %v2224, %v4702
  %v5018 = vmax.f32 %v2247, %v4703
  %v5019 = vmax.f32 %v2270, %v4704
  %v5020 = vmax.f32 %v2293, %v4705
  %v5021 = vmax.f32 %v2316, %v4706
  %v5022 = vmax.f32 %v2339, %v4707
  %v5023 = vmax.f32 %v2362, %v4708
  %v5024 = vmax.f32 %v2385, %v4709
  %v5025 = vmax.f32 %v2408, %v4710
  %v5026 = vmax.f32 %v2431, %v4711
  %v5027 = vmax.f32 %v2454, %v4712
  %v5028 = vmax.f32 %v2477, %v4713
  %v5029 = vmax.f32 %v2500, %v4714
  %v5030 = vmax.f32 %v2523, %v4715
  %v5031 = vmax.f32 %v2546, %v4716
  %v5032 = vmax.f32 %v2569, %v4717
  %v5033 = vmax.f32 %v2592, %v4718
  %v5034 = vmax.f32 %v2615, %v4719
  %v5035 = vmax.f32 %v2638, %v4720
  %v5036 = vmax.f32 %v2661, %v4721
  %v5037 = vmax.f32 %v2684, %v4722
  %v5038 = vmax.f32 %v2707, %v4723
  %v5039 = vmax.f32 %v2730, %v4724
  %v5040 = vmax.f32 %v2753, %v4725
  %v5041 = vmax.f32 %v2776, %v4726
  %v5042 = vmax.f32 %v2799, %v4727
  %v5043 = vmax.f32 %v2822, %v4728
  %v5044 = vmax.f32 %v2845, %v4729
  %v5045 = vmax.f32 %v2868, %v4730
  %v5046 = vmax.f32 %v2891, %v4731
  %v5047 = vmax.f32 %v2914, %v4732
  %v5048 = vmax.f32 %v2937, %v4733
  %v5049 = vmax.f32 %v2960, %v4734
  %v5050 = vmax.f32 %v2983, %v4735
  %v5051 = vmax.f32 %v3006, %v4736
  %v5052 = vmax.f32 %v3029, %v4737
  %v5053 = vmax.f32 %v3052, %v4738
  %v5054 = vmax.f32 %v3075, %v4739
  %v5055 = vmax.f32 %v3098, %v4740
  %v5056 = vmax.f32 %v3121, %v4741
  %v5057 = vmax.f32 %v3144, %v4742
  %v5058 = vmax.f32 %v3167, %v4743
  %v5059 = vmax.f32 %v3190, %v4744
  %v5060 = vmax.f32 %v3213, %v4745
  %v5061 = vmax.f32 %v3236, %v4746
  %v5062 = vmax.f32 %v3259, %v4747
  %v5063 = vmax.f32 %v3282, %v4748
  %v5064 = vmax.f32 %v3305, %v4749
  %v5065 = vmax.f32 %v3328, %v4750
  %v5066 = vmax.f32 %v3351, %v4751
  %v5067 = vmax.f32 %v3374, %v4752
  %v5068 = vmax.f32 %v3397, %v4753
  %v5069 = vmax.f32 %v3420, %v4754
  %v5070 = vmax.f32 %v3443, %v4755
  %v5071 = vmax.f32 %v3466, %v4756
  %v5072 = vmax.f32 %v3489, %v4757
  %v5073 = vmax.f32 %v3512, %v4758
  %v5074 = vmax.f32 %v3535, %v4759
  %v5075 = vmax.f32 %v3558, %v4760
  %v5076 = vmax.f32 %v2135, %v4761
  %v5077 = vmax.f32 %v2158, %v4762
  %v5078 = vmax.f32 %v2181, %v4763
  %v5079 = vmax.f32 %v2204, %v4764
  %v5080 = vmax.f32 %v2227, %v4765
  %v5081 = vmax.f32 %v2250, %v4766
  %v5082 = vmax.f32 %v2273, %v4767
  %v5083 = vmax.f32 %v2296, %v4768
  %v5084 = vmax.f32 %v2319, %v4769
  %v5085 = vmax.f32 %v2342, %v4770
  %v5086 = vmax.f32 %v2365, %v4771
  %v5087 = vmax.f32 %v2388, %v4772
  %v5088 = vmax.f32 %v2411, %v4773
  %v5089 = vmax.f32 %v2434, %v4774
  %v5090 = vmax.f32 %v2457, %v4775
  %v5091 = vmax.f32 %v2480, %v4776
  %v5092 = vmax.f32 %v2503, %v4777
  %v5093 = vmax.f32 %v2526, %v4778
  %v5094 = vmax.f32 %v2549, %v4779
  %v5095 = vmax.f32 %v2572, %v4780
  %v5096 = vmax.f32 %v2595, %v4781
  %v5097 = vmax.f32 %v2618, %v4782
  %v5098 = vmax.f32 %v2641, %v4783
  %v5099 = vmax.f32 %v2664, %v4784
  %v5100 = vmax.f32 %v2687, %v4785
  %v5101 = vmax.f32 %v2710, %v4786
  %v5102 = vmax.f32 %v2733, %v4787
  %v5103 = vmax.f32 %v2756, %v4788
  %v5104 = vmax.f32 %v2779, %v4789
  %v5105 = vmax.f32 %v2802, %v4790
  %v5106 = vmax.f32 %v2825, %v4791
  %v5107 = vmax.f32 %v2848, %v4792
  %v5108 = vmax.f32 %v2871, %v4793
  %v5109 = vmax.f32 %v2894, %v4794
  %v5110 = vmax.f32 %v2917, %v4795
  %v5111 = vmax.f32 %v2940, %v4796
  %v5112 = vmax.f32 %v2963, %v4797
  %v5113 = vmax.f32 %v2986, %v4798
  %v5114 = vmax.f32 %v3009, %v4799
  %v5115 = vmax.f32 %v3032, %v4800
  %v5116 = vmax.f32 %v3055, %v4801
  %v5117 = vmax.f32 %v3078, %v4802
  %v5118 = vmax.f32 %v3101, %v4803
  %v5119 = vmax.f32 %v3124, %v4804
  %v5120 = vmax.f32 %v3147, %v4805
  %v5121 = vmax.f32 %v3170, %v4806
  %v5122 = vmax.f32 %v3193, %v4807
  %v5123 = vmax.f32 %v3216, %v4808
  %v5124 = vmax.f32 %v3239, %v4809
  %v5125 = vmax.f32 %v3262, %v4810
  %v5126 = vmax.f32 %v3285, %v4811
  %v5127 = vmax.f32 %v3308, %v4812
  %v5128 = vmax.f32 %v3331, %v4813
  %v5129 = vmax.f32 %v3354, %v4814
  %v5130 = vmax.f32 %v3377, %v4815
  %v5131 = vmax.f32 %v3400, %v4816
  %v5132 = vmax.f32 %v3423, %v4817
  %v5133 = vmax.f32 %v3446, %v4818
  %v5134 = vmax.f32 %v3469, %v4819
  %v5135 = vmax.f32 %v3492, %v4820
  %v5136 = vmax.f32 %v3515, %v4821
  %v5137 = vmax.f32 %v3538, %v4822
  %v5138 = vmax.f32 %v3561, %v4823
  %vm5139 = vcmask 1040384
  %v5140 = vsel %vm5139, %v4824, 0.0
  %v5141 = vrot.slane %v4825, 7
  %vm5142 = vcmask 1041409
  %v5143 = vsel %vm5142, %v5141, %v5140
  %v5144 = vrot.slane %v4826, 6
  %vm5145 = vcmask 1042434
  %v5146 = vsel %vm5145, %v5144, %v5143
  %v5147 = vrot.slane %v4827, 5
  %vm5148 = vcmask 1043459
  %v5149 = vsel %vm5148, %v5147, %v5146
  %v5150 = vrot.slane %v4828, 4
  %vm5151 = vcmask 1044484
  %v5152 = vsel %vm5151, %v5150, %v5149
  %v5153 = vrot.slane %v4829, 3
  %vm5154 = vcmask 1045509
  %v5155 = vsel %vm5154, %v5153, %v5152
  %v5156 = vrot.slane %v4830, 2
  %vm5157 = vcmask 1046534
  %v5158 = vsel %vm5157, %v5156, %v5155
  %v5159 = vrot.slane %v4831, 1
  %vm5160 = vcmask 1047559
  %v5161 = vsel %vm5160, %v5159, %v5158
  %v5162 = vsel %vm5139, %v4832, 0.0
  %v5163 = vrot.slane %v4833, 7
  %v5164 = vsel %vm5142, %v5163, %v5162
  %v5165 = vrot.slane %v4834, 6
  %v5166 = vsel %vm5145, %v5165, %v5164
  %v5167 = vrot.slane %v4835, 5
  %v5168 = vsel %vm5148, %v5167, %v5166
  %v5169 = vrot.slane %v4836, 4
  %v5170 = vsel %vm5151, %v5169, %v5168
  %v5171 = vrot.slane %v4837, 3
  %v5172 = vsel %vm5154, %v5171, %v5170
  %v5173 = vrot.slane %v4838, 2
  %v5174 = vsel %vm5157, %v5173, %v5172
  %v5175 = vrot.slane %v4839, 1
  %v5176 = vsel %vm5160, %v5175, %v5174
  %v5177 = vsel %vm5139, %v4840, 0.0
  %v5178 = vrot.slane %v4841, 7
  %v5179 = vsel %vm5142, %v5178, %v5177
  %v5180 = vrot.slane %v4842, 6
  %v5181 = vsel %vm5145, %v5180, %v5179
  %v5182 = vrot.slane %v4843, 5
  %v5183 = vsel %vm5148, %v5182, %v5181
  %v5184 = vrot.slane %v4844, 4
  %v5185 = vsel %vm5151, %v5184, %v5183
  %v5186 = vrot.slane %v4845, 3
  %v5187 = vsel %vm5154, %v5186, %v5185
  %v5188 = vrot.slane %v4846, 2
  %v5189 = vsel %vm5157, %v5188, %v5187
  %v5190 = vrot.slane %v4847, 1
  %v5191 = vsel %vm5160, %v5190, %v5189
  %v5192 = vsel %vm5139, %v4848, 0.0
  %v5193 = vrot.slane %v4849, 7
  %v5194 = vsel %vm5142, %v5193, %v5192
  %v5195 = vrot.slane %v4850, 6
  %v5196 = vsel %vm5145, %v5195, %v5194
  %v5197 = vrot.slane %v4851, 5
  %v5198 = vsel %vm5148, %v5197, %v5196
  %v5199 = vrot.slane %v4852, 4
  %v5200 = vsel %vm5151, %v5199, %v5198
  %v5201 = vrot.slane %v4853, 3
  %v5202 = vsel %vm5154, %v5201, %v5200
  %v5203 = vrot.slane %v4854, 2
  %v5204 = vsel %vm5157, %v5203, %v5202
  %v5205 = vrot.slane %v4855, 1
  %v5206 = vsel %vm5160, %v5205, %v5204
  %v5207 = vsel %vm5139, %v4856, 0.0
  %v5208 = vrot.slane %v4857, 7
  %v5209 = vsel %vm5142, %v5208, %v5207
  %v5210 = vrot.slane %v4858, 6
  %v5211 = vsel %vm5145, %v5210, %v5209
  %v5212 = vrot.slane %v4859, 5
  %v5213 = vsel %vm5148, %v5212, %v5211
  %v5214 = vrot.slane %v4860, 4
  %v5215 = vsel %vm5151, %v5214, %v5213
  %v5216 = vrot.slane %v4861, 3
  %v5217 = vsel %vm5154, %v5216, %v5215
  %v5218 = vrot.slane %v4862, 2
  %v5219 = vsel %vm5157, %v5218, %v5217
  %v5220 = vrot.slane %v4863, 1
  %v5221 = vsel %vm5160, %v5220, %v5219
  %v5222 = vsel %vm5139, %v4864, 0.0
  %v5223 = vrot.slane %v4865, 7
  %v5224 = vsel %vm5142, %v5223, %v5222
  %v5225 = vrot.slane %v4866, 6
  %v5226 = vsel %vm5145, %v5225, %v5224
  %v5227 = vrot.slane %v4867, 5
  %v5228 = vsel %vm5148, %v5227, %v5226
  %v5229 = vrot.slane %v4868, 4
  %v5230 = vsel %vm5151, %v5229, %v5228
  %v5231 = vrot.slane %v4869, 3
  %v5232 = vsel %vm5154, %v5231, %v5230
  %v5233 = vrot.slane %v4870, 2
  %v5234 = vsel %vm5157, %v5233, %v5232
  %v5235 = vrot.slane %v4871, 1
  %v5236 = vsel %vm5160, %v5235, %v5234
  %v5237 = vsel %vm5139, %v4872, 0.0
  %v5238 = vrot.slane %v4873, 7
  %v5239 = vsel %vm5142, %v5238, %v5237
  %v5240 = vrot.slane %v4874, 6
  %v5241 = vsel %vm5145, %v5240, %v5239
  %v5242 = vrot.slane %v4875, 5
  %v5243 = vsel %vm5148, %v5242, %v5241
  %v5244 = vrot.slane %v4876, 4
  %v5245 = vsel %vm5151, %v5244, %v5243
  %v5246 = vrot.slane %v4877, 3
  %v5247 = vsel %vm5154, %v5246, %v5245
  %v5248 = vrot.slane %v4878, 2
  %v5249 = vsel %vm5157, %v5248, %v5247
  %v5250 = vrot.slane %v4879, 1
  %v5251 = vsel %vm5160, %v5250, %v5249
  %v5252 = vsel %vm5139, %v4880, 0.0
  %v5253 = vrot.slane %v4881, 7
  %v5254 = vsel %vm5142, %v5253, %v5252
  %v5255 = vrot.slane %v4882, 6
  %v5256 = vsel %vm5145, %v5255, %v5254
  %v5257 = vrot.slane %v4883, 5
  %v5258 = vsel %vm5148, %v5257, %v5256
  %v5259 = vrot.slane %v4884, 4
  %v5260 = vsel %vm5151, %v5259, %v5258
  %v5261 = vrot.slane %v4885, 3
  %v5262 = vsel %vm5154, %v5261, %v5260
  %v5263 = vrot.slane %v4886, 2
  %v5264 = vsel %vm5157, %v5263, %v5262
  %v5265 = vrot.slane %v4824, 2
  %v5266 = vsel %vm5160, %v5265, %v5264
  %v5267 = vrot.slane %v4825, 1
  %v5268 = vsel %vm5139, %v5267, 0.0
  %v5269 = vsel %vm5142, %v4826, %v5268
  %v5270 = vrot.slane %v4827, 7
  %v5271 = vsel %vm5145, %v5270, %v5269
  %v5272 = vrot.slane %v4828, 6
  %v5273 = vsel %vm5148, %v5272, %v5271
  %v5274 = vrot.slane %v4829, 5
  %v5275 = vsel %vm5151, %v5274, %v5273
  %v5276 = vrot.slane %v4830, 4
  %v5277 = vsel %vm5154, %v5276, %v5275
  %v5278 = vrot.slane %v4831, 3
  %v5279 = vsel %vm5157, %v5278, %v5277
  %v5280 = vrot.slane %v4832, 2
  %v5281 = vsel %vm5160, %v5280, %v5279
  %v5282 = vrot.slane %v4833, 1
  %v5283 = vsel %vm5139, %v5282, 0.0
  %v5284 = vsel %vm5142, %v4834, %v5283
  %v5285 = vrot.slane %v4835, 7
  %v5286 = vsel %vm5145, %v5285, %v5284
  %v5287 = vrot.slane %v4836, 6
  %v5288 = vsel %vm5148, %v5287, %v5286
  %v5289 = vrot.slane %v4837, 5
  %v5290 = vsel %vm5151, %v5289, %v5288
  %v5291 = vrot.slane %v4838, 4
  %v5292 = vsel %vm5154, %v5291, %v5290
  %v5293 = vrot.slane %v4839, 3
  %v5294 = vsel %vm5157, %v5293, %v5292
  %v5295 = vrot.slane %v4840, 2
  %v5296 = vsel %vm5160, %v5295, %v5294
  %v5297 = vrot.slane %v4841, 1
  %v5298 = vsel %vm5139, %v5297, 0.0
  %v5299 = vsel %vm5142, %v4842, %v5298
  %v5300 = vrot.slane %v4843, 7
  %v5301 = vsel %vm5145, %v5300, %v5299
  %v5302 = vrot.slane %v4844, 6
  %v5303 = vsel %vm5148, %v5302, %v5301
  %v5304 = vrot.slane %v4845, 5
  %v5305 = vsel %vm5151, %v5304, %v5303
  %v5306 = vrot.slane %v4846, 4
  %v5307 = vsel %vm5154, %v5306, %v5305
  %v5308 = vrot.slane %v4847, 3
  %v5309 = vsel %vm5157, %v5308, %v5307
  %v5310 = vrot.slane %v4848, 2
  %v5311 = vsel %vm5160, %v5310, %v5309
  %v5312 = vrot.slane %v4849, 1
  %v5313 = vsel %vm5139, %v5312, 0.0
  %v5314 = vsel %vm5142, %v4850, %v5313
  %v5315 = vrot.slane %v4851, 7
  %v5316 = vsel %vm5145, %v5315, %v5314
  %v5317 = vrot.slane %v4852, 6
  %v5318 = vsel %vm5148, %v5317, %v5316
  %v5319 = vrot.slane %v4853, 5
  %v5320 = vsel %vm5151, %v5319, %v5318
  %v5321 = vrot.slane %v4854, 4
  %v5322 = vsel %vm5154, %v5321, %v5320
  %v5323 = vrot.slane %v4855, 3
  %v5324 = vsel %vm5157, %v5323, %v5322
  %v5325 = vrot.slane %v4856, 2
  %v5326 = vsel %vm5160, %v5325, %v5324
  %v5327 = vrot.slane %v4857, 1
  %v5328 = vsel %vm5139, %v5327, 0.0
  %v5329 = vsel %vm5142, %v4858, %v5328
  %v5330 = vrot.slane %v4859, 7
  %v5331 = vsel %vm5145, %v5330, %v5329
  %v5332 = vrot.slane %v4860, 6
  %v5333 = vsel %vm5148, %v5332, %v5331
  %v5334 = vrot.slane %v4861, 5
  %v5335 = vsel %vm5151, %v5334, %v5333
  %v5336 = vrot.slane %v4862, 4
  %v5337 = vsel %vm5154, %v5336, %v5335
  %v5338 = vrot.slane %v4863, 3
  %v5339 = vsel %vm5157, %v5338, %v5337
  %v5340 = vrot.slane %v4864, 2
  %v5341 = vsel %vm5160, %v5340, %v5339
  %v5342 = vrot.slane %v4865, 1
  %v5343 = vsel %vm5139, %v5342, 0.0
  %v5344 = vsel %vm5142, %v4866, %v5343
  %v5345 = vrot.slane %v4867, 7
  %v5346 = vsel %vm5145, %v5345, %v5344
  %v5347 = vrot.slane %v4868, 6
  %v5348 = vsel %vm5148, %v5347, %v5346
  %v5349 = vrot.slane %v4869, 5
  %v5350 = vsel %vm5151, %v5349, %v5348
  %v5351 = vrot.slane %v4870, 4
  %v5352 = vsel %vm5154, %v5351, %v5350
  %v5353 = vrot.slane %v4871, 3
  %v5354 = vsel %vm5157, %v5353, %v5352
  %v5355 = vrot.slane %v4872, 2
  %v5356 = vsel %vm5160, %v5355, %v5354
  %v5357 = vrot.slane %v4873, 1
  %v5358 = vsel %vm5139, %v5357, 0.0
  %v5359 = vsel %vm5142, %v4874, %v5358
  %v5360 = vrot.slane %v4875, 7
  %v5361 = vsel %vm5145, %v5360, %v5359
  %v5362 = vrot.slane %v4876, 6
  %v5363 = vsel %vm5148, %v5362, %v5361
  %v5364 = vrot.slane %v4877, 5
  %v5365 = vsel %vm5151, %v5364, %v5363
  %v5366 = vrot.slane %v4878, 4
  %v5367 = vsel %vm5154, %v5366, %v5365
  %v5368 = vrot.slane %v4879, 3
  %v5369 = vsel %vm5157, %v5368, %v5367
  %v5370 = vrot.slane %v4880, 2
  %v5371 = vsel %vm5160, %v5370, %v5369
  %v5372 = vrot.slane %v4881, 1
  %v5373 = vsel %vm5139, %v5372, 0.0
  %v5374 = vsel %vm5142, %v4882, %v5373
  %v5375 = vrot.slane %v4883, 7
  %v5376 = vsel %vm5145, %v5375, %v5374
  %v5377 = vrot.slane %v4884, 6
  %v5378 = vsel %vm5148, %v5377, %v5376
  %v5379 = vrot.slane %v4885, 5
  %v5380 = vsel %vm5151, %v5379, %v5378
  %v5381 = vrot.slane %v4886, 4
  %v5382 = vsel %vm5154, %v5381, %v5380
  %v5383 = vrot.slane %v4824, 4
  %v5384 = vsel %vm5157, %v5383, %v5382
  %v5385 = vrot.slane %v4825, 3
  %v5386 = vsel %vm5160, %v5385, %v5384
  %v5387 = vrot.slane %v4826, 2
  %v5388 = vsel %vm5139, %v5387, 0.0
  %v5389 = vrot.slane %v4827, 1
  %v5390 = vsel %vm5142, %v5389, %v5388
  %v5391 = vsel %vm5145, %v4828, %v5390
  %v5392 = vrot.slane %v4829, 7
  %v5393 = vsel %vm5148, %v5392, %v5391
  %v5394 = vrot.slane %v4830, 6
  %v5395 = vsel %vm5151, %v5394, %v5393
  %v5396 = vrot.slane %v4831, 5
  %v5397 = vsel %vm5154, %v5396, %v5395
  %v5398 = vrot.slane %v4832, 4
  %v5399 = vsel %vm5157, %v5398, %v5397
  %v5400 = vrot.slane %v4833, 3
  %v5401 = vsel %vm5160, %v5400, %v5399
  %v5402 = vrot.slane %v4834, 2
  %v5403 = vsel %vm5139, %v5402, 0.0
  %v5404 = vrot.slane %v4835, 1
  %v5405 = vsel %vm5142, %v5404, %v5403
  %v5406 = vsel %vm5145, %v4836, %v5405
  %v5407 = vrot.slane %v4837, 7
  %v5408 = vsel %vm5148, %v5407, %v5406
  %v5409 = vrot.slane %v4838, 6
  %v5410 = vsel %vm5151, %v5409, %v5408
  %v5411 = vrot.slane %v4839, 5
  %v5412 = vsel %vm5154, %v5411, %v5410
  %v5413 = vrot.slane %v4840, 4
  %v5414 = vsel %vm5157, %v5413, %v5412
  %v5415 = vrot.slane %v4841, 3
  %v5416 = vsel %vm5160, %v5415, %v5414
  %v5417 = vrot.slane %v4842, 2
  %v5418 = vsel %vm5139, %v5417, 0.0
  %v5419 = vrot.slane %v4843, 1
  %v5420 = vsel %vm5142, %v5419, %v5418
  %v5421 = vsel %vm5145, %v4844, %v5420
  %v5422 = vrot.slane %v4845, 7
  %v5423 = vsel %vm5148, %v5422, %v5421
  %v5424 = vrot.slane %v4846, 6
  %v5425 = vsel %vm5151, %v5424, %v5423
  %v5426 = vrot.slane %v4847, 5
  %v5427 = vsel %vm5154, %v5426, %v5425
  %v5428 = vrot.slane %v4848, 4
  %v5429 = vsel %vm5157, %v5428, %v5427
  %v5430 = vrot.slane %v4849, 3
  %v5431 = vsel %vm5160, %v5430, %v5429
  %v5432 = vrot.slane %v4850, 2
  %v5433 = vsel %vm5139, %v5432, 0.0
  %v5434 = vrot.slane %v4851, 1
  %v5435 = vsel %vm5142, %v5434, %v5433
  %v5436 = vsel %vm5145, %v4852, %v5435
  %v5437 = vrot.slane %v4853, 7
  %v5438 = vsel %vm5148, %v5437, %v5436
  %v5439 = vrot.slane %v4854, 6
  %v5440 = vsel %vm5151, %v5439, %v5438
  %v5441 = vrot.slane %v4855, 5
  %v5442 = vsel %vm5154, %v5441, %v5440
  %v5443 = vrot.slane %v4856, 4
  %v5444 = vsel %vm5157, %v5443, %v5442
  %v5445 = vrot.slane %v4857, 3
  %v5446 = vsel %vm5160, %v5445, %v5444
  %v5447 = vrot.slane %v4858, 2
  %v5448 = vsel %vm5139, %v5447, 0.0
  %v5449 = vrot.slane %v4859, 1
  %v5450 = vsel %vm5142, %v5449, %v5448
  %v5451 = vsel %vm5145, %v4860, %v5450
  %v5452 = vrot.slane %v4861, 7
  %v5453 = vsel %vm5148, %v5452, %v5451
  %v5454 = vrot.slane %v4862, 6
  %v5455 = vsel %vm5151, %v5454, %v5453
  %v5456 = vrot.slane %v4863, 5
  %v5457 = vsel %vm5154, %v5456, %v5455
  %v5458 = vrot.slane %v4864, 4
  %v5459 = vsel %vm5157, %v5458, %v5457
  %v5460 = vrot.slane %v4865, 3
  %v5461 = vsel %vm5160, %v5460, %v5459
  %v5462 = vrot.slane %v4866, 2
  %v5463 = vsel %vm5139, %v5462, 0.0
  %v5464 = vrot.slane %v4867, 1
  %v5465 = vsel %vm5142, %v5464, %v5463
  %v5466 = vsel %vm5145, %v4868, %v5465
  %v5467 = vrot.slane %v4869, 7
  %v5468 = vsel %vm5148, %v5467, %v5466
  %v5469 = vrot.slane %v4870, 6
  %v5470 = vsel %vm5151, %v5469, %v5468
  %v5471 = vrot.slane %v4871, 5
  %v5472 = vsel %vm5154, %v5471, %v5470
  %v5473 = vrot.slane %v4872, 4
  %v5474 = vsel %vm5157, %v5473, %v5472
  %v5475 = vrot.slane %v4873, 3
  %v5476 = vsel %vm5160, %v5475, %v5474
  %v5477 = vrot.slane %v4874, 2
  %v5478 = vsel %vm5139, %v5477, 0.0
  %v5479 = vrot.slane %v4875, 1
  %v5480 = vsel %vm5142, %v5479, %v5478
  %v5481 = vsel %vm5145, %v4876, %v5480
  %v5482 = vrot.slane %v4877, 7
  %v5483 = vsel %vm5148, %v5482, %v5481
  %v5484 = vrot.slane %v4878, 6
  %v5485 = vsel %vm5151, %v5484, %v5483
  %v5486 = vrot.slane %v4879, 5
  %v5487 = vsel %vm5154, %v5486, %v5485
  %v5488 = vrot.slane %v4880, 4
  %v5489 = vsel %vm5157, %v5488, %v5487
  %v5490 = vrot.slane %v4881, 3
  %v5491 = vsel %vm5160, %v5490, %v5489
  %v5492 = vrot.slane %v4882, 2
  %v5493 = vsel %vm5139, %v5492, 0.0
  %v5494 = vrot.slane %v4883, 1
  %v5495 = vsel %vm5142, %v5494, %v5493
  %v5496 = vsel %vm5145, %v4884, %v5495
  %v5497 = vrot.slane %v4885, 7
  %v5498 = vsel %vm5148, %v5497, %v5496
  %v5499 = vrot.slane %v4886, 6
  %v5500 = vsel %vm5151, %v5499, %v5498
  %v5501 = vrot.slane %v4824, 6
  %v5502 = vsel %vm5154, %v5501, %v5500
  %v5503 = vrot.slane %v4825, 5
  %v5504 = vsel %vm5157, %v5503, %v5502
  %v5505 = vrot.slane %v4826, 4
  %v5506 = vsel %vm5160, %v5505, %v5504
  %v5507 = vrot.slane %v4827, 3
  %v5508 = vsel %vm5139, %v5507, 0.0
  %v5509 = vrot.slane %v4828, 2
  %v5510 = vsel %vm5142, %v5509, %v5508
  %v5511 = vrot.slane %v4829, 1
  %v5512 = vsel %vm5145, %v5511, %v5510
  %v5513 = vsel %vm5148, %v4830, %v5512
  %v5514 = vrot.slane %v4831, 7
  %v5515 = vsel %vm5151, %v5514, %v5513
  %v5516 = vrot.slane %v4832, 6
  %v5517 = vsel %vm5154, %v5516, %v5515
  %v5518 = vrot.slane %v4833, 5
  %v5519 = vsel %vm5157, %v5518, %v5517
  %v5520 = vrot.slane %v4834, 4
  %v5521 = vsel %vm5160, %v5520, %v5519
  %v5522 = vrot.slane %v4835, 3
  %v5523 = vsel %vm5139, %v5522, 0.0
  %v5524 = vrot.slane %v4836, 2
  %v5525 = vsel %vm5142, %v5524, %v5523
  %v5526 = vrot.slane %v4837, 1
  %v5527 = vsel %vm5145, %v5526, %v5525
  %v5528 = vsel %vm5148, %v4838, %v5527
  %v5529 = vrot.slane %v4839, 7
  %v5530 = vsel %vm5151, %v5529, %v5528
  %v5531 = vrot.slane %v4840, 6
  %v5532 = vsel %vm5154, %v5531, %v5530
  %v5533 = vrot.slane %v4841, 5
  %v5534 = vsel %vm5157, %v5533, %v5532
  %v5535 = vrot.slane %v4842, 4
  %v5536 = vsel %vm5160, %v5535, %v5534
  %v5537 = vrot.slane %v4843, 3
  %v5538 = vsel %vm5139, %v5537, 0.0
  %v5539 = vrot.slane %v4844, 2
  %v5540 = vsel %vm5142, %v5539, %v5538
  %v5541 = vrot.slane %v4845, 1
  %v5542 = vsel %vm5145, %v5541, %v5540
  %v5543 = vsel %vm5148, %v4846, %v5542
  %v5544 = vrot.slane %v4847, 7
  %v5545 = vsel %vm5151, %v5544, %v5543
  %v5546 = vrot.slane %v4848, 6
  %v5547 = vsel %vm5154, %v5546, %v5545
  %v5548 = vrot.slane %v4849, 5
  %v5549 = vsel %vm5157, %v5548, %v5547
  %v5550 = vrot.slane %v4850, 4
  %v5551 = vsel %vm5160, %v5550, %v5549
  %v5552 = vrot.slane %v4851, 3
  %v5553 = vsel %vm5139, %v5552, 0.0
  %v5554 = vrot.slane %v4852, 2
  %v5555 = vsel %vm5142, %v5554, %v5553
  %v5556 = vrot.slane %v4853, 1
  %v5557 = vsel %vm5145, %v5556, %v5555
  %v5558 = vsel %vm5148, %v4854, %v5557
  %v5559 = vrot.slane %v4855, 7
  %v5560 = vsel %vm5151, %v5559, %v5558
  %v5561 = vrot.slane %v4856, 6
  %v5562 = vsel %vm5154, %v5561, %v5560
  %v5563 = vrot.slane %v4857, 5
  %v5564 = vsel %vm5157, %v5563, %v5562
  %v5565 = vrot.slane %v4858, 4
  %v5566 = vsel %vm5160, %v5565, %v5564
  %v5567 = vrot.slane %v4859, 3
  %v5568 = vsel %vm5139, %v5567, 0.0
  %v5569 = vrot.slane %v4860, 2
  %v5570 = vsel %vm5142, %v5569, %v5568
  %v5571 = vrot.slane %v4861, 1
  %v5572 = vsel %vm5145, %v5571, %v5570
  %v5573 = vsel %vm5148, %v4862, %v5572
  %v5574 = vrot.slane %v4863, 7
  %v5575 = vsel %vm5151, %v5574, %v5573
  %v5576 = vrot.slane %v4864, 6
  %v5577 = vsel %vm5154, %v5576, %v5575
  %v5578 = vrot.slane %v4865, 5
  %v5579 = vsel %vm5157, %v5578, %v5577
  %v5580 = vrot.slane %v4866, 4
  %v5581 = vsel %vm5160, %v5580, %v5579
  %v5582 = vrot.slane %v4867, 3
  %v5583 = vsel %vm5139, %v5582, 0.0
  %v5584 = vrot.slane %v4868, 2
  %v5585 = vsel %vm5142, %v5584, %v5583
  %v5586 = vrot.slane %v4869, 1
  %v5587 = vsel %vm5145, %v5586, %v5585
  %v5588 = vsel %vm5148, %v4870, %v5587
  %v5589 = vrot.slane %v4871, 7
  %v5590 = vsel %vm5151, %v5589, %v5588
  %v5591 = vrot.slane %v4872, 6
  %v5592 = vsel %vm5154, %v5591, %v5590
  %v5593 = vrot.slane %v4873, 5
  %v5594 = vsel %vm5157, %v5593, %v5592
  %v5595 = vrot.slane %v4874, 4
  %v5596 = vsel %vm5160, %v5595, %v5594
  %v5597 = vrot.slane %v4875, 3
  %v5598 = vsel %vm5139, %v5597, 0.0
  %v5599 = vrot.slane %v4876, 2
  %v5600 = vsel %vm5142, %v5599, %v5598
  %v5601 = vrot.slane %v4877, 1
  %v5602 = vsel %vm5145, %v5601, %v5600
  %v5603 = vsel %vm5148, %v4878, %v5602
  %v5604 = vrot.slane %v4879, 7
  %v5605 = vsel %vm5151, %v5604, %v5603
  %v5606 = vrot.slane %v4880, 6
  %v5607 = vsel %vm5154, %v5606, %v5605
  %v5608 = vrot.slane %v4881, 5
  %v5609 = vsel %vm5157, %v5608, %v5607
  %v5610 = vrot.slane %v4882, 4
  %v5611 = vsel %vm5160, %v5610, %v5609
  %v5612 = vrot.slane %v4883, 3
  %v5613 = vsel %vm5139, %v5612, 0.0
  %v5614 = vrot.slane %v4884, 2
  %v5615 = vsel %vm5142, %v5614, %v5613
  %v5616 = vrot.slane %v4885, 1
  %v5617 = vsel %vm5145, %v5616, %v5615
  %v5618 = vsel %vm5148, %v4886, %v5617
  %v5619 = vsel %vm5151, %v4824, %v5618
  %v5620 = vsel %vm5154, %v5141, %v5619
  %v5621 = vsel %vm5157, %v5144, %v5620
  %v5622 = vsel %vm5160, %v5147, %v5621
  %v5623 = vsel %vm5139, %v5150, 0.0
  %v5624 = vsel %vm5142, %v5153, %v5623
  %v5625 = vsel %vm5145, %v5156, %v5624
  %v5626 = vsel %vm5148, %v5159, %v5625
  %v5627 = vsel %vm5151, %v4832, %v5626
  %v5628 = vsel %vm5154, %v5163, %v5627
  %v5629 = vsel %vm5157, %v5165, %v5628
  %v5630 = vsel %vm5160, %v5167, %v5629
  %v5631 = vsel %vm5139, %v5169, 0.0
  %v5632 = vsel %vm5142, %v5171, %v5631
  %v5633 = vsel %vm5145, %v5173, %v5632
  %v5634 = vsel %vm5148, %v5175, %v5633
  %v5635 = vsel %vm5151, %v4840, %v5634
  %v5636 = vsel %vm5154, %v5178, %v5635
  %v5637 = vsel %vm5157, %v5180, %v5636
  %v5638 = vsel %vm5160, %v5182, %v5637
  %v5639 = vsel %vm5139, %v5184, 0.0
  %v5640 = vsel %vm5142, %v5186, %v5639
  %v5641 = vsel %vm5145, %v5188, %v5640
  %v5642 = vsel %vm5148, %v5190, %v5641
  %v5643 = vsel %vm5151, %v4848, %v5642
  %v5644 = vsel %vm5154, %v5193, %v5643
  %v5645 = vsel %vm5157, %v5195, %v5644
  %v5646 = vsel %vm5160, %v5197, %v5645
  %v5647 = vsel %vm5139, %v5199, 0.0
  %v5648 = vsel %vm5142, %v5201, %v5647
  %v5649 = vsel %vm5145, %v5203, %v5648
  %v5650 = vsel %vm5148, %v5205, %v5649
  %v5651 = vsel %vm5151, %v4856, %v5650
  %v5652 = vsel %vm5154, %v5208, %v5651
  %v5653 = vsel %vm5157, %v5210, %v5652
  %v5654 = vsel %vm5160, %v5212, %v5653
  %v5655 = vsel %vm5139, %v5214, 0.0
  %v5656 = vsel %vm5142, %v5216, %v5655
  %v5657 = vsel %vm5145, %v5218, %v5656
  %v5658 = vsel %vm5148, %v5220, %v5657
  %v5659 = vsel %vm5151, %v4864, %v5658
  %v5660 = vsel %vm5154, %v5223, %v5659
  %v5661 = vsel %vm5157, %v5225, %v5660
  %v5662 = vsel %vm5160, %v5227, %v5661
  %v5663 = vsel %vm5139, %v5229, 0.0
  %v5664 = vsel %vm5142, %v5231, %v5663
  %v5665 = vsel %vm5145, %v5233, %v5664
  %v5666 = vsel %vm5148, %v5235, %v5665
  %v5667 = vsel %vm5151, %v4872, %v5666
  %v5668 = vsel %vm5154, %v5238, %v5667
  %v5669 = vsel %vm5157, %v5240, %v5668
  %v5670 = vsel %vm5160, %v5242, %v5669
  %v5671 = vsel %vm5139, %v5244, 0.0
  %v5672 = vsel %vm5142, %v5246, %v5671
  %v5673 = vsel %vm5145, %v5248, %v5672
  %v5674 = vsel %vm5148, %v5250, %v5673
  %v5675 = vsel %vm5151, %v4880, %v5674
  %v5676 = vsel %vm5154, %v5253, %v5675
  %v5677 = vsel %vm5157, %v5255, %v5676
  %v5678 = vsel %vm5160, %v5257, %v5677
  %v5679 = vsel %vm5139, %v5259, 0.0
  %v5680 = vsel %vm5142, %v5261, %v5679
  %v5681 = vsel %vm5145, %v5263, %v5680
  %v5682 = vsel %vm5148, %v5265, %v5681
  %v5683 = vsel %vm5151, %v5267, %v5682
  %v5684 = vsel %vm5154, %v4826, %v5683
  %v5685 = vsel %vm5157, %v5270, %v5684
  %v5686 = vsel %vm5160, %v5272, %v5685
  %v5687 = vsel %vm5139, %v5274, 0.0
  %v5688 = vsel %vm5142, %v5276, %v5687
  %v5689 = vsel %vm5145, %v5278, %v5688
  %v5690 = vsel %vm5148, %v5280, %v5689
  %v5691 = vsel %vm5151, %v5282, %v5690
  %v5692 = vsel %vm5154, %v4834, %v5691
  %v5693 = vsel %vm5157, %v5285, %v5692
  %v5694 = vsel %vm5160, %v5287, %v5693
  %v5695 = vsel %vm5139, %v5289, 0.0
  %v5696 = vsel %vm5142, %v5291, %v5695
  %v5697 = vsel %vm5145, %v5293, %v5696
  %v5698 = vsel %vm5148, %v5295, %v5697
  %v5699 = vsel %vm5151, %v5297, %v5698
  %v5700 = vsel %vm5154, %v4842, %v5699
  %v5701 = vsel %vm5157, %v5300, %v5700
  %v5702 = vsel %vm5160, %v5302, %v5701
  %v5703 = vsel %vm5139, %v5304, 0.0
  %v5704 = vsel %vm5142, %v5306, %v5703
  %v5705 = vsel %vm5145, %v5308, %v5704
  %v5706 = vsel %vm5148, %v5310, %v5705
  %v5707 = vsel %vm5151, %v5312, %v5706
  %v5708 = vsel %vm5154, %v4850, %v5707
  %v5709 = vsel %vm5157, %v5315, %v5708
  %v5710 = vsel %vm5160, %v5317, %v5709
  %v5711 = vsel %vm5139, %v5319, 0.0
  %v5712 = vsel %vm5142, %v5321, %v5711
  %v5713 = vsel %vm5145, %v5323, %v5712
  %v5714 = vsel %vm5148, %v5325, %v5713
  %v5715 = vsel %vm5151, %v5327, %v5714
  %v5716 = vsel %vm5154, %v4858, %v5715
  %v5717 = vsel %vm5157, %v5330, %v5716
  %v5718 = vsel %vm5160, %v5332, %v5717
  %v5719 = vsel %vm5139, %v5334, 0.0
  %v5720 = vsel %vm5142, %v5336, %v5719
  %v5721 = vsel %vm5145, %v5338, %v5720
  %v5722 = vsel %vm5148, %v5340, %v5721
  %v5723 = vsel %vm5151, %v5342, %v5722
  %v5724 = vsel %vm5154, %v4866, %v5723
  %v5725 = vsel %vm5157, %v5345, %v5724
  %v5726 = vsel %vm5160, %v5347, %v5725
  %v5727 = vsel %vm5139, %v5349, 0.0
  %v5728 = vsel %vm5142, %v5351, %v5727
  %v5729 = vsel %vm5145, %v5353, %v5728
  %v5730 = vsel %vm5148, %v5355, %v5729
  %v5731 = vsel %vm5151, %v5357, %v5730
  %v5732 = vsel %vm5154, %v4874, %v5731
  %v5733 = vsel %vm5157, %v5360, %v5732
  %v5734 = vsel %vm5160, %v5362, %v5733
  %v5735 = vsel %vm5139, %v5364, 0.0
  %v5736 = vsel %vm5142, %v5366, %v5735
  %v5737 = vsel %vm5145, %v5368, %v5736
  %v5738 = vsel %vm5148, %v5370, %v5737
  %v5739 = vsel %vm5151, %v5372, %v5738
  %v5740 = vsel %vm5154, %v4882, %v5739
  %v5741 = vsel %vm5157, %v5375, %v5740
  %v5742 = vsel %vm5160, %v5377, %v5741
  %v5743 = vsel %vm5139, %v5379, 0.0
  %v5744 = vsel %vm5142, %v5381, %v5743
  %v5745 = vsel %vm5145, %v5383, %v5744
  %v5746 = vsel %vm5148, %v5385, %v5745
  %v5747 = vsel %vm5151, %v5387, %v5746
  %v5748 = vsel %vm5154, %v5389, %v5747
  %v5749 = vsel %vm5157, %v4828, %v5748
  %v5750 = vsel %vm5160, %v5392, %v5749
  %v5751 = vsel %vm5139, %v5394, 0.0
  %v5752 = vsel %vm5142, %v5396, %v5751
  %v5753 = vsel %vm5145, %v5398, %v5752
  %v5754 = vsel %vm5148, %v5400, %v5753
  %v5755 = vsel %vm5151, %v5402, %v5754
  %v5756 = vsel %vm5154, %v5404, %v5755
  %v5757 = vsel %vm5157, %v4836, %v5756
  %v5758 = vsel %vm5160, %v5407, %v5757
  %v5759 = vsel %vm5139, %v5409, 0.0
  %v5760 = vsel %vm5142, %v5411, %v5759
  %v5761 = vsel %vm5145, %v5413, %v5760
  %v5762 = vsel %vm5148, %v5415, %v5761
  %v5763 = vsel %vm5151, %v5417, %v5762
  %v5764 = vsel %vm5154, %v5419, %v5763
  %v5765 = vsel %vm5157, %v4844, %v5764
  %v5766 = vsel %vm5160, %v5422, %v5765
  %v5767 = vsel %vm5139, %v5424, 0.0
  %v5768 = vsel %vm5142, %v5426, %v5767
  %v5769 = vsel %vm5145, %v5428, %v5768
  %v5770 = vsel %vm5148, %v5430, %v5769
  %v5771 = vsel %vm5151, %v5432, %v5770
  %v5772 = vsel %vm5154, %v5434, %v5771
  %v5773 = vsel %vm5157, %v4852, %v5772
  %v5774 = vsel %vm5160, %v5437, %v5773
  %v5775 = vsel %vm5139, %v5439, 0.0
  %v5776 = vsel %vm5142, %v5441, %v5775
  %v5777 = vsel %vm5145, %v5443, %v5776
  %v5778 = vsel %vm5148, %v5445, %v5777
  %v5779 = vsel %vm5151, %v5447, %v5778
  %v5780 = vsel %vm5154, %v5449, %v5779
  %v5781 = vsel %vm5157, %v4860, %v5780
  %v5782 = vsel %vm5160, %v5452, %v5781
  %v5783 = vsel %vm5139, %v5454, 0.0
  %v5784 = vsel %vm5142, %v5456, %v5783
  %v5785 = vsel %vm5145, %v5458, %v5784
  %v5786 = vsel %vm5148, %v5460, %v5785
  %v5787 = vsel %vm5151, %v5462, %v5786
  %v5788 = vsel %vm5154, %v5464, %v5787
  %v5789 = vsel %vm5157, %v4868, %v5788
  %v5790 = vsel %vm5160, %v5467, %v5789
  %v5791 = vsel %vm5139, %v5469, 0.0
  %v5792 = vsel %vm5142, %v5471, %v5791
  %v5793 = vsel %vm5145, %v5473, %v5792
  %v5794 = vsel %vm5148, %v5475, %v5793
  %v5795 = vsel %vm5151, %v5477, %v5794
  %v5796 = vsel %vm5154, %v5479, %v5795
  %v5797 = vsel %vm5157, %v4876, %v5796
  %v5798 = vsel %vm5160, %v5482, %v5797
  %v5799 = vsel %vm5139, %v5484, 0.0
  %v5800 = vsel %vm5142, %v5486, %v5799
  %v5801 = vsel %vm5145, %v5488, %v5800
  %v5802 = vsel %vm5148, %v5490, %v5801
  %v5803 = vsel %vm5151, %v5492, %v5802
  %v5804 = vsel %vm5154, %v5494, %v5803
  %v5805 = vsel %vm5157, %v4884, %v5804
  %v5806 = vsel %vm5160, %v5497, %v5805
  %v5807 = vsel %vm5139, %v5499, 0.0
  %v5808 = vsel %vm5142, %v5501, %v5807
  %v5809 = vsel %vm5145, %v5503, %v5808
  %v5810 = vsel %vm5148, %v5505, %v5809
  %v5811 = vsel %vm5151, %v5507, %v5810
  %v5812 = vsel %vm5154, %v5509, %v5811
  %v5813 = vsel %vm5157, %v5511, %v5812
  %v5814 = vsel %vm5160, %v4830, %v5813
  %v5815 = vsel %vm5139, %v5514, 0.0
  %v5816 = vsel %vm5142, %v5516, %v5815
  %v5817 = vsel %vm5145, %v5518, %v5816
  %v5818 = vsel %vm5148, %v5520, %v5817
  %v5819 = vsel %vm5151, %v5522, %v5818
  %v5820 = vsel %vm5154, %v5524, %v5819
  %v5821 = vsel %vm5157, %v5526, %v5820
  %v5822 = vsel %vm5160, %v4838, %v5821
  %v5823 = vsel %vm5139, %v5529, 0.0
  %v5824 = vsel %vm5142, %v5531, %v5823
  %v5825 = vsel %vm5145, %v5533, %v5824
  %v5826 = vsel %vm5148, %v5535, %v5825
  %v5827 = vsel %vm5151, %v5537, %v5826
  %v5828 = vsel %vm5154, %v5539, %v5827
  %v5829 = vsel %vm5157, %v5541, %v5828
  %v5830 = vsel %vm5160, %v4846, %v5829
  %v5831 = vsel %vm5139, %v5544, 0.0
  %v5832 = vsel %vm5142, %v5546, %v5831
  %v5833 = vsel %vm5145, %v5548, %v5832
  %v5834 = vsel %vm5148, %v5550, %v5833
  %v5835 = vsel %vm5151, %v5552, %v5834
  %v5836 = vsel %vm5154, %v5554, %v5835
  %v5837 = vsel %vm5157, %v5556, %v5836
  %v5838 = vsel %vm5160, %v4854, %v5837
  %v5839 = vsel %vm5139, %v5559, 0.0
  %v5840 = vsel %vm5142, %v5561, %v5839
  %v5841 = vsel %vm5145, %v5563, %v5840
  %v5842 = vsel %vm5148, %v5565, %v5841
  %v5843 = vsel %vm5151, %v5567, %v5842
  %v5844 = vsel %vm5154, %v5569, %v5843
  %v5845 = vsel %vm5157, %v5571, %v5844
  %v5846 = vsel %vm5160, %v4862, %v5845
  %v5847 = vsel %vm5139, %v5574, 0.0
  %v5848 = vsel %vm5142, %v5576, %v5847
  %v5849 = vsel %vm5145, %v5578, %v5848
  %v5850 = vsel %vm5148, %v5580, %v5849
  %v5851 = vsel %vm5151, %v5582, %v5850
  %v5852 = vsel %vm5154, %v5584, %v5851
  %v5853 = vsel %vm5157, %v5586, %v5852
  %v5854 = vsel %vm5160, %v4870, %v5853
  %v5855 = vsel %vm5139, %v5589, 0.0
  %v5856 = vsel %vm5142, %v5591, %v5855
  %v5857 = vsel %vm5145, %v5593, %v5856
  %v5858 = vsel %vm5148, %v5595, %v5857
  %v5859 = vsel %vm5151, %v5597, %v5858
  %v5860 = vsel %vm5154, %v5599, %v5859
  %v5861 = vsel %vm5157, %v5601, %v5860
  %v5862 = vsel %vm5160, %v4878, %v5861
  %v5863 = vsel %vm5139, %v5604, 0.0
  %v5864 = vsel %vm5142, %v5606, %v5863
  %v5865 = vsel %vm5145, %v5608, %v5864
  %v5866 = vsel %vm5148, %v5610, %v5865
  %v5867 = vsel %vm5151, %v5612, %v5866
  %v5868 = vsel %vm5154, %v5614, %v5867
  %v5869 = vsel %vm5157, %v5616, %v5868
  %v5870 = vsel %vm5160, %v4886, %v5869
  %v5871 = vsel %vm5139, %v4887, 0.0
  %v5872 = vrot.slane %v4888, 7
  %v5873 = vsel %vm5142, %v5872, %v5871
  %v5874 = vrot.slane %v4889, 6
  %v5875 = vsel %vm5145, %v5874, %v5873
  %v5876 = vrot.slane %v4890, 5
  %v5877 = vsel %vm5148, %v5876, %v5875
  %v5878 = vrot.slane %v4891, 4
  %v5879 = vsel %vm5151, %v5878, %v5877
  %v5880 = vrot.slane %v4892, 3
  %v5881 = vsel %vm5154, %v5880, %v5879
  %v5882 = vrot.slane %v4893, 2
  %v5883 = vsel %vm5157, %v5882, %v5881
  %v5884 = vrot.slane %v4894, 1
  %v5885 = vsel %vm5160, %v5884, %v5883
  %v5886 = vsel %vm5139, %v4895, 0.0
  %v5887 = vrot.slane %v4896, 7
  %v5888 = vsel %vm5142, %v5887, %v5886
  %v5889 = vrot.slane %v4897, 6
  %v5890 = vsel %vm5145, %v5889, %v5888
  %v5891 = vrot.slane %v4898, 5
  %v5892 = vsel %vm5148, %v5891, %v5890
  %v5893 = vrot.slane %v4899, 4
  %v5894 = vsel %vm5151, %v5893, %v5892
  %v5895 = vrot.slane %v4900, 3
  %v5896 = vsel %vm5154, %v5895, %v5894
  %v5897 = vrot.slane %v4901, 2
  %v5898 = vsel %vm5157, %v5897, %v5896
  %v5899 = vrot.slane %v4902, 1
  %v5900 = vsel %vm5160, %v5899, %v5898
  %v5901 = vsel %vm5139, %v4903, 0.0
  %v5902 = vrot.slane %v4904, 7
  %v5903 = vsel %vm5142, %v5902, %v5901
  %v5904 = vrot.slane %v4905, 6
  %v5905 = vsel %vm5145, %v5904, %v5903
  %v5906 = vrot.slane %v4906, 5
  %v5907 = vsel %vm5148, %v5906, %v5905
  %v5908 = vrot.slane %v4907, 4
  %v5909 = vsel %vm5151, %v5908, %v5907
  %v5910 = vrot.slane %v4908, 3
  %v5911 = vsel %vm5154, %v5910, %v5909
  %v5912 = vrot.slane %v4909, 2
  %v5913 = vsel %vm5157, %v5912, %v5911
  %v5914 = vrot.slane %v4910, 1
  %v5915 = vsel %vm5160, %v5914, %v5913
  %v5916 = vsel %vm5139, %v4911, 0.0
  %v5917 = vrot.slane %v4912, 7
  %v5918 = vsel %vm5142, %v5917, %v5916
  %v5919 = vrot.slane %v4913, 6
  %v5920 = vsel %vm5145, %v5919, %v5918
  %v5921 = vrot.slane %v4914, 5
  %v5922 = vsel %vm5148, %v5921, %v5920
  %v5923 = vrot.slane %v4915, 4
  %v5924 = vsel %vm5151, %v5923, %v5922
  %v5925 = vrot.slane %v4916, 3
  %v5926 = vsel %vm5154, %v5925, %v5924
  %v5927 = vrot.slane %v4917, 2
  %v5928 = vsel %vm5157, %v5927, %v5926
  %v5929 = vrot.slane %v4918, 1
  %v5930 = vsel %vm5160, %v5929, %v5928
  %v5931 = vsel %vm5139, %v4919, 0.0
  %v5932 = vrot.slane %v4920, 7
  %v5933 = vsel %vm5142, %v5932, %v5931
  %v5934 = vrot.slane %v4921, 6
  %v5935 = vsel %vm5145, %v5934, %v5933
  %v5936 = vrot.slane %v4922, 5
  %v5937 = vsel %vm5148, %v5936, %v5935
  %v5938 = vrot.slane %v4923, 4
  %v5939 = vsel %vm5151, %v5938, %v5937
  %v5940 = vrot.slane %v4924, 3
  %v5941 = vsel %vm5154, %v5940, %v5939
  %v5942 = vrot.slane %v4925, 2
  %v5943 = vsel %vm5157, %v5942, %v5941
  %v5944 = vrot.slane %v4926, 1
  %v5945 = vsel %vm5160, %v5944, %v5943
  %v5946 = vsel %vm5139, %v4927, 0.0
  %v5947 = vrot.slane %v4928, 7
  %v5948 = vsel %vm5142, %v5947, %v5946
  %v5949 = vrot.slane %v4929, 6
  %v5950 = vsel %vm5145, %v5949, %v5948
  %v5951 = vrot.slane %v4930, 5
  %v5952 = vsel %vm5148, %v5951, %v5950
  %v5953 = vrot.slane %v4931, 4
  %v5954 = vsel %vm5151, %v5953, %v5952
  %v5955 = vrot.slane %v4932, 3
  %v5956 = vsel %vm5154, %v5955, %v5954
  %v5957 = vrot.slane %v4933, 2
  %v5958 = vsel %vm5157, %v5957, %v5956
  %v5959 = vrot.slane %v4934, 1
  %v5960 = vsel %vm5160, %v5959, %v5958
  %v5961 = vsel %vm5139, %v4935, 0.0
  %v5962 = vrot.slane %v4936, 7
  %v5963 = vsel %vm5142, %v5962, %v5961
  %v5964 = vrot.slane %v4937, 6
  %v5965 = vsel %vm5145, %v5964, %v5963
  %v5966 = vrot.slane %v4938, 5
  %v5967 = vsel %vm5148, %v5966, %v5965
  %v5968 = vrot.slane %v4939, 4
  %v5969 = vsel %vm5151, %v5968, %v5967
  %v5970 = vrot.slane %v4940, 3
  %v5971 = vsel %vm5154, %v5970, %v5969
  %v5972 = vrot.slane %v4941, 2
  %v5973 = vsel %vm5157, %v5972, %v5971
  %v5974 = vrot.slane %v4942, 1
  %v5975 = vsel %vm5160, %v5974, %v5973
  %v5976 = vsel %vm5139, %v4943, 0.0
  %v5977 = vrot.slane %v4944, 7
  %v5978 = vsel %vm5142, %v5977, %v5976
  %v5979 = vrot.slane %v4945, 6
  %v5980 = vsel %vm5145, %v5979, %v5978
  %v5981 = vrot.slane %v4946, 5
  %v5982 = vsel %vm5148, %v5981, %v5980
  %v5983 = vrot.slane %v4947, 4
  %v5984 = vsel %vm5151, %v5983, %v5982
  %v5985 = vrot.slane %v4948, 3
  %v5986 = vsel %vm5154, %v5985, %v5984
  %v5987 = vrot.slane %v4949, 2
  %v5988 = vsel %vm5157, %v5987, %v5986
  %v5989 = vrot.slane %v4887, 2
  %v5990 = vsel %vm5160, %v5989, %v5988
  %v5991 = vrot.slane %v4888, 1
  %v5992 = vsel %vm5139, %v5991, 0.0
  %v5993 = vsel %vm5142, %v4889, %v5992
  %v5994 = vrot.slane %v4890, 7
  %v5995 = vsel %vm5145, %v5994, %v5993
  %v5996 = vrot.slane %v4891, 6
  %v5997 = vsel %vm5148, %v5996, %v5995
  %v5998 = vrot.slane %v4892, 5
  %v5999 = vsel %vm5151, %v5998, %v5997
  %v6000 = vrot.slane %v4893, 4
  %v6001 = vsel %vm5154, %v6000, %v5999
  %v6002 = vrot.slane %v4894, 3
  %v6003 = vsel %vm5157, %v6002, %v6001
  %v6004 = vrot.slane %v4895, 2
  %v6005 = vsel %vm5160, %v6004, %v6003
  %v6006 = vrot.slane %v4896, 1
  %v6007 = vsel %vm5139, %v6006, 0.0
  %v6008 = vsel %vm5142, %v4897, %v6007
  %v6009 = vrot.slane %v4898, 7
  %v6010 = vsel %vm5145, %v6009, %v6008
  %v6011 = vrot.slane %v4899, 6
  %v6012 = vsel %vm5148, %v6011, %v6010
  %v6013 = vrot.slane %v4900, 5
  %v6014 = vsel %vm5151, %v6013, %v6012
  %v6015 = vrot.slane %v4901, 4
  %v6016 = vsel %vm5154, %v6015, %v6014
  %v6017 = vrot.slane %v4902, 3
  %v6018 = vsel %vm5157, %v6017, %v6016
  %v6019 = vrot.slane %v4903, 2
  %v6020 = vsel %vm5160, %v6019, %v6018
  %v6021 = vrot.slane %v4904, 1
  %v6022 = vsel %vm5139, %v6021, 0.0
  %v6023 = vsel %vm5142, %v4905, %v6022
  %v6024 = vrot.slane %v4906, 7
  %v6025 = vsel %vm5145, %v6024, %v6023
  %v6026 = vrot.slane %v4907, 6
  %v6027 = vsel %vm5148, %v6026, %v6025
  %v6028 = vrot.slane %v4908, 5
  %v6029 = vsel %vm5151, %v6028, %v6027
  %v6030 = vrot.slane %v4909, 4
  %v6031 = vsel %vm5154, %v6030, %v6029
  %v6032 = vrot.slane %v4910, 3
  %v6033 = vsel %vm5157, %v6032, %v6031
  %v6034 = vrot.slane %v4911, 2
  %v6035 = vsel %vm5160, %v6034, %v6033
  %v6036 = vrot.slane %v4912, 1
  %v6037 = vsel %vm5139, %v6036, 0.0
  %v6038 = vsel %vm5142, %v4913, %v6037
  %v6039 = vrot.slane %v4914, 7
  %v6040 = vsel %vm5145, %v6039, %v6038
  %v6041 = vrot.slane %v4915, 6
  %v6042 = vsel %vm5148, %v6041, %v6040
  %v6043 = vrot.slane %v4916, 5
  %v6044 = vsel %vm5151, %v6043, %v6042
  %v6045 = vrot.slane %v4917, 4
  %v6046 = vsel %vm5154, %v6045, %v6044
  %v6047 = vrot.slane %v4918, 3
  %v6048 = vsel %vm5157, %v6047, %v6046
  %v6049 = vrot.slane %v4919, 2
  %v6050 = vsel %vm5160, %v6049, %v6048
  %v6051 = vrot.slane %v4920, 1
  %v6052 = vsel %vm5139, %v6051, 0.0
  %v6053 = vsel %vm5142, %v4921, %v6052
  %v6054 = vrot.slane %v4922, 7
  %v6055 = vsel %vm5145, %v6054, %v6053
  %v6056 = vrot.slane %v4923, 6
  %v6057 = vsel %vm5148, %v6056, %v6055
  %v6058 = vrot.slane %v4924, 5
  %v6059 = vsel %vm5151, %v6058, %v6057
  %v6060 = vrot.slane %v4925, 4
  %v6061 = vsel %vm5154, %v6060, %v6059
  %v6062 = vrot.slane %v4926, 3
  %v6063 = vsel %vm5157, %v6062, %v6061
  %v6064 = vrot.slane %v4927, 2
  %v6065 = vsel %vm5160, %v6064, %v6063
  %v6066 = vrot.slane %v4928, 1
  %v6067 = vsel %vm5139, %v6066, 0.0
  %v6068 = vsel %vm5142, %v4929, %v6067
  %v6069 = vrot.slane %v4930, 7
  %v6070 = vsel %vm5145, %v6069, %v6068
  %v6071 = vrot.slane %v4931, 6
  %v6072 = vsel %vm5148, %v6071, %v6070
  %v6073 = vrot.slane %v4932, 5
  %v6074 = vsel %vm5151, %v6073, %v6072
  %v6075 = vrot.slane %v4933, 4
  %v6076 = vsel %vm5154, %v6075, %v6074
  %v6077 = vrot.slane %v4934, 3
  %v6078 = vsel %vm5157, %v6077, %v6076
  %v6079 = vrot.slane %v4935, 2
  %v6080 = vsel %vm5160, %v6079, %v6078
  %v6081 = vrot.slane %v4936, 1
  %v6082 = vsel %vm5139, %v6081, 0.0
  %v6083 = vsel %vm5142, %v4937, %v6082
  %v6084 = vrot.slane %v4938, 7
  %v6085 = vsel %vm5145, %v6084, %v6083
  %v6086 = vrot.slane %v4939, 6
  %v6087 = vsel %vm5148, %v6086, %v6085
  %v6088 = vrot.slane %v4940, 5
  %v6089 = vsel %vm5151, %v6088, %v6087
  %v6090 = vrot.slane %v4941, 4
  %v6091 = vsel %vm5154, %v6090, %v6089
  %v6092 = vrot.slane %v4942, 3
  %v6093 = vsel %vm5157, %v6092, %v6091
  %v6094 = vrot.slane %v4943, 2
  %v6095 = vsel %vm5160, %v6094, %v6093
  %v6096 = vrot.slane %v4944, 1
  %v6097 = vsel %vm5139, %v6096, 0.0
  %v6098 = vsel %vm5142, %v4945, %v6097
  %v6099 = vrot.slane %v4946, 7
  %v6100 = vsel %vm5145, %v6099, %v6098
  %v6101 = vrot.slane %v4947, 6
  %v6102 = vsel %vm5148, %v6101, %v6100
  %v6103 = vrot.slane %v4948, 5
  %v6104 = vsel %vm5151, %v6103, %v6102
  %v6105 = vrot.slane %v4949, 4
  %v6106 = vsel %vm5154, %v6105, %v6104
  %v6107 = vrot.slane %v4887, 4
  %v6108 = vsel %vm5157, %v6107, %v6106
  %v6109 = vrot.slane %v4888, 3
  %v6110 = vsel %vm5160, %v6109, %v6108
  %v6111 = vrot.slane %v4889, 2
  %v6112 = vsel %vm5139, %v6111, 0.0
  %v6113 = vrot.slane %v4890, 1
  %v6114 = vsel %vm5142, %v6113, %v6112
  %v6115 = vsel %vm5145, %v4891, %v6114
  %v6116 = vrot.slane %v4892, 7
  %v6117 = vsel %vm5148, %v6116, %v6115
  %v6118 = vrot.slane %v4893, 6
  %v6119 = vsel %vm5151, %v6118, %v6117
  %v6120 = vrot.slane %v4894, 5
  %v6121 = vsel %vm5154, %v6120, %v6119
  %v6122 = vrot.slane %v4895, 4
  %v6123 = vsel %vm5157, %v6122, %v6121
  %v6124 = vrot.slane %v4896, 3
  %v6125 = vsel %vm5160, %v6124, %v6123
  %v6126 = vrot.slane %v4897, 2
  %v6127 = vsel %vm5139, %v6126, 0.0
  %v6128 = vrot.slane %v4898, 1
  %v6129 = vsel %vm5142, %v6128, %v6127
  %v6130 = vsel %vm5145, %v4899, %v6129
  %v6131 = vrot.slane %v4900, 7
  %v6132 = vsel %vm5148, %v6131, %v6130
  %v6133 = vrot.slane %v4901, 6
  %v6134 = vsel %vm5151, %v6133, %v6132
  %v6135 = vrot.slane %v4902, 5
  %v6136 = vsel %vm5154, %v6135, %v6134
  %v6137 = vrot.slane %v4903, 4
  %v6138 = vsel %vm5157, %v6137, %v6136
  %v6139 = vrot.slane %v4904, 3
  %v6140 = vsel %vm5160, %v6139, %v6138
  %v6141 = vrot.slane %v4905, 2
  %v6142 = vsel %vm5139, %v6141, 0.0
  %v6143 = vrot.slane %v4906, 1
  %v6144 = vsel %vm5142, %v6143, %v6142
  %v6145 = vsel %vm5145, %v4907, %v6144
  %v6146 = vrot.slane %v4908, 7
  %v6147 = vsel %vm5148, %v6146, %v6145
  %v6148 = vrot.slane %v4909, 6
  %v6149 = vsel %vm5151, %v6148, %v6147
  %v6150 = vrot.slane %v4910, 5
  %v6151 = vsel %vm5154, %v6150, %v6149
  %v6152 = vrot.slane %v4911, 4
  %v6153 = vsel %vm5157, %v6152, %v6151
  %v6154 = vrot.slane %v4912, 3
  %v6155 = vsel %vm5160, %v6154, %v6153
  %v6156 = vrot.slane %v4913, 2
  %v6157 = vsel %vm5139, %v6156, 0.0
  %v6158 = vrot.slane %v4914, 1
  %v6159 = vsel %vm5142, %v6158, %v6157
  %v6160 = vsel %vm5145, %v4915, %v6159
  %v6161 = vrot.slane %v4916, 7
  %v6162 = vsel %vm5148, %v6161, %v6160
  %v6163 = vrot.slane %v4917, 6
  %v6164 = vsel %vm5151, %v6163, %v6162
  %v6165 = vrot.slane %v4918, 5
  %v6166 = vsel %vm5154, %v6165, %v6164
  %v6167 = vrot.slane %v4919, 4
  %v6168 = vsel %vm5157, %v6167, %v6166
  %v6169 = vrot.slane %v4920, 3
  %v6170 = vsel %vm5160, %v6169, %v6168
  %v6171 = vrot.slane %v4921, 2
  %v6172 = vsel %vm5139, %v6171, 0.0
  %v6173 = vrot.slane %v4922, 1
  %v6174 = vsel %vm5142, %v6173, %v6172
  %v6175 = vsel %vm5145, %v4923, %v6174
  %v6176 = vrot.slane %v4924, 7
  %v6177 = vsel %vm5148, %v6176, %v6175
  %v6178 = vrot.slane %v4925, 6
  %v6179 = vsel %vm5151, %v6178, %v6177
  %v6180 = vrot.slane %v4926, 5
  %v6181 = vsel %vm5154, %v6180, %v6179
  %v6182 = vrot.slane %v4927, 4
  %v6183 = vsel %vm5157, %v6182, %v6181
  %v6184 = vrot.slane %v4928, 3
  %v6185 = vsel %vm5160, %v6184, %v6183
  %v6186 = vrot.slane %v4929, 2
  %v6187 = vsel %vm5139, %v6186, 0.0
  %v6188 = vrot.slane %v4930, 1
  %v6189 = vsel %vm5142, %v6188, %v6187
  %v6190 = vsel %vm5145, %v4931, %v6189
  %v6191 = vrot.slane %v4932, 7
  %v6192 = vsel %vm5148, %v6191, %v6190
  %v6193 = vrot.slane %v4933, 6
  %v6194 = vsel %vm5151, %v6193, %v6192
  %v6195 = vrot.slane %v4934, 5
  %v6196 = vsel %vm5154, %v6195, %v6194
  %v6197 = vrot.slane %v4935, 4
  %v6198 = vsel %vm5157, %v6197, %v6196
  %v6199 = vrot.slane %v4936, 3
  %v6200 = vsel %vm5160, %v6199, %v6198
  %v6201 = vrot.slane %v4937, 2
  %v6202 = vsel %vm5139, %v6201, 0.0
  %v6203 = vrot.slane %v4938, 1
  %v6204 = vsel %vm5142, %v6203, %v6202
  %v6205 = vsel %vm5145, %v4939, %v6204
  %v6206 = vrot.slane %v4940, 7
  %v6207 = vsel %vm5148, %v6206, %v6205
  %v6208 = vrot.slane %v4941, 6
  %v6209 = vsel %vm5151, %v6208, %v6207
  %v6210 = vrot.slane %v4942, 5
  %v6211 = vsel %vm5154, %v6210, %v6209
  %v6212 = vrot.slane %v4943, 4
  %v6213 = vsel %vm5157, %v6212, %v6211
  %v6214 = vrot.slane %v4944, 3
  %v6215 = vsel %vm5160, %v6214, %v6213
  %v6216 = vrot.slane %v4945, 2
  %v6217 = vsel %vm5139, %v6216, 0.0
  %v6218 = vrot.slane %v4946, 1
  %v6219 = vsel %vm5142, %v6218, %v6217
  %v6220 = vsel %vm5145, %v4947, %v6219
  %v6221 = vrot.slane %v4948, 7
  %v6222 = vsel %vm5148, %v6221, %v6220
  %v6223 = vrot.slane %v4949, 6
  %v6224 = vsel %vm5151, %v6223, %v6222
  %v6225 = vrot.slane %v4887, 6
  %v6226 = vsel %vm5154, %v6225, %v6224
  %v6227 = vrot.slane %v4888, 5
  %v6228 = vsel %vm5157, %v6227, %v6226
  %v6229 = vrot.slane %v4889, 4
  %v6230 = vsel %vm5160, %v6229, %v6228
  %v6231 = vrot.slane %v4890, 3
  %v6232 = vsel %vm5139, %v6231, 0.0
  %v6233 = vrot.slane %v4891, 2
  %v6234 = vsel %vm5142, %v6233, %v6232
  %v6235 = vrot.slane %v4892, 1
  %v6236 = vsel %vm5145, %v6235, %v6234
  %v6237 = vsel %vm5148, %v4893, %v6236
  %v6238 = vrot.slane %v4894, 7
  %v6239 = vsel %vm5151, %v6238, %v6237
  %v6240 = vrot.slane %v4895, 6
  %v6241 = vsel %vm5154, %v6240, %v6239
  %v6242 = vrot.slane %v4896, 5
  %v6243 = vsel %vm5157, %v6242, %v6241
  %v6244 = vrot.slane %v4897, 4
  %v6245 = vsel %vm5160, %v6244, %v6243
  %v6246 = vrot.slane %v4898, 3
  %v6247 = vsel %vm5139, %v6246, 0.0
  %v6248 = vrot.slane %v4899, 2
  %v6249 = vsel %vm5142, %v6248, %v6247
  %v6250 = vrot.slane %v4900, 1
  %v6251 = vsel %vm5145, %v6250, %v6249
  %v6252 = vsel %vm5148, %v4901, %v6251
  %v6253 = vrot.slane %v4902, 7
  %v6254 = vsel %vm5151, %v6253, %v6252
  %v6255 = vrot.slane %v4903, 6
  %v6256 = vsel %vm5154, %v6255, %v6254
  %v6257 = vrot.slane %v4904, 5
  %v6258 = vsel %vm5157, %v6257, %v6256
  %v6259 = vrot.slane %v4905, 4
  %v6260 = vsel %vm5160, %v6259, %v6258
  %v6261 = vrot.slane %v4906, 3
  %v6262 = vsel %vm5139, %v6261, 0.0
  %v6263 = vrot.slane %v4907, 2
  %v6264 = vsel %vm5142, %v6263, %v6262
  %v6265 = vrot.slane %v4908, 1
  %v6266 = vsel %vm5145, %v6265, %v6264
  %v6267 = vsel %vm5148, %v4909, %v6266
  %v6268 = vrot.slane %v4910, 7
  %v6269 = vsel %vm5151, %v6268, %v6267
  %v6270 = vrot.slane %v4911, 6
  %v6271 = vsel %vm5154, %v6270, %v6269
  %v6272 = vrot.slane %v4912, 5
  %v6273 = vsel %vm5157, %v6272, %v6271
  %v6274 = vrot.slane %v4913, 4
  %v6275 = vsel %vm5160, %v6274, %v6273
  %v6276 = vrot.slane %v4914, 3
  %v6277 = vsel %vm5139, %v6276, 0.0
  %v6278 = vrot.slane %v4915, 2
  %v6279 = vsel %vm5142, %v6278, %v6277
  %v6280 = vrot.slane %v4916, 1
  %v6281 = vsel %vm5145, %v6280, %v6279
  %v6282 = vsel %vm5148, %v4917, %v6281
  %v6283 = vrot.slane %v4918, 7
  %v6284 = vsel %vm5151, %v6283, %v6282
  %v6285 = vrot.slane %v4919, 6
  %v6286 = vsel %vm5154, %v6285, %v6284
  %v6287 = vrot.slane %v4920, 5
  %v6288 = vsel %vm5157, %v6287, %v6286
  %v6289 = vrot.slane %v4921, 4
  %v6290 = vsel %vm5160, %v6289, %v6288
  %v6291 = vrot.slane %v4922, 3
  %v6292 = vsel %vm5139, %v6291, 0.0
  %v6293 = vrot.slane %v4923, 2
  %v6294 = vsel %vm5142, %v6293, %v6292
  %v6295 = vrot.slane %v4924, 1
  %v6296 = vsel %vm5145, %v6295, %v6294
  %v6297 = vsel %vm5148, %v4925, %v6296
  %v6298 = vrot.slane %v4926, 7
  %v6299 = vsel %vm5151, %v6298, %v6297
  %v6300 = vrot.slane %v4927, 6
  %v6301 = vsel %vm5154, %v6300, %v6299
  %v6302 = vrot.slane %v4928, 5
  %v6303 = vsel %vm5157, %v6302, %v6301
  %v6304 = vrot.slane %v4929, 4
  %v6305 = vsel %vm5160, %v6304, %v6303
  %v6306 = vrot.slane %v4930, 3
  %v6307 = vsel %vm5139, %v6306, 0.0
  %v6308 = vrot.slane %v4931, 2
  %v6309 = vsel %vm5142, %v6308, %v6307
  %v6310 = vrot.slane %v4932, 1
  %v6311 = vsel %vm5145, %v6310, %v6309
  %v6312 = vsel %vm5148, %v4933, %v6311
  %v6313 = vrot.slane %v4934, 7
  %v6314 = vsel %vm5151, %v6313, %v6312
  %v6315 = vrot.slane %v4935, 6
  %v6316 = vsel %vm5154, %v6315, %v6314
  %v6317 = vrot.slane %v4936, 5
  %v6318 = vsel %vm5157, %v6317, %v6316
  %v6319 = vrot.slane %v4937, 4
  %v6320 = vsel %vm5160, %v6319, %v6318
  %v6321 = vrot.slane %v4938, 3
  %v6322 = vsel %vm5139, %v6321, 0.0
  %v6323 = vrot.slane %v4939, 2
  %v6324 = vsel %vm5142, %v6323, %v6322
  %v6325 = vrot.slane %v4940, 1
  %v6326 = vsel %vm5145, %v6325, %v6324
  %v6327 = vsel %vm5148, %v4941, %v6326
  %v6328 = vrot.slane %v4942, 7
  %v6329 = vsel %vm5151, %v6328, %v6327
  %v6330 = vrot.slane %v4943, 6
  %v6331 = vsel %vm5154, %v6330, %v6329
  %v6332 = vrot.slane %v4944, 5
  %v6333 = vsel %vm5157, %v6332, %v6331
  %v6334 = vrot.slane %v4945, 4
  %v6335 = vsel %vm5160, %v6334, %v6333
  %v6336 = vrot.slane %v4946, 3
  %v6337 = vsel %vm5139, %v6336, 0.0
  %v6338 = vrot.slane %v4947, 2
  %v6339 = vsel %vm5142, %v6338, %v6337
  %v6340 = vrot.slane %v4948, 1
  %v6341 = vsel %vm5145, %v6340, %v6339
  %v6342 = vsel %vm5148, %v4949, %v6341
  %v6343 = vsel %vm5151, %v4887, %v6342
  %v6344 = vsel %vm5154, %v5872, %v6343
  %v6345 = vsel %vm5157, %v5874, %v6344
  %v6346 = vsel %vm5160, %v5876, %v6345
  %v6347 = vsel %vm5139, %v5878, 0.0
  %v6348 = vsel %vm5142, %v5880, %v6347
  %v6349 = vsel %vm5145, %v5882, %v6348
  %v6350 = vsel %vm5148, %v5884, %v6349
  %v6351 = vsel %vm5151, %v4895, %v6350
  %v6352 = vsel %vm5154, %v5887, %v6351
  %v6353 = vsel %vm5157, %v5889, %v6352
  %v6354 = vsel %vm5160, %v5891, %v6353
  %v6355 = vsel %vm5139, %v5893, 0.0
  %v6356 = vsel %vm5142, %v5895, %v6355
  %v6357 = vsel %vm5145, %v5897, %v6356
  %v6358 = vsel %vm5148, %v5899, %v6357
  %v6359 = vsel %vm5151, %v4903, %v6358
  %v6360 = vsel %vm5154, %v5902, %v6359
  %v6361 = vsel %vm5157, %v5904, %v6360
  %v6362 = vsel %vm5160, %v5906, %v6361
  %v6363 = vsel %vm5139, %v5908, 0.0
  %v6364 = vsel %vm5142, %v5910, %v6363
  %v6365 = vsel %vm5145, %v5912, %v6364
  %v6366 = vsel %vm5148, %v5914, %v6365
  %v6367 = vsel %vm5151, %v4911, %v6366
  %v6368 = vsel %vm5154, %v5917, %v6367
  %v6369 = vsel %vm5157, %v5919, %v6368
  %v6370 = vsel %vm5160, %v5921, %v6369
  %v6371 = vsel %vm5139, %v5923, 0.0
  %v6372 = vsel %vm5142, %v5925, %v6371
  %v6373 = vsel %vm5145, %v5927, %v6372
  %v6374 = vsel %vm5148, %v5929, %v6373
  %v6375 = vsel %vm5151, %v4919, %v6374
  %v6376 = vsel %vm5154, %v5932, %v6375
  %v6377 = vsel %vm5157, %v5934, %v6376
  %v6378 = vsel %vm5160, %v5936, %v6377
  %v6379 = vsel %vm5139, %v5938, 0.0
  %v6380 = vsel %vm5142, %v5940, %v6379
  %v6381 = vsel %vm5145, %v5942, %v6380
  %v6382 = vsel %vm5148, %v5944, %v6381
  %v6383 = vsel %vm5151, %v4927, %v6382
  %v6384 = vsel %vm5154, %v5947, %v6383
  %v6385 = vsel %vm5157, %v5949, %v6384
  %v6386 = vsel %vm5160, %v5951, %v6385
  %v6387 = vsel %vm5139, %v5953, 0.0
  %v6388 = vsel %vm5142, %v5955, %v6387
  %v6389 = vsel %vm5145, %v5957, %v6388
  %v6390 = vsel %vm5148, %v5959, %v6389
  %v6391 = vsel %vm5151, %v4935, %v6390
  %v6392 = vsel %vm5154, %v5962, %v6391
  %v6393 = vsel %vm5157, %v5964, %v6392
  %v6394 = vsel %vm5160, %v5966, %v6393
  %v6395 = vsel %vm5139, %v5968, 0.0
  %v6396 = vsel %vm5142, %v5970, %v6395
  %v6397 = vsel %vm5145, %v5972, %v6396
  %v6398 = vsel %vm5148, %v5974, %v6397
  %v6399 = vsel %vm5151, %v4943, %v6398
  %v6400 = vsel %vm5154, %v5977, %v6399
  %v6401 = vsel %vm5157, %v5979, %v6400
  %v6402 = vsel %vm5160, %v5981, %v6401
  %v6403 = vsel %vm5139, %v5983, 0.0
  %v6404 = vsel %vm5142, %v5985, %v6403
  %v6405 = vsel %vm5145, %v5987, %v6404
  %v6406 = vsel %vm5148, %v5989, %v6405
  %v6407 = vsel %vm5151, %v5991, %v6406
  %v6408 = vsel %vm5154, %v4889, %v6407
  %v6409 = vsel %vm5157, %v5994, %v6408
  %v6410 = vsel %vm5160, %v5996, %v6409
  %v6411 = vsel %vm5139, %v5998, 0.0
  %v6412 = vsel %vm5142, %v6000, %v6411
  %v6413 = vsel %vm5145, %v6002, %v6412
  %v6414 = vsel %vm5148, %v6004, %v6413
  %v6415 = vsel %vm5151, %v6006, %v6414
  %v6416 = vsel %vm5154, %v4897, %v6415
  %v6417 = vsel %vm5157, %v6009, %v6416
  %v6418 = vsel %vm5160, %v6011, %v6417
  %v6419 = vsel %vm5139, %v6013, 0.0
  %v6420 = vsel %vm5142, %v6015, %v6419
  %v6421 = vsel %vm5145, %v6017, %v6420
  %v6422 = vsel %vm5148, %v6019, %v6421
  %v6423 = vsel %vm5151, %v6021, %v6422
  %v6424 = vsel %vm5154, %v4905, %v6423
  %v6425 = vsel %vm5157, %v6024, %v6424
  %v6426 = vsel %vm5160, %v6026, %v6425
  %v6427 = vsel %vm5139, %v6028, 0.0
  %v6428 = vsel %vm5142, %v6030, %v6427
  %v6429 = vsel %vm5145, %v6032, %v6428
  %v6430 = vsel %vm5148, %v6034, %v6429
  %v6431 = vsel %vm5151, %v6036, %v6430
  %v6432 = vsel %vm5154, %v4913, %v6431
  %v6433 = vsel %vm5157, %v6039, %v6432
  %v6434 = vsel %vm5160, %v6041, %v6433
  %v6435 = vsel %vm5139, %v6043, 0.0
  %v6436 = vsel %vm5142, %v6045, %v6435
  %v6437 = vsel %vm5145, %v6047, %v6436
  %v6438 = vsel %vm5148, %v6049, %v6437
  %v6439 = vsel %vm5151, %v6051, %v6438
  %v6440 = vsel %vm5154, %v4921, %v6439
  %v6441 = vsel %vm5157, %v6054, %v6440
  %v6442 = vsel %vm5160, %v6056, %v6441
  %v6443 = vsel %vm5139, %v6058, 0.0
  %v6444 = vsel %vm5142, %v6060, %v6443
  %v6445 = vsel %vm5145, %v6062, %v6444
  %v6446 = vsel %vm5148, %v6064, %v6445
  %v6447 = vsel %vm5151, %v6066, %v6446
  %v6448 = vsel %vm5154, %v4929, %v6447
  %v6449 = vsel %vm5157, %v6069, %v6448
  %v6450 = vsel %vm5160, %v6071, %v6449
  %v6451 = vsel %vm5139, %v6073, 0.0
  %v6452 = vsel %vm5142, %v6075, %v6451
  %v6453 = vsel %vm5145, %v6077, %v6452
  %v6454 = vsel %vm5148, %v6079, %v6453
  %v6455 = vsel %vm5151, %v6081, %v6454
  %v6456 = vsel %vm5154, %v4937, %v6455
  %v6457 = vsel %vm5157, %v6084, %v6456
  %v6458 = vsel %vm5160, %v6086, %v6457
  %v6459 = vsel %vm5139, %v6088, 0.0
  %v6460 = vsel %vm5142, %v6090, %v6459
  %v6461 = vsel %vm5145, %v6092, %v6460
  %v6462 = vsel %vm5148, %v6094, %v6461
  %v6463 = vsel %vm5151, %v6096, %v6462
  %v6464 = vsel %vm5154, %v4945, %v6463
  %v6465 = vsel %vm5157, %v6099, %v6464
  %v6466 = vsel %vm5160, %v6101, %v6465
  %v6467 = vsel %vm5139, %v6103, 0.0
  %v6468 = vsel %vm5142, %v6105, %v6467
  %v6469 = vsel %vm5145, %v6107, %v6468
  %v6470 = vsel %vm5148, %v6109, %v6469
  %v6471 = vsel %vm5151, %v6111, %v6470
  %v6472 = vsel %vm5154, %v6113, %v6471
  %v6473 = vsel %vm5157, %v4891, %v6472
  %v6474 = vsel %vm5160, %v6116, %v6473
  %v6475 = vsel %vm5139, %v6118, 0.0
  %v6476 = vsel %vm5142, %v6120, %v6475
  %v6477 = vsel %vm5145, %v6122, %v6476
  %v6478 = vsel %vm5148, %v6124, %v6477
  %v6479 = vsel %vm5151, %v6126, %v6478
  %v6480 = vsel %vm5154, %v6128, %v6479
  %v6481 = vsel %vm5157, %v4899, %v6480
  %v6482 = vsel %vm5160, %v6131, %v6481
  %v6483 = vsel %vm5139, %v6133, 0.0
  %v6484 = vsel %vm5142, %v6135, %v6483
  %v6485 = vsel %vm5145, %v6137, %v6484
  %v6486 = vsel %vm5148, %v6139, %v6485
  %v6487 = vsel %vm5151, %v6141, %v6486
  %v6488 = vsel %vm5154, %v6143, %v6487
  %v6489 = vsel %vm5157, %v4907, %v6488
  %v6490 = vsel %vm5160, %v6146, %v6489
  %v6491 = vsel %vm5139, %v6148, 0.0
  %v6492 = vsel %vm5142, %v6150, %v6491
  %v6493 = vsel %vm5145, %v6152, %v6492
  %v6494 = vsel %vm5148, %v6154, %v6493
  %v6495 = vsel %vm5151, %v6156, %v6494
  %v6496 = vsel %vm5154, %v6158, %v6495
  %v6497 = vsel %vm5157, %v4915, %v6496
  %v6498 = vsel %vm5160, %v6161, %v6497
  %v6499 = vsel %vm5139, %v6163, 0.0
  %v6500 = vsel %vm5142, %v6165, %v6499
  %v6501 = vsel %vm5145, %v6167, %v6500
  %v6502 = vsel %vm5148, %v6169, %v6501
  %v6503 = vsel %vm5151, %v6171, %v6502
  %v6504 = vsel %vm5154, %v6173, %v6503
  %v6505 = vsel %vm5157, %v4923, %v6504
  %v6506 = vsel %vm5160, %v6176, %v6505
  %v6507 = vsel %vm5139, %v6178, 0.0
  %v6508 = vsel %vm5142, %v6180, %v6507
  %v6509 = vsel %vm5145, %v6182, %v6508
  %v6510 = vsel %vm5148, %v6184, %v6509
  %v6511 = vsel %vm5151, %v6186, %v6510
  %v6512 = vsel %vm5154, %v6188, %v6511
  %v6513 = vsel %vm5157, %v4931, %v6512
  %v6514 = vsel %vm5160, %v6191, %v6513
  %v6515 = vsel %vm5139, %v6193, 0.0
  %v6516 = vsel %vm5142, %v6195, %v6515
  %v6517 = vsel %vm5145, %v6197, %v6516
  %v6518 = vsel %vm5148, %v6199, %v6517
  %v6519 = vsel %vm5151, %v6201, %v6518
  %v6520 = vsel %vm5154, %v6203, %v6519
  %v6521 = vsel %vm5157, %v4939, %v6520
  %v6522 = vsel %vm5160, %v6206, %v6521
  %v6523 = vsel %vm5139, %v6208, 0.0
  %v6524 = vsel %vm5142, %v6210, %v6523
  %v6525 = vsel %vm5145, %v6212, %v6524
  %v6526 = vsel %vm5148, %v6214, %v6525
  %v6527 = vsel %vm5151, %v6216, %v6526
  %v6528 = vsel %vm5154, %v6218, %v6527
  %v6529 = vsel %vm5157, %v4947, %v6528
  %v6530 = vsel %vm5160, %v6221, %v6529
  %v6531 = vsel %vm5139, %v6223, 0.0
  %v6532 = vsel %vm5142, %v6225, %v6531
  %v6533 = vsel %vm5145, %v6227, %v6532
  %v6534 = vsel %vm5148, %v6229, %v6533
  %v6535 = vsel %vm5151, %v6231, %v6534
  %v6536 = vsel %vm5154, %v6233, %v6535
  %v6537 = vsel %vm5157, %v6235, %v6536
  %v6538 = vsel %vm5160, %v4893, %v6537
  %v6539 = vsel %vm5139, %v6238, 0.0
  %v6540 = vsel %vm5142, %v6240, %v6539
  %v6541 = vsel %vm5145, %v6242, %v6540
  %v6542 = vsel %vm5148, %v6244, %v6541
  %v6543 = vsel %vm5151, %v6246, %v6542
  %v6544 = vsel %vm5154, %v6248, %v6543
  %v6545 = vsel %vm5157, %v6250, %v6544
  %v6546 = vsel %vm5160, %v4901, %v6545
  %v6547 = vsel %vm5139, %v6253, 0.0
  %v6548 = vsel %vm5142, %v6255, %v6547
  %v6549 = vsel %vm5145, %v6257, %v6548
  %v6550 = vsel %vm5148, %v6259, %v6549
  %v6551 = vsel %vm5151, %v6261, %v6550
  %v6552 = vsel %vm5154, %v6263, %v6551
  %v6553 = vsel %vm5157, %v6265, %v6552
  %v6554 = vsel %vm5160, %v4909, %v6553
  %v6555 = vsel %vm5139, %v6268, 0.0
  %v6556 = vsel %vm5142, %v6270, %v6555
  %v6557 = vsel %vm5145, %v6272, %v6556
  %v6558 = vsel %vm5148, %v6274, %v6557
  %v6559 = vsel %vm5151, %v6276, %v6558
  %v6560 = vsel %vm5154, %v6278, %v6559
  %v6561 = vsel %vm5157, %v6280, %v6560
  %v6562 = vsel %vm5160, %v4917, %v6561
  %v6563 = vsel %vm5139, %v6283, 0.0
  %v6564 = vsel %vm5142, %v6285, %v6563
  %v6565 = vsel %vm5145, %v6287, %v6564
  %v6566 = vsel %vm5148, %v6289, %v6565
  %v6567 = vsel %vm5151, %v6291, %v6566
  %v6568 = vsel %vm5154, %v6293, %v6567
  %v6569 = vsel %vm5157, %v6295, %v6568
  %v6570 = vsel %vm5160, %v4925, %v6569
  %v6571 = vsel %vm5139, %v6298, 0.0
  %v6572 = vsel %vm5142, %v6300, %v6571
  %v6573 = vsel %vm5145, %v6302, %v6572
  %v6574 = vsel %vm5148, %v6304, %v6573
  %v6575 = vsel %vm5151, %v6306, %v6574
  %v6576 = vsel %vm5154, %v6308, %v6575
  %v6577 = vsel %vm5157, %v6310, %v6576
  %v6578 = vsel %vm5160, %v4933, %v6577
  %v6579 = vsel %vm5139, %v6313, 0.0
  %v6580 = vsel %vm5142, %v6315, %v6579
  %v6581 = vsel %vm5145, %v6317, %v6580
  %v6582 = vsel %vm5148, %v6319, %v6581
  %v6583 = vsel %vm5151, %v6321, %v6582
  %v6584 = vsel %vm5154, %v6323, %v6583
  %v6585 = vsel %vm5157, %v6325, %v6584
  %v6586 = vsel %vm5160, %v4941, %v6585
  %v6587 = vsel %vm5139, %v6328, 0.0
  %v6588 = vsel %vm5142, %v6330, %v6587
  %v6589 = vsel %vm5145, %v6332, %v6588
  %v6590 = vsel %vm5148, %v6334, %v6589
  %v6591 = vsel %vm5151, %v6336, %v6590
  %v6592 = vsel %vm5154, %v6338, %v6591
  %v6593 = vsel %vm5157, %v6340, %v6592
  %v6594 = vsel %vm5160, %v4949, %v6593
  %v6595 = vsel %vm5139, %v4950, 0.0
  %v6596 = vrot.slane %v4951, 7
  %v6597 = vsel %vm5142, %v6596, %v6595
  %v6598 = vrot.slane %v4952, 6
  %v6599 = vsel %vm5145, %v6598, %v6597
  %v6600 = vrot.slane %v4953, 5
  %v6601 = vsel %vm5148, %v6600, %v6599
  %v6602 = vrot.slane %v4954, 4
  %v6603 = vsel %vm5151, %v6602, %v6601
  %v6604 = vrot.slane %v4955, 3
  %v6605 = vsel %vm5154, %v6604, %v6603
  %v6606 = vrot.slane %v4956, 2
  %v6607 = vsel %vm5157, %v6606, %v6605
  %v6608 = vrot.slane %v4957, 1
  %v6609 = vsel %vm5160, %v6608, %v6607
  %v6610 = vsel %vm5139, %v4958, 0.0
  %v6611 = vrot.slane %v4959, 7
  %v6612 = vsel %vm5142, %v6611, %v6610
  %v6613 = vrot.slane %v4960, 6
  %v6614 = vsel %vm5145, %v6613, %v6612
  %v6615 = vrot.slane %v4961, 5
  %v6616 = vsel %vm5148, %v6615, %v6614
  %v6617 = vrot.slane %v4962, 4
  %v6618 = vsel %vm5151, %v6617, %v6616
  %v6619 = vrot.slane %v4963, 3
  %v6620 = vsel %vm5154, %v6619, %v6618
  %v6621 = vrot.slane %v4964, 2
  %v6622 = vsel %vm5157, %v6621, %v6620
  %v6623 = vrot.slane %v4965, 1
  %v6624 = vsel %vm5160, %v6623, %v6622
  %v6625 = vsel %vm5139, %v4966, 0.0
  %v6626 = vrot.slane %v4967, 7
  %v6627 = vsel %vm5142, %v6626, %v6625
  %v6628 = vrot.slane %v4968, 6
  %v6629 = vsel %vm5145, %v6628, %v6627
  %v6630 = vrot.slane %v4969, 5
  %v6631 = vsel %vm5148, %v6630, %v6629
  %v6632 = vrot.slane %v4970, 4
  %v6633 = vsel %vm5151, %v6632, %v6631
  %v6634 = vrot.slane %v4971, 3
  %v6635 = vsel %vm5154, %v6634, %v6633
  %v6636 = vrot.slane %v4972, 2
  %v6637 = vsel %vm5157, %v6636, %v6635
  %v6638 = vrot.slane %v4973, 1
  %v6639 = vsel %vm5160, %v6638, %v6637
  %v6640 = vsel %vm5139, %v4974, 0.0
  %v6641 = vrot.slane %v4975, 7
  %v6642 = vsel %vm5142, %v6641, %v6640
  %v6643 = vrot.slane %v4976, 6
  %v6644 = vsel %vm5145, %v6643, %v6642
  %v6645 = vrot.slane %v4977, 5
  %v6646 = vsel %vm5148, %v6645, %v6644
  %v6647 = vrot.slane %v4978, 4
  %v6648 = vsel %vm5151, %v6647, %v6646
  %v6649 = vrot.slane %v4979, 3
  %v6650 = vsel %vm5154, %v6649, %v6648
  %v6651 = vrot.slane %v4980, 2
  %v6652 = vsel %vm5157, %v6651, %v6650
  %v6653 = vrot.slane %v4981, 1
  %v6654 = vsel %vm5160, %v6653, %v6652
  %v6655 = vsel %vm5139, %v4982, 0.0
  %v6656 = vrot.slane %v4983, 7
  %v6657 = vsel %vm5142, %v6656, %v6655
  %v6658 = vrot.slane %v4984, 6
  %v6659 = vsel %vm5145, %v6658, %v6657
  %v6660 = vrot.slane %v4985, 5
  %v6661 = vsel %vm5148, %v6660, %v6659
  %v6662 = vrot.slane %v4986, 4
  %v6663 = vsel %vm5151, %v6662, %v6661
  %v6664 = vrot.slane %v4987, 3
  %v6665 = vsel %vm5154, %v6664, %v6663
  %v6666 = vrot.slane %v4988, 2
  %v6667 = vsel %vm5157, %v6666, %v6665
  %v6668 = vrot.slane %v4989, 1
  %v6669 = vsel %vm5160, %v6668, %v6667
  %v6670 = vsel %vm5139, %v4990, 0.0
  %v6671 = vrot.slane %v4991, 7
  %v6672 = vsel %vm5142, %v6671, %v6670
  %v6673 = vrot.slane %v4992, 6
  %v6674 = vsel %vm5145, %v6673, %v6672
  %v6675 = vrot.slane %v4993, 5
  %v6676 = vsel %vm5148, %v6675, %v6674
  %v6677 = vrot.slane %v4994, 4
  %v6678 = vsel %vm5151, %v6677, %v6676
  %v6679 = vrot.slane %v4995, 3
  %v6680 = vsel %vm5154, %v6679, %v6678
  %v6681 = vrot.slane %v4996, 2
  %v6682 = vsel %vm5157, %v6681, %v6680
  %v6683 = vrot.slane %v4997, 1
  %v6684 = vsel %vm5160, %v6683, %v6682
  %v6685 = vsel %vm5139, %v4998, 0.0
  %v6686 = vrot.slane %v4999, 7
  %v6687 = vsel %vm5142, %v6686, %v6685
  %v6688 = vrot.slane %v5000, 6
  %v6689 = vsel %vm5145, %v6688, %v6687
  %v6690 = vrot.slane %v5001, 5
  %v6691 = vsel %vm5148, %v6690, %v6689
  %v6692 = vrot.slane %v5002, 4
  %v6693 = vsel %vm5151, %v6692, %v6691
  %v6694 = vrot.slane %v5003, 3
  %v6695 = vsel %vm5154, %v6694, %v6693
  %v6696 = vrot.slane %v5004, 2
  %v6697 = vsel %vm5157, %v6696, %v6695
  %v6698 = vrot.slane %v5005, 1
  %v6699 = vsel %vm5160, %v6698, %v6697
  %v6700 = vsel %vm5139, %v5006, 0.0
  %v6701 = vrot.slane %v5007, 7
  %v6702 = vsel %vm5142, %v6701, %v6700
  %v6703 = vrot.slane %v5008, 6
  %v6704 = vsel %vm5145, %v6703, %v6702
  %v6705 = vrot.slane %v5009, 5
  %v6706 = vsel %vm5148, %v6705, %v6704
  %v6707 = vrot.slane %v5010, 4
  %v6708 = vsel %vm5151, %v6707, %v6706
  %v6709 = vrot.slane %v5011, 3
  %v6710 = vsel %vm5154, %v6709, %v6708
  %v6711 = vrot.slane %v5012, 2
  %v6712 = vsel %vm5157, %v6711, %v6710
  %v6713 = vrot.slane %v4950, 2
  %v6714 = vsel %vm5160, %v6713, %v6712
  %v6715 = vrot.slane %v4951, 1
  %v6716 = vsel %vm5139, %v6715, 0.0
  %v6717 = vsel %vm5142, %v4952, %v6716
  %v6718 = vrot.slane %v4953, 7
  %v6719 = vsel %vm5145, %v6718, %v6717
  %v6720 = vrot.slane %v4954, 6
  %v6721 = vsel %vm5148, %v6720, %v6719
  %v6722 = vrot.slane %v4955, 5
  %v6723 = vsel %vm5151, %v6722, %v6721
  %v6724 = vrot.slane %v4956, 4
  %v6725 = vsel %vm5154, %v6724, %v6723
  %v6726 = vrot.slane %v4957, 3
  %v6727 = vsel %vm5157, %v6726, %v6725
  %v6728 = vrot.slane %v4958, 2
  %v6729 = vsel %vm5160, %v6728, %v6727
  %v6730 = vrot.slane %v4959, 1
  %v6731 = vsel %vm5139, %v6730, 0.0
  %v6732 = vsel %vm5142, %v4960, %v6731
  %v6733 = vrot.slane %v4961, 7
  %v6734 = vsel %vm5145, %v6733, %v6732
  %v6735 = vrot.slane %v4962, 6
  %v6736 = vsel %vm5148, %v6735, %v6734
  %v6737 = vrot.slane %v4963, 5
  %v6738 = vsel %vm5151, %v6737, %v6736
  %v6739 = vrot.slane %v4964, 4
  %v6740 = vsel %vm5154, %v6739, %v6738
  %v6741 = vrot.slane %v4965, 3
  %v6742 = vsel %vm5157, %v6741, %v6740
  %v6743 = vrot.slane %v4966, 2
  %v6744 = vsel %vm5160, %v6743, %v6742
  %v6745 = vrot.slane %v4967, 1
  %v6746 = vsel %vm5139, %v6745, 0.0
  %v6747 = vsel %vm5142, %v4968, %v6746
  %v6748 = vrot.slane %v4969, 7
  %v6749 = vsel %vm5145, %v6748, %v6747
  %v6750 = vrot.slane %v4970, 6
  %v6751 = vsel %vm5148, %v6750, %v6749
  %v6752 = vrot.slane %v4971, 5
  %v6753 = vsel %vm5151, %v6752, %v6751
  %v6754 = vrot.slane %v4972, 4
  %v6755 = vsel %vm5154, %v6754, %v6753
  %v6756 = vrot.slane %v4973, 3
  %v6757 = vsel %vm5157, %v6756, %v6755
  %v6758 = vrot.slane %v4974, 2
  %v6759 = vsel %vm5160, %v6758, %v6757
  %v6760 = vrot.slane %v4975, 1
  %v6761 = vsel %vm5139, %v6760, 0.0
  %v6762 = vsel %vm5142, %v4976, %v6761
  %v6763 = vrot.slane %v4977, 7
  %v6764 = vsel %vm5145, %v6763, %v6762
  %v6765 = vrot.slane %v4978, 6
  %v6766 = vsel %vm5148, %v6765, %v6764
  %v6767 = vrot.slane %v4979, 5
  %v6768 = vsel %vm5151, %v6767, %v6766
  %v6769 = vrot.slane %v4980, 4
  %v6770 = vsel %vm5154, %v6769, %v6768
  %v6771 = vrot.slane %v4981, 3
  %v6772 = vsel %vm5157, %v6771, %v6770
  %v6773 = vrot.slane %v4982, 2
  %v6774 = vsel %vm5160, %v6773, %v6772
  %v6775 = vrot.slane %v4983, 1
  %v6776 = vsel %vm5139, %v6775, 0.0
  %v6777 = vsel %vm5142, %v4984, %v6776
  %v6778 = vrot.slane %v4985, 7
  %v6779 = vsel %vm5145, %v6778, %v6777
  %v6780 = vrot.slane %v4986, 6
  %v6781 = vsel %vm5148, %v6780, %v6779
  %v6782 = vrot.slane %v4987, 5
  %v6783 = vsel %vm5151, %v6782, %v6781
  %v6784 = vrot.slane %v4988, 4
  %v6785 = vsel %vm5154, %v6784, %v6783
  %v6786 = vrot.slane %v4989, 3
  %v6787 = vsel %vm5157, %v6786, %v6785
  %v6788 = vrot.slane %v4990, 2
  %v6789 = vsel %vm5160, %v6788, %v6787
  %v6790 = vrot.slane %v4991, 1
  %v6791 = vsel %vm5139, %v6790, 0.0
  %v6792 = vsel %vm5142, %v4992, %v6791
  %v6793 = vrot.slane %v4993, 7
  %v6794 = vsel %vm5145, %v6793, %v6792
  %v6795 = vrot.slane %v4994, 6
  %v6796 = vsel %vm5148, %v6795, %v6794
  %v6797 = vrot.slane %v4995, 5
  %v6798 = vsel %vm5151, %v6797, %v6796
  %v6799 = vrot.slane %v4996, 4
  %v6800 = vsel %vm5154, %v6799, %v6798
  %v6801 = vrot.slane %v4997, 3
  %v6802 = vsel %vm5157, %v6801, %v6800
  %v6803 = vrot.slane %v4998, 2
  %v6804 = vsel %vm5160, %v6803, %v6802
  %v6805 = vrot.slane %v4999, 1
  %v6806 = vsel %vm5139, %v6805, 0.0
  %v6807 = vsel %vm5142, %v5000, %v6806
  %v6808 = vrot.slane %v5001, 7
  %v6809 = vsel %vm5145, %v6808, %v6807
  %v6810 = vrot.slane %v5002, 6
  %v6811 = vsel %vm5148, %v6810, %v6809
  %v6812 = vrot.slane %v5003, 5
  %v6813 = vsel %vm5151, %v6812, %v6811
  %v6814 = vrot.slane %v5004, 4
  %v6815 = vsel %vm5154, %v6814, %v6813
  %v6816 = vrot.slane %v5005, 3
  %v6817 = vsel %vm5157, %v6816, %v6815
  %v6818 = vrot.slane %v5006, 2
  %v6819 = vsel %vm5160, %v6818, %v6817
  %v6820 = vrot.slane %v5007, 1
  %v6821 = vsel %vm5139, %v6820, 0.0
  %v6822 = vsel %vm5142, %v5008, %v6821
  %v6823 = vrot.slane %v5009, 7
  %v6824 = vsel %vm5145, %v6823, %v6822
  %v6825 = vrot.slane %v5010, 6
  %v6826 = vsel %vm5148, %v6825, %v6824
  %v6827 = vrot.slane %v5011, 5
  %v6828 = vsel %vm5151, %v6827, %v6826
  %v6829 = vrot.slane %v5012, 4
  %v6830 = vsel %vm5154, %v6829, %v6828
  %v6831 = vrot.slane %v4950, 4
  %v6832 = vsel %vm5157, %v6831, %v6830
  %v6833 = vrot.slane %v4951, 3
  %v6834 = vsel %vm5160, %v6833, %v6832
  %v6835 = vrot.slane %v4952, 2
  %v6836 = vsel %vm5139, %v6835, 0.0
  %v6837 = vrot.slane %v4953, 1
  %v6838 = vsel %vm5142, %v6837, %v6836
  %v6839 = vsel %vm5145, %v4954, %v6838
  %v6840 = vrot.slane %v4955, 7
  %v6841 = vsel %vm5148, %v6840, %v6839
  %v6842 = vrot.slane %v4956, 6
  %v6843 = vsel %vm5151, %v6842, %v6841
  %v6844 = vrot.slane %v4957, 5
  %v6845 = vsel %vm5154, %v6844, %v6843
  %v6846 = vrot.slane %v4958, 4
  %v6847 = vsel %vm5157, %v6846, %v6845
  %v6848 = vrot.slane %v4959, 3
  %v6849 = vsel %vm5160, %v6848, %v6847
  %v6850 = vrot.slane %v4960, 2
  %v6851 = vsel %vm5139, %v6850, 0.0
  %v6852 = vrot.slane %v4961, 1
  %v6853 = vsel %vm5142, %v6852, %v6851
  %v6854 = vsel %vm5145, %v4962, %v6853
  %v6855 = vrot.slane %v4963, 7
  %v6856 = vsel %vm5148, %v6855, %v6854
  %v6857 = vrot.slane %v4964, 6
  %v6858 = vsel %vm5151, %v6857, %v6856
  %v6859 = vrot.slane %v4965, 5
  %v6860 = vsel %vm5154, %v6859, %v6858
  %v6861 = vrot.slane %v4966, 4
  %v6862 = vsel %vm5157, %v6861, %v6860
  %v6863 = vrot.slane %v4967, 3
  %v6864 = vsel %vm5160, %v6863, %v6862
  %v6865 = vrot.slane %v4968, 2
  %v6866 = vsel %vm5139, %v6865, 0.0
  %v6867 = vrot.slane %v4969, 1
  %v6868 = vsel %vm5142, %v6867, %v6866
  %v6869 = vsel %vm5145, %v4970, %v6868
  %v6870 = vrot.slane %v4971, 7
  %v6871 = vsel %vm5148, %v6870, %v6869
  %v6872 = vrot.slane %v4972, 6
  %v6873 = vsel %vm5151, %v6872, %v6871
  %v6874 = vrot.slane %v4973, 5
  %v6875 = vsel %vm5154, %v6874, %v6873
  %v6876 = vrot.slane %v4974, 4
  %v6877 = vsel %vm5157, %v6876, %v6875
  %v6878 = vrot.slane %v4975, 3
  %v6879 = vsel %vm5160, %v6878, %v6877
  %v6880 = vrot.slane %v4976, 2
  %v6881 = vsel %vm5139, %v6880, 0.0
  %v6882 = vrot.slane %v4977, 1
  %v6883 = vsel %vm5142, %v6882, %v6881
  %v6884 = vsel %vm5145, %v4978, %v6883
  %v6885 = vrot.slane %v4979, 7
  %v6886 = vsel %vm5148, %v6885, %v6884
  %v6887 = vrot.slane %v4980, 6
  %v6888 = vsel %vm5151, %v6887, %v6886
  %v6889 = vrot.slane %v4981, 5
  %v6890 = vsel %vm5154, %v6889, %v6888
  %v6891 = vrot.slane %v4982, 4
  %v6892 = vsel %vm5157, %v6891, %v6890
  %v6893 = vrot.slane %v4983, 3
  %v6894 = vsel %vm5160, %v6893, %v6892
  %v6895 = vrot.slane %v4984, 2
  %v6896 = vsel %vm5139, %v6895, 0.0
  %v6897 = vrot.slane %v4985, 1
  %v6898 = vsel %vm5142, %v6897, %v6896
  %v6899 = vsel %vm5145, %v4986, %v6898
  %v6900 = vrot.slane %v4987, 7
  %v6901 = vsel %vm5148, %v6900, %v6899
  %v6902 = vrot.slane %v4988, 6
  %v6903 = vsel %vm5151, %v6902, %v6901
  %v6904 = vrot.slane %v4989, 5
  %v6905 = vsel %vm5154, %v6904, %v6903
  %v6906 = vrot.slane %v4990, 4
  %v6907 = vsel %vm5157, %v6906, %v6905
  %v6908 = vrot.slane %v4991, 3
  %v6909 = vsel %vm5160, %v6908, %v6907
  %v6910 = vrot.slane %v4992, 2
  %v6911 = vsel %vm5139, %v6910, 0.0
  %v6912 = vrot.slane %v4993, 1
  %v6913 = vsel %vm5142, %v6912, %v6911
  %v6914 = vsel %vm5145, %v4994, %v6913
  %v6915 = vrot.slane %v4995, 7
  %v6916 = vsel %vm5148, %v6915, %v6914
  %v6917 = vrot.slane %v4996, 6
  %v6918 = vsel %vm5151, %v6917, %v6916
  %v6919 = vrot.slane %v4997, 5
  %v6920 = vsel %vm5154, %v6919, %v6918
  %v6921 = vrot.slane %v4998, 4
  %v6922 = vsel %vm5157, %v6921, %v6920
  %v6923 = vrot.slane %v4999, 3
  %v6924 = vsel %vm5160, %v6923, %v6922
  %v6925 = vrot.slane %v5000, 2
  %v6926 = vsel %vm5139, %v6925, 0.0
  %v6927 = vrot.slane %v5001, 1
  %v6928 = vsel %vm5142, %v6927, %v6926
  %v6929 = vsel %vm5145, %v5002, %v6928
  %v6930 = vrot.slane %v5003, 7
  %v6931 = vsel %vm5148, %v6930, %v6929
  %v6932 = vrot.slane %v5004, 6
  %v6933 = vsel %vm5151, %v6932, %v6931
  %v6934 = vrot.slane %v5005, 5
  %v6935 = vsel %vm5154, %v6934, %v6933
  %v6936 = vrot.slane %v5006, 4
  %v6937 = vsel %vm5157, %v6936, %v6935
  %v6938 = vrot.slane %v5007, 3
  %v6939 = vsel %vm5160, %v6938, %v6937
  %v6940 = vrot.slane %v5008, 2
  %v6941 = vsel %vm5139, %v6940, 0.0
  %v6942 = vrot.slane %v5009, 1
  %v6943 = vsel %vm5142, %v6942, %v6941
  %v6944 = vsel %vm5145, %v5010, %v6943
  %v6945 = vrot.slane %v5011, 7
  %v6946 = vsel %vm5148, %v6945, %v6944
  %v6947 = vrot.slane %v5012, 6
  %v6948 = vsel %vm5151, %v6947, %v6946
  %v6949 = vrot.slane %v4950, 6
  %v6950 = vsel %vm5154, %v6949, %v6948
  %v6951 = vrot.slane %v4951, 5
  %v6952 = vsel %vm5157, %v6951, %v6950
  %v6953 = vrot.slane %v4952, 4
  %v6954 = vsel %vm5160, %v6953, %v6952
  %v6955 = vrot.slane %v4953, 3
  %v6956 = vsel %vm5139, %v6955, 0.0
  %v6957 = vrot.slane %v4954, 2
  %v6958 = vsel %vm5142, %v6957, %v6956
  %v6959 = vrot.slane %v4955, 1
  %v6960 = vsel %vm5145, %v6959, %v6958
  %v6961 = vsel %vm5148, %v4956, %v6960
  %v6962 = vrot.slane %v4957, 7
  %v6963 = vsel %vm5151, %v6962, %v6961
  %v6964 = vrot.slane %v4958, 6
  %v6965 = vsel %vm5154, %v6964, %v6963
  %v6966 = vrot.slane %v4959, 5
  %v6967 = vsel %vm5157, %v6966, %v6965
  %v6968 = vrot.slane %v4960, 4
  %v6969 = vsel %vm5160, %v6968, %v6967
  %v6970 = vrot.slane %v4961, 3
  %v6971 = vsel %vm5139, %v6970, 0.0
  %v6972 = vrot.slane %v4962, 2
  %v6973 = vsel %vm5142, %v6972, %v6971
  %v6974 = vrot.slane %v4963, 1
  %v6975 = vsel %vm5145, %v6974, %v6973
  %v6976 = vsel %vm5148, %v4964, %v6975
  %v6977 = vrot.slane %v4965, 7
  %v6978 = vsel %vm5151, %v6977, %v6976
  %v6979 = vrot.slane %v4966, 6
  %v6980 = vsel %vm5154, %v6979, %v6978
  %v6981 = vrot.slane %v4967, 5
  %v6982 = vsel %vm5157, %v6981, %v6980
  %v6983 = vrot.slane %v4968, 4
  %v6984 = vsel %vm5160, %v6983, %v6982
  %v6985 = vrot.slane %v4969, 3
  %v6986 = vsel %vm5139, %v6985, 0.0
  %v6987 = vrot.slane %v4970, 2
  %v6988 = vsel %vm5142, %v6987, %v6986
  %v6989 = vrot.slane %v4971, 1
  %v6990 = vsel %vm5145, %v6989, %v6988
  %v6991 = vsel %vm5148, %v4972, %v6990
  %v6992 = vrot.slane %v4973, 7
  %v6993 = vsel %vm5151, %v6992, %v6991
  %v6994 = vrot.slane %v4974, 6
  %v6995 = vsel %vm5154, %v6994, %v6993
  %v6996 = vrot.slane %v4975, 5
  %v6997 = vsel %vm5157, %v6996, %v6995
  %v6998 = vrot.slane %v4976, 4
  %v6999 = vsel %vm5160, %v6998, %v6997
  %v7000 = vrot.slane %v4977, 3
  %v7001 = vsel %vm5139, %v7000, 0.0
  %v7002 = vrot.slane %v4978, 2
  %v7003 = vsel %vm5142, %v7002, %v7001
  %v7004 = vrot.slane %v4979, 1
  %v7005 = vsel %vm5145, %v7004, %v7003
  %v7006 = vsel %vm5148, %v4980, %v7005
  %v7007 = vrot.slane %v4981, 7
  %v7008 = vsel %vm5151, %v7007, %v7006
  %v7009 = vrot.slane %v4982, 6
  %v7010 = vsel %vm5154, %v7009, %v7008
  %v7011 = vrot.slane %v4983, 5
  %v7012 = vsel %vm5157, %v7011, %v7010
  %v7013 = vrot.slane %v4984, 4
  %v7014 = vsel %vm5160, %v7013, %v7012
  %v7015 = vrot.slane %v4985, 3
  %v7016 = vsel %vm5139, %v7015, 0.0
  %v7017 = vrot.slane %v4986, 2
  %v7018 = vsel %vm5142, %v7017, %v7016
  %v7019 = vrot.slane %v4987, 1
  %v7020 = vsel %vm5145, %v7019, %v7018
  %v7021 = vsel %vm5148, %v4988, %v7020
  %v7022 = vrot.slane %v4989, 7
  %v7023 = vsel %vm5151, %v7022, %v7021
  %v7024 = vrot.slane %v4990, 6
  %v7025 = vsel %vm5154, %v7024, %v7023
  %v7026 = vrot.slane %v4991, 5
  %v7027 = vsel %vm5157, %v7026, %v7025
  %v7028 = vrot.slane %v4992, 4
  %v7029 = vsel %vm5160, %v7028, %v7027
  %v7030 = vrot.slane %v4993, 3
  %v7031 = vsel %vm5139, %v7030, 0.0
  %v7032 = vrot.slane %v4994, 2
  %v7033 = vsel %vm5142, %v7032, %v7031
  %v7034 = vrot.slane %v4995, 1
  %v7035 = vsel %vm5145, %v7034, %v7033
  %v7036 = vsel %vm5148, %v4996, %v7035
  %v7037 = vrot.slane %v4997, 7
  %v7038 = vsel %vm5151, %v7037, %v7036
  %v7039 = vrot.slane %v4998, 6
  %v7040 = vsel %vm5154, %v7039, %v7038
  %v7041 = vrot.slane %v4999, 5
  %v7042 = vsel %vm5157, %v7041, %v7040
  %v7043 = vrot.slane %v5000, 4
  %v7044 = vsel %vm5160, %v7043, %v7042
  %v7045 = vrot.slane %v5001, 3
  %v7046 = vsel %vm5139, %v7045, 0.0
  %v7047 = vrot.slane %v5002, 2
  %v7048 = vsel %vm5142, %v7047, %v7046
  %v7049 = vrot.slane %v5003, 1
  %v7050 = vsel %vm5145, %v7049, %v7048
  %v7051 = vsel %vm5148, %v5004, %v7050
  %v7052 = vrot.slane %v5005, 7
  %v7053 = vsel %vm5151, %v7052, %v7051
  %v7054 = vrot.slane %v5006, 6
  %v7055 = vsel %vm5154, %v7054, %v7053
  %v7056 = vrot.slane %v5007, 5
  %v7057 = vsel %vm5157, %v7056, %v7055
  %v7058 = vrot.slane %v5008, 4
  %v7059 = vsel %vm5160, %v7058, %v7057
  %v7060 = vrot.slane %v5009, 3
  %v7061 = vsel %vm5139, %v7060, 0.0
  %v7062 = vrot.slane %v5010, 2
  %v7063 = vsel %vm5142, %v7062, %v7061
  %v7064 = vrot.slane %v5011, 1
  %v7065 = vsel %vm5145, %v7064, %v7063
  %v7066 = vsel %vm5148, %v5012, %v7065
  %v7067 = vsel %vm5151, %v4950, %v7066
  %v7068 = vsel %vm5154, %v6596, %v7067
  %v7069 = vsel %vm5157, %v6598, %v7068
  %v7070 = vsel %vm5160, %v6600, %v7069
  %v7071 = vsel %vm5139, %v6602, 0.0
  %v7072 = vsel %vm5142, %v6604, %v7071
  %v7073 = vsel %vm5145, %v6606, %v7072
  %v7074 = vsel %vm5148, %v6608, %v7073
  %v7075 = vsel %vm5151, %v4958, %v7074
  %v7076 = vsel %vm5154, %v6611, %v7075
  %v7077 = vsel %vm5157, %v6613, %v7076
  %v7078 = vsel %vm5160, %v6615, %v7077
  %v7079 = vsel %vm5139, %v6617, 0.0
  %v7080 = vsel %vm5142, %v6619, %v7079
  %v7081 = vsel %vm5145, %v6621, %v7080
  %v7082 = vsel %vm5148, %v6623, %v7081
  %v7083 = vsel %vm5151, %v4966, %v7082
  %v7084 = vsel %vm5154, %v6626, %v7083
  %v7085 = vsel %vm5157, %v6628, %v7084
  %v7086 = vsel %vm5160, %v6630, %v7085
  %v7087 = vsel %vm5139, %v6632, 0.0
  %v7088 = vsel %vm5142, %v6634, %v7087
  %v7089 = vsel %vm5145, %v6636, %v7088
  %v7090 = vsel %vm5148, %v6638, %v7089
  %v7091 = vsel %vm5151, %v4974, %v7090
  %v7092 = vsel %vm5154, %v6641, %v7091
  %v7093 = vsel %vm5157, %v6643, %v7092
  %v7094 = vsel %vm5160, %v6645, %v7093
  %v7095 = vsel %vm5139, %v6647, 0.0
  %v7096 = vsel %vm5142, %v6649, %v7095
  %v7097 = vsel %vm5145, %v6651, %v7096
  %v7098 = vsel %vm5148, %v6653, %v7097
  %v7099 = vsel %vm5151, %v4982, %v7098
  %v7100 = vsel %vm5154, %v6656, %v7099
  %v7101 = vsel %vm5157, %v6658, %v7100
  %v7102 = vsel %vm5160, %v6660, %v7101
  %v7103 = vsel %vm5139, %v6662, 0.0
  %v7104 = vsel %vm5142, %v6664, %v7103
  %v7105 = vsel %vm5145, %v6666, %v7104
  %v7106 = vsel %vm5148, %v6668, %v7105
  %v7107 = vsel %vm5151, %v4990, %v7106
  %v7108 = vsel %vm5154, %v6671, %v7107
  %v7109 = vsel %vm5157, %v6673, %v7108
  %v7110 = vsel %vm5160, %v6675, %v7109
  %v7111 = vsel %vm5139, %v6677, 0.0
  %v7112 = vsel %vm5142, %v6679, %v7111
  %v7113 = vsel %vm5145, %v6681, %v7112
  %v7114 = vsel %vm5148, %v6683, %v7113
  %v7115 = vsel %vm5151, %v4998, %v7114
  %v7116 = vsel %vm5154, %v6686, %v7115
  %v7117 = vsel %vm5157, %v6688, %v7116
  %v7118 = vsel %vm5160, %v6690, %v7117
  %v7119 = vsel %vm5139, %v6692, 0.0
  %v7120 = vsel %vm5142, %v6694, %v7119
  %v7121 = vsel %vm5145, %v6696, %v7120
  %v7122 = vsel %vm5148, %v6698, %v7121
  %v7123 = vsel %vm5151, %v5006, %v7122
  %v7124 = vsel %vm5154, %v6701, %v7123
  %v7125 = vsel %vm5157, %v6703, %v7124
  %v7126 = vsel %vm5160, %v6705, %v7125
  %v7127 = vsel %vm5139, %v6707, 0.0
  %v7128 = vsel %vm5142, %v6709, %v7127
  %v7129 = vsel %vm5145, %v6711, %v7128
  %v7130 = vsel %vm5148, %v6713, %v7129
  %v7131 = vsel %vm5151, %v6715, %v7130
  %v7132 = vsel %vm5154, %v4952, %v7131
  %v7133 = vsel %vm5157, %v6718, %v7132
  %v7134 = vsel %vm5160, %v6720, %v7133
  %v7135 = vsel %vm5139, %v6722, 0.0
  %v7136 = vsel %vm5142, %v6724, %v7135
  %v7137 = vsel %vm5145, %v6726, %v7136
  %v7138 = vsel %vm5148, %v6728, %v7137
  %v7139 = vsel %vm5151, %v6730, %v7138
  %v7140 = vsel %vm5154, %v4960, %v7139
  %v7141 = vsel %vm5157, %v6733, %v7140
  %v7142 = vsel %vm5160, %v6735, %v7141
  %v7143 = vsel %vm5139, %v6737, 0.0
  %v7144 = vsel %vm5142, %v6739, %v7143
  %v7145 = vsel %vm5145, %v6741, %v7144
  %v7146 = vsel %vm5148, %v6743, %v7145
  %v7147 = vsel %vm5151, %v6745, %v7146
  %v7148 = vsel %vm5154, %v4968, %v7147
  %v7149 = vsel %vm5157, %v6748, %v7148
  %v7150 = vsel %vm5160, %v6750, %v7149
  %v7151 = vsel %vm5139, %v6752, 0.0
  %v7152 = vsel %vm5142, %v6754, %v7151
  %v7153 = vsel %vm5145, %v6756, %v7152
  %v7154 = vsel %vm5148, %v6758, %v7153
  %v7155 = vsel %vm5151, %v6760, %v7154
  %v7156 = vsel %vm5154, %v4976, %v7155
  %v7157 = vsel %vm5157, %v6763, %v7156
  %v7158 = vsel %vm5160, %v6765, %v7157
  %v7159 = vsel %vm5139, %v6767, 0.0
  %v7160 = vsel %vm5142, %v6769, %v7159
  %v7161 = vsel %vm5145, %v6771, %v7160
  %v7162 = vsel %vm5148, %v6773, %v7161
  %v7163 = vsel %vm5151, %v6775, %v7162
  %v7164 = vsel %vm5154, %v4984, %v7163
  %v7165 = vsel %vm5157, %v6778, %v7164
  %v7166 = vsel %vm5160, %v6780, %v7165
  %v7167 = vsel %vm5139, %v6782, 0.0
  %v7168 = vsel %vm5142, %v6784, %v7167
  %v7169 = vsel %vm5145, %v6786, %v7168
  %v7170 = vsel %vm5148, %v6788, %v7169
  %v7171 = vsel %vm5151, %v6790, %v7170
  %v7172 = vsel %vm5154, %v4992, %v7171
  %v7173 = vsel %vm5157, %v6793, %v7172
  %v7174 = vsel %vm5160, %v6795, %v7173
  %v7175 = vsel %vm5139, %v6797, 0.0
  %v7176 = vsel %vm5142, %v6799, %v7175
  %v7177 = vsel %vm5145, %v6801, %v7176
  %v7178 = vsel %vm5148, %v6803, %v7177
  %v7179 = vsel %vm5151, %v6805, %v7178
  %v7180 = vsel %vm5154, %v5000, %v7179
  %v7181 = vsel %vm5157, %v6808, %v7180
  %v7182 = vsel %vm5160, %v6810, %v7181
  %v7183 = vsel %vm5139, %v6812, 0.0
  %v7184 = vsel %vm5142, %v6814, %v7183
  %v7185 = vsel %vm5145, %v6816, %v7184
  %v7186 = vsel %vm5148, %v6818, %v7185
  %v7187 = vsel %vm5151, %v6820, %v7186
  %v7188 = vsel %vm5154, %v5008, %v7187
  %v7189 = vsel %vm5157, %v6823, %v7188
  %v7190 = vsel %vm5160, %v6825, %v7189
  %v7191 = vsel %vm5139, %v6827, 0.0
  %v7192 = vsel %vm5142, %v6829, %v7191
  %v7193 = vsel %vm5145, %v6831, %v7192
  %v7194 = vsel %vm5148, %v6833, %v7193
  %v7195 = vsel %vm5151, %v6835, %v7194
  %v7196 = vsel %vm5154, %v6837, %v7195
  %v7197 = vsel %vm5157, %v4954, %v7196
  %v7198 = vsel %vm5160, %v6840, %v7197
  %v7199 = vsel %vm5139, %v6842, 0.0
  %v7200 = vsel %vm5142, %v6844, %v7199
  %v7201 = vsel %vm5145, %v6846, %v7200
  %v7202 = vsel %vm5148, %v6848, %v7201
  %v7203 = vsel %vm5151, %v6850, %v7202
  %v7204 = vsel %vm5154, %v6852, %v7203
  %v7205 = vsel %vm5157, %v4962, %v7204
  %v7206 = vsel %vm5160, %v6855, %v7205
  %v7207 = vsel %vm5139, %v6857, 0.0
  %v7208 = vsel %vm5142, %v6859, %v7207
  %v7209 = vsel %vm5145, %v6861, %v7208
  %v7210 = vsel %vm5148, %v6863, %v7209
  %v7211 = vsel %vm5151, %v6865, %v7210
  %v7212 = vsel %vm5154, %v6867, %v7211
  %v7213 = vsel %vm5157, %v4970, %v7212
  %v7214 = vsel %vm5160, %v6870, %v7213
  %v7215 = vsel %vm5139, %v6872, 0.0
  %v7216 = vsel %vm5142, %v6874, %v7215
  %v7217 = vsel %vm5145, %v6876, %v7216
  %v7218 = vsel %vm5148, %v6878, %v7217
  %v7219 = vsel %vm5151, %v6880, %v7218
  %v7220 = vsel %vm5154, %v6882, %v7219
  %v7221 = vsel %vm5157, %v4978, %v7220
  %v7222 = vsel %vm5160, %v6885, %v7221
  %v7223 = vsel %vm5139, %v6887, 0.0
  %v7224 = vsel %vm5142, %v6889, %v7223
  %v7225 = vsel %vm5145, %v6891, %v7224
  %v7226 = vsel %vm5148, %v6893, %v7225
  %v7227 = vsel %vm5151, %v6895, %v7226
  %v7228 = vsel %vm5154, %v6897, %v7227
  %v7229 = vsel %vm5157, %v4986, %v7228
  %v7230 = vsel %vm5160, %v6900, %v7229
  %v7231 = vsel %vm5139, %v6902, 0.0
  %v7232 = vsel %vm5142, %v6904, %v7231
  %v7233 = vsel %vm5145, %v6906, %v7232
  %v7234 = vsel %vm5148, %v6908, %v7233
  %v7235 = vsel %vm5151, %v6910, %v7234
  %v7236 = vsel %vm5154, %v6912, %v7235
  %v7237 = vsel %vm5157, %v4994, %v7236
  %v7238 = vsel %vm5160, %v6915, %v7237
  %v7239 = vsel %vm5139, %v6917, 0.0
  %v7240 = vsel %vm5142, %v6919, %v7239
  %v7241 = vsel %vm5145, %v6921, %v7240
  %v7242 = vsel %vm5148, %v6923, %v7241
  %v7243 = vsel %vm5151, %v6925, %v7242
  %v7244 = vsel %vm5154, %v6927, %v7243
  %v7245 = vsel %vm5157, %v5002, %v7244
  %v7246 = vsel %vm5160, %v6930, %v7245
  %v7247 = vsel %vm5139, %v6932, 0.0
  %v7248 = vsel %vm5142, %v6934, %v7247
  %v7249 = vsel %vm5145, %v6936, %v7248
  %v7250 = vsel %vm5148, %v6938, %v7249
  %v7251 = vsel %vm5151, %v6940, %v7250
  %v7252 = vsel %vm5154, %v6942, %v7251
  %v7253 = vsel %vm5157, %v5010, %v7252
  %v7254 = vsel %vm5160, %v6945, %v7253
  %v7255 = vsel %vm5139, %v6947, 0.0
  %v7256 = vsel %vm5142, %v6949, %v7255
  %v7257 = vsel %vm5145, %v6951, %v7256
  %v7258 = vsel %vm5148, %v6953, %v7257
  %v7259 = vsel %vm5151, %v6955, %v7258
  %v7260 = vsel %vm5154, %v6957, %v7259
  %v7261 = vsel %vm5157, %v6959, %v7260
  %v7262 = vsel %vm5160, %v4956, %v7261
  %v7263 = vsel %vm5139, %v6962, 0.0
  %v7264 = vsel %vm5142, %v6964, %v7263
  %v7265 = vsel %vm5145, %v6966, %v7264
  %v7266 = vsel %vm5148, %v6968, %v7265
  %v7267 = vsel %vm5151, %v6970, %v7266
  %v7268 = vsel %vm5154, %v6972, %v7267
  %v7269 = vsel %vm5157, %v6974, %v7268
  %v7270 = vsel %vm5160, %v4964, %v7269
  %v7271 = vsel %vm5139, %v6977, 0.0
  %v7272 = vsel %vm5142, %v6979, %v7271
  %v7273 = vsel %vm5145, %v6981, %v7272
  %v7274 = vsel %vm5148, %v6983, %v7273
  %v7275 = vsel %vm5151, %v6985, %v7274
  %v7276 = vsel %vm5154, %v6987, %v7275
  %v7277 = vsel %vm5157, %v6989, %v7276
  %v7278 = vsel %vm5160, %v4972, %v7277
  %v7279 = vsel %vm5139, %v6992, 0.0
  %v7280 = vsel %vm5142, %v6994, %v7279
  %v7281 = vsel %vm5145, %v6996, %v7280
  %v7282 = vsel %vm5148, %v6998, %v7281
  %v7283 = vsel %vm5151, %v7000, %v7282
  %v7284 = vsel %vm5154, %v7002, %v7283
  %v7285 = vsel %vm5157, %v7004, %v7284
  %v7286 = vsel %vm5160, %v4980, %v7285
  %v7287 = vsel %vm5139, %v7007, 0.0
  %v7288 = vsel %vm5142, %v7009, %v7287
  %v7289 = vsel %vm5145, %v7011, %v7288
  %v7290 = vsel %vm5148, %v7013, %v7289
  %v7291 = vsel %vm5151, %v7015, %v7290
  %v7292 = vsel %vm5154, %v7017, %v7291
  %v7293 = vsel %vm5157, %v7019, %v7292
  %v7294 = vsel %vm5160, %v4988, %v7293
  %v7295 = vsel %vm5139, %v7022, 0.0
  %v7296 = vsel %vm5142, %v7024, %v7295
  %v7297 = vsel %vm5145, %v7026, %v7296
  %v7298 = vsel %vm5148, %v7028, %v7297
  %v7299 = vsel %vm5151, %v7030, %v7298
  %v7300 = vsel %vm5154, %v7032, %v7299
  %v7301 = vsel %vm5157, %v7034, %v7300
  %v7302 = vsel %vm5160, %v4996, %v7301
  %v7303 = vsel %vm5139, %v7037, 0.0
  %v7304 = vsel %vm5142, %v7039, %v7303
  %v7305 = vsel %vm5145, %v7041, %v7304
  %v7306 = vsel %vm5148, %v7043, %v7305
  %v7307 = vsel %vm5151, %v7045, %v7306
  %v7308 = vsel %vm5154, %v7047, %v7307
  %v7309 = vsel %vm5157, %v7049, %v7308
  %v7310 = vsel %vm5160, %v5004, %v7309
  %v7311 = vsel %vm5139, %v7052, 0.0
  %v7312 = vsel %vm5142, %v7054, %v7311
  %v7313 = vsel %vm5145, %v7056, %v7312
  %v7314 = vsel %vm5148, %v7058, %v7313
  %v7315 = vsel %vm5151, %v7060, %v7314
  %v7316 = vsel %vm5154, %v7062, %v7315
  %v7317 = vsel %vm5157, %v7064, %v7316
  %v7318 = vsel %vm5160, %v5012, %v7317
  %v7319 = vsel %vm5139, %v5013, 0.0
  %v7320 = vrot.slane %v5014, 7
  %v7321 = vsel %vm5142, %v7320, %v7319
  %v7322 = vrot.slane %v5015, 6
  %v7323 = vsel %vm5145, %v7322, %v7321
  %v7324 = vrot.slane %v5016, 5
  %v7325 = vsel %vm5148, %v7324, %v7323
  %v7326 = vrot.slane %v5017, 4
  %v7327 = vsel %vm5151, %v7326, %v7325
  %v7328 = vrot.slane %v5018, 3
  %v7329 = vsel %vm5154, %v7328, %v7327
  %v7330 = vrot.slane %v5019, 2
  %v7331 = vsel %vm5157, %v7330, %v7329
  %v7332 = vrot.slane %v5020, 1
  %v7333 = vsel %vm5160, %v7332, %v7331
  %v7334 = vsel %vm5139, %v5021, 0.0
  %v7335 = vrot.slane %v5022, 7
  %v7336 = vsel %vm5142, %v7335, %v7334
  %v7337 = vrot.slane %v5023, 6
  %v7338 = vsel %vm5145, %v7337, %v7336
  %v7339 = vrot.slane %v5024, 5
  %v7340 = vsel %vm5148, %v7339, %v7338
  %v7341 = vrot.slane %v5025, 4
  %v7342 = vsel %vm5151, %v7341, %v7340
  %v7343 = vrot.slane %v5026, 3
  %v7344 = vsel %vm5154, %v7343, %v7342
  %v7345 = vrot.slane %v5027, 2
  %v7346 = vsel %vm5157, %v7345, %v7344
  %v7347 = vrot.slane %v5028, 1
  %v7348 = vsel %vm5160, %v7347, %v7346
  %v7349 = vsel %vm5139, %v5029, 0.0
  %v7350 = vrot.slane %v5030, 7
  %v7351 = vsel %vm5142, %v7350, %v7349
  %v7352 = vrot.slane %v5031, 6
  %v7353 = vsel %vm5145, %v7352, %v7351
  %v7354 = vrot.slane %v5032, 5
  %v7355 = vsel %vm5148, %v7354, %v7353
  %v7356 = vrot.slane %v5033, 4
  %v7357 = vsel %vm5151, %v7356, %v7355
  %v7358 = vrot.slane %v5034, 3
  %v7359 = vsel %vm5154, %v7358, %v7357
  %v7360 = vrot.slane %v5035, 2
  %v7361 = vsel %vm5157, %v7360, %v7359
  %v7362 = vrot.slane %v5036, 1
  %v7363 = vsel %vm5160, %v7362, %v7361
  %v7364 = vsel %vm5139, %v5037, 0.0
  %v7365 = vrot.slane %v5038, 7
  %v7366 = vsel %vm5142, %v7365, %v7364
  %v7367 = vrot.slane %v5039, 6
  %v7368 = vsel %vm5145, %v7367, %v7366
  %v7369 = vrot.slane %v5040, 5
  %v7370 = vsel %vm5148, %v7369, %v7368
  %v7371 = vrot.slane %v5041, 4
  %v7372 = vsel %vm5151, %v7371, %v7370
  %v7373 = vrot.slane %v5042, 3
  %v7374 = vsel %vm5154, %v7373, %v7372
  %v7375 = vrot.slane %v5043, 2
  %v7376 = vsel %vm5157, %v7375, %v7374
  %v7377 = vrot.slane %v5044, 1
  %v7378 = vsel %vm5160, %v7377, %v7376
  %v7379 = vsel %vm5139, %v5045, 0.0
  %v7380 = vrot.slane %v5046, 7
  %v7381 = vsel %vm5142, %v7380, %v7379
  %v7382 = vrot.slane %v5047, 6
  %v7383 = vsel %vm5145, %v7382, %v7381
  %v7384 = vrot.slane %v5048, 5
  %v7385 = vsel %vm5148, %v7384, %v7383
  %v7386 = vrot.slane %v5049, 4
  %v7387 = vsel %vm5151, %v7386, %v7385
  %v7388 = vrot.slane %v5050, 3
  %v7389 = vsel %vm5154, %v7388, %v7387
  %v7390 = vrot.slane %v5051, 2
  %v7391 = vsel %vm5157, %v7390, %v7389
  %v7392 = vrot.slane %v5052, 1
  %v7393 = vsel %vm5160, %v7392, %v7391
  %v7394 = vsel %vm5139, %v5053, 0.0
  %v7395 = vrot.slane %v5054, 7
  %v7396 = vsel %vm5142, %v7395, %v7394
  %v7397 = vrot.slane %v5055, 6
  %v7398 = vsel %vm5145, %v7397, %v7396
  %v7399 = vrot.slane %v5056, 5
  %v7400 = vsel %vm5148, %v7399, %v7398
  %v7401 = vrot.slane %v5057, 4
  %v7402 = vsel %vm5151, %v7401, %v7400
  %v7403 = vrot.slane %v5058, 3
  %v7404 = vsel %vm5154, %v7403, %v7402
  %v7405 = vrot.slane %v5059, 2
  %v7406 = vsel %vm5157, %v7405, %v7404
  %v7407 = vrot.slane %v5060, 1
  %v7408 = vsel %vm5160, %v7407, %v7406
  %v7409 = vsel %vm5139, %v5061, 0.0
  %v7410 = vrot.slane %v5062, 7
  %v7411 = vsel %vm5142, %v7410, %v7409
  %v7412 = vrot.slane %v5063, 6
  %v7413 = vsel %vm5145, %v7412, %v7411
  %v7414 = vrot.slane %v5064, 5
  %v7415 = vsel %vm5148, %v7414, %v7413
  %v7416 = vrot.slane %v5065, 4
  %v7417 = vsel %vm5151, %v7416, %v7415
  %v7418 = vrot.slane %v5066, 3
  %v7419 = vsel %vm5154, %v7418, %v7417
  %v7420 = vrot.slane %v5067, 2
  %v7421 = vsel %vm5157, %v7420, %v7419
  %v7422 = vrot.slane %v5068, 1
  %v7423 = vsel %vm5160, %v7422, %v7421
  %v7424 = vsel %vm5139, %v5069, 0.0
  %v7425 = vrot.slane %v5070, 7
  %v7426 = vsel %vm5142, %v7425, %v7424
  %v7427 = vrot.slane %v5071, 6
  %v7428 = vsel %vm5145, %v7427, %v7426
  %v7429 = vrot.slane %v5072, 5
  %v7430 = vsel %vm5148, %v7429, %v7428
  %v7431 = vrot.slane %v5073, 4
  %v7432 = vsel %vm5151, %v7431, %v7430
  %v7433 = vrot.slane %v5074, 3
  %v7434 = vsel %vm5154, %v7433, %v7432
  %v7435 = vrot.slane %v5075, 2
  %v7436 = vsel %vm5157, %v7435, %v7434
  %v7437 = vrot.slane %v5013, 2
  %v7438 = vsel %vm5160, %v7437, %v7436
  %v7439 = vrot.slane %v5014, 1
  %v7440 = vsel %vm5139, %v7439, 0.0
  %v7441 = vsel %vm5142, %v5015, %v7440
  %v7442 = vrot.slane %v5016, 7
  %v7443 = vsel %vm5145, %v7442, %v7441
  %v7444 = vrot.slane %v5017, 6
  %v7445 = vsel %vm5148, %v7444, %v7443
  %v7446 = vrot.slane %v5018, 5
  %v7447 = vsel %vm5151, %v7446, %v7445
  %v7448 = vrot.slane %v5019, 4
  %v7449 = vsel %vm5154, %v7448, %v7447
  %v7450 = vrot.slane %v5020, 3
  %v7451 = vsel %vm5157, %v7450, %v7449
  %v7452 = vrot.slane %v5021, 2
  %v7453 = vsel %vm5160, %v7452, %v7451
  %v7454 = vrot.slane %v5022, 1
  %v7455 = vsel %vm5139, %v7454, 0.0
  %v7456 = vsel %vm5142, %v5023, %v7455
  %v7457 = vrot.slane %v5024, 7
  %v7458 = vsel %vm5145, %v7457, %v7456
  %v7459 = vrot.slane %v5025, 6
  %v7460 = vsel %vm5148, %v7459, %v7458
  %v7461 = vrot.slane %v5026, 5
  %v7462 = vsel %vm5151, %v7461, %v7460
  %v7463 = vrot.slane %v5027, 4
  %v7464 = vsel %vm5154, %v7463, %v7462
  %v7465 = vrot.slane %v5028, 3
  %v7466 = vsel %vm5157, %v7465, %v7464
  %v7467 = vrot.slane %v5029, 2
  %v7468 = vsel %vm5160, %v7467, %v7466
  %v7469 = vrot.slane %v5030, 1
  %v7470 = vsel %vm5139, %v7469, 0.0
  %v7471 = vsel %vm5142, %v5031, %v7470
  %v7472 = vrot.slane %v5032, 7
  %v7473 = vsel %vm5145, %v7472, %v7471
  %v7474 = vrot.slane %v5033, 6
  %v7475 = vsel %vm5148, %v7474, %v7473
  %v7476 = vrot.slane %v5034, 5
  %v7477 = vsel %vm5151, %v7476, %v7475
  %v7478 = vrot.slane %v5035, 4
  %v7479 = vsel %vm5154, %v7478, %v7477
  %v7480 = vrot.slane %v5036, 3
  %v7481 = vsel %vm5157, %v7480, %v7479
  %v7482 = vrot.slane %v5037, 2
  %v7483 = vsel %vm5160, %v7482, %v7481
  %v7484 = vrot.slane %v5038, 1
  %v7485 = vsel %vm5139, %v7484, 0.0
  %v7486 = vsel %vm5142, %v5039, %v7485
  %v7487 = vrot.slane %v5040, 7
  %v7488 = vsel %vm5145, %v7487, %v7486
  %v7489 = vrot.slane %v5041, 6
  %v7490 = vsel %vm5148, %v7489, %v7488
  %v7491 = vrot.slane %v5042, 5
  %v7492 = vsel %vm5151, %v7491, %v7490
  %v7493 = vrot.slane %v5043, 4
  %v7494 = vsel %vm5154, %v7493, %v7492
  %v7495 = vrot.slane %v5044, 3
  %v7496 = vsel %vm5157, %v7495, %v7494
  %v7497 = vrot.slane %v5045, 2
  %v7498 = vsel %vm5160, %v7497, %v7496
  %v7499 = vrot.slane %v5046, 1
  %v7500 = vsel %vm5139, %v7499, 0.0
  %v7501 = vsel %vm5142, %v5047, %v7500
  %v7502 = vrot.slane %v5048, 7
  %v7503 = vsel %vm5145, %v7502, %v7501
  %v7504 = vrot.slane %v5049, 6
  %v7505 = vsel %vm5148, %v7504, %v7503
  %v7506 = vrot.slane %v5050, 5
  %v7507 = vsel %vm5151, %v7506, %v7505
  %v7508 = vrot.slane %v5051, 4
  %v7509 = vsel %vm5154, %v7508, %v7507
  %v7510 = vrot.slane %v5052, 3
  %v7511 = vsel %vm5157, %v7510, %v7509
  %v7512 = vrot.slane %v5053, 2
  %v7513 = vsel %vm5160, %v7512, %v7511
  %v7514 = vrot.slane %v5054, 1
  %v7515 = vsel %vm5139, %v7514, 0.0
  %v7516 = vsel %vm5142, %v5055, %v7515
  %v7517 = vrot.slane %v5056, 7
  %v7518 = vsel %vm5145, %v7517, %v7516
  %v7519 = vrot.slane %v5057, 6
  %v7520 = vsel %vm5148, %v7519, %v7518
  %v7521 = vrot.slane %v5058, 5
  %v7522 = vsel %vm5151, %v7521, %v7520
  %v7523 = vrot.slane %v5059, 4
  %v7524 = vsel %vm5154, %v7523, %v7522
  %v7525 = vrot.slane %v5060, 3
  %v7526 = vsel %vm5157, %v7525, %v7524
  %v7527 = vrot.slane %v5061, 2
  %v7528 = vsel %vm5160, %v7527, %v7526
  %v7529 = vrot.slane %v5062, 1
  %v7530 = vsel %vm5139, %v7529, 0.0
  %v7531 = vsel %vm5142, %v5063, %v7530
  %v7532 = vrot.slane %v5064, 7
  %v7533 = vsel %vm5145, %v7532, %v7531
  %v7534 = vrot.slane %v5065, 6
  %v7535 = vsel %vm5148, %v7534, %v7533
  %v7536 = vrot.slane %v5066, 5
  %v7537 = vsel %vm5151, %v7536, %v7535
  %v7538 = vrot.slane %v5067, 4
  %v7539 = vsel %vm5154, %v7538, %v7537
  %v7540 = vrot.slane %v5068, 3
  %v7541 = vsel %vm5157, %v7540, %v7539
  %v7542 = vrot.slane %v5069, 2
  %v7543 = vsel %vm5160, %v7542, %v7541
  %v7544 = vrot.slane %v5070, 1
  %v7545 = vsel %vm5139, %v7544, 0.0
  %v7546 = vsel %vm5142, %v5071, %v7545
  %v7547 = vrot.slane %v5072, 7
  %v7548 = vsel %vm5145, %v7547, %v7546
  %v7549 = vrot.slane %v5073, 6
  %v7550 = vsel %vm5148, %v7549, %v7548
  %v7551 = vrot.slane %v5074, 5
  %v7552 = vsel %vm5151, %v7551, %v7550
  %v7553 = vrot.slane %v5075, 4
  %v7554 = vsel %vm5154, %v7553, %v7552
  %v7555 = vrot.slane %v5013, 4
  %v7556 = vsel %vm5157, %v7555, %v7554
  %v7557 = vrot.slane %v5014, 3
  %v7558 = vsel %vm5160, %v7557, %v7556
  %v7559 = vrot.slane %v5015, 2
  %v7560 = vsel %vm5139, %v7559, 0.0
  %v7561 = vrot.slane %v5016, 1
  %v7562 = vsel %vm5142, %v7561, %v7560
  %v7563 = vsel %vm5145, %v5017, %v7562
  %v7564 = vrot.slane %v5018, 7
  %v7565 = vsel %vm5148, %v7564, %v7563
  %v7566 = vrot.slane %v5019, 6
  %v7567 = vsel %vm5151, %v7566, %v7565
  %v7568 = vrot.slane %v5020, 5
  %v7569 = vsel %vm5154, %v7568, %v7567
  %v7570 = vrot.slane %v5021, 4
  %v7571 = vsel %vm5157, %v7570, %v7569
  %v7572 = vrot.slane %v5022, 3
  %v7573 = vsel %vm5160, %v7572, %v7571
  %v7574 = vrot.slane %v5023, 2
  %v7575 = vsel %vm5139, %v7574, 0.0
  %v7576 = vrot.slane %v5024, 1
  %v7577 = vsel %vm5142, %v7576, %v7575
  %v7578 = vsel %vm5145, %v5025, %v7577
  %v7579 = vrot.slane %v5026, 7
  %v7580 = vsel %vm5148, %v7579, %v7578
  %v7581 = vrot.slane %v5027, 6
  %v7582 = vsel %vm5151, %v7581, %v7580
  %v7583 = vrot.slane %v5028, 5
  %v7584 = vsel %vm5154, %v7583, %v7582
  %v7585 = vrot.slane %v5029, 4
  %v7586 = vsel %vm5157, %v7585, %v7584
  %v7587 = vrot.slane %v5030, 3
  %v7588 = vsel %vm5160, %v7587, %v7586
  %v7589 = vrot.slane %v5031, 2
  %v7590 = vsel %vm5139, %v7589, 0.0
  %v7591 = vrot.slane %v5032, 1
  %v7592 = vsel %vm5142, %v7591, %v7590
  %v7593 = vsel %vm5145, %v5033, %v7592
  %v7594 = vrot.slane %v5034, 7
  %v7595 = vsel %vm5148, %v7594, %v7593
  %v7596 = vrot.slane %v5035, 6
  %v7597 = vsel %vm5151, %v7596, %v7595
  %v7598 = vrot.slane %v5036, 5
  %v7599 = vsel %vm5154, %v7598, %v7597
  %v7600 = vrot.slane %v5037, 4
  %v7601 = vsel %vm5157, %v7600, %v7599
  %v7602 = vrot.slane %v5038, 3
  %v7603 = vsel %vm5160, %v7602, %v7601
  %v7604 = vrot.slane %v5039, 2
  %v7605 = vsel %vm5139, %v7604, 0.0
  %v7606 = vrot.slane %v5040, 1
  %v7607 = vsel %vm5142, %v7606, %v7605
  %v7608 = vsel %vm5145, %v5041, %v7607
  %v7609 = vrot.slane %v5042, 7
  %v7610 = vsel %vm5148, %v7609, %v7608
  %v7611 = vrot.slane %v5043, 6
  %v7612 = vsel %vm5151, %v7611, %v7610
  %v7613 = vrot.slane %v5044, 5
  %v7614 = vsel %vm5154, %v7613, %v7612
  %v7615 = vrot.slane %v5045, 4
  %v7616 = vsel %vm5157, %v7615, %v7614
  %v7617 = vrot.slane %v5046, 3
  %v7618 = vsel %vm5160, %v7617, %v7616
  %v7619 = vrot.slane %v5047, 2
  %v7620 = vsel %vm5139, %v7619, 0.0
  %v7621 = vrot.slane %v5048, 1
  %v7622 = vsel %vm5142, %v7621, %v7620
  %v7623 = vsel %vm5145, %v5049, %v7622
  %v7624 = vrot.slane %v5050, 7
  %v7625 = vsel %vm5148, %v7624, %v7623
  %v7626 = vrot.slane %v5051, 6
  %v7627 = vsel %vm5151, %v7626, %v7625
  %v7628 = vrot.slane %v5052, 5
  %v7629 = vsel %vm5154, %v7628, %v7627
  %v7630 = vrot.slane %v5053, 4
  %v7631 = vsel %vm5157, %v7630, %v7629
  %v7632 = vrot.slane %v5054, 3
  %v7633 = vsel %vm5160, %v7632, %v7631
  %v7634 = vrot.slane %v5055, 2
  %v7635 = vsel %vm5139, %v7634, 0.0
  %v7636 = vrot.slane %v5056, 1
  %v7637 = vsel %vm5142, %v7636, %v7635
  %v7638 = vsel %vm5145, %v5057, %v7637
  %v7639 = vrot.slane %v5058, 7
  %v7640 = vsel %vm5148, %v7639, %v7638
  %v7641 = vrot.slane %v5059, 6
  %v7642 = vsel %vm5151, %v7641, %v7640
  %v7643 = vrot.slane %v5060, 5
  %v7644 = vsel %vm5154, %v7643, %v7642
  %v7645 = vrot.slane %v5061, 4
  %v7646 = vsel %vm5157, %v7645, %v7644
  %v7647 = vrot.slane %v5062, 3
  %v7648 = vsel %vm5160, %v7647, %v7646
  %v7649 = vrot.slane %v5063, 2
  %v7650 = vsel %vm5139, %v7649, 0.0
  %v7651 = vrot.slane %v5064, 1
  %v7652 = vsel %vm5142, %v7651, %v7650
  %v7653 = vsel %vm5145, %v5065, %v7652
  %v7654 = vrot.slane %v5066, 7
  %v7655 = vsel %vm5148, %v7654, %v7653
  %v7656 = vrot.slane %v5067, 6
  %v7657 = vsel %vm5151, %v7656, %v7655
  %v7658 = vrot.slane %v5068, 5
  %v7659 = vsel %vm5154, %v7658, %v7657
  %v7660 = vrot.slane %v5069, 4
  %v7661 = vsel %vm5157, %v7660, %v7659
  %v7662 = vrot.slane %v5070, 3
  %v7663 = vsel %vm5160, %v7662, %v7661
  %v7664 = vrot.slane %v5071, 2
  %v7665 = vsel %vm5139, %v7664, 0.0
  %v7666 = vrot.slane %v5072, 1
  %v7667 = vsel %vm5142, %v7666, %v7665
  %v7668 = vsel %vm5145, %v5073, %v7667
  %v7669 = vrot.slane %v5074, 7
  %v7670 = vsel %vm5148, %v7669, %v7668
  %v7671 = vrot.slane %v5075, 6
  %v7672 = vsel %vm5151, %v7671, %v7670
  %v7673 = vrot.slane %v5013, 6
  %v7674 = vsel %vm5154, %v7673, %v7672
  %v7675 = vrot.slane %v5014, 5
  %v7676 = vsel %vm5157, %v7675, %v7674
  %v7677 = vrot.slane %v5015, 4
  %v7678 = vsel %vm5160, %v7677, %v7676
  %v7679 = vrot.slane %v5016, 3
  %v7680 = vsel %vm5139, %v7679, 0.0
  %v7681 = vrot.slane %v5017, 2
  %v7682 = vsel %vm5142, %v7681, %v7680
  %v7683 = vrot.slane %v5018, 1
  %v7684 = vsel %vm5145, %v7683, %v7682
  %v7685 = vsel %vm5148, %v5019, %v7684
  %v7686 = vrot.slane %v5020, 7
  %v7687 = vsel %vm5151, %v7686, %v7685
  %v7688 = vrot.slane %v5021, 6
  %v7689 = vsel %vm5154, %v7688, %v7687
  %v7690 = vrot.slane %v5022, 5
  %v7691 = vsel %vm5157, %v7690, %v7689
  %v7692 = vrot.slane %v5023, 4
  %v7693 = vsel %vm5160, %v7692, %v7691
  %v7694 = vrot.slane %v5024, 3
  %v7695 = vsel %vm5139, %v7694, 0.0
  %v7696 = vrot.slane %v5025, 2
  %v7697 = vsel %vm5142, %v7696, %v7695
  %v7698 = vrot.slane %v5026, 1
  %v7699 = vsel %vm5145, %v7698, %v7697
  %v7700 = vsel %vm5148, %v5027, %v7699
  %v7701 = vrot.slane %v5028, 7
  %v7702 = vsel %vm5151, %v7701, %v7700
  %v7703 = vrot.slane %v5029, 6
  %v7704 = vsel %vm5154, %v7703, %v7702
  %v7705 = vrot.slane %v5030, 5
  %v7706 = vsel %vm5157, %v7705, %v7704
  %v7707 = vrot.slane %v5031, 4
  %v7708 = vsel %vm5160, %v7707, %v7706
  %v7709 = vrot.slane %v5032, 3
  %v7710 = vsel %vm5139, %v7709, 0.0
  %v7711 = vrot.slane %v5033, 2
  %v7712 = vsel %vm5142, %v7711, %v7710
  %v7713 = vrot.slane %v5034, 1
  %v7714 = vsel %vm5145, %v7713, %v7712
  %v7715 = vsel %vm5148, %v5035, %v7714
  %v7716 = vrot.slane %v5036, 7
  %v7717 = vsel %vm5151, %v7716, %v7715
  %v7718 = vrot.slane %v5037, 6
  %v7719 = vsel %vm5154, %v7718, %v7717
  %v7720 = vrot.slane %v5038, 5
  %v7721 = vsel %vm5157, %v7720, %v7719
  %v7722 = vrot.slane %v5039, 4
  %v7723 = vsel %vm5160, %v7722, %v7721
  %v7724 = vrot.slane %v5040, 3
  %v7725 = vsel %vm5139, %v7724, 0.0
  %v7726 = vrot.slane %v5041, 2
  %v7727 = vsel %vm5142, %v7726, %v7725
  %v7728 = vrot.slane %v5042, 1
  %v7729 = vsel %vm5145, %v7728, %v7727
  %v7730 = vsel %vm5148, %v5043, %v7729
  %v7731 = vrot.slane %v5044, 7
  %v7732 = vsel %vm5151, %v7731, %v7730
  %v7733 = vrot.slane %v5045, 6
  %v7734 = vsel %vm5154, %v7733, %v7732
  %v7735 = vrot.slane %v5046, 5
  %v7736 = vsel %vm5157, %v7735, %v7734
  %v7737 = vrot.slane %v5047, 4
  %v7738 = vsel %vm5160, %v7737, %v7736
  %v7739 = vrot.slane %v5048, 3
  %v7740 = vsel %vm5139, %v7739, 0.0
  %v7741 = vrot.slane %v5049, 2
  %v7742 = vsel %vm5142, %v7741, %v7740
  %v7743 = vrot.slane %v5050, 1
  %v7744 = vsel %vm5145, %v7743, %v7742
  %v7745 = vsel %vm5148, %v5051, %v7744
  %v7746 = vrot.slane %v5052, 7
  %v7747 = vsel %vm5151, %v7746, %v7745
  %v7748 = vrot.slane %v5053, 6
  %v7749 = vsel %vm5154, %v7748, %v7747
  %v7750 = vrot.slane %v5054, 5
  %v7751 = vsel %vm5157, %v7750, %v7749
  %v7752 = vrot.slane %v5055, 4
  %v7753 = vsel %vm5160, %v7752, %v7751
  %v7754 = vrot.slane %v5056, 3
  %v7755 = vsel %vm5139, %v7754, 0.0
  %v7756 = vrot.slane %v5057, 2
  %v7757 = vsel %vm5142, %v7756, %v7755
  %v7758 = vrot.slane %v5058, 1
  %v7759 = vsel %vm5145, %v7758, %v7757
  %v7760 = vsel %vm5148, %v5059, %v7759
  %v7761 = vrot.slane %v5060, 7
  %v7762 = vsel %vm5151, %v7761, %v7760
  %v7763 = vrot.slane %v5061, 6
  %v7764 = vsel %vm5154, %v7763, %v7762
  %v7765 = vrot.slane %v5062, 5
  %v7766 = vsel %vm5157, %v7765, %v7764
  %v7767 = vrot.slane %v5063, 4
  %v7768 = vsel %vm5160, %v7767, %v7766
  %v7769 = vrot.slane %v5064, 3
  %v7770 = vsel %vm5139, %v7769, 0.0
  %v7771 = vrot.slane %v5065, 2
  %v7772 = vsel %vm5142, %v7771, %v7770
  %v7773 = vrot.slane %v5066, 1
  %v7774 = vsel %vm5145, %v7773, %v7772
  %v7775 = vsel %vm5148, %v5067, %v7774
  %v7776 = vrot.slane %v5068, 7
  %v7777 = vsel %vm5151, %v7776, %v7775
  %v7778 = vrot.slane %v5069, 6
  %v7779 = vsel %vm5154, %v7778, %v7777
  %v7780 = vrot.slane %v5070, 5
  %v7781 = vsel %vm5157, %v7780, %v7779
  %v7782 = vrot.slane %v5071, 4
  %v7783 = vsel %vm5160, %v7782, %v7781
  %v7784 = vrot.slane %v5072, 3
  %v7785 = vsel %vm5139, %v7784, 0.0
  %v7786 = vrot.slane %v5073, 2
  %v7787 = vsel %vm5142, %v7786, %v7785
  %v7788 = vrot.slane %v5074, 1
  %v7789 = vsel %vm5145, %v7788, %v7787
  %v7790 = vsel %vm5148, %v5075, %v7789
  %v7791 = vsel %vm5151, %v5013, %v7790
  %v7792 = vsel %vm5154, %v7320, %v7791
  %v7793 = vsel %vm5157, %v7322, %v7792
  %v7794 = vsel %vm5160, %v7324, %v7793
  %v7795 = vsel %vm5139, %v7326, 0.0
  %v7796 = vsel %vm5142, %v7328, %v7795
  %v7797 = vsel %vm5145, %v7330, %v7796
  %v7798 = vsel %vm5148, %v7332, %v7797
  %v7799 = vsel %vm5151, %v5021, %v7798
  %v7800 = vsel %vm5154, %v7335, %v7799
  %v7801 = vsel %vm5157, %v7337, %v7800
  %v7802 = vsel %vm5160, %v7339, %v7801
  %v7803 = vsel %vm5139, %v7341, 0.0
  %v7804 = vsel %vm5142, %v7343, %v7803
  %v7805 = vsel %vm5145, %v7345, %v7804
  %v7806 = vsel %vm5148, %v7347, %v7805
  %v7807 = vsel %vm5151, %v5029, %v7806
  %v7808 = vsel %vm5154, %v7350, %v7807
  %v7809 = vsel %vm5157, %v7352, %v7808
  %v7810 = vsel %vm5160, %v7354, %v7809
  %v7811 = vsel %vm5139, %v7356, 0.0
  %v7812 = vsel %vm5142, %v7358, %v7811
  %v7813 = vsel %vm5145, %v7360, %v7812
  %v7814 = vsel %vm5148, %v7362, %v7813
  %v7815 = vsel %vm5151, %v5037, %v7814
  %v7816 = vsel %vm5154, %v7365, %v7815
  %v7817 = vsel %vm5157, %v7367, %v7816
  %v7818 = vsel %vm5160, %v7369, %v7817
  %v7819 = vsel %vm5139, %v7371, 0.0
  %v7820 = vsel %vm5142, %v7373, %v7819
  %v7821 = vsel %vm5145, %v7375, %v7820
  %v7822 = vsel %vm5148, %v7377, %v7821
  %v7823 = vsel %vm5151, %v5045, %v7822
  %v7824 = vsel %vm5154, %v7380, %v7823
  %v7825 = vsel %vm5157, %v7382, %v7824
  %v7826 = vsel %vm5160, %v7384, %v7825
  %v7827 = vsel %vm5139, %v7386, 0.0
  %v7828 = vsel %vm5142, %v7388, %v7827
  %v7829 = vsel %vm5145, %v7390, %v7828
  %v7830 = vsel %vm5148, %v7392, %v7829
  %v7831 = vsel %vm5151, %v5053, %v7830
  %v7832 = vsel %vm5154, %v7395, %v7831
  %v7833 = vsel %vm5157, %v7397, %v7832
  %v7834 = vsel %vm5160, %v7399, %v7833
  %v7835 = vsel %vm5139, %v7401, 0.0
  %v7836 = vsel %vm5142, %v7403, %v7835
  %v7837 = vsel %vm5145, %v7405, %v7836
  %v7838 = vsel %vm5148, %v7407, %v7837
  %v7839 = vsel %vm5151, %v5061, %v7838
  %v7840 = vsel %vm5154, %v7410, %v7839
  %v7841 = vsel %vm5157, %v7412, %v7840
  %v7842 = vsel %vm5160, %v7414, %v7841
  %v7843 = vsel %vm5139, %v7416, 0.0
  %v7844 = vsel %vm5142, %v7418, %v7843
  %v7845 = vsel %vm5145, %v7420, %v7844
  %v7846 = vsel %vm5148, %v7422, %v7845
  %v7847 = vsel %vm5151, %v5069, %v7846
  %v7848 = vsel %vm5154, %v7425, %v7847
  %v7849 = vsel %vm5157, %v7427, %v7848
  %v7850 = vsel %vm5160, %v7429, %v7849
  %v7851 = vsel %vm5139, %v7431, 0.0
  %v7852 = vsel %vm5142, %v7433, %v7851
  %v7853 = vsel %vm5145, %v7435, %v7852
  %v7854 = vsel %vm5148, %v7437, %v7853
  %v7855 = vsel %vm5151, %v7439, %v7854
  %v7856 = vsel %vm5154, %v5015, %v7855
  %v7857 = vsel %vm5157, %v7442, %v7856
  %v7858 = vsel %vm5160, %v7444, %v7857
  %v7859 = vsel %vm5139, %v7446, 0.0
  %v7860 = vsel %vm5142, %v7448, %v7859
  %v7861 = vsel %vm5145, %v7450, %v7860
  %v7862 = vsel %vm5148, %v7452, %v7861
  %v7863 = vsel %vm5151, %v7454, %v7862
  %v7864 = vsel %vm5154, %v5023, %v7863
  %v7865 = vsel %vm5157, %v7457, %v7864
  %v7866 = vsel %vm5160, %v7459, %v7865
  %v7867 = vsel %vm5139, %v7461, 0.0
  %v7868 = vsel %vm5142, %v7463, %v7867
  %v7869 = vsel %vm5145, %v7465, %v7868
  %v7870 = vsel %vm5148, %v7467, %v7869
  %v7871 = vsel %vm5151, %v7469, %v7870
  %v7872 = vsel %vm5154, %v5031, %v7871
  %v7873 = vsel %vm5157, %v7472, %v7872
  %v7874 = vsel %vm5160, %v7474, %v7873
  %v7875 = vsel %vm5139, %v7476, 0.0
  %v7876 = vsel %vm5142, %v7478, %v7875
  %v7877 = vsel %vm5145, %v7480, %v7876
  %v7878 = vsel %vm5148, %v7482, %v7877
  %v7879 = vsel %vm5151, %v7484, %v7878
  %v7880 = vsel %vm5154, %v5039, %v7879
  %v7881 = vsel %vm5157, %v7487, %v7880
  %v7882 = vsel %vm5160, %v7489, %v7881
  %v7883 = vsel %vm5139, %v7491, 0.0
  %v7884 = vsel %vm5142, %v7493, %v7883
  %v7885 = vsel %vm5145, %v7495, %v7884
  %v7886 = vsel %vm5148, %v7497, %v7885
  %v7887 = vsel %vm5151, %v7499, %v7886
  %v7888 = vsel %vm5154, %v5047, %v7887
  %v7889 = vsel %vm5157, %v7502, %v7888
  %v7890 = vsel %vm5160, %v7504, %v7889
  %v7891 = vsel %vm5139, %v7506, 0.0
  %v7892 = vsel %vm5142, %v7508, %v7891
  %v7893 = vsel %vm5145, %v7510, %v7892
  %v7894 = vsel %vm5148, %v7512, %v7893
  %v7895 = vsel %vm5151, %v7514, %v7894
  %v7896 = vsel %vm5154, %v5055, %v7895
  %v7897 = vsel %vm5157, %v7517, %v7896
  %v7898 = vsel %vm5160, %v7519, %v7897
  %v7899 = vsel %vm5139, %v7521, 0.0
  %v7900 = vsel %vm5142, %v7523, %v7899
  %v7901 = vsel %vm5145, %v7525, %v7900
  %v7902 = vsel %vm5148, %v7527, %v7901
  %v7903 = vsel %vm5151, %v7529, %v7902
  %v7904 = vsel %vm5154, %v5063, %v7903
  %v7905 = vsel %vm5157, %v7532, %v7904
  %v7906 = vsel %vm5160, %v7534, %v7905
  %v7907 = vsel %vm5139, %v7536, 0.0
  %v7908 = vsel %vm5142, %v7538, %v7907
  %v7909 = vsel %vm5145, %v7540, %v7908
  %v7910 = vsel %vm5148, %v7542, %v7909
  %v7911 = vsel %vm5151, %v7544, %v7910
  %v7912 = vsel %vm5154, %v5071, %v7911
  %v7913 = vsel %vm5157, %v7547, %v7912
  %v7914 = vsel %vm5160, %v7549, %v7913
  %v7915 = vsel %vm5139, %v7551, 0.0
  %v7916 = vsel %vm5142, %v7553, %v7915
  %v7917 = vsel %vm5145, %v7555, %v7916
  %v7918 = vsel %vm5148, %v7557, %v7917
  %v7919 = vsel %vm5151, %v7559, %v7918
  %v7920 = vsel %vm5154, %v7561, %v7919
  %v7921 = vsel %vm5157, %v5017, %v7920
  %v7922 = vsel %vm5160, %v7564, %v7921
  %v7923 = vsel %vm5139, %v7566, 0.0
  %v7924 = vsel %vm5142, %v7568, %v7923
  %v7925 = vsel %vm5145, %v7570, %v7924
  %v7926 = vsel %vm5148, %v7572, %v7925
  %v7927 = vsel %vm5151, %v7574, %v7926
  %v7928 = vsel %vm5154, %v7576, %v7927
  %v7929 = vsel %vm5157, %v5025, %v7928
  %v7930 = vsel %vm5160, %v7579, %v7929
  %v7931 = vsel %vm5139, %v7581, 0.0
  %v7932 = vsel %vm5142, %v7583, %v7931
  %v7933 = vsel %vm5145, %v7585, %v7932
  %v7934 = vsel %vm5148, %v7587, %v7933
  %v7935 = vsel %vm5151, %v7589, %v7934
  %v7936 = vsel %vm5154, %v7591, %v7935
  %v7937 = vsel %vm5157, %v5033, %v7936
  %v7938 = vsel %vm5160, %v7594, %v7937
  %v7939 = vsel %vm5139, %v7596, 0.0
  %v7940 = vsel %vm5142, %v7598, %v7939
  %v7941 = vsel %vm5145, %v7600, %v7940
  %v7942 = vsel %vm5148, %v7602, %v7941
  %v7943 = vsel %vm5151, %v7604, %v7942
  %v7944 = vsel %vm5154, %v7606, %v7943
  %v7945 = vsel %vm5157, %v5041, %v7944
  %v7946 = vsel %vm5160, %v7609, %v7945
  %v7947 = vsel %vm5139, %v7611, 0.0
  %v7948 = vsel %vm5142, %v7613, %v7947
  %v7949 = vsel %vm5145, %v7615, %v7948
  %v7950 = vsel %vm5148, %v7617, %v7949
  %v7951 = vsel %vm5151, %v7619, %v7950
  %v7952 = vsel %vm5154, %v7621, %v7951
  %v7953 = vsel %vm5157, %v5049, %v7952
  %v7954 = vsel %vm5160, %v7624, %v7953
  %v7955 = vsel %vm5139, %v7626, 0.0
  %v7956 = vsel %vm5142, %v7628, %v7955
  %v7957 = vsel %vm5145, %v7630, %v7956
  %v7958 = vsel %vm5148, %v7632, %v7957
  %v7959 = vsel %vm5151, %v7634, %v7958
  %v7960 = vsel %vm5154, %v7636, %v7959
  %v7961 = vsel %vm5157, %v5057, %v7960
  %v7962 = vsel %vm5160, %v7639, %v7961
  %v7963 = vsel %vm5139, %v7641, 0.0
  %v7964 = vsel %vm5142, %v7643, %v7963
  %v7965 = vsel %vm5145, %v7645, %v7964
  %v7966 = vsel %vm5148, %v7647, %v7965
  %v7967 = vsel %vm5151, %v7649, %v7966
  %v7968 = vsel %vm5154, %v7651, %v7967
  %v7969 = vsel %vm5157, %v5065, %v7968
  %v7970 = vsel %vm5160, %v7654, %v7969
  %v7971 = vsel %vm5139, %v7656, 0.0
  %v7972 = vsel %vm5142, %v7658, %v7971
  %v7973 = vsel %vm5145, %v7660, %v7972
  %v7974 = vsel %vm5148, %v7662, %v7973
  %v7975 = vsel %vm5151, %v7664, %v7974
  %v7976 = vsel %vm5154, %v7666, %v7975
  %v7977 = vsel %vm5157, %v5073, %v7976
  %v7978 = vsel %vm5160, %v7669, %v7977
  %v7979 = vsel %vm5139, %v7671, 0.0
  %v7980 = vsel %vm5142, %v7673, %v7979
  %v7981 = vsel %vm5145, %v7675, %v7980
  %v7982 = vsel %vm5148, %v7677, %v7981
  %v7983 = vsel %vm5151, %v7679, %v7982
  %v7984 = vsel %vm5154, %v7681, %v7983
  %v7985 = vsel %vm5157, %v7683, %v7984
  %v7986 = vsel %vm5160, %v5019, %v7985
  %v7987 = vsel %vm5139, %v7686, 0.0
  %v7988 = vsel %vm5142, %v7688, %v7987
  %v7989 = vsel %vm5145, %v7690, %v7988
  %v7990 = vsel %vm5148, %v7692, %v7989
  %v7991 = vsel %vm5151, %v7694, %v7990
  %v7992 = vsel %vm5154, %v7696, %v7991
  %v7993 = vsel %vm5157, %v7698, %v7992
  %v7994 = vsel %vm5160, %v5027, %v7993
  %v7995 = vsel %vm5139, %v7701, 0.0
  %v7996 = vsel %vm5142, %v7703, %v7995
  %v7997 = vsel %vm5145, %v7705, %v7996
  %v7998 = vsel %vm5148, %v7707, %v7997
  %v7999 = vsel %vm5151, %v7709, %v7998
  %v8000 = vsel %vm5154, %v7711, %v7999
  %v8001 = vsel %vm5157, %v7713, %v8000
  %v8002 = vsel %vm5160, %v5035, %v8001
  %v8003 = vsel %vm5139, %v7716, 0.0
  %v8004 = vsel %vm5142, %v7718, %v8003
  %v8005 = vsel %vm5145, %v7720, %v8004
  %v8006 = vsel %vm5148, %v7722, %v8005
  %v8007 = vsel %vm5151, %v7724, %v8006
  %v8008 = vsel %vm5154, %v7726, %v8007
  %v8009 = vsel %vm5157, %v7728, %v8008
  %v8010 = vsel %vm5160, %v5043, %v8009
  %v8011 = vsel %vm5139, %v7731, 0.0
  %v8012 = vsel %vm5142, %v7733, %v8011
  %v8013 = vsel %vm5145, %v7735, %v8012
  %v8014 = vsel %vm5148, %v7737, %v8013
  %v8015 = vsel %vm5151, %v7739, %v8014
  %v8016 = vsel %vm5154, %v7741, %v8015
  %v8017 = vsel %vm5157, %v7743, %v8016
  %v8018 = vsel %vm5160, %v5051, %v8017
  %v8019 = vsel %vm5139, %v7746, 0.0
  %v8020 = vsel %vm5142, %v7748, %v8019
  %v8021 = vsel %vm5145, %v7750, %v8020
  %v8022 = vsel %vm5148, %v7752, %v8021
  %v8023 = vsel %vm5151, %v7754, %v8022
  %v8024 = vsel %vm5154, %v7756, %v8023
  %v8025 = vsel %vm5157, %v7758, %v8024
  %v8026 = vsel %vm5160, %v5059, %v8025
  %v8027 = vsel %vm5139, %v7761, 0.0
  %v8028 = vsel %vm5142, %v7763, %v8027
  %v8029 = vsel %vm5145, %v7765, %v8028
  %v8030 = vsel %vm5148, %v7767, %v8029
  %v8031 = vsel %vm5151, %v7769, %v8030
  %v8032 = vsel %vm5154, %v7771, %v8031
  %v8033 = vsel %vm5157, %v7773, %v8032
  %v8034 = vsel %vm5160, %v5067, %v8033
  %v8035 = vsel %vm5139, %v7776, 0.0
  %v8036 = vsel %vm5142, %v7778, %v8035
  %v8037 = vsel %vm5145, %v7780, %v8036
  %v8038 = vsel %vm5148, %v7782, %v8037
  %v8039 = vsel %vm5151, %v7784, %v8038
  %v8040 = vsel %vm5154, %v7786, %v8039
  %v8041 = vsel %vm5157, %v7788, %v8040
  %v8042 = vsel %vm5160, %v5075, %v8041
  %v8043 = vsel %vm5139, %v5076, 0.0
  %v8044 = vrot.slane %v5077, 7
  %v8045 = vsel %vm5142, %v8044, %v8043
  %v8046 = vrot.slane %v5078, 6
  %v8047 = vsel %vm5145, %v8046, %v8045
  %v8048 = vrot.slane %v5079, 5
  %v8049 = vsel %vm5148, %v8048, %v8047
  %v8050 = vrot.slane %v5080, 4
  %v8051 = vsel %vm5151, %v8050, %v8049
  %v8052 = vrot.slane %v5081, 3
  %v8053 = vsel %vm5154, %v8052, %v8051
  %v8054 = vrot.slane %v5082, 2
  %v8055 = vsel %vm5157, %v8054, %v8053
  %v8056 = vrot.slane %v5083, 1
  %v8057 = vsel %vm5160, %v8056, %v8055
  %v8058 = vsel %vm5139, %v5084, 0.0
  %v8059 = vrot.slane %v5085, 7
  %v8060 = vsel %vm5142, %v8059, %v8058
  %v8061 = vrot.slane %v5086, 6
  %v8062 = vsel %vm5145, %v8061, %v8060
  %v8063 = vrot.slane %v5087, 5
  %v8064 = vsel %vm5148, %v8063, %v8062
  %v8065 = vrot.slane %v5088, 4
  %v8066 = vsel %vm5151, %v8065, %v8064
  %v8067 = vrot.slane %v5089, 3
  %v8068 = vsel %vm5154, %v8067, %v8066
  %v8069 = vrot.slane %v5090, 2
  %v8070 = vsel %vm5157, %v8069, %v8068
  %v8071 = vrot.slane %v5091, 1
  %v8072 = vsel %vm5160, %v8071, %v8070
  %v8073 = vsel %vm5139, %v5092, 0.0
  %v8074 = vrot.slane %v5093, 7
  %v8075 = vsel %vm5142, %v8074, %v8073
  %v8076 = vrot.slane %v5094, 6
  %v8077 = vsel %vm5145, %v8076, %v8075
  %v8078 = vrot.slane %v5095, 5
  %v8079 = vsel %vm5148, %v8078, %v8077
  %v8080 = vrot.slane %v5096, 4
  %v8081 = vsel %vm5151, %v8080, %v8079
  %v8082 = vrot.slane %v5097, 3
  %v8083 = vsel %vm5154, %v8082, %v8081
  %v8084 = vrot.slane %v5098, 2
  %v8085 = vsel %vm5157, %v8084, %v8083
  %v8086 = vrot.slane %v5099, 1
  %v8087 = vsel %vm5160, %v8086, %v8085
  %v8088 = vsel %vm5139, %v5100, 0.0
  %v8089 = vrot.slane %v5101, 7
  %v8090 = vsel %vm5142, %v8089, %v8088
  %v8091 = vrot.slane %v5102, 6
  %v8092 = vsel %vm5145, %v8091, %v8090
  %v8093 = vrot.slane %v5103, 5
  %v8094 = vsel %vm5148, %v8093, %v8092
  %v8095 = vrot.slane %v5104, 4
  %v8096 = vsel %vm5151, %v8095, %v8094
  %v8097 = vrot.slane %v5105, 3
  %v8098 = vsel %vm5154, %v8097, %v8096
  %v8099 = vrot.slane %v5106, 2
  %v8100 = vsel %vm5157, %v8099, %v8098
  %v8101 = vrot.slane %v5107, 1
  %v8102 = vsel %vm5160, %v8101, %v8100
  %v8103 = vsel %vm5139, %v5108, 0.0
  %v8104 = vrot.slane %v5109, 7
  %v8105 = vsel %vm5142, %v8104, %v8103
  %v8106 = vrot.slane %v5110, 6
  %v8107 = vsel %vm5145, %v8106, %v8105
  %v8108 = vrot.slane %v5111, 5
  %v8109 = vsel %vm5148, %v8108, %v8107
  %v8110 = vrot.slane %v5112, 4
  %v8111 = vsel %vm5151, %v8110, %v8109
  %v8112 = vrot.slane %v5113, 3
  %v8113 = vsel %vm5154, %v8112, %v8111
  %v8114 = vrot.slane %v5114, 2
  %v8115 = vsel %vm5157, %v8114, %v8113
  %v8116 = vrot.slane %v5115, 1
  %v8117 = vsel %vm5160, %v8116, %v8115
  %v8118 = vsel %vm5139, %v5116, 0.0
  %v8119 = vrot.slane %v5117, 7
  %v8120 = vsel %vm5142, %v8119, %v8118
  %v8121 = vrot.slane %v5118, 6
  %v8122 = vsel %vm5145, %v8121, %v8120
  %v8123 = vrot.slane %v5119, 5
  %v8124 = vsel %vm5148, %v8123, %v8122
  %v8125 = vrot.slane %v5120, 4
  %v8126 = vsel %vm5151, %v8125, %v8124
  %v8127 = vrot.slane %v5121, 3
  %v8128 = vsel %vm5154, %v8127, %v8126
  %v8129 = vrot.slane %v5122, 2
  %v8130 = vsel %vm5157, %v8129, %v8128
  %v8131 = vrot.slane %v5123, 1
  %v8132 = vsel %vm5160, %v8131, %v8130
  %v8133 = vsel %vm5139, %v5124, 0.0
  %v8134 = vrot.slane %v5125, 7
  %v8135 = vsel %vm5142, %v8134, %v8133
  %v8136 = vrot.slane %v5126, 6
  %v8137 = vsel %vm5145, %v8136, %v8135
  %v8138 = vrot.slane %v5127, 5
  %v8139 = vsel %vm5148, %v8138, %v8137
  %v8140 = vrot.slane %v5128, 4
  %v8141 = vsel %vm5151, %v8140, %v8139
  %v8142 = vrot.slane %v5129, 3
  %v8143 = vsel %vm5154, %v8142, %v8141
  %v8144 = vrot.slane %v5130, 2
  %v8145 = vsel %vm5157, %v8144, %v8143
  %v8146 = vrot.slane %v5131, 1
  %v8147 = vsel %vm5160, %v8146, %v8145
  %v8148 = vsel %vm5139, %v5132, 0.0
  %v8149 = vrot.slane %v5133, 7
  %v8150 = vsel %vm5142, %v8149, %v8148
  %v8151 = vrot.slane %v5134, 6
  %v8152 = vsel %vm5145, %v8151, %v8150
  %v8153 = vrot.slane %v5135, 5
  %v8154 = vsel %vm5148, %v8153, %v8152
  %v8155 = vrot.slane %v5136, 4
  %v8156 = vsel %vm5151, %v8155, %v8154
  %v8157 = vrot.slane %v5137, 3
  %v8158 = vsel %vm5154, %v8157, %v8156
  %v8159 = vrot.slane %v5138, 2
  %v8160 = vsel %vm5157, %v8159, %v8158
  %v8161 = vrot.slane %v5076, 2
  %v8162 = vsel %vm5160, %v8161, %v8160
  %v8163 = vrot.slane %v5077, 1
  %v8164 = vsel %vm5139, %v8163, 0.0
  %v8165 = vsel %vm5142, %v5078, %v8164
  %v8166 = vrot.slane %v5079, 7
  %v8167 = vsel %vm5145, %v8166, %v8165
  %v8168 = vrot.slane %v5080, 6
  %v8169 = vsel %vm5148, %v8168, %v8167
  %v8170 = vrot.slane %v5081, 5
  %v8171 = vsel %vm5151, %v8170, %v8169
  %v8172 = vrot.slane %v5082, 4
  %v8173 = vsel %vm5154, %v8172, %v8171
  %v8174 = vrot.slane %v5083, 3
  %v8175 = vsel %vm5157, %v8174, %v8173
  %v8176 = vrot.slane %v5084, 2
  %v8177 = vsel %vm5160, %v8176, %v8175
  %v8178 = vrot.slane %v5085, 1
  %v8179 = vsel %vm5139, %v8178, 0.0
  %v8180 = vsel %vm5142, %v5086, %v8179
  %v8181 = vrot.slane %v5087, 7
  %v8182 = vsel %vm5145, %v8181, %v8180
  %v8183 = vrot.slane %v5088, 6
  %v8184 = vsel %vm5148, %v8183, %v8182
  %v8185 = vrot.slane %v5089, 5
  %v8186 = vsel %vm5151, %v8185, %v8184
  %v8187 = vrot.slane %v5090, 4
  %v8188 = vsel %vm5154, %v8187, %v8186
  %v8189 = vrot.slane %v5091, 3
  %v8190 = vsel %vm5157, %v8189, %v8188
  %v8191 = vrot.slane %v5092, 2
  %v8192 = vsel %vm5160, %v8191, %v8190
  %v8193 = vrot.slane %v5093, 1
  %v8194 = vsel %vm5139, %v8193, 0.0
  %v8195 = vsel %vm5142, %v5094, %v8194
  %v8196 = vrot.slane %v5095, 7
  %v8197 = vsel %vm5145, %v8196, %v8195
  %v8198 = vrot.slane %v5096, 6
  %v8199 = vsel %vm5148, %v8198, %v8197
  %v8200 = vrot.slane %v5097, 5
  %v8201 = vsel %vm5151, %v8200, %v8199
  %v8202 = vrot.slane %v5098, 4
  %v8203 = vsel %vm5154, %v8202, %v8201
  %v8204 = vrot.slane %v5099, 3
  %v8205 = vsel %vm5157, %v8204, %v8203
  %v8206 = vrot.slane %v5100, 2
  %v8207 = vsel %vm5160, %v8206, %v8205
  %v8208 = vrot.slane %v5101, 1
  %v8209 = vsel %vm5139, %v8208, 0.0
  %v8210 = vsel %vm5142, %v5102, %v8209
  %v8211 = vrot.slane %v5103, 7
  %v8212 = vsel %vm5145, %v8211, %v8210
  %v8213 = vrot.slane %v5104, 6
  %v8214 = vsel %vm5148, %v8213, %v8212
  %v8215 = vrot.slane %v5105, 5
  %v8216 = vsel %vm5151, %v8215, %v8214
  %v8217 = vrot.slane %v5106, 4
  %v8218 = vsel %vm5154, %v8217, %v8216
  %v8219 = vrot.slane %v5107, 3
  %v8220 = vsel %vm5157, %v8219, %v8218
  %v8221 = vrot.slane %v5108, 2
  %v8222 = vsel %vm5160, %v8221, %v8220
  %v8223 = vrot.slane %v5109, 1
  %v8224 = vsel %vm5139, %v8223, 0.0
  %v8225 = vsel %vm5142, %v5110, %v8224
  %v8226 = vrot.slane %v5111, 7
  %v8227 = vsel %vm5145, %v8226, %v8225
  %v8228 = vrot.slane %v5112, 6
  %v8229 = vsel %vm5148, %v8228, %v8227
  %v8230 = vrot.slane %v5113, 5
  %v8231 = vsel %vm5151, %v8230, %v8229
  %v8232 = vrot.slane %v5114, 4
  %v8233 = vsel %vm5154, %v8232, %v8231
  %v8234 = vrot.slane %v5115, 3
  %v8235 = vsel %vm5157, %v8234, %v8233
  %v8236 = vrot.slane %v5116, 2
  %v8237 = vsel %vm5160, %v8236, %v8235
  %v8238 = vrot.slane %v5117, 1
  %v8239 = vsel %vm5139, %v8238, 0.0
  %v8240 = vsel %vm5142, %v5118, %v8239
  %v8241 = vrot.slane %v5119, 7
  %v8242 = vsel %vm5145, %v8241, %v8240
  %v8243 = vrot.slane %v5120, 6
  %v8244 = vsel %vm5148, %v8243, %v8242
  %v8245 = vrot.slane %v5121, 5
  %v8246 = vsel %vm5151, %v8245, %v8244
  %v8247 = vrot.slane %v5122, 4
  %v8248 = vsel %vm5154, %v8247, %v8246
  %v8249 = vrot.slane %v5123, 3
  %v8250 = vsel %vm5157, %v8249, %v8248
  %v8251 = vrot.slane %v5124, 2
  %v8252 = vsel %vm5160, %v8251, %v8250
  %v8253 = vrot.slane %v5125, 1
  %v8254 = vsel %vm5139, %v8253, 0.0
  %v8255 = vsel %vm5142, %v5126, %v8254
  %v8256 = vrot.slane %v5127, 7
  %v8257 = vsel %vm5145, %v8256, %v8255
  %v8258 = vrot.slane %v5128, 6
  %v8259 = vsel %vm5148, %v8258, %v8257
  %v8260 = vrot.slane %v5129, 5
  %v8261 = vsel %vm5151, %v8260, %v8259
  %v8262 = vrot.slane %v5130, 4
  %v8263 = vsel %vm5154, %v8262, %v8261
  %v8264 = vrot.slane %v5131, 3
  %v8265 = vsel %vm5157, %v8264, %v8263
  %v8266 = vrot.slane %v5132, 2
  %v8267 = vsel %vm5160, %v8266, %v8265
  %v8268 = vrot.slane %v5133, 1
  %v8269 = vsel %vm5139, %v8268, 0.0
  %v8270 = vsel %vm5142, %v5134, %v8269
  %v8271 = vrot.slane %v5135, 7
  %v8272 = vsel %vm5145, %v8271, %v8270
  %v8273 = vrot.slane %v5136, 6
  %v8274 = vsel %vm5148, %v8273, %v8272
  %v8275 = vrot.slane %v5137, 5
  %v8276 = vsel %vm5151, %v8275, %v8274
  %v8277 = vrot.slane %v5138, 4
  %v8278 = vsel %vm5154, %v8277, %v8276
  %v8279 = vrot.slane %v5076, 4
  %v8280 = vsel %vm5157, %v8279, %v8278
  %v8281 = vrot.slane %v5077, 3
  %v8282 = vsel %vm5160, %v8281, %v8280
  %v8283 = vrot.slane %v5078, 2
  %v8284 = vsel %vm5139, %v8283, 0.0
  %v8285 = vrot.slane %v5079, 1
  %v8286 = vsel %vm5142, %v8285, %v8284
  %v8287 = vsel %vm5145, %v5080, %v8286
  %v8288 = vrot.slane %v5081, 7
  %v8289 = vsel %vm5148, %v8288, %v8287
  %v8290 = vrot.slane %v5082, 6
  %v8291 = vsel %vm5151, %v8290, %v8289
  %v8292 = vrot.slane %v5083, 5
  %v8293 = vsel %vm5154, %v8292, %v8291
  %v8294 = vrot.slane %v5084, 4
  %v8295 = vsel %vm5157, %v8294, %v8293
  %v8296 = vrot.slane %v5085, 3
  %v8297 = vsel %vm5160, %v8296, %v8295
  %v8298 = vrot.slane %v5086, 2
  %v8299 = vsel %vm5139, %v8298, 0.0
  %v8300 = vrot.slane %v5087, 1
  %v8301 = vsel %vm5142, %v8300, %v8299
  %v8302 = vsel %vm5145, %v5088, %v8301
  %v8303 = vrot.slane %v5089, 7
  %v8304 = vsel %vm5148, %v8303, %v8302
  %v8305 = vrot.slane %v5090, 6
  %v8306 = vsel %vm5151, %v8305, %v8304
  %v8307 = vrot.slane %v5091, 5
  %v8308 = vsel %vm5154, %v8307, %v8306
  %v8309 = vrot.slane %v5092, 4
  %v8310 = vsel %vm5157, %v8309, %v8308
  %v8311 = vrot.slane %v5093, 3
  %v8312 = vsel %vm5160, %v8311, %v8310
  %v8313 = vrot.slane %v5094, 2
  %v8314 = vsel %vm5139, %v8313, 0.0
  %v8315 = vrot.slane %v5095, 1
  %v8316 = vsel %vm5142, %v8315, %v8314
  %v8317 = vsel %vm5145, %v5096, %v8316
  %v8318 = vrot.slane %v5097, 7
  %v8319 = vsel %vm5148, %v8318, %v8317
  %v8320 = vrot.slane %v5098, 6
  %v8321 = vsel %vm5151, %v8320, %v8319
  %v8322 = vrot.slane %v5099, 5
  %v8323 = vsel %vm5154, %v8322, %v8321
  %v8324 = vrot.slane %v5100, 4
  %v8325 = vsel %vm5157, %v8324, %v8323
  %v8326 = vrot.slane %v5101, 3
  %v8327 = vsel %vm5160, %v8326, %v8325
  %v8328 = vrot.slane %v5102, 2
  %v8329 = vsel %vm5139, %v8328, 0.0
  %v8330 = vrot.slane %v5103, 1
  %v8331 = vsel %vm5142, %v8330, %v8329
  %v8332 = vsel %vm5145, %v5104, %v8331
  %v8333 = vrot.slane %v5105, 7
  %v8334 = vsel %vm5148, %v8333, %v8332
  %v8335 = vrot.slane %v5106, 6
  %v8336 = vsel %vm5151, %v8335, %v8334
  %v8337 = vrot.slane %v5107, 5
  %v8338 = vsel %vm5154, %v8337, %v8336
  %v8339 = vrot.slane %v5108, 4
  %v8340 = vsel %vm5157, %v8339, %v8338
  %v8341 = vrot.slane %v5109, 3
  %v8342 = vsel %vm5160, %v8341, %v8340
  %v8343 = vrot.slane %v5110, 2
  %v8344 = vsel %vm5139, %v8343, 0.0
  %v8345 = vrot.slane %v5111, 1
  %v8346 = vsel %vm5142, %v8345, %v8344
  %v8347 = vsel %vm5145, %v5112, %v8346
  %v8348 = vrot.slane %v5113, 7
  %v8349 = vsel %vm5148, %v8348, %v8347
  %v8350 = vrot.slane %v5114, 6
  %v8351 = vsel %vm5151, %v8350, %v8349
  %v8352 = vrot.slane %v5115, 5
  %v8353 = vsel %vm5154, %v8352, %v8351
  %v8354 = vrot.slane %v5116, 4
  %v8355 = vsel %vm5157, %v8354, %v8353
  %v8356 = vrot.slane %v5117, 3
  %v8357 = vsel %vm5160, %v8356, %v8355
  %v8358 = vrot.slane %v5118, 2
  %v8359 = vsel %vm5139, %v8358, 0.0
  %v8360 = vrot.slane %v5119, 1
  %v8361 = vsel %vm5142, %v8360, %v8359
  %v8362 = vsel %vm5145, %v5120, %v8361
  %v8363 = vrot.slane %v5121, 7
  %v8364 = vsel %vm5148, %v8363, %v8362
  %v8365 = vrot.slane %v5122, 6
  %v8366 = vsel %vm5151, %v8365, %v8364
  %v8367 = vrot.slane %v5123, 5
  %v8368 = vsel %vm5154, %v8367, %v8366
  %v8369 = vrot.slane %v5124, 4
  %v8370 = vsel %vm5157, %v8369, %v8368
  %v8371 = vrot.slane %v5125, 3
  %v8372 = vsel %vm5160, %v8371, %v8370
  %v8373 = vrot.slane %v5126, 2
  %v8374 = vsel %vm5139, %v8373, 0.0
  %v8375 = vrot.slane %v5127, 1
  %v8376 = vsel %vm5142, %v8375, %v8374
  %v8377 = vsel %vm5145, %v5128, %v8376
  %v8378 = vrot.slane %v5129, 7
  %v8379 = vsel %vm5148, %v8378, %v8377
  %v8380 = vrot.slane %v5130, 6
  %v8381 = vsel %vm5151, %v8380, %v8379
  %v8382 = vrot.slane %v5131, 5
  %v8383 = vsel %vm5154, %v8382, %v8381
  %v8384 = vrot.slane %v5132, 4
  %v8385 = vsel %vm5157, %v8384, %v8383
  %v8386 = vrot.slane %v5133, 3
  %v8387 = vsel %vm5160, %v8386, %v8385
  %v8388 = vrot.slane %v5134, 2
  %v8389 = vsel %vm5139, %v8388, 0.0
  %v8390 = vrot.slane %v5135, 1
  %v8391 = vsel %vm5142, %v8390, %v8389
  %v8392 = vsel %vm5145, %v5136, %v8391
  %v8393 = vrot.slane %v5137, 7
  %v8394 = vsel %vm5148, %v8393, %v8392
  %v8395 = vrot.slane %v5138, 6
  %v8396 = vsel %vm5151, %v8395, %v8394
  %v8397 = vrot.slane %v5076, 6
  %v8398 = vsel %vm5154, %v8397, %v8396
  %v8399 = vrot.slane %v5077, 5
  %v8400 = vsel %vm5157, %v8399, %v8398
  %v8401 = vrot.slane %v5078, 4
  %v8402 = vsel %vm5160, %v8401, %v8400
  %v8403 = vrot.slane %v5079, 3
  %v8404 = vsel %vm5139, %v8403, 0.0
  %v8405 = vrot.slane %v5080, 2
  %v8406 = vsel %vm5142, %v8405, %v8404
  %v8407 = vrot.slane %v5081, 1
  %v8408 = vsel %vm5145, %v8407, %v8406
  %v8409 = vsel %vm5148, %v5082, %v8408
  %v8410 = vrot.slane %v5083, 7
  %v8411 = vsel %vm5151, %v8410, %v8409
  %v8412 = vrot.slane %v5084, 6
  %v8413 = vsel %vm5154, %v8412, %v8411
  %v8414 = vrot.slane %v5085, 5
  %v8415 = vsel %vm5157, %v8414, %v8413
  %v8416 = vrot.slane %v5086, 4
  %v8417 = vsel %vm5160, %v8416, %v8415
  %v8418 = vrot.slane %v5087, 3
  %v8419 = vsel %vm5139, %v8418, 0.0
  %v8420 = vrot.slane %v5088, 2
  %v8421 = vsel %vm5142, %v8420, %v8419
  %v8422 = vrot.slane %v5089, 1
  %v8423 = vsel %vm5145, %v8422, %v8421
  %v8424 = vsel %vm5148, %v5090, %v8423
  %v8425 = vrot.slane %v5091, 7
  %v8426 = vsel %vm5151, %v8425, %v8424
  %v8427 = vrot.slane %v5092, 6
  %v8428 = vsel %vm5154, %v8427, %v8426
  %v8429 = vrot.slane %v5093, 5
  %v8430 = vsel %vm5157, %v8429, %v8428
  %v8431 = vrot.slane %v5094, 4
  %v8432 = vsel %vm5160, %v8431, %v8430
  %v8433 = vrot.slane %v5095, 3
  %v8434 = vsel %vm5139, %v8433, 0.0
  %v8435 = vrot.slane %v5096, 2
  %v8436 = vsel %vm5142, %v8435, %v8434
  %v8437 = vrot.slane %v5097, 1
  %v8438 = vsel %vm5145, %v8437, %v8436
  %v8439 = vsel %vm5148, %v5098, %v8438
  %v8440 = vrot.slane %v5099, 7
  %v8441 = vsel %vm5151, %v8440, %v8439
  %v8442 = vrot.slane %v5100, 6
  %v8443 = vsel %vm5154, %v8442, %v8441
  %v8444 = vrot.slane %v5101, 5
  %v8445 = vsel %vm5157, %v8444, %v8443
  %v8446 = vrot.slane %v5102, 4
  %v8447 = vsel %vm5160, %v8446, %v8445
  %v8448 = vrot.slane %v5103, 3
  %v8449 = vsel %vm5139, %v8448, 0.0
  %v8450 = vrot.slane %v5104, 2
  %v8451 = vsel %vm5142, %v8450, %v8449
  %v8452 = vrot.slane %v5105, 1
  %v8453 = vsel %vm5145, %v8452, %v8451
  %v8454 = vsel %vm5148, %v5106, %v8453
  %v8455 = vrot.slane %v5107, 7
  %v8456 = vsel %vm5151, %v8455, %v8454
  %v8457 = vrot.slane %v5108, 6
  %v8458 = vsel %vm5154, %v8457, %v8456
  %v8459 = vrot.slane %v5109, 5
  %v8460 = vsel %vm5157, %v8459, %v8458
  %v8461 = vrot.slane %v5110, 4
  %v8462 = vsel %vm5160, %v8461, %v8460
  %v8463 = vrot.slane %v5111, 3
  %v8464 = vsel %vm5139, %v8463, 0.0
  %v8465 = vrot.slane %v5112, 2
  %v8466 = vsel %vm5142, %v8465, %v8464
  %v8467 = vrot.slane %v5113, 1
  %v8468 = vsel %vm5145, %v8467, %v8466
  %v8469 = vsel %vm5148, %v5114, %v8468
  %v8470 = vrot.slane %v5115, 7
  %v8471 = vsel %vm5151, %v8470, %v8469
  %v8472 = vrot.slane %v5116, 6
  %v8473 = vsel %vm5154, %v8472, %v8471
  %v8474 = vrot.slane %v5117, 5
  %v8475 = vsel %vm5157, %v8474, %v8473
  %v8476 = vrot.slane %v5118, 4
  %v8477 = vsel %vm5160, %v8476, %v8475
  %v8478 = vrot.slane %v5119, 3
  %v8479 = vsel %vm5139, %v8478, 0.0
  %v8480 = vrot.slane %v5120, 2
  %v8481 = vsel %vm5142, %v8480, %v8479
  %v8482 = vrot.slane %v5121, 1
  %v8483 = vsel %vm5145, %v8482, %v8481
  %v8484 = vsel %vm5148, %v5122, %v8483
  %v8485 = vrot.slane %v5123, 7
  %v8486 = vsel %vm5151, %v8485, %v8484
  %v8487 = vrot.slane %v5124, 6
  %v8488 = vsel %vm5154, %v8487, %v8486
  %v8489 = vrot.slane %v5125, 5
  %v8490 = vsel %vm5157, %v8489, %v8488
  %v8491 = vrot.slane %v5126, 4
  %v8492 = vsel %vm5160, %v8491, %v8490
  %v8493 = vrot.slane %v5127, 3
  %v8494 = vsel %vm5139, %v8493, 0.0
  %v8495 = vrot.slane %v5128, 2
  %v8496 = vsel %vm5142, %v8495, %v8494
  %v8497 = vrot.slane %v5129, 1
  %v8498 = vsel %vm5145, %v8497, %v8496
  %v8499 = vsel %vm5148, %v5130, %v8498
  %v8500 = vrot.slane %v5131, 7
  %v8501 = vsel %vm5151, %v8500, %v8499
  %v8502 = vrot.slane %v5132, 6
  %v8503 = vsel %vm5154, %v8502, %v8501
  %v8504 = vrot.slane %v5133, 5
  %v8505 = vsel %vm5157, %v8504, %v8503
  %v8506 = vrot.slane %v5134, 4
  %v8507 = vsel %vm5160, %v8506, %v8505
  %v8508 = vrot.slane %v5135, 3
  %v8509 = vsel %vm5139, %v8508, 0.0
  %v8510 = vrot.slane %v5136, 2
  %v8511 = vsel %vm5142, %v8510, %v8509
  %v8512 = vrot.slane %v5137, 1
  %v8513 = vsel %vm5145, %v8512, %v8511
  %v8514 = vsel %vm5148, %v5138, %v8513
  %v8515 = vsel %vm5151, %v5076, %v8514
  %v8516 = vsel %vm5154, %v8044, %v8515
  %v8517 = vsel %vm5157, %v8046, %v8516
  %v8518 = vsel %vm5160, %v8048, %v8517
  %v8519 = vsel %vm5139, %v8050, 0.0
  %v8520 = vsel %vm5142, %v8052, %v8519
  %v8521 = vsel %vm5145, %v8054, %v8520
  %v8522 = vsel %vm5148, %v8056, %v8521
  %v8523 = vsel %vm5151, %v5084, %v8522
  %v8524 = vsel %vm5154, %v8059, %v8523
  %v8525 = vsel %vm5157, %v8061, %v8524
  %v8526 = vsel %vm5160, %v8063, %v8525
  %v8527 = vsel %vm5139, %v8065, 0.0
  %v8528 = vsel %vm5142, %v8067, %v8527
  %v8529 = vsel %vm5145, %v8069, %v8528
  %v8530 = vsel %vm5148, %v8071, %v8529
  %v8531 = vsel %vm5151, %v5092, %v8530
  %v8532 = vsel %vm5154, %v8074, %v8531
  %v8533 = vsel %vm5157, %v8076, %v8532
  %v8534 = vsel %vm5160, %v8078, %v8533
  %v8535 = vsel %vm5139, %v8080, 0.0
  %v8536 = vsel %vm5142, %v8082, %v8535
  %v8537 = vsel %vm5145, %v8084, %v8536
  %v8538 = vsel %vm5148, %v8086, %v8537
  %v8539 = vsel %vm5151, %v5100, %v8538
  %v8540 = vsel %vm5154, %v8089, %v8539
  %v8541 = vsel %vm5157, %v8091, %v8540
  %v8542 = vsel %vm5160, %v8093, %v8541
  %v8543 = vsel %vm5139, %v8095, 0.0
  %v8544 = vsel %vm5142, %v8097, %v8543
  %v8545 = vsel %vm5145, %v8099, %v8544
  %v8546 = vsel %vm5148, %v8101, %v8545
  %v8547 = vsel %vm5151, %v5108, %v8546
  %v8548 = vsel %vm5154, %v8104, %v8547
  %v8549 = vsel %vm5157, %v8106, %v8548
  %v8550 = vsel %vm5160, %v8108, %v8549
  %v8551 = vsel %vm5139, %v8110, 0.0
  %v8552 = vsel %vm5142, %v8112, %v8551
  %v8553 = vsel %vm5145, %v8114, %v8552
  %v8554 = vsel %vm5148, %v8116, %v8553
  %v8555 = vsel %vm5151, %v5116, %v8554
  %v8556 = vsel %vm5154, %v8119, %v8555
  %v8557 = vsel %vm5157, %v8121, %v8556
  %v8558 = vsel %vm5160, %v8123, %v8557
  %v8559 = vsel %vm5139, %v8125, 0.0
  %v8560 = vsel %vm5142, %v8127, %v8559
  %v8561 = vsel %vm5145, %v8129, %v8560
  %v8562 = vsel %vm5148, %v8131, %v8561
  %v8563 = vsel %vm5151, %v5124, %v8562
  %v8564 = vsel %vm5154, %v8134, %v8563
  %v8565 = vsel %vm5157, %v8136, %v8564
  %v8566 = vsel %vm5160, %v8138, %v8565
  %v8567 = vsel %vm5139, %v8140, 0.0
  %v8568 = vsel %vm5142, %v8142, %v8567
  %v8569 = vsel %vm5145, %v8144, %v8568
  %v8570 = vsel %vm5148, %v8146, %v8569
  %v8571 = vsel %vm5151, %v5132, %v8570
  %v8572 = vsel %vm5154, %v8149, %v8571
  %v8573 = vsel %vm5157, %v8151, %v8572
  %v8574 = vsel %vm5160, %v8153, %v8573
  %v8575 = vsel %vm5139, %v8155, 0.0
  %v8576 = vsel %vm5142, %v8157, %v8575
  %v8577 = vsel %vm5145, %v8159, %v8576
  %v8578 = vsel %vm5148, %v8161, %v8577
  %v8579 = vsel %vm5151, %v8163, %v8578
  %v8580 = vsel %vm5154, %v5078, %v8579
  %v8581 = vsel %vm5157, %v8166, %v8580
  %v8582 = vsel %vm5160, %v8168, %v8581
  %v8583 = vsel %vm5139, %v8170, 0.0
  %v8584 = vsel %vm5142, %v8172, %v8583
  %v8585 = vsel %vm5145, %v8174, %v8584
  %v8586 = vsel %vm5148, %v8176, %v8585
  %v8587 = vsel %vm5151, %v8178, %v8586
  %v8588 = vsel %vm5154, %v5086, %v8587
  %v8589 = vsel %vm5157, %v8181, %v8588
  %v8590 = vsel %vm5160, %v8183, %v8589
  %v8591 = vsel %vm5139, %v8185, 0.0
  %v8592 = vsel %vm5142, %v8187, %v8591
  %v8593 = vsel %vm5145, %v8189, %v8592
  %v8594 = vsel %vm5148, %v8191, %v8593
  %v8595 = vsel %vm5151, %v8193, %v8594
  %v8596 = vsel %vm5154, %v5094, %v8595
  %v8597 = vsel %vm5157, %v8196, %v8596
  %v8598 = vsel %vm5160, %v8198, %v8597
  %v8599 = vsel %vm5139, %v8200, 0.0
  %v8600 = vsel %vm5142, %v8202, %v8599
  %v8601 = vsel %vm5145, %v8204, %v8600
  %v8602 = vsel %vm5148, %v8206, %v8601
  %v8603 = vsel %vm5151, %v8208, %v8602
  %v8604 = vsel %vm5154, %v5102, %v8603
  %v8605 = vsel %vm5157, %v8211, %v8604
  %v8606 = vsel %vm5160, %v8213, %v8605
  %v8607 = vsel %vm5139, %v8215, 0.0
  %v8608 = vsel %vm5142, %v8217, %v8607
  %v8609 = vsel %vm5145, %v8219, %v8608
  %v8610 = vsel %vm5148, %v8221, %v8609
  %v8611 = vsel %vm5151, %v8223, %v8610
  %v8612 = vsel %vm5154, %v5110, %v8611
  %v8613 = vsel %vm5157, %v8226, %v8612
  %v8614 = vsel %vm5160, %v8228, %v8613
  %v8615 = vsel %vm5139, %v8230, 0.0
  %v8616 = vsel %vm5142, %v8232, %v8615
  %v8617 = vsel %vm5145, %v8234, %v8616
  %v8618 = vsel %vm5148, %v8236, %v8617
  %v8619 = vsel %vm5151, %v8238, %v8618
  %v8620 = vsel %vm5154, %v5118, %v8619
  %v8621 = vsel %vm5157, %v8241, %v8620
  %v8622 = vsel %vm5160, %v8243, %v8621
  %v8623 = vsel %vm5139, %v8245, 0.0
  %v8624 = vsel %vm5142, %v8247, %v8623
  %v8625 = vsel %vm5145, %v8249, %v8624
  %v8626 = vsel %vm5148, %v8251, %v8625
  %v8627 = vsel %vm5151, %v8253, %v8626
  %v8628 = vsel %vm5154, %v5126, %v8627
  %v8629 = vsel %vm5157, %v8256, %v8628
  %v8630 = vsel %vm5160, %v8258, %v8629
  %v8631 = vsel %vm5139, %v8260, 0.0
  %v8632 = vsel %vm5142, %v8262, %v8631
  %v8633 = vsel %vm5145, %v8264, %v8632
  %v8634 = vsel %vm5148, %v8266, %v8633
  %v8635 = vsel %vm5151, %v8268, %v8634
  %v8636 = vsel %vm5154, %v5134, %v8635
  %v8637 = vsel %vm5157, %v8271, %v8636
  %v8638 = vsel %vm5160, %v8273, %v8637
  %v8639 = vsel %vm5139, %v8275, 0.0
  %v8640 = vsel %vm5142, %v8277, %v8639
  %v8641 = vsel %vm5145, %v8279, %v8640
  %v8642 = vsel %vm5148, %v8281, %v8641
  %v8643 = vsel %vm5151, %v8283, %v8642
  %v8644 = vsel %vm5154, %v8285, %v8643
  %v8645 = vsel %vm5157, %v5080, %v8644
  %v8646 = vsel %vm5160, %v8288, %v8645
  %v8647 = vsel %vm5139, %v8290, 0.0
  %v8648 = vsel %vm5142, %v8292, %v8647
  %v8649 = vsel %vm5145, %v8294, %v8648
  %v8650 = vsel %vm5148, %v8296, %v8649
  %v8651 = vsel %vm5151, %v8298, %v8650
  %v8652 = vsel %vm5154, %v8300, %v8651
  %v8653 = vsel %vm5157, %v5088, %v8652
  %v8654 = vsel %vm5160, %v8303, %v8653
  %v8655 = vsel %vm5139, %v8305, 0.0
  %v8656 = vsel %vm5142, %v8307, %v8655
  %v8657 = vsel %vm5145, %v8309, %v8656
  %v8658 = vsel %vm5148, %v8311, %v8657
  %v8659 = vsel %vm5151, %v8313, %v8658
  %v8660 = vsel %vm5154, %v8315, %v8659
  %v8661 = vsel %vm5157, %v5096, %v8660
  %v8662 = vsel %vm5160, %v8318, %v8661
  %v8663 = vsel %vm5139, %v8320, 0.0
  %v8664 = vsel %vm5142, %v8322, %v8663
  %v8665 = vsel %vm5145, %v8324, %v8664
  %v8666 = vsel %vm5148, %v8326, %v8665
  %v8667 = vsel %vm5151, %v8328, %v8666
  %v8668 = vsel %vm5154, %v8330, %v8667
  %v8669 = vsel %vm5157, %v5104, %v8668
  %v8670 = vsel %vm5160, %v8333, %v8669
  %v8671 = vsel %vm5139, %v8335, 0.0
  %v8672 = vsel %vm5142, %v8337, %v8671
  %v8673 = vsel %vm5145, %v8339, %v8672
  %v8674 = vsel %vm5148, %v8341, %v8673
  %v8675 = vsel %vm5151, %v8343, %v8674
  %v8676 = vsel %vm5154, %v8345, %v8675
  %v8677 = vsel %vm5157, %v5112, %v8676
  %v8678 = vsel %vm5160, %v8348, %v8677
  %v8679 = vsel %vm5139, %v8350, 0.0
  %v8680 = vsel %vm5142, %v8352, %v8679
  %v8681 = vsel %vm5145, %v8354, %v8680
  %v8682 = vsel %vm5148, %v8356, %v8681
  %v8683 = vsel %vm5151, %v8358, %v8682
  %v8684 = vsel %vm5154, %v8360, %v8683
  %v8685 = vsel %vm5157, %v5120, %v8684
  %v8686 = vsel %vm5160, %v8363, %v8685
  %v8687 = vsel %vm5139, %v8365, 0.0
  %v8688 = vsel %vm5142, %v8367, %v8687
  %v8689 = vsel %vm5145, %v8369, %v8688
  %v8690 = vsel %vm5148, %v8371, %v8689
  %v8691 = vsel %vm5151, %v8373, %v8690
  %v8692 = vsel %vm5154, %v8375, %v8691
  %v8693 = vsel %vm5157, %v5128, %v8692
  %v8694 = vsel %vm5160, %v8378, %v8693
  %v8695 = vsel %vm5139, %v8380, 0.0
  %v8696 = vsel %vm5142, %v8382, %v8695
  %v8697 = vsel %vm5145, %v8384, %v8696
  %v8698 = vsel %vm5148, %v8386, %v8697
  %v8699 = vsel %vm5151, %v8388, %v8698
  %v8700 = vsel %vm5154, %v8390, %v8699
  %v8701 = vsel %vm5157, %v5136, %v8700
  %v8702 = vsel %vm5160, %v8393, %v8701
  %v8703 = vsel %vm5139, %v8395, 0.0
  %v8704 = vsel %vm5142, %v8397, %v8703
  %v8705 = vsel %vm5145, %v8399, %v8704
  %v8706 = vsel %vm5148, %v8401, %v8705
  %v8707 = vsel %vm5151, %v8403, %v8706
  %v8708 = vsel %vm5154, %v8405, %v8707
  %v8709 = vsel %vm5157, %v8407, %v8708
  %v8710 = vsel %vm5160, %v5082, %v8709
  %v8711 = vsel %vm5139, %v8410, 0.0
  %v8712 = vsel %vm5142, %v8412, %v8711
  %v8713 = vsel %vm5145, %v8414, %v8712
  %v8714 = vsel %vm5148, %v8416, %v8713
  %v8715 = vsel %vm5151, %v8418, %v8714
  %v8716 = vsel %vm5154, %v8420, %v8715
  %v8717 = vsel %vm5157, %v8422, %v8716
  %v8718 = vsel %vm5160, %v5090, %v8717
  %v8719 = vsel %vm5139, %v8425, 0.0
  %v8720 = vsel %vm5142, %v8427, %v8719
  %v8721 = vsel %vm5145, %v8429, %v8720
  %v8722 = vsel %vm5148, %v8431, %v8721
  %v8723 = vsel %vm5151, %v8433, %v8722
  %v8724 = vsel %vm5154, %v8435, %v8723
  %v8725 = vsel %vm5157, %v8437, %v8724
  %v8726 = vsel %vm5160, %v5098, %v8725
  %v8727 = vsel %vm5139, %v8440, 0.0
  %v8728 = vsel %vm5142, %v8442, %v8727
  %v8729 = vsel %vm5145, %v8444, %v8728
  %v8730 = vsel %vm5148, %v8446, %v8729
  %v8731 = vsel %vm5151, %v8448, %v8730
  %v8732 = vsel %vm5154, %v8450, %v8731
  %v8733 = vsel %vm5157, %v8452, %v8732
  %v8734 = vsel %vm5160, %v5106, %v8733
  %v8735 = vsel %vm5139, %v8455, 0.0
  %v8736 = vsel %vm5142, %v8457, %v8735
  %v8737 = vsel %vm5145, %v8459, %v8736
  %v8738 = vsel %vm5148, %v8461, %v8737
  %v8739 = vsel %vm5151, %v8463, %v8738
  %v8740 = vsel %vm5154, %v8465, %v8739
  %v8741 = vsel %vm5157, %v8467, %v8740
  %v8742 = vsel %vm5160, %v5114, %v8741
  %v8743 = vsel %vm5139, %v8470, 0.0
  %v8744 = vsel %vm5142, %v8472, %v8743
  %v8745 = vsel %vm5145, %v8474, %v8744
  %v8746 = vsel %vm5148, %v8476, %v8745
  %v8747 = vsel %vm5151, %v8478, %v8746
  %v8748 = vsel %vm5154, %v8480, %v8747
  %v8749 = vsel %vm5157, %v8482, %v8748
  %v8750 = vsel %vm5160, %v5122, %v8749
  %v8751 = vsel %vm5139, %v8485, 0.0
  %v8752 = vsel %vm5142, %v8487, %v8751
  %v8753 = vsel %vm5145, %v8489, %v8752
  %v8754 = vsel %vm5148, %v8491, %v8753
  %v8755 = vsel %vm5151, %v8493, %v8754
  %v8756 = vsel %vm5154, %v8495, %v8755
  %v8757 = vsel %vm5157, %v8497, %v8756
  %v8758 = vsel %vm5160, %v5130, %v8757
  %v8759 = vsel %vm5139, %v8500, 0.0
  %v8760 = vsel %vm5142, %v8502, %v8759
  %v8761 = vsel %vm5145, %v8504, %v8760
  %v8762 = vsel %vm5148, %v8506, %v8761
  %v8763 = vsel %vm5151, %v8508, %v8762
  %v8764 = vsel %vm5154, %v8510, %v8763
  %v8765 = vsel %vm5157, %v8512, %v8764
  %v8766 = vsel %vm5160, %v5138, %v8765
  %v8767 = vpack.c.bf16 %v5176, %v5161
  %v8768 = vpack.c.bf16 %v5206, %v5191
  %v8769 = vpack.c.bf16 %v5236, %v5221
  %v8770 = vpack.c.bf16 %v5266, %v5251
  %v8771 = vpack.c.bf16 %v5296, %v5281
  %v8772 = vpack.c.bf16 %v5326, %v5311
  %v8773 = vpack.c.bf16 %v5356, %v5341
  %v8774 = vpack.c.bf16 %v5386, %v5371
  %v8775 = vpack.c.bf16 %v5416, %v5401
  %v8776 = vpack.c.bf16 %v5446, %v5431
  %v8777 = vpack.c.bf16 %v5476, %v5461
  %v8778 = vpack.c.bf16 %v5506, %v5491
  %v8779 = vpack.c.bf16 %v5536, %v5521
  %v8780 = vpack.c.bf16 %v5566, %v5551
  %v8781 = vpack.c.bf16 %v5596, %v5581
  %v8782 = vpack.c.bf16 %v5622, %v5611
  %v8783 = vpack.c.bf16 %v5638, %v5630
  %v8784 = vpack.c.bf16 %v5654, %v5646
  %v8785 = vpack.c.bf16 %v5670, %v5662
  %v8786 = vpack.c.bf16 %v5686, %v5678
  %v8787 = vpack.c.bf16 %v5702, %v5694
  %v8788 = vpack.c.bf16 %v5718, %v5710
  %v8789 = vpack.c.bf16 %v5734, %v5726
  %v8790 = vpack.c.bf16 %v5750, %v5742
  %v8791 = vpack.c.bf16 %v5766, %v5758
  %v8792 = vpack.c.bf16 %v5782, %v5774
  %v8793 = vpack.c.bf16 %v5798, %v5790
  %v8794 = vpack.c.bf16 %v5814, %v5806
  %v8795 = vpack.c.bf16 %v5830, %v5822
  %v8796 = vpack.c.bf16 %v5846, %v5838
  %v8797 = vpack.c.bf16 %v5862, %v5854
  %v8798 = vpack.c.bf16 %v5885, %v5870
  %v8799 = vpack.c.bf16 %v5915, %v5900
  %v8800 = vpack.c.bf16 %v5945, %v5930
  %v8801 = vpack.c.bf16 %v5975, %v5960
  %v8802 = vpack.c.bf16 %v6005, %v5990
  %v8803 = vpack.c.bf16 %v6035, %v6020
  %v8804 = vpack.c.bf16 %v6065, %v6050
  %v8805 = vpack.c.bf16 %v6095, %v6080
  %v8806 = vpack.c.bf16 %v6125, %v6110
  %v8807 = vpack.c.bf16 %v6155, %v6140
  %v8808 = vpack.c.bf16 %v6185, %v6170
  %v8809 = vpack.c.bf16 %v6215, %v6200
  %v8810 = vpack.c.bf16 %v6245, %v6230
  %v8811 = vpack.c.bf16 %v6275, %v6260
  %v8812 = vpack.c.bf16 %v6305, %v6290
  %v8813 = vpack.c.bf16 %v6335, %v6320
  %v8814 = vpack.c.bf16 %v6354, %v6346
  %v8815 = vpack.c.bf16 %v6370, %v6362
  %v8816 = vpack.c.bf16 %v6386, %v6378
  %v8817 = vpack.c.bf16 %v6402, %v6394
  %v8818 = vpack.c.bf16 %v6418, %v6410
  %v8819 = vpack.c.bf16 %v6434, %v6426
  %v8820 = vpack.c.bf16 %v6450, %v6442
  %v8821 = vpack.c.bf16 %v6466, %v6458
  %v8822 = vpack.c.bf16 %v6482, %v6474
  %v8823 = vpack.c.bf16 %v6498, %v6490
  %v8824 = vpack.c.bf16 %v6514, %v6506
  %v8825 = vpack.c.bf16 %v6530, %v6522
  %v8826 = vpack.c.bf16 %v6546, %v6538
  %v8827 = vpack.c.bf16 %v6562, %v6554
  %v8828 = vpack.c.bf16 %v6578, %v6570
  %v8829 = vpack.c.bf16 %v6594, %v6586
  %v8830 = vpack.c.bf16 %v6624, %v6609
  %v8831 = vpack.c.bf16 %v6654, %v6639
  %v8832 = vpack.c.bf16 %v6684, %v6669
  %v8833 = vpack.c.bf16 %v6714, %v6699
  %v8834 = vpack.c.bf16 %v6744, %v6729
  %v8835 = vpack.c.bf16 %v6774, %v6759
  %v8836 = vpack.c.bf16 %v6804, %v6789
  %v8837 = vpack.c.bf16 %v6834, %v6819
  %v8838 = vpack.c.bf16 %v6864, %v6849
  %v8839 = vpack.c.bf16 %v6894, %v6879
  %v8840 = vpack.c.bf16 %v6924, %v6909
  %v8841 = vpack.c.bf16 %v6954, %v6939
  %v8842 = vpack.c.bf16 %v6984, %v6969
  %v8843 = vpack.c.bf16 %v7014, %v6999
  %v8844 = vpack.c.bf16 %v7044, %v7029
  %v8845 = vpack.c.bf16 %v7070, %v7059
  %v8846 = vpack.c.bf16 %v7086, %v7078
  %v8847 = vpack.c.bf16 %v7102, %v7094
  %v8848 = vpack.c.bf16 %v7118, %v7110
  %v8849 = vpack.c.bf16 %v7134, %v7126
  %v8850 = vpack.c.bf16 %v7150, %v7142
  %v8851 = vpack.c.bf16 %v7166, %v7158
  %v8852 = vpack.c.bf16 %v7182, %v7174
  %v8853 = vpack.c.bf16 %v7198, %v7190
  %v8854 = vpack.c.bf16 %v7214, %v7206
  %v8855 = vpack.c.bf16 %v7230, %v7222
  %v8856 = vpack.c.bf16 %v7246, %v7238
  %v8857 = vpack.c.bf16 %v7262, %v7254
  %v8858 = vpack.c.bf16 %v7278, %v7270
  %v8859 = vpack.c.bf16 %v7294, %v7286
  %v8860 = vpack.c.bf16 %v7310, %v7302
  %v8861 = vpack.c.bf16 %v7333, %v7318
  %v8862 = vpack.c.bf16 %v7363, %v7348
  %v8863 = vpack.c.bf16 %v7393, %v7378
  %v8864 = vpack.c.bf16 %v7423, %v7408
  %v8865 = vpack.c.bf16 %v7453, %v7438
  %v8866 = vpack.c.bf16 %v7483, %v7468
  %v8867 = vpack.c.bf16 %v7513, %v7498
  %v8868 = vpack.c.bf16 %v7543, %v7528
  %v8869 = vpack.c.bf16 %v7573, %v7558
  %v8870 = vpack.c.bf16 %v7603, %v7588
  %v8871 = vpack.c.bf16 %v7633, %v7618
  %v8872 = vpack.c.bf16 %v7663, %v7648
  %v8873 = vpack.c.bf16 %v7693, %v7678
  %v8874 = vpack.c.bf16 %v7723, %v7708
  %v8875 = vpack.c.bf16 %v7753, %v7738
  %v8876 = vpack.c.bf16 %v7783, %v7768
  %v8877 = vpack.c.bf16 %v7802, %v7794
  %v8878 = vpack.c.bf16 %v7818, %v7810
  %v8879 = vpack.c.bf16 %v7834, %v7826
  %v8880 = vpack.c.bf16 %v7850, %v7842
  %v8881 = vpack.c.bf16 %v7866, %v7858
  %v8882 = vpack.c.bf16 %v7882, %v7874
  %v8883 = vpack.c.bf16 %v7898, %v7890
  %v8884 = vpack.c.bf16 %v7914, %v7906
  %v8885 = vpack.c.bf16 %v7930, %v7922
  %v8886 = vpack.c.bf16 %v7946, %v7938
  %v8887 = vpack.c.bf16 %v7962, %v7954
  %v8888 = vpack.c.bf16 %v7978, %v7970
  %v8889 = vpack.c.bf16 %v7994, %v7986
  %v8890 = vpack.c.bf16 %v8010, %v8002
  %v8891 = vpack.c.bf16 %v8026, %v8018
  %v8892 = vpack.c.bf16 %v8042, %v8034
  %v8893 = vpack.c.bf16 %v8072, %v8057
  %v8894 = vpack.c.bf16 %v8102, %v8087
  %v8895 = vpack.c.bf16 %v8132, %v8117
  %v8896 = vpack.c.bf16 %v8162, %v8147
  %v8897 = vpack.c.bf16 %v8192, %v8177
  %v8898 = vpack.c.bf16 %v8222, %v8207
  %v8899 = vpack.c.bf16 %v8252, %v8237
  %v8900 = vpack.c.bf16 %v8282, %v8267
  %v8901 = vpack.c.bf16 %v8312, %v8297
  %v8902 = vpack.c.bf16 %v8342, %v8327
  %v8903 = vpack.c.bf16 %v8372, %v8357
  %v8904 = vpack.c.bf16 %v8402, %v8387
  %v8905 = vpack.c.bf16 %v8432, %v8417
  %v8906 = vpack.c.bf16 %v8462, %v8447
  %v8907 = vpack.c.bf16 %v8492, %v8477
  %v8908 = vpack.c.bf16 %v8518, %v8507
  %v8909 = vpack.c.bf16 %v8534, %v8526
  %v8910 = vpack.c.bf16 %v8550, %v8542
  %v8911 = vpack.c.bf16 %v8566, %v8558
  %v8912 = vpack.c.bf16 %v8582, %v8574
  %v8913 = vpack.c.bf16 %v8598, %v8590
  %v8914 = vpack.c.bf16 %v8614, %v8606
  %v8915 = vpack.c.bf16 %v8630, %v8622
  %v8916 = vpack.c.bf16 %v8646, %v8638
  %v8917 = vpack.c.bf16 %v8662, %v8654
  %v8918 = vpack.c.bf16 %v8678, %v8670
  %v8919 = vpack.c.bf16 %v8694, %v8686
  %v8920 = vpack.c.bf16 %v8710, %v8702
  %v8921 = vpack.c.bf16 %v8726, %v8718
  %v8922 = vpack.c.bf16 %v8742, %v8734
  %v8923 = vpack.c.bf16 %v8758, %v8750
  %v8924 = vpack.c.bf16 %v8766, %v8766
  %v8925 = vld [vmem:[%s3] sm:$0xff]
  %v8926 = vld [vmem:[%s3 + $0x8] sm:$0xff]
  %v8927 = vld [vmem:[%s3 + $0x10] sm:$0xff]
  %v8928 = vld [vmem:[%s3 + $0x18] sm:$0xff]
  %v8929 = vld [vmem:[%s3 + $0x20] sm:$0xff]
  %v8930 = vld [vmem:[%s3 + $0x28] sm:$0xff]
  %v8931 = vld [vmem:[%s3 + $0x30] sm:$0xff]
  %v8932 = vld [vmem:[%s3 + $0x38] sm:$0xff]
  %v8933 = vld [vmem:[%s3 + $0x40] sm:$0xff]
  %v8934 = vld [vmem:[%s3 + $0x48] sm:$0xff]
  %v8935 = vld [vmem:[%s3 + $0x50] sm:$0xff]
  %v8936 = vld [vmem:[%s3 + $0x58] sm:$0xff]
  %v8937 = vld [vmem:[%s3 + $0x60] sm:$0xff]
  %v8938 = vld [vmem:[%s3 + $0x68] sm:$0xff]
  %v8939 = vld [vmem:[%s3 + $0x70] sm:$0xff]
  %v8940 = vld [vmem:[%s3 + $0x78] sm:$0xff]
  %v8941 = vld [vmem:[%s3 + $0x80] sm:$0xff]
  %v8942 = vld [vmem:[%s3 + $0x88] sm:$0xff]
  %v8943 = vld [vmem:[%s3 + $0x90] sm:$0xff]
  %v8944 = vld [vmem:[%s3 + $0x98] sm:$0xff]
  %v8945 = vld [vmem:[%s3 + $0xa0] sm:$0xff]
  %v8946 = vld [vmem:[%s3 + $0xa8] sm:$0xff]
  %v8947 = vld [vmem:[%s3 + $0xb0] sm:$0xff]
  %v8948 = vld [vmem:[%s3 + $0xb8] sm:$0xff]
  %v8949 = vld [vmem:[%s3 + $0xc0] sm:$0xff]
  %v8950 = vld [vmem:[%s3 + $0xc8] sm:$0xff]
  %v8951 = vld [vmem:[%s3 + $0xd0] sm:$0xff]
  %v8952 = vld [vmem:[%s3 + $0xd8] sm:$0xff]
  %v8953 = vld [vmem:[%s3 + $0xe0] sm:$0xff]
  %v8954 = vld [vmem:[%s3 + $0xe8] sm:$0xff]
  %v8955 = vld [vmem:[%s3 + $0xf0] sm:$0xff]
  %v8956 = vld [vmem:[%s3 + $0xf8] sm:$0xff]
  %v8957 = vld [vmem:[%s3 + $0x100] sm:$0xff]
  %v8958 = vld [vmem:[%s3 + $0x108] sm:$0xff]
  %v8959 = vld [vmem:[%s3 + $0x110] sm:$0xff]
  %v8960 = vld [vmem:[%s3 + $0x118] sm:$0xff]
  %v8961 = vld [vmem:[%s3 + $0x120] sm:$0xff]
  %v8962 = vld [vmem:[%s3 + $0x128] sm:$0xff]
  %v8963 = vld [vmem:[%s3 + $0x130] sm:$0xff]
  %v8964 = vld [vmem:[%s3 + $0x138] sm:$0xff]
  %v8965 = vld [vmem:[%s3 + $0x140] sm:$0xff]
  %v8966 = vld [vmem:[%s3 + $0x148] sm:$0xff]
  %v8967 = vld [vmem:[%s3 + $0x150] sm:$0xff]
  %v8968 = vld [vmem:[%s3 + $0x158] sm:$0xff]
  %v8969 = vld [vmem:[%s3 + $0x160] sm:$0xff]
  %v8970 = vld [vmem:[%s3 + $0x168] sm:$0xff]
  %v8971 = vld [vmem:[%s3 + $0x170] sm:$0xff]
  %v8972 = vld [vmem:[%s3 + $0x178] sm:$0xff]
  %v8973 = vld [vmem:[%s3 + $0x180] sm:$0xff]
  %v8974 = vld [vmem:[%s3 + $0x188] sm:$0xff]
  %v8975 = vld [vmem:[%s4] sm:$0xff]
  %v8976 = vld [vmem:[%s4 + $0x8] sm:$0xff]
  %v8977 = vld [vmem:[%s4 + $0x10] sm:$0xff]
  %v8978 = vld [vmem:[%s4 + $0x18] sm:$0xff]
  %v8979 = vld [vmem:[%s4 + $0x20] sm:$0xff]
  %8981 = vset.pattern.permute.xlu0 0
  %8982 = vperm.xlu0 %8981, %v8975
  %v8983 = vpop.permute.xlu0 %8982
  %8986 = vset.pattern.permute.xlu0 0
  %8987 = vperm.xlu0 %8986, %v8976
  %v8988 = vpop.permute.xlu0 %8987
  %8991 = vset.pattern.permute.xlu0 0
  %8992 = vperm.xlu0 %8991, %v8977
  %v8993 = vpop.permute.xlu0 %8992
  %8996 = vset.pattern.permute.xlu0 0
  %8997 = vperm.xlu0 %8996, %v8978
  %v8998 = vpop.permute.xlu0 %8997
  %9001 = vset.pattern.permute.xlu0 0
  %9002 = vperm.xlu0 %9001, %v8979
  %v9003 = vpop.permute.xlu0 %9002
  %v9055 = vunpack.c.l.b16 %v8925
  %v9056 = vunpack.c.h.b16 %v8925
  %v9057 = vunpack.c.l.b16 %v8926
  %v9058 = vunpack.c.h.b16 %v8926
  %v9059 = vunpack.c.l.b16 %v8927
  %v9060 = vunpack.c.h.b16 %v8927
  %v9061 = vunpack.c.l.b16 %v8928
  %v9062 = vunpack.c.h.b16 %v8928
  %v9063 = vunpack.c.l.b16 %v8929
  %v9064 = vunpack.c.h.b16 %v8929
  %v9065 = vunpack.c.l.b16 %v8930
  %v9066 = vunpack.c.h.b16 %v8930
  %v9067 = vunpack.c.l.b16 %v8931
  %v9068 = vunpack.c.h.b16 %v8931
  %v9069 = vunpack.c.l.b16 %v8932
  %v9070 = vunpack.c.h.b16 %v8932
  %v9071 = vunpack.c.l.b16 %v8933
  %v9072 = vunpack.c.h.b16 %v8933
  %v9073 = vunpack.c.l.b16 %v8934
  %v9074 = vunpack.c.h.b16 %v8934
  %v9075 = vunpack.c.l.b16 %v8935
  %v9076 = vunpack.c.h.b16 %v8935
  %v9077 = vunpack.c.l.b16 %v8936
  %v9078 = vunpack.c.h.b16 %v8936
  %v9079 = vunpack.c.l.b16 %v8937
  %v9080 = vunpack.c.h.b16 %v8937
  %v9081 = vunpack.c.l.b16 %v8938
  %v9082 = vunpack.c.h.b16 %v8938
  %v9083 = vunpack.c.l.b16 %v8939
  %v9084 = vunpack.c.h.b16 %v8939
  %v9085 = vunpack.c.l.b16 %v8940
  %v9086 = vunpack.c.h.b16 %v8940
  %v9087 = vunpack.c.l.b16 %v8941
  %v9088 = vunpack.c.h.b16 %v8941
  %v9089 = vunpack.c.l.b16 %v8942
  %v9090 = vunpack.c.h.b16 %v8942
  %v9091 = vunpack.c.l.b16 %v8943
  %v9092 = vunpack.c.h.b16 %v8943
  %v9093 = vunpack.c.l.b16 %v8944
  %v9094 = vunpack.c.h.b16 %v8944
  %v9095 = vunpack.c.l.b16 %v8945
  %v9096 = vunpack.c.h.b16 %v8945
  %v9097 = vunpack.c.l.b16 %v8946
  %v9098 = vunpack.c.h.b16 %v8946
  %v9099 = vunpack.c.l.b16 %v8947
  %v9100 = vunpack.c.h.b16 %v8947
  %v9101 = vunpack.c.l.b16 %v8948
  %v9102 = vunpack.c.h.b16 %v8948
  %v9103 = vunpack.c.l.b16 %v8949
  %v9104 = vunpack.c.h.b16 %v8949
  %v9105 = vunpack.c.l.b16 %v8950
  %v9106 = vunpack.c.h.b16 %v8950
  %v9107 = vunpack.c.l.b16 %v8951
  %v9108 = vunpack.c.h.b16 %v8951
  %v9109 = vunpack.c.l.b16 %v8952
  %v9110 = vunpack.c.h.b16 %v8952
  %v9111 = vunpack.c.l.b16 %v8953
  %v9112 = vunpack.c.h.b16 %v8953
  %v9113 = vunpack.c.l.b16 %v8954
  %v9114 = vunpack.c.h.b16 %v8954
  %v9115 = vunpack.c.l.b16 %v8955
  %v9116 = vunpack.c.h.b16 %v8955
  %v9117 = vunpack.c.l.b16 %v8956
  %v9118 = vunpack.c.h.b16 %v8956
  %v9119 = vunpack.c.l.b16 %v8957
  %v9120 = vunpack.c.h.b16 %v8957
  %v9121 = vunpack.c.l.b16 %v8958
  %v9122 = vunpack.c.h.b16 %v8958
  %v9123 = vunpack.c.l.b16 %v8959
  %v9124 = vunpack.c.h.b16 %v8959
  %v9125 = vunpack.c.l.b16 %v8960
  %v9126 = vunpack.c.h.b16 %v8960
  %v9127 = vunpack.c.l.b16 %v8961
  %v9128 = vunpack.c.h.b16 %v8961
  %v9129 = vunpack.c.l.b16 %v8962
  %v9130 = vunpack.c.h.b16 %v8962
  %v9131 = vunpack.c.l.b16 %v8963
  %v9132 = vunpack.c.h.b16 %v8963
  %v9133 = vunpack.c.l.b16 %v8964
  %v9134 = vunpack.c.h.b16 %v8964
  %v9135 = vunpack.c.l.b16 %v8965
  %v9136 = vunpack.c.h.b16 %v8965
  %v9137 = vunpack.c.l.b16 %v8966
  %v9138 = vunpack.c.h.b16 %v8966
  %v9139 = vunpack.c.l.b16 %v8967
  %v9140 = vunpack.c.h.b16 %v8967
  %v9141 = vunpack.c.l.b16 %v8968
  %v9142 = vunpack.c.h.b16 %v8968
  %v9143 = vunpack.c.l.b16 %v8969
  %v9144 = vunpack.c.h.b16 %v8969
  %v9145 = vunpack.c.l.b16 %v8970
  %v9146 = vunpack.c.h.b16 %v8970
  %v9147 = vunpack.c.l.b16 %v8971
  %v9148 = vunpack.c.h.b16 %v8971
  %v9149 = vunpack.c.l.b16 %v8972
  %v9150 = vunpack.c.h.b16 %v8972
  %v9151 = vunpack.c.l.b16 %v8973
  %v9152 = vunpack.c.h.b16 %v8973
  %v9153 = vunpack.c.l.b16 %v8974
  %v9154 = vunpack.c.h.b16 %v8974
  %v9155 = vpack.c.b16 %v9075, %v9055
  %v9156 = vpack.c.b16 %v9076, %v9056
  %v9157 = vpack.c.b16 %v9077, %v9057
  %v9158 = vpack.c.b16 %v9078, %v9058
  %v9159 = vpack.c.b16 %v9079, %v9059
  %v9160 = vpack.c.b16 %v9080, %v9060
  %v9161 = vpack.c.b16 %v9081, %v9061
  %v9162 = vpack.c.b16 %v9082, %v9062
  %v9163 = vpack.c.b16 %v9083, %v9063
  %v9164 = vpack.c.b16 %v9084, %v9064
  %v9165 = vpack.c.b16 %v9085, %v9065
  %v9166 = vpack.c.b16 %v9086, %v9066
  %v9167 = vpack.c.b16 %v9087, %v9067
  %v9168 = vpack.c.b16 %v9088, %v9068
  %v9169 = vpack.c.b16 %v9089, %v9069
  %v9170 = vpack.c.b16 %v9090, %v9070
  %v9171 = vpack.c.b16 %v9091, %v9071
  %v9172 = vpack.c.b16 %v9092, %v9072
  %v9173 = vpack.c.b16 %v9093, %v9073
  %v9174 = vpack.c.b16 %v9094, %v9074
  %v9175 = vpack.c.b16 %v9115, %v9095
  %v9176 = vpack.c.b16 %v9116, %v9096
  %v9177 = vpack.c.b16 %v9117, %v9097
  %v9178 = vpack.c.b16 %v9118, %v9098
  %v9179 = vpack.c.b16 %v9119, %v9099
  %v9180 = vpack.c.b16 %v9120, %v9100
  %v9181 = vpack.c.b16 %v9121, %v9101
  %v9182 = vpack.c.b16 %v9122, %v9102
  %v9183 = vpack.c.b16 %v9123, %v9103
  %v9184 = vpack.c.b16 %v9124, %v9104
  %v9185 = vpack.c.b16 %v9125, %v9105
  %v9186 = vpack.c.b16 %v9126, %v9106
  %v9187 = vpack.c.b16 %v9127, %v9107
  %v9188 = vpack.c.b16 %v9128, %v9108
  %v9189 = vpack.c.b16 %v9129, %v9109
  %v9190 = vpack.c.b16 %v9130, %v9110
  %v9191 = vpack.c.b16 %v9131, %v9111
  %v9192 = vpack.c.b16 %v9132, %v9112
  %v9193 = vpack.c.b16 %v9133, %v9113
  %v9194 = vpack.c.b16 %v9134, %v9114
  %v9195 = vpack.c.b16 %v9135, %v9135
  %v9196 = vpack.c.b16 %v9136, %v9136
  %v9197 = vpack.c.b16 %v9137, %v9137
  %v9198 = vpack.c.b16 %v9138, %v9138
  %v9199 = vpack.c.b16 %v9139, %v9139
  %v9200 = vpack.c.b16 %v9140, %v9140
  %v9201 = vpack.c.b16 %v9141, %v9141
  %v9202 = vpack.c.b16 %v9142, %v9142
  %v9203 = vpack.c.b16 %v9143, %v9143
  %v9204 = vpack.c.b16 %v9144, %v9144
  %v9205 = vpack.c.b16 %v9145, %v9145
  %v9206 = vpack.c.b16 %v9146, %v9146
  %v9207 = vpack.c.b16 %v9147, %v9147
  %v9208 = vpack.c.b16 %v9148, %v9148
  %v9209 = vpack.c.b16 %v9149, %v9149
  %v9210 = vpack.c.b16 %v9150, %v9150
  %v9211 = vpack.c.b16 %v9151, %v9151
  %v9212 = vpack.c.b16 %v9152, %v9152
  %v9213 = vpack.c.b16 %v9153, %v9153
  %v9214 = vpack.c.b16 %v9154, %v9154
  %vm9272 = vcmask 719872
  %v9274 = vsel %vm9272, %v9174, 0
  %v9277 = vsel %vm9272, %v9194, 0
  %v9280 = vsel %vm9272, %v9214, 0
  %vm9282 = vcmask 1043456
  %v9284 = vsel %vm9282, %v8924, 0
  %9286 = vmatpush.bf16.msra.mxu0 %v8774
  %9287 = vmatpush.bf16.msra.mxu0 %v8773
  %9288 = vmatpush.bf16.msra.mxu0 %v8772
  %9289 = vmatpush.bf16.msra.mxu0 %v8771
  %9290 = vmatpush.bf16.msra.mxu0 %v8770
  %9291 = vmatpush.bf16.msra.mxu0 %v8769
  %9292 = vmatpush.bf16.msra.mxu0 %v8768
  %9293 = vmatpush.bf16.msra.mxu0 %v8767
  %9294 = vmatmul.bf16.gmra.mxu0 %v9155
  %v9295 = vpop.f32.mrf.mxu0
  %v9296 = vadd.f32 %v8983, %v9295
  %v9297 = vpop.f32.mrf.mxu0
  %v9298 = vadd.f32 %v8988, %v9297
  %9299 = vmatmul.bf16.gmra.mxu0 %v9175
  %v9300 = vpop.f32.mrf.mxu0
  %v9301 = vadd.f32 %v8993, %v9300
  %v9302 = vpop.f32.mrf.mxu0
  %v9303 = vadd.f32 %v8998, %v9302
  %9304 = vmatmul.bf16.gmra.mxu0 %v9195
  %v9305 = vpop.f32.mrf.mxu0
  %v9306 = vadd.f32 %v9003, %v9305
  %v9307 = vpop.f32.mrf.mxu0
  %9308 = vdwg.mxu0
  %9309 = vmatpush.bf16.msra.mxu0 %v8782
  %9310 = vmatpush.bf16.msra.mxu0 %v8781
  %9311 = vmatpush.bf16.msra.mxu0 %v8780
  %9312 = vmatpush.bf16.msra.mxu0 %v8779
  %9313 = vmatpush.bf16.msra.mxu0 %v8778
  %9314 = vmatpush.bf16.msra.mxu0 %v8777
  %9315 = vmatpush.bf16.msra.mxu0 %v8776
  %9316 = vmatpush.bf16.msra.mxu0 %v8775
  %9317 = vmatmul.bf16.gmra.mxu0 %v9156
  %v9318 = vpop.f32.mrf.mxu0
  %v9319 = vadd.f32 %v9296, %v9318
  %v9320 = vpop.f32.mrf.mxu0
  %v9321 = vadd.f32 %v9298, %v9320
  %9322 = vmatmul.bf16.gmra.mxu0 %v9176
  %v9323 = vpop.f32.mrf.mxu0
  %v9324 = vadd.f32 %v9301, %v9323
  %v9325 = vpop.f32.mrf.mxu0
  %v9326 = vadd.f32 %v9303, %v9325
  %9327 = vmatmul.bf16.gmra.mxu0 %v9196
  %v9328 = vpop.f32.mrf.mxu0
  %v9329 = vadd.f32 %v9306, %v9328
  %v9330 = vpop.f32.mrf.mxu0
  %9331 = vdwg.mxu0
  %9332 = vmatpush.bf16.msra.mxu0 %v8790
  %9333 = vmatpush.bf16.msra.mxu0 %v8789
  %9334 = vmatpush.bf16.msra.mxu0 %v8788
  %9335 = vmatpush.bf16.msra.mxu0 %v8787
  %9336 = vmatpush.bf16.msra.mxu0 %v8786
  %9337 = vmatpush.bf16.msra.mxu0 %v8785
  %9338 = vmatpush.bf16.msra.mxu0 %v8784
  %9339 = vmatpush.bf16.msra.mxu0 %v8783
  %9340 = vmatmul.bf16.gmra.mxu0 %v9157
  %v9341 = vpop.f32.mrf.mxu0
  %v9342 = vadd.f32 %v9319, %v9341
  %v9343 = vpop.f32.mrf.mxu0
  %v9344 = vadd.f32 %v9321, %v9343
  %9345 = vmatmul.bf16.gmra.mxu0 %v9177
  %v9346 = vpop.f32.mrf.mxu0
  %v9347 = vadd.f32 %v9324, %v9346
  %v9348 = vpop.f32.mrf.mxu0
  %v9349 = vadd.f32 %v9326, %v9348
  %9350 = vmatmul.bf16.gmra.mxu0 %v9197
  %v9351 = vpop.f32.mrf.mxu0
  %v9352 = vadd.f32 %v9329, %v9351
  %v9353 = vpop.f32.mrf.mxu0
  %9354 = vdwg.mxu0
  %9355 = vmatpush.bf16.msra.mxu0 %v8798
  %9356 = vmatpush.bf16.msra.mxu0 %v8797
  %9357 = vmatpush.bf16.msra.mxu0 %v8796
  %9358 = vmatpush.bf16.msra.mxu0 %v8795
  %9359 = vmatpush.bf16.msra.mxu0 %v8794
  %9360 = vmatpush.bf16.msra.mxu0 %v8793
  %9361 = vmatpush.bf16.msra.mxu0 %v8792
  %9362 = vmatpush.bf16.msra.mxu0 %v8791
  %9363 = vmatmul.bf16.gmra.mxu0 %v9158
  %v9364 = vpop.f32.mrf.mxu0
  %v9365 = vadd.f32 %v9342, %v9364
  %v9366 = vpop.f32.mrf.mxu0
  %v9367 = vadd.f32 %v9344, %v9366
  %9368 = vmatmul.bf16.gmra.mxu0 %v9178
  %v9369 = vpop.f32.mrf.mxu0
  %v9370 = vadd.f32 %v9347, %v9369
  %v9371 = vpop.f32.mrf.mxu0
  %v9372 = vadd.f32 %v9349, %v9371
  %9373 = vmatmul.bf16.gmra.mxu0 %v9198
  %v9374 = vpop.f32.mrf.mxu0
  %v9375 = vadd.f32 %v9352, %v9374
  %v9376 = vpop.f32.mrf.mxu0
  %9377 = vdwg.mxu0
  %9378 = vmatpush.bf16.msra.mxu0 %v8806
  %9379 = vmatpush.bf16.msra.mxu0 %v8805
  %9380 = vmatpush.bf16.msra.mxu0 %v8804
  %9381 = vmatpush.bf16.msra.mxu0 %v8803
  %9382 = vmatpush.bf16.msra.mxu0 %v8802
  %9383 = vmatpush.bf16.msra.mxu0 %v8801
  %9384 = vmatpush.bf16.msra.mxu0 %v8800
  %9385 = vmatpush.bf16.msra.mxu0 %v8799
  %9386 = vmatmul.bf16.gmra.mxu0 %v9159
  %v9387 = vpop.f32.mrf.mxu0
  %v9388 = vadd.f32 %v9365, %v9387
  %v9389 = vpop.f32.mrf.mxu0
  %v9390 = vadd.f32 %v9367, %v9389
  %9391 = vmatmul.bf16.gmra.mxu0 %v9179
  %v9392 = vpop.f32.mrf.mxu0
  %v9393 = vadd.f32 %v9370, %v9392
  %v9394 = vpop.f32.mrf.mxu0
  %v9395 = vadd.f32 %v9372, %v9394
  %9396 = vmatmul.bf16.gmra.mxu0 %v9199
  %v9397 = vpop.f32.mrf.mxu0
  %v9398 = vadd.f32 %v9375, %v9397
  %v9399 = vpop.f32.mrf.mxu0
  %9400 = vdwg.mxu0
  %9401 = vmatpush.bf16.msra.mxu0 %v8814
  %9402 = vmatpush.bf16.msra.mxu0 %v8813
  %9403 = vmatpush.bf16.msra.mxu0 %v8812
  %9404 = vmatpush.bf16.msra.mxu0 %v8811
  %9405 = vmatpush.bf16.msra.mxu0 %v8810
  %9406 = vmatpush.bf16.msra.mxu0 %v8809
  %9407 = vmatpush.bf16.msra.mxu0 %v8808
  %9408 = vmatpush.bf16.msra.mxu0 %v8807
  %9409 = vmatmul.bf16.gmra.mxu0 %v9160
  %v9410 = vpop.f32.mrf.mxu0
  %v9411 = vadd.f32 %v9388, %v9410
  %v9412 = vpop.f32.mrf.mxu0
  %v9413 = vadd.f32 %v9390, %v9412
  %9414 = vmatmul.bf16.gmra.mxu0 %v9180
  %v9415 = vpop.f32.mrf.mxu0
  %v9416 = vadd.f32 %v9393, %v9415
  %v9417 = vpop.f32.mrf.mxu0
  %v9418 = vadd.f32 %v9395, %v9417
  %9419 = vmatmul.bf16.gmra.mxu0 %v9200
  %v9420 = vpop.f32.mrf.mxu0
  %v9421 = vadd.f32 %v9398, %v9420
  %v9422 = vpop.f32.mrf.mxu0
  %9423 = vdwg.mxu0
  %9424 = vmatpush.bf16.msra.mxu0 %v8822
  %9425 = vmatpush.bf16.msra.mxu0 %v8821
  %9426 = vmatpush.bf16.msra.mxu0 %v8820
  %9427 = vmatpush.bf16.msra.mxu0 %v8819
  %9428 = vmatpush.bf16.msra.mxu0 %v8818
  %9429 = vmatpush.bf16.msra.mxu0 %v8817
  %9430 = vmatpush.bf16.msra.mxu0 %v8816
  %9431 = vmatpush.bf16.msra.mxu0 %v8815
  %9432 = vmatmul.bf16.gmra.mxu0 %v9161
  %v9433 = vpop.f32.mrf.mxu0
  %v9434 = vadd.f32 %v9411, %v9433
  %v9435 = vpop.f32.mrf.mxu0
  %v9436 = vadd.f32 %v9413, %v9435
  %9437 = vmatmul.bf16.gmra.mxu0 %v9181
  %v9438 = vpop.f32.mrf.mxu0
  %v9439 = vadd.f32 %v9416, %v9438
  %v9440 = vpop.f32.mrf.mxu0
  %v9441 = vadd.f32 %v9418, %v9440
  %9442 = vmatmul.bf16.gmra.mxu0 %v9201
  %v9443 = vpop.f32.mrf.mxu0
  %v9444 = vadd.f32 %v9421, %v9443
  %v9445 = vpop.f32.mrf.mxu0
  %9446 = vdwg.mxu0
  %9447 = vmatpush.bf16.msra.mxu0 %v8830
  %9448 = vmatpush.bf16.msra.mxu0 %v8829
  %9449 = vmatpush.bf16.msra.mxu0 %v8828
  %9450 = vmatpush.bf16.msra.mxu0 %v8827
  %9451 = vmatpush.bf16.msra.mxu0 %v8826
  %9452 = vmatpush.bf16.msra.mxu0 %v8825
  %9453 = vmatpush.bf16.msra.mxu0 %v8824
  %9454 = vmatpush.bf16.msra.mxu0 %v8823
  %9455 = vmatmul.bf16.gmra.mxu0 %v9162
  %v9456 = vpop.f32.mrf.mxu0
  %v9457 = vadd.f32 %v9434, %v9456
  %v9458 = vpop.f32.mrf.mxu0
  %v9459 = vadd.f32 %v9436, %v9458
  %9460 = vmatmul.bf16.gmra.mxu0 %v9182
  %v9461 = vpop.f32.mrf.mxu0
  %v9462 = vadd.f32 %v9439, %v9461
  %v9463 = vpop.f32.mrf.mxu0
  %v9464 = vadd.f32 %v9441, %v9463
  %9465 = vmatmul.bf16.gmra.mxu0 %v9202
  %v9466 = vpop.f32.mrf.mxu0
  %v9467 = vadd.f32 %v9444, %v9466
  %v9468 = vpop.f32.mrf.mxu0
  %9469 = vdwg.mxu0
  %9470 = vmatpush.bf16.msra.mxu0 %v8838
  %9471 = vmatpush.bf16.msra.mxu0 %v8837
  %9472 = vmatpush.bf16.msra.mxu0 %v8836
  %9473 = vmatpush.bf16.msra.mxu0 %v8835
  %9474 = vmatpush.bf16.msra.mxu0 %v8834
  %9475 = vmatpush.bf16.msra.mxu0 %v8833
  %9476 = vmatpush.bf16.msra.mxu0 %v8832
  %9477 = vmatpush.bf16.msra.mxu0 %v8831
  %9478 = vmatmul.bf16.gmra.mxu0 %v9163
  %v9479 = vpop.f32.mrf.mxu0
  %v9480 = vadd.f32 %v9457, %v9479
  %v9481 = vpop.f32.mrf.mxu0
  %v9482 = vadd.f32 %v9459, %v9481
  %9483 = vmatmul.bf16.gmra.mxu0 %v9183
  %v9484 = vpop.f32.mrf.mxu0
  %v9485 = vadd.f32 %v9462, %v9484
  %v9486 = vpop.f32.mrf.mxu0
  %v9487 = vadd.f32 %v9464, %v9486
  %9488 = vmatmul.bf16.gmra.mxu0 %v9203
  %v9489 = vpop.f32.mrf.mxu0
  %v9490 = vadd.f32 %v9467, %v9489
  %v9491 = vpop.f32.mrf.mxu0
  %9492 = vdwg.mxu0
  %9493 = vmatpush.bf16.msra.mxu0 %v8846
  %9494 = vmatpush.bf16.msra.mxu0 %v8845
  %9495 = vmatpush.bf16.msra.mxu0 %v8844
  %9496 = vmatpush.bf16.msra.mxu0 %v8843
  %9497 = vmatpush.bf16.msra.mxu0 %v8842
  %9498 = vmatpush.bf16.msra.mxu0 %v8841
  %9499 = vmatpush.bf16.msra.mxu0 %v8840
  %9500 = vmatpush.bf16.msra.mxu0 %v8839
  %9501 = vmatmul.bf16.gmra.mxu0 %v9164
  %v9502 = vpop.f32.mrf.mxu0
  %v9503 = vadd.f32 %v9480, %v9502
  %v9504 = vpop.f32.mrf.mxu0
  %v9505 = vadd.f32 %v9482, %v9504
  %9506 = vmatmul.bf16.gmra.mxu0 %v9184
  %v9507 = vpop.f32.mrf.mxu0
  %v9508 = vadd.f32 %v9485, %v9507
  %v9509 = vpop.f32.mrf.mxu0
  %v9510 = vadd.f32 %v9487, %v9509
  %9511 = vmatmul.bf16.gmra.mxu0 %v9204
  %v9512 = vpop.f32.mrf.mxu0
  %v9513 = vadd.f32 %v9490, %v9512
  %v9514 = vpop.f32.mrf.mxu0
  %9515 = vdwg.mxu0
  %9516 = vmatpush.bf16.msra.mxu0 %v8854
  %9517 = vmatpush.bf16.msra.mxu0 %v8853
  %9518 = vmatpush.bf16.msra.mxu0 %v8852
  %9519 = vmatpush.bf16.msra.mxu0 %v8851
  %9520 = vmatpush.bf16.msra.mxu0 %v8850
  %9521 = vmatpush.bf16.msra.mxu0 %v8849
  %9522 = vmatpush.bf16.msra.mxu0 %v8848
  %9523 = vmatpush.bf16.msra.mxu0 %v8847
  %9524 = vmatmul.bf16.gmra.mxu0 %v9165
  %v9525 = vpop.f32.mrf.mxu0
  %v9526 = vadd.f32 %v9503, %v9525
  %v9527 = vpop.f32.mrf.mxu0
  %v9528 = vadd.f32 %v9505, %v9527
  %9529 = vmatmul.bf16.gmra.mxu0 %v9185
  %v9530 = vpop.f32.mrf.mxu0
  %v9531 = vadd.f32 %v9508, %v9530
  %v9532 = vpop.f32.mrf.mxu0
  %v9533 = vadd.f32 %v9510, %v9532
  %9534 = vmatmul.bf16.gmra.mxu0 %v9205
  %v9535 = vpop.f32.mrf.mxu0
  %v9536 = vadd.f32 %v9513, %v9535
  %v9537 = vpop.f32.mrf.mxu0
  %9538 = vdwg.mxu0
  %9539 = vmatpush.bf16.msra.mxu0 %v8862
  %9540 = vmatpush.bf16.msra.mxu0 %v8861
  %9541 = vmatpush.bf16.msra.mxu0 %v8860
  %9542 = vmatpush.bf16.msra.mxu0 %v8859
  %9543 = vmatpush.bf16.msra.mxu0 %v8858
  %9544 = vmatpush.bf16.msra.mxu0 %v8857
  %9545 = vmatpush.bf16.msra.mxu0 %v8856
  %9546 = vmatpush.bf16.msra.mxu0 %v8855
  %9547 = vmatmul.bf16.gmra.mxu0 %v9166
  %v9548 = vpop.f32.mrf.mxu0
  %v9549 = vadd.f32 %v9526, %v9548
  %v9550 = vpop.f32.mrf.mxu0
  %v9551 = vadd.f32 %v9528, %v9550
  %9552 = vmatmul.bf16.gmra.mxu0 %v9186
  %v9553 = vpop.f32.mrf.mxu0
  %v9554 = vadd.f32 %v9531, %v9553
  %v9555 = vpop.f32.mrf.mxu0
  %v9556 = vadd.f32 %v9533, %v9555
  %9557 = vmatmul.bf16.gmra.mxu0 %v9206
  %v9558 = vpop.f32.mrf.mxu0
  %v9559 = vadd.f32 %v9536, %v9558
  %v9560 = vpop.f32.mrf.mxu0
  %9561 = vdwg.mxu0
  %9562 = vmatpush.bf16.msra.mxu0 %v8870
  %9563 = vmatpush.bf16.msra.mxu0 %v8869
  %9564 = vmatpush.bf16.msra.mxu0 %v8868
  %9565 = vmatpush.bf16.msra.mxu0 %v8867
  %9566 = vmatpush.bf16.msra.mxu0 %v8866
  %9567 = vmatpush.bf16.msra.mxu0 %v8865
  %9568 = vmatpush.bf16.msra.mxu0 %v8864
  %9569 = vmatpush.bf16.msra.mxu0 %v8863
  %9570 = vmatmul.bf16.gmra.mxu0 %v9167
  %v9571 = vpop.f32.mrf.mxu0
  %v9572 = vadd.f32 %v9549, %v9571
  %v9573 = vpop.f32.mrf.mxu0
  %v9574 = vadd.f32 %v9551, %v9573
  %9575 = vmatmul.bf16.gmra.mxu0 %v9187
  %v9576 = vpop.f32.mrf.mxu0
  %v9577 = vadd.f32 %v9554, %v9576
  %v9578 = vpop.f32.mrf.mxu0
  %v9579 = vadd.f32 %v9556, %v9578
  %9580 = vmatmul.bf16.gmra.mxu0 %v9207
  %v9581 = vpop.f32.mrf.mxu0
  %v9582 = vadd.f32 %v9559, %v9581
  %v9583 = vpop.f32.mrf.mxu0
  %9584 = vdwg.mxu0
  %9585 = vmatpush.bf16.msra.mxu0 %v8878
  %9586 = vmatpush.bf16.msra.mxu0 %v8877
  %9587 = vmatpush.bf16.msra.mxu0 %v8876
  %9588 = vmatpush.bf16.msra.mxu0 %v8875
  %9589 = vmatpush.bf16.msra.mxu0 %v8874
  %9590 = vmatpush.bf16.msra.mxu0 %v8873
  %9591 = vmatpush.bf16.msra.mxu0 %v8872
  %9592 = vmatpush.bf16.msra.mxu0 %v8871
  %9593 = vmatmul.bf16.gmra.mxu0 %v9168
  %v9594 = vpop.f32.mrf.mxu0
  %v9595 = vadd.f32 %v9572, %v9594
  %v9596 = vpop.f32.mrf.mxu0
  %v9597 = vadd.f32 %v9574, %v9596
  %9598 = vmatmul.bf16.gmra.mxu0 %v9188
  %v9599 = vpop.f32.mrf.mxu0
  %v9600 = vadd.f32 %v9577, %v9599
  %v9601 = vpop.f32.mrf.mxu0
  %v9602 = vadd.f32 %v9579, %v9601
  %9603 = vmatmul.bf16.gmra.mxu0 %v9208
  %v9604 = vpop.f32.mrf.mxu0
  %v9605 = vadd.f32 %v9582, %v9604
  %v9606 = vpop.f32.mrf.mxu0
  %9607 = vdwg.mxu0
  %9608 = vmatpush.bf16.msra.mxu0 %v8886
  %9609 = vmatpush.bf16.msra.mxu0 %v8885
  %9610 = vmatpush.bf16.msra.mxu0 %v8884
  %9611 = vmatpush.bf16.msra.mxu0 %v8883
  %9612 = vmatpush.bf16.msra.mxu0 %v8882
  %9613 = vmatpush.bf16.msra.mxu0 %v8881
  %9614 = vmatpush.bf16.msra.mxu0 %v8880
  %9615 = vmatpush.bf16.msra.mxu0 %v8879
  %9616 = vmatmul.bf16.gmra.mxu0 %v9169
  %v9617 = vpop.f32.mrf.mxu0
  %v9618 = vadd.f32 %v9595, %v9617
  %v9619 = vpop.f32.mrf.mxu0
  %v9620 = vadd.f32 %v9597, %v9619
  %9621 = vmatmul.bf16.gmra.mxu0 %v9189
  %v9622 = vpop.f32.mrf.mxu0
  %v9623 = vadd.f32 %v9600, %v9622
  %v9624 = vpop.f32.mrf.mxu0
  %v9625 = vadd.f32 %v9602, %v9624
  %9626 = vmatmul.bf16.gmra.mxu0 %v9209
  %v9627 = vpop.f32.mrf.mxu0
  %v9628 = vadd.f32 %v9605, %v9627
  %v9629 = vpop.f32.mrf.mxu0
  %9630 = vdwg.mxu0
  %9631 = vmatpush.bf16.msra.mxu0 %v8894
  %9632 = vmatpush.bf16.msra.mxu0 %v8893
  %9633 = vmatpush.bf16.msra.mxu0 %v8892
  %9634 = vmatpush.bf16.msra.mxu0 %v8891
  %9635 = vmatpush.bf16.msra.mxu0 %v8890
  %9636 = vmatpush.bf16.msra.mxu0 %v8889
  %9637 = vmatpush.bf16.msra.mxu0 %v8888
  %9638 = vmatpush.bf16.msra.mxu0 %v8887
  %9639 = vmatmul.bf16.gmra.mxu0 %v9170
  %v9640 = vpop.f32.mrf.mxu0
  %v9641 = vadd.f32 %v9618, %v9640
  %v9642 = vpop.f32.mrf.mxu0
  %v9643 = vadd.f32 %v9620, %v9642
  %9644 = vmatmul.bf16.gmra.mxu0 %v9190
  %v9645 = vpop.f32.mrf.mxu0
  %v9646 = vadd.f32 %v9623, %v9645
  %v9647 = vpop.f32.mrf.mxu0
  %v9648 = vadd.f32 %v9625, %v9647
  %9649 = vmatmul.bf16.gmra.mxu0 %v9210
  %v9650 = vpop.f32.mrf.mxu0
  %v9651 = vadd.f32 %v9628, %v9650
  %v9652 = vpop.f32.mrf.mxu0
  %9653 = vdwg.mxu0
  %9654 = vmatpush.bf16.msra.mxu0 %v8902
  %9655 = vmatpush.bf16.msra.mxu0 %v8901
  %9656 = vmatpush.bf16.msra.mxu0 %v8900
  %9657 = vmatpush.bf16.msra.mxu0 %v8899
  %9658 = vmatpush.bf16.msra.mxu0 %v8898
  %9659 = vmatpush.bf16.msra.mxu0 %v8897
  %9660 = vmatpush.bf16.msra.mxu0 %v8896
  %9661 = vmatpush.bf16.msra.mxu0 %v8895
  %9662 = vmatmul.bf16.gmra.mxu0 %v9171
  %v9663 = vpop.f32.mrf.mxu0
  %v9664 = vadd.f32 %v9641, %v9663
  %v9665 = vpop.f32.mrf.mxu0
  %v9666 = vadd.f32 %v9643, %v9665
  %9667 = vmatmul.bf16.gmra.mxu0 %v9191
  %v9668 = vpop.f32.mrf.mxu0
  %v9669 = vadd.f32 %v9646, %v9668
  %v9670 = vpop.f32.mrf.mxu0
  %v9671 = vadd.f32 %v9648, %v9670
  %9672 = vmatmul.bf16.gmra.mxu0 %v9211
  %v9673 = vpop.f32.mrf.mxu0
  %v9674 = vadd.f32 %v9651, %v9673
  %v9675 = vpop.f32.mrf.mxu0
  %9676 = vdwg.mxu0
  %9677 = vmatpush.bf16.msra.mxu0 %v8910
  %9678 = vmatpush.bf16.msra.mxu0 %v8909
  %9679 = vmatpush.bf16.msra.mxu0 %v8908
  %9680 = vmatpush.bf16.msra.mxu0 %v8907
  %9681 = vmatpush.bf16.msra.mxu0 %v8906
  %9682 = vmatpush.bf16.msra.mxu0 %v8905
  %9683 = vmatpush.bf16.msra.mxu0 %v8904
  %9684 = vmatpush.bf16.msra.mxu0 %v8903
  %9685 = vmatmul.bf16.gmra.mxu0 %v9172
  %v9686 = vpop.f32.mrf.mxu0
  %v9687 = vadd.f32 %v9664, %v9686
  %v9688 = vpop.f32.mrf.mxu0
  %v9689 = vadd.f32 %v9666, %v9688
  %9690 = vmatmul.bf16.gmra.mxu0 %v9192
  %v9691 = vpop.f32.mrf.mxu0
  %v9692 = vadd.f32 %v9669, %v9691
  %v9693 = vpop.f32.mrf.mxu0
  %v9694 = vadd.f32 %v9671, %v9693
  %9695 = vmatmul.bf16.gmra.mxu0 %v9212
  %v9696 = vpop.f32.mrf.mxu0
  %v9697 = vadd.f32 %v9674, %v9696
  %v9698 = vpop.f32.mrf.mxu0
  %9699 = vdwg.mxu0
  %9700 = vmatpush.bf16.msra.mxu0 %v8918
  %9701 = vmatpush.bf16.msra.mxu0 %v8917
  %9702 = vmatpush.bf16.msra.mxu0 %v8916
  %9703 = vmatpush.bf16.msra.mxu0 %v8915
  %9704 = vmatpush.bf16.msra.mxu0 %v8914
  %9705 = vmatpush.bf16.msra.mxu0 %v8913
  %9706 = vmatpush.bf16.msra.mxu0 %v8912
  %9707 = vmatpush.bf16.msra.mxu0 %v8911
  %9708 = vmatmul.bf16.gmra.mxu0 %v9173
  %v9709 = vpop.f32.mrf.mxu0
  %v9710 = vadd.f32 %v9687, %v9709
  %v9711 = vpop.f32.mrf.mxu0
  %v9712 = vadd.f32 %v9689, %v9711
  %9713 = vmatmul.bf16.gmra.mxu0 %v9193
  %v9714 = vpop.f32.mrf.mxu0
  %v9715 = vadd.f32 %v9692, %v9714
  %v9716 = vpop.f32.mrf.mxu0
  %v9717 = vadd.f32 %v9694, %v9716
  %9718 = vmatmul.bf16.gmra.mxu0 %v9213
  %v9719 = vpop.f32.mrf.mxu0
  %v9720 = vadd.f32 %v9697, %v9719
  %v9721 = vpop.f32.mrf.mxu0
  %9722 = vdwg.mxu0
  %9723 = vmatpush.bf16.msra.mxu0 0
  %9724 = vmatpush.bf16.msra.mxu0 0
  %9725 = vmatpush.bf16.msra.mxu0 %v9284
  %9726 = vmatpush.bf16.msra.mxu0 %v8923
  %9727 = vmatpush.bf16.msra.mxu0 %v8922
  %9728 = vmatpush.bf16.msra.mxu0 %v8921
  %9729 = vmatpush.bf16.msra.mxu0 %v8920
  %9730 = vmatpush.bf16.msra.mxu0 %v8919
  %9731 = vmatmul.bf16.gmra.mxu0 %v9274
  %v9732 = vpop.f32.mrf.mxu0
  %v9733 = vadd.f32 %v9710, %v9732
  %v9734 = vpop.f32.mrf.mxu0
  %v9735 = vadd.f32 %v9712, %v9734
  %9736 = vmatmul.bf16.gmra.mxu0 %v9277
  %v9737 = vpop.f32.mrf.mxu0
  %v9738 = vadd.f32 %v9715, %v9737
  %v9739 = vpop.f32.mrf.mxu0
  %v9740 = vadd.f32 %v9717, %v9739
  %9741 = vmatmul.bf16.gmra.mxu0 %v9280
  %v9742 = vpop.f32.mrf.mxu0
  %v9743 = vadd.f32 %v9720, %v9742
  %v9744 = vpop.f32.mrf.mxu0
  %9745 = vdwg.mxu0
  %v9746 = vmin.f32 %v9733, 0.0
  %v9747 = vmin.f32 %v9735, 0.0
  %v9748 = vmin.f32 %v9738, 0.0
  %v9749 = vmin.f32 %v9740, 0.0
  %v9750 = vmin.f32 %v9743, 0.0
  %v9751 = vmul.f32 %v9746, 1.442695
  %v9752 = vpow.pop %v9751
  %v9753 = vmul.f32 %v9747, 1.442695
  %v9754 = vpow.pop %v9753
  %v9755 = vmul.f32 %v9748, 1.442695
  %v9756 = vpow.pop %v9755
  %v9757 = vmul.f32 %v9749, 1.442695
  %v9758 = vpow.pop %v9757
  %v9759 = vmul.f32 %v9750, 1.442695
  %v9760 = vpow.pop %v9759
  %v9761 = vsub.f32 %v9752, 1.0
  %v9762 = vsub.f32 %v9754, 1.0
  %v9763 = vsub.f32 %v9756, 1.0
  %v9764 = vsub.f32 %v9758, 1.0
  %v9765 = vsub.f32 %v9760, 1.0
  %v9766 = vmax.f32 %v9733, %v9761
  %v9767 = vmax.f32 %v9735, %v9762
  %v9768 = vmax.f32 %v9738, %v9763
  %v9769 = vmax.f32 %v9740, %v9764
  %v9770 = vmax.f32 %v9743, %v9765
  %v9771 = vld [vmem:[%s5] sm:$0xf]
  %v9772 = vld [vmem:[%s5 + $0x4] sm:$0xf]
  %v9773 = vld [vmem:[%s5 + $0x8] sm:$0xf]
  %v9774 = vld [vmem:[%s5 + $0xc] sm:$0xf]
  %v9775 = vld [vmem:[%s5 + $0x10] sm:$0xf]
  %v9776 = vpack.c.bf16 %v9767, %v9766
  %v9777 = vpack.c.bf16 %v9769, %v9768
  %v9778 = vpack.c.bf16 %v9770, %v9770
  %v9779 = vld [vmem:[%s6] sm:$0xff]
  %v9780 = vld [vmem:[%s6 + $0x8] sm:$0xff]
  %v9781 = vld [vmem:[%s6 + $0x10] sm:$0xff]
  %v9782 = vld [vmem:[%s6 + $0x18] sm:$0xff]
  %v9783 = vld [vmem:[%s6 + $0x20] sm:$0xff]
  %9785 = vset.pattern.permute.xlu0 0
  %9786 = vperm.xlu0 %9785, %v9779
  %v9787 = vpop.permute.xlu0 %9786
  %9790 = vset.pattern.permute.xlu0 0
  %9791 = vperm.xlu0 %9790, %v9780
  %v9792 = vpop.permute.xlu0 %9791
  %9795 = vset.pattern.permute.xlu0 0
  %9796 = vperm.xlu0 %9795, %v9781
  %v9797 = vpop.permute.xlu0 %9796
  %9800 = vset.pattern.permute.xlu0 0
  %9801 = vperm.xlu0 %9800, %v9782
  %v9802 = vpop.permute.xlu0 %9801
  %9805 = vset.pattern.permute.xlu0 0
  %9806 = vperm.xlu0 %9805, %v9783
  %v9807 = vpop.permute.xlu0 %9806
  %v9814 = vunpack.c.l.b16 %v9771
  %v9815 = vunpack.c.l.b16 %v9772
  %v9816 = vunpack.c.l.b16 %v9773
  %v9817 = vunpack.c.l.b16 %v9774
  %v9818 = vunpack.c.l.b16 %v9775
  %v9819 = vpack.c.b16 %v9815, %v9814
  %v9820 = vpack.c.b16 %v9817, %v9816
  %v9821 = vpack.c.b16 %v9818, %v9818
  %vm9822 = vcmask 326656
  %v9824 = vsel %vm9822, %v9819, 0
  %v9827 = vsel %vm9822, %v9820, 0
  %v9830 = vsel %vm9822, %v9821, 0
  %v9833 = vsel %vm9282, %v9778, 0
  %9835 = vmatpush.bf16.msra.mxu0 0
  %9836 = vmatpush.bf16.msra.mxu0 0
  %9837 = vmatpush.bf16.msra.mxu0 0
  %9838 = vmatpush.bf16.msra.mxu0 0
  %9839 = vmatpush.bf16.msra.mxu0 0
  %9840 = vmatpush.bf16.msra.mxu0 %v9833
  %9841 = vmatpush.bf16.msra.mxu0 %v9777
  %9842 = vmatpush.bf16.msra.mxu0 %v9776
  %9843 = vmatmul.bf16.gmra.mxu0 %v9824
  %v9844 = vpop.f32.mrf.mxu0
  %v9845 = vadd.f32 %v9787, %v9844
  %v9846 = vpop.f32.mrf.mxu0
  %v9847 = vadd.f32 %v9792, %v9846
  %9848 = vmatmul.bf16.gmra.mxu0 %v9827
  %v9849 = vpop.f32.mrf.mxu0
  %v9850 = vadd.f32 %v9797, %v9849
  %v9851 = vpop.f32.mrf.mxu0
  %v9852 = vadd.f32 %v9802, %v9851
  %9853 = vmatmul.bf16.gmra.mxu0 %v9830
  %v9854 = vpop.f32.mrf.mxu0
  %v9855 = vadd.f32 %v9807, %v9854
  %v9856 = vpop.f32.mrf.mxu0
  %9857 = vdwg.mxu0
  %9858 = vst [vmem:[%s7] sm:$0xff] %v9845
  %9859 = vst [vmem:[%s7 + $0x8] sm:$0xff] %v9847
  %9860 = vst [vmem:[%s7 + $0x10] sm:$0xff] %v9850
  %9861 = vst [vmem:[%s7 + $0x18] sm:$0xff] %v9852
  %9862 = vst [vmem:[%s7 + $0x20] sm:$0xff] %v9855
  // Predicated region
  $region30: #{_lambda_.1} parent=0 // pred_check
    _
  $region31: #{_lambda_.1} parent=0 // pred_check_branch
    %9864 = sbr.rel (0) target = $region33
  $region32: #{_lambda_.1} parent=0 // pred_region
    _
  $region33: #{_lambda_.1} parent=0 // pred_fallthru
    _
  // Predicated region
  $region34: #{_lambda_.1} parent=0 // pred_check
    _
  $region35: #{_lambda_.1} parent=0 // pred_check_branch
    %9866 = sbr.rel (0) target = $region37
  $region36: #{_lambda_.1} parent=0 // pred_region
    _
  $region37: #{_lambda_.1} parent=0 // pred_fallthru
    _

</llo_original>
